<compile_context>
chip_gen: v7x
topology: tpu7x:2x2x1
jax: 0.10.0
libtpu: 0.0.40
codegen_flags: <defaults>
</compile_context>

<pallas_src>
import functools

import jax
import jax.numpy as jnp
from jax.experimental import pallas as pl
from jax.experimental.pallas import tpu as pltpu

EPS = 1e-12  # same eps as torch.nn.functional.normalize
_HP = jax.lax.Precision.HIGHEST


def _vmem_capacity_bytes():
    """Physical VMEM per core (used for tile sizing / scoped-vmem limit)."""
    try:
        return int(pltpu.get_tpu_info().vmem_capacity_bytes)
    except Exception:
        pass
    try:
        kind = jax.devices()[0].device_kind.lower()
        if any(tag in kind for tag in ("v4", "v5", "v6")):
            return 128 * 1024 * 1024
    except Exception:
        pass
    return 64 * 1024 * 1024  # conservative: v7x physical VMEM


_VMEM_CAP = _vmem_capacity_bytes()
_VMEM_LIMIT = min(_VMEM_CAP - 16 * 1024 * 1024, 100 * 1024 * 1024)


def _pick_tile_n(n, f, kd, tile_n):
    """Batch tile: multiple of 8, VMEM-budget aware, >=2 grid steps when possible."""
    n8 = (n + 7) // 8 * 8
    if tile_n is None:
        # per-row VMEM ~ double-buffered x & out tiles + ~3 live (KD,) f32 temps
        row_bytes = 4 * (2 * f + 2 * kd + 3 * kd)
        cap = max(8, int(0.6 * _VMEM_LIMIT) // max(row_bytes, 1))
        hard_cap = 2048 if _VMEM_LIMIT >= 80 * 1024 * 1024 else 1024
        tile_n = min(hard_cap, cap)
    tile_n = max(8, (min(int(tile_n), n8) // 8) * 8)
    if n8 > 8:
        # keep >=2 grid steps so the "parallel" batch axis can use both TCs (v7x)
        half = ((n8 // 2) + 7) // 8 * 8
        tile_n = min(tile_n, half)
    return tile_n


def writer_netvlad_kernel(x_ref, fcwt_ref, fcb_ref, convwt_ref, convb_ref,
                          centt_ref, centsq_ref, centflat_ref,
                          tilemat_ref, expmat_ref, out_ref):
    """One batch tile of the WriterModelFC forward, fully in VMEM."""
    # ---- fc1: y = x @ W^T + b (weights pre-transposed; no in-kernel .T) ----
    y = jnp.dot(x_ref[...], fcwt_ref[...],
                preferred_element_type=jnp.float32, precision=_HP)
    y = y + fcb_ref[...]                                             # (tN, D)

    # ---- F.normalize(y, p=2, dim=1): rsqrt(max(sumsq, eps^2)) == 1/max(||y||,eps)
    y = y * jax.lax.rsqrt(
        jnp.maximum(jnp.sum(y * y, axis=-1, keepdims=True), EPS * EPS))
    ysq = jnp.sum(y * y, axis=-1, keepdims=True)                     # (tN, 1)

    # ---- soft assignment: 1x1 conv == linear, softmax over clusters --------
    logits = jnp.dot(y, convwt_ref[...],
                     preferred_element_type=jnp.float32, precision=_HP)
    logits = logits + convb_ref[...]                                 # (tN, K)
    e = jnp.exp(logits - jnp.max(logits, axis=-1, keepdims=True))
    a = e / jnp.sum(e, axis=-1, keepdims=True)                       # (tN, K)

    # ---- per-(n,k) coefficients on small tensors ----------------------------
    # ||y - c_k||^2 via expansion (clamped >= 0 against cancellation).
    yc = jnp.dot(y, centt_ref[...],
                 preferred_element_type=jnp.float32, precision=_HP)  # (tN, K)
    d2 = jnp.maximum(ysq - 2.0 * yc + centsq_ref[...], 0.0)          # (tN, K)
    blk_sq = (a * a) * d2                       # ||a*(y - c_k)||^2 per block
    ci = a * jax.lax.rsqrt(jnp.maximum(blk_sq, EPS * EPS))           # intra-norm coeff
    gsq = jnp.sum((ci * ci) * d2, axis=-1, keepdims=True)            # global sumsq
    coeff = ci * jax.lax.rsqrt(jnp.maximum(gsq, EPS * EPS))          # (tN, K)

    # ---- expand to lane-dense (tN, K*D) with two tiny 0/1 MXU matmuls ------
    y_tiled = jnp.dot(y, tilemat_ref[...],
                      preferred_element_type=jnp.float32, precision=_HP)
    coeff_e = jnp.dot(coeff, expmat_ref[...],
                      preferred_element_type=jnp.float32, precision=_HP)

    # ---- ONE subtract + ONE multiply over the big tensor, then store -------
    out_ref[...] = (coeff_e * (y_tiled - centflat_ref[...])).astype(out_ref.dtype)


@functools.partial(jax.jit, static_argnames=("tile_n", "out_dtype"))
def writer_model_fc(x, fc_w, fc_b, conv_w, conv_b, centroids, *,
                    tile_n=None, out_dtype=jnp.float32):
    N, F_ = x.shape
    K, D = centroids.shape
    KD = K * D

    tile_n = _pick_tile_n(N, F_, KD, tile_n)
    n_pad = pl.cdiv(N, tile_n) * tile_n
    if n_pad != N:
        x = jnp.pad(x, ((0, n_pad - N), (0, 0)))

    # One-time wrapper-side preprocessing (plain XLA ops).
    fc_wt = fc_w.T                                    # (F, D)
    conv_wt = conv_w.T                                # (D, K)
    cent_t = centroids.T                              # (D, K)
    fc_b2 = fc_b.reshape(1, D)
    conv_b2 = conv_b.reshape(1, K)
    cent_flat = centroids.reshape(1, KD)              # lane-dense centroids
    cent_sq = jnp.sum(centroids * centroids, axis=1).reshape(1, K)

    # 0/1 expansion matrices for the flattened layout: lane j = k*D + d.
    lane_k = jnp.arange(KD, dtype=jnp.int32) // D
    lane_d = jnp.arange(KD, dtype=jnp.int32) % D
    tile_mat = (jnp.arange(D, dtype=jnp.int32)[:, None] == lane_d[None, :]
                ).astype(jnp.float32)                 # (D, KD): y -> y tiled K times
    exp_mat = (jnp.arange(K, dtype=jnp.int32)[:, None] == lane_k[None, :]
               ).astype(jnp.float32)                  # (K, KD): coeff -> per-lane coeff

    out = pl.pallas_call(
        writer_netvlad_kernel,
        out_shape=jax.ShapeDtypeStruct((n_pad, KD), out_dtype),
        grid_spec=pltpu.PrefetchScalarGridSpec(
            num_scalar_prefetch=0,
            grid=(n_pad // tile_n,),
            in_specs=[
                pl.BlockSpec((tile_n, F_), lambda i: (i, 0)),  # x: batch-tiled
                pl.BlockSpec((F_, D), lambda i: (0, 0)),       # fc_wT      (resident)
                pl.BlockSpec((1, D), lambda i: (0, 0)),        # fc_b       (resident)
                pl.BlockSpec((D, K), lambda i: (0, 0)),        # conv_wT    (resident)
                pl.BlockSpec((1, K), lambda i: (0, 0)),        # conv_b     (resident)
                pl.BlockSpec((D, K), lambda i: (0, 0)),        # centroids^T
                pl.BlockSpec((1, K), lambda i: (0, 0)),        # ||c_k||^2
                pl.BlockSpec((1, KD), lambda i: (0, 0)),       # centroids flat
                pl.BlockSpec((D, KD), lambda i: (0, 0)),       # tile matrix
                pl.BlockSpec((K, KD), lambda i: (0, 0)),       # expand matrix
            ],
            out_specs=pl.BlockSpec((tile_n, KD), lambda i: (i, 0)),
        ),
        compiler_params=pltpu.CompilerParams(
            dimension_semantics=("parallel",),       # dual-TC sharding on v7x
            vmem_limit_bytes=_VMEM_LIMIT,
        ),
    )(x, fc_wt, fc_b2, conv_wt, conv_b2,
      cent_t, cent_sq, cent_flat, tile_mat, exp_mat)

    return out[:N]


def reference_jax(x, fc_w, fc_b, conv_w, conv_b, centroids):
    """Pure-JAX reference mirroring the PyTorch math exactly (both normalizes)."""
    y = jnp.dot(x, fc_w.T, precision=_HP) + fc_b
    y = y / jnp.maximum(jnp.linalg.norm(y, axis=-1, keepdims=True), EPS)
    logits = jnp.dot(y, conv_w.T, precision=_HP) + conv_b
    a = jax.nn.softmax(logits, axis=-1)
    vlad = a[:, :, None] * (y[:, None, :] - centroids[None, :, :])
    vlad = vlad / jnp.maximum(
        jnp.linalg.norm(vlad, axis=-1, keepdims=True), EPS)
    flat = vlad.reshape(x.shape[0], -1)
    flat = flat / jnp.maximum(
        jnp.linalg.norm(flat, axis=-1, keepdims=True), EPS)
    flat = flat / jnp.maximum(
        jnp.linalg.norm(flat, axis=-1, keepdims=True), EPS)
    return flat


if __name__ == "__main__":
    # Small shapes consistent with the module (features -> dim -> clusters).
    # K*D = 1024 is a multiple of 128 -> fully lane-dense, unmasked output slab.
    N, F, D, K = 16, 128, 64, 16
    ALPHA = 100.0

    key = jax.random.PRNGKey(0)
    k_x, k_c = jax.random.split(key)

    # Input "normalized_enc": (N, F)
    x = jax.random.normal(k_x, (N, F), dtype=jnp.float32)

    # fc1: eye_ init on weight, zero bias (as in WriterModelFC._init_params)
    fc_w = jnp.eye(D, F, dtype=jnp.float32)               # (D, F)
    fc_b = jnp.zeros((D,), dtype=jnp.float32)

    # NetVLAD params: centroids ~ U[0,1); conv derived from centroids
    centroids = jax.random.uniform(k_c, (K, D), dtype=jnp.float32)
    conv_w = 2.0 * ALPHA * centroids                       # (K, D) (1x1 conv weight)
    conv_b = -ALPHA * jnp.linalg.norm(centroids, axis=1)   # (K,)

    # Default tile selection -> tile_n=8, grid=2 here (exercises the pipelined
    # multi-tile path and the ">=2 grid steps" dual-TC sizing logic).
    out = writer_model_fc(x, fc_w, fc_b, conv_w, conv_b, centroids)
    out = jax.block_until_ready(out)

    ref = reference_jax(x, fc_w, fc_b, conv_w, conv_b, centroids)
    assert out.shape == (N, K * D)
    assert jnp.allclose(out, ref, atol=1e-5, rtol=1e-5), float(
        jnp.max(jnp.abs(out - ref)))

    # Robustness: a non-multiple-of-8 tile request must be clamped to a legal block.
    out2 = writer_model_fc(x, fc_w, fc_b, conv_w, conv_b, centroids, tile_n=12)
    out2 = jax.block_until_ready(out2)
    assert jnp.allclose(out2, ref, atol=1e-5, rtol=1e-5)

    print("KERNEL_OK")
</pallas_src>

<mosaic_0001>
module attributes {stable_mosaic.version = 11 : i64} {
  func.func @writer_netvlad_kernel(%arg0: i32, %arg1: memref<8x128xf32, #tpu.memory_space<vmem>>, %arg2: memref<128x64xf32, #tpu.memory_space<vmem>>, %arg3: memref<1x64xf32, #tpu.memory_space<vmem>>, %arg4: memref<64x16xf32, #tpu.memory_space<vmem>>, %arg5: memref<1x16xf32, #tpu.memory_space<vmem>>, %arg6: memref<64x16xf32, #tpu.memory_space<vmem>>, %arg7: memref<1x16xf32, #tpu.memory_space<vmem>>, %arg8: memref<1x1024xf32, #tpu.memory_space<vmem>>, %arg9: memref<64x1024xf32, #tpu.memory_space<vmem>>, %arg10: memref<16x1024xf32, #tpu.memory_space<vmem>>, %arg11: memref<8x1024xf32, #tpu.memory_space<vmem>>) attributes {dimension_semantics = [#tpu.dimension_semantics<parallel>], iteration_bounds = array<i64: 2>, scalar_prefetch = 0 : i64, scratch_operands = 0 : i64, tpu.core_type = #tpu.core_type<tc>, window_params = [{transform_indices = @transform_0, window_bounds = array<i64: 8, 128>}, {pipeline_mode = #tpu.pipeline_mode<synchronous>, transform_indices = @transform_1, window_bounds = array<i64: 128, 64>}, {pipeline_mode = #tpu.pipeline_mode<synchronous>, transform_indices = @transform_2, window_bounds = array<i64: 1, 64>}, {pipeline_mode = #tpu.pipeline_mode<synchronous>, transform_indices = @transform_3, window_bounds = array<i64: 64, 16>}, {pipeline_mode = #tpu.pipeline_mode<synchronous>, transform_indices = @transform_4, window_bounds = array<i64: 1, 16>}, {pipeline_mode = #tpu.pipeline_mode<synchronous>, transform_indices = @transform_5, window_bounds = array<i64: 64, 16>}, {pipeline_mode = #tpu.pipeline_mode<synchronous>, transform_indices = @transform_6, window_bounds = array<i64: 1, 16>}, {pipeline_mode = #tpu.pipeline_mode<synchronous>, transform_indices = @transform_7, window_bounds = array<i64: 1, 1024>}, {pipeline_mode = #tpu.pipeline_mode<synchronous>, transform_indices = @transform_8, window_bounds = array<i64: 64, 1024>}, {pipeline_mode = #tpu.pipeline_mode<synchronous>, transform_indices = @transform_9, window_bounds = array<i64: 16, 1024>}, {transform_indices = @transform_10, window_bounds = array<i64: 8, 1024>}]} {
    %c0 = arith.constant 0 : index
    %c0_0 = arith.constant 0 : index
    %0 = vector.load %arg1[%c0, %c0_0] : memref<8x128xf32, #tpu.memory_space<vmem>>, vector<8x128xf32>
    %c0_1 = arith.constant 0 : index
    %c0_2 = arith.constant 0 : index
    %1 = vector.load %arg2[%c0_1, %c0_2] : memref<128x64xf32, #tpu.memory_space<vmem>>, vector<128x64xf32>
    %cst = arith.constant dense<0.000000e+00> : vector<8x64xf32>
    %2 = tpu.matmul %0, %1, %cst {dimension_numbers = #tpu.dot_dimension_numbers<[1], [0], [0], [1], [0, 0, 1, 1], [], []>, precision = #tpu.contract_precision<fp32>} : vector<8x128xf32>, vector<128x64xf32>, vector<8x64xf32> -> vector<8x64xf32>
    %c0_3 = arith.constant 0 : index
    %c0_4 = arith.constant 0 : index
    %3 = vector.load %arg3[%c0_3, %c0_4] : memref<1x64xf32, #tpu.memory_space<vmem>>, vector<1x64xf32>
    %4 = vector.broadcast %3 : vector<1x64xf32> to vector<8x64xf32>
    %5 = arith.addf %2, %4 : vector<8x64xf32>
    %6 = arith.mulf %5, %5 : vector<8x64xf32>
    %cst_5 = arith.constant dense<0.000000e+00> : vector<8xf32>
    %7 = vector.multi_reduction <add>, %6, %cst_5 [1] : vector<8x64xf32> to vector<8xf32>
    %8 = vector.shape_cast %7 : vector<8xf32> to vector<8x1xf32>
    %cst_6 = arith.constant 1.000000e-24 : f32
    %9 = vector.broadcast %cst_6 : f32 to vector<8x1xf32>
    %10 = arith.maximumf %8, %9 : vector<8x1xf32>
    %11 = math.rsqrt %10 : vector<8x1xf32>
    %12 = vector.broadcast %11 : vector<8x1xf32> to vector<8x64xf32>
    %13 = arith.mulf %5, %12 : vector<8x64xf32>
    %14 = arith.mulf %13, %13 : vector<8x64xf32>
    %cst_7 = arith.constant dense<0.000000e+00> : vector<8xf32>
    %15 = vector.multi_reduction <add>, %14, %cst_7 [1] : vector<8x64xf32> to vector<8xf32>
    %16 = vector.shape_cast %15 : vector<8xf32> to vector<8x1xf32>
    %c0_8 = arith.constant 0 : index
    %c0_9 = arith.constant 0 : index
    %17 = vector.load %arg4[%c0_8, %c0_9] : memref<64x16xf32, #tpu.memory_space<vmem>>, vector<64x16xf32>
    %cst_10 = arith.constant dense<0.000000e+00> : vector<8x16xf32>
    %18 = tpu.matmul %13, %17, %cst_10 {dimension_numbers = #tpu.dot_dimension_numbers<[1], [0], [0], [1], [0, 0, 1, 1], [], []>, precision = #tpu.contract_precision<fp32>} : vector<8x64xf32>, vector<64x16xf32>, vector<8x16xf32> -> vector<8x16xf32>
    %c0_11 = arith.constant 0 : index
    %c0_12 = arith.constant 0 : index
    %19 = vector.load %arg5[%c0_11, %c0_12] : memref<1x16xf32, #tpu.memory_space<vmem>>, vector<1x16xf32>
    %20 = vector.broadcast %19 : vector<1x16xf32> to vector<8x16xf32>
    %21 = arith.addf %18, %20 : vector<8x16xf32>
    %cst_13 = arith.constant dense<0xFF800000> : vector<8xf32>
    %22 = vector.multi_reduction <maximumf>, %21, %cst_13 [1] : vector<8x16xf32> to vector<8xf32>
    %23 = vector.shape_cast %22 : vector<8xf32> to vector<8x1xf32>
    %24 = vector.broadcast %23 : vector<8x1xf32> to vector<8x16xf32>
    %25 = arith.subf %21, %24 : vector<8x16xf32>
    %26 = math.exp %25 : vector<8x16xf32>
    %cst_14 = arith.constant dense<0.000000e+00> : vector<8xf32>
    %27 = vector.multi_reduction <add>, %26, %cst_14 [1] : vector<8x16xf32> to vector<8xf32>
    %28 = vector.shape_cast %27 : vector<8xf32> to vector<8x1xf32>
    %29 = vector.broadcast %28 : vector<8x1xf32> to vector<8x16xf32>
    %30 = arith.divf %26, %29 : vector<8x16xf32>
    %c0_15 = arith.constant 0 : index
    %c0_16 = arith.constant 0 : index
    %31 = vector.load %arg6[%c0_15, %c0_16] : memref<64x16xf32, #tpu.memory_space<vmem>>, vector<64x16xf32>
    %cst_17 = arith.constant dense<0.000000e+00> : vector<8x16xf32>
    %32 = tpu.matmul %13, %31, %cst_17 {dimension_numbers = #tpu.dot_dimension_numbers<[1], [0], [0], [1], [0, 0, 1, 1], [], []>, precision = #tpu.contract_precision<fp32>} : vector<8x64xf32>, vector<64x16xf32>, vector<8x16xf32> -> vector<8x16xf32>
    %cst_18 = arith.constant 2.000000e+00 : f32
    %33 = vector.broadcast %cst_18 : f32 to vector<8x16xf32>
    %34 = arith.mulf %33, %32 : vector<8x16xf32>
    %35 = vector.broadcast %16 : vector<8x1xf32> to vector<8x16xf32>
    %36 = arith.subf %35, %34 : vector<8x16xf32>
    %c0_19 = arith.constant 0 : index
    %c0_20 = arith.constant 0 : index
    %37 = vector.load %arg7[%c0_19, %c0_20] : memref<1x16xf32, #tpu.memory_space<vmem>>, vector<1x16xf32>
    %38 = vector.broadcast %37 : vector<1x16xf32> to vector<8x16xf32>
    %39 = arith.addf %36, %38 : vector<8x16xf32>
    %cst_21 = arith.constant 0.000000e+00 : f32
    %40 = vector.broadcast %cst_21 : f32 to vector<8x16xf32>
    %41 = arith.maximumf %39, %40 : vector<8x16xf32>
    %42 = arith.mulf %30, %30 : vector<8x16xf32>
    %43 = arith.mulf %42, %41 : vector<8x16xf32>
    %cst_22 = arith.constant 1.000000e-24 : f32
    %44 = vector.broadcast %cst_22 : f32 to vector<8x16xf32>
    %45 = arith.maximumf %43, %44 : vector<8x16xf32>
    %46 = math.rsqrt %45 : vector<8x16xf32>
    %47 = arith.mulf %30, %46 : vector<8x16xf32>
    %48 = arith.mulf %47, %47 : vector<8x16xf32>
    %49 = arith.mulf %48, %41 : vector<8x16xf32>
    %cst_23 = arith.constant dense<0.000000e+00> : vector<8xf32>
    %50 = vector.multi_reduction <add>, %49, %cst_23 [1] : vector<8x16xf32> to vector<8xf32>
    %51 = vector.shape_cast %50 : vector<8xf32> to vector<8x1xf32>
    %cst_24 = arith.constant 1.000000e-24 : f32
    %52 = vector.broadcast %cst_24 : f32 to vector<8x1xf32>
    %53 = arith.maximumf %51, %52 : vector<8x1xf32>
    %54 = math.rsqrt %53 : vector<8x1xf32>
    %55 = vector.broadcast %54 : vector<8x1xf32> to vector<8x16xf32>
    %56 = arith.mulf %47, %55 : vector<8x16xf32>
    %c0_25 = arith.constant 0 : index
    %c0_26 = arith.constant 0 : index
    %57 = vector.load %arg9[%c0_25, %c0_26] : memref<64x1024xf32, #tpu.memory_space<vmem>>, vector<64x1024xf32>
    %cst_27 = arith.constant dense<0.000000e+00> : vector<8x1024xf32>
    %58 = tpu.matmul %13, %57, %cst_27 {dimension_numbers = #tpu.dot_dimension_numbers<[1], [0], [0], [1], [0, 0, 1, 1], [], []>, precision = #tpu.contract_precision<fp32>} : vector<8x64xf32>, vector<64x1024xf32>, vector<8x1024xf32> -> vector<8x1024xf32>
    %c0_28 = arith.constant 0 : index
    %c0_29 = arith.constant 0 : index
    %59 = vector.load %arg10[%c0_28, %c0_29] : memref<16x1024xf32, #tpu.memory_space<vmem>>, vector<16x1024xf32>
    %cst_30 = arith.constant dense<0.000000e+00> : vector<8x1024xf32>
    %60 = tpu.matmul %56, %59, %cst_30 {dimension_numbers = #tpu.dot_dimension_numbers<[1], [0], [0], [1], [0, 0, 1, 1], [], []>, precision = #tpu.contract_precision<fp32>} : vector<8x16xf32>, vector<16x1024xf32>, vector<8x1024xf32> -> vector<8x1024xf32>
    %c0_31 = arith.constant 0 : index
    %c0_32 = arith.constant 0 : index
    %61 = vector.load %arg8[%c0_31, %c0_32] : memref<1x1024xf32, #tpu.memory_space<vmem>>, vector<1x1024xf32>
    %62 = vector.broadcast %61 : vector<1x1024xf32> to vector<8x1024xf32>
    %63 = arith.subf %58, %62 : vector<8x1024xf32>
    %64 = arith.mulf %60, %63 : vector<8x1024xf32>
    %c0_33 = arith.constant 0 : index
    %c0_34 = arith.constant 0 : index
    %65 = vector.load %arg11[%c0_33, %c0_34] : memref<8x1024xf32, #tpu.memory_space<vmem>>, vector<8x1024xf32>
    tpu.vector_store %arg11[%c0_33, %c0_34], %64 {strides = array<i32>} : memref<8x1024xf32, #tpu.memory_space<vmem>>, vector<8x1024xf32>,
    return
  }
  func.func @transform_0(%arg0: i32) -> (i32, i32) {
    %c0_i32 = arith.constant 0 : i32
    %c0_i32_0 = arith.constant 0 : i32
    return %arg0, %c0_i32 : i32, i32
  }
  func.func @transform_1(%arg0: i32) -> (i32, i32) {
    %c0_i32 = arith.constant 0 : i32
    %c0_i32_0 = arith.constant 0 : i32
    %c0_i32_1 = arith.constant 0 : i32
    return %c0_i32, %c0_i32_0 : i32, i32
  }
  func.func @transform_2(%arg0: i32) -> (i32, i32) {
    %c0_i32 = arith.constant 0 : i32
    %c0_i32_0 = arith.constant 0 : i32
    %c0_i32_1 = arith.constant 0 : i32
    return %c0_i32, %c0_i32_0 : i32, i32
  }
  func.func @transform_3(%arg0: i32) -> (i32, i32) {
    %c0_i32 = arith.constant 0 : i32
    %c0_i32_0 = arith.constant 0 : i32
    %c0_i32_1 = arith.constant 0 : i32
    return %c0_i32, %c0_i32_0 : i32, i32
  }
  func.func @transform_4(%arg0: i32) -> (i32, i32) {
    %c0_i32 = arith.constant 0 : i32
    %c0_i32_0 = arith.constant 0 : i32
    %c0_i32_1 = arith.constant 0 : i32
    return %c0_i32, %c0_i32_0 : i32, i32
  }
  func.func @transform_5(%arg0: i32) -> (i32, i32) {
    %c0_i32 = arith.constant 0 : i32
    %c0_i32_0 = arith.constant 0 : i32
    %c0_i32_1 = arith.constant 0 : i32
    return %c0_i32, %c0_i32_0 : i32, i32
  }
  func.func @transform_6(%arg0: i32) -> (i32, i32) {
    %c0_i32 = arith.constant 0 : i32
    %c0_i32_0 = arith.constant 0 : i32
    %c0_i32_1 = arith.constant 0 : i32
    return %c0_i32, %c0_i32_0 : i32, i32
  }
  func.func @transform_7(%arg0: i32) -> (i32, i32) {
    %c0_i32 = arith.constant 0 : i32
    %c0_i32_0 = arith.constant 0 : i32
    %c0_i32_1 = arith.constant 0 : i32
    return %c0_i32, %c0_i32_0 : i32, i32
  }
  func.func @transform_8(%arg0: i32) -> (i32, i32) {
    %c0_i32 = arith.constant 0 : i32
    %c0_i32_0 = arith.constant 0 : i32
    %c0_i32_1 = arith.constant 0 : i32
    return %c0_i32, %c0_i32_0 : i32, i32
  }
  func.func @transform_9(%arg0: i32) -> (i32, i32) {
    %c0_i32 = arith.constant 0 : i32
    %c0_i32_0 = arith.constant 0 : i32
    %c0_i32_1 = arith.constant 0 : i32
    return %c0_i32, %c0_i32_0 : i32, i32
  }
  func.func @transform_10(%arg0: i32) -> (i32, i32) {
    %c0_i32 = arith.constant 0 : i32
    %c0_i32_0 = arith.constant 0 : i32
    return %arg0, %c0_i32 : i32, i32
  }
}

</mosaic_0001>

<llo_original>
// kernel: writer_model_fc.1
$region0: #{writer_model_fc.1}
  #allocation0 [shape = 'u32[]', space=smem, size = 0x4, offset = 0x4, fixed_abs, tag = 'smem constant byte address 0x4 - core index']
  #allocation1 [shape = 'u32[144,128]{1,0:T(1,128)}', space=vmem, size = 0x12000, scoped, tag = 'internal scratch']
  %s0 = inlined_call_operand.vmem [shape: f32[16,128], index: 0, kind: input, shape index: {}]
  %s1 = inlined_call_operand.vmem [shape: f32[128,64], index: 1, kind: input, shape index: {}]
  %s2 = inlined_call_operand.vmem [shape: f32[1,64], index: 2, kind: input, shape index: {}]
  %s3 = inlined_call_operand.vmem [shape: f32[64,16], index: 3, kind: input, shape index: {}]
  %s4 = inlined_call_operand.vmem [shape: f32[1,16], index: 4, kind: input, shape index: {}]
  %s5 = inlined_call_operand.vmem [shape: f32[64,16], index: 5, kind: input, shape index: {}]
  %s6 = inlined_call_operand.vmem [shape: f32[1,16], index: 6, kind: input, shape index: {}]
  %s7 = inlined_call_operand.vmem [shape: f32[1,1024], index: 7, kind: input, shape index: {}]
  %s8 = inlined_call_operand.vmem [shape: f32[64,1024], index: 8, kind: input, shape index: {}]
  %s9 = inlined_call_operand.vmem [shape: f32[16,1024], index: 9, kind: input, shape index: {}]
  %s10 = inlined_call_operand.hbm [shape: f32[16,1024], index: 10, kind: output, shape index: {}]
  %s11 = sld [smem:[#allocation0]]
  $region73: #{writer_model_fc.1} parent=0
    _
  %s13 = ssub.s32 1, %s11
  %s14 = scalar_select 0, %s13, %s11
  $region1: #{writer_model_fc.1} parent=0
    #allocation2 [shape = 'u8[65536]{0}', space=vmem, size = 0x10000, scoped, tag = 'output window, operand 0']
    #allocation3 [shape = 's32[2]{0}', space=sflag, size = 0x8, scoped, tag = 'scoped memory for writer_model_fc.1']
    %15 = vsyncpa [#allocation3], 0
    %s16 = scalar_lea.sflag [#allocation3], 1
    %17 = vsyncpa %s16, 0
    loop: start=0, step=1, limit=4
    $region2: #{writer_model_fc.1} parent=1 // loop_pre_header
      _
    $region3: #{writer_model_fc.1} parent=1 // loop_header
      %s19 = sphi 0, %s23
      %p20 = scmp.ge.s32.totalorder %s19, 4
      %s29 = sphi 0, %s31
      %s32 = sphi 0, %s29
      %s33 = sphi 0, %s32
      %s49 = sphi 0, %s33
      %s53 = sphi 0, %s53
      %s55 = sphi 0, %s53
      %s56 = sphi 0, %s55
      %s70 = sphi 0, %s56
      %s74 = sphi 0, %s74
      %s76 = sphi 0, %s74
      %s77 = sphi 0, %s76
      %s91 = sphi 0, %s77
      %s95 = sphi 0, %s95
      %s97 = sphi 0, %s95
      %s98 = sphi 0, %s97
      %s112 = sphi 0, %s98
      %s116 = sphi 0, %s116
      %s118 = sphi 0, %s116
      %s119 = sphi 0, %s118
      %s133 = sphi 0, %s119
      %s137 = sphi 0, %s137
      %s139 = sphi 0, %s137
      %s140 = sphi 0, %s139
      %s154 = sphi 0, %s140
      %s158 = sphi 0, %s158
      %s160 = sphi 0, %s158
      %s161 = sphi 0, %s160
      %s175 = sphi 0, %s161
      %s179 = sphi 0, %s179
      %s181 = sphi 0, %s179
      %s182 = sphi 0, %s181
      %s196 = sphi 0, %s182
      %s200 = sphi 0, %s200
      %s202 = sphi 0, %s200
      %s203 = sphi 0, %s202
      %s217 = sphi 0, %s203
      %s221 = sphi 0, %s221
      %s223 = sphi 0, %s221
      %s224 = sphi 0, %s223
      %s238 = sphi 0, %s224
      %s244 = sphi 0, %s246
      %s247 = sphi 0, %s244
      %s248 = sphi 0, %s247
      %s264 = sphi 0, %s248
    $region4: #{writer_model_fc.1} parent=1 // loop_header_branch
      %22 = sbr.rel (%p20) target = $region8
    $region5: #{writer_model_fc.1} parent=1 // loop_body
      %s24 = ssub.s32 %s19, 1
      %s25 = ssub.s32 %s19, 2
      %s26 = sadd.s32 %s19, 1
      %s27 = ssub.s32 %s19, %s26
      %p28 = scmp.eq.s32.totalorder %s27, 0
      %s30 = sadd.s32 %s29, 1
      %s31 = scalar_select %p28, %s29, %s30
      %p34 = pneg %p28
      %p35 = scmp.eq.s32.totalorder %s19, 1
      %p36 = por %p34, %p35
      %p37 = scmp.ne.s32.totalorder %s29, %s32
      %p38 = scmp.eq.s32.totalorder %s19, 0
      %p39 = por %p37, %p38
      %p40 = scmp.ne.s32.totalorder %s29, %s32
      %p41 = scmp.eq.s32.totalorder %s24, 1
      %p42 = por %p40, %p41
      %p43 = scmp.ne.s32.totalorder %s32, %s33
      %p44 = scmp.eq.s32.totalorder %s24, 0
      %p45 = por %p43, %p44
      %p46 = scmp.ne.s32.totalorder %s32, %s33
      %p47 = scmp.eq.s32.totalorder %s25, 1
      %p48 = por %p46, %p47
      %p50 = scmp.ne.s32.totalorder %s33, %s49
      %p51 = scmp.eq.s32.totalorder %s25, 0
      %p52 = por %p50, %p51
      %s54 = sadd.s32 %s53, 1
      %p57 = scmp.eq.s32.totalorder %s19, 1
      %p58 = scmp.ne.s32.totalorder %s53, %s55
      %p59 = scmp.eq.s32.totalorder %s19, 0
      %p60 = por %p58, %p59
      %p61 = scmp.ne.s32.totalorder %s53, %s55
      %p62 = scmp.eq.s32.totalorder %s24, 1
      %p63 = por %p61, %p62
      %p64 = scmp.ne.s32.totalorder %s55, %s56
      %p65 = scmp.eq.s32.totalorder %s24, 0
      %p66 = por %p64, %p65
      %p67 = scmp.ne.s32.totalorder %s55, %s56
      %p68 = scmp.eq.s32.totalorder %s25, 1
      %p69 = por %p67, %p68
      %p71 = scmp.ne.s32.totalorder %s56, %s70
      %p72 = scmp.eq.s32.totalorder %s25, 0
      %p73 = por %p71, %p72
      %s75 = sadd.s32 %s74, 1
      %p78 = scmp.eq.s32.totalorder %s19, 1
      %p79 = scmp.ne.s32.totalorder %s74, %s76
      %p80 = scmp.eq.s32.totalorder %s19, 0
      %p81 = por %p79, %p80
      %p82 = scmp.ne.s32.totalorder %s74, %s76
      %p83 = scmp.eq.s32.totalorder %s24, 1
      %p84 = por %p82, %p83
      %p85 = scmp.ne.s32.totalorder %s76, %s77
      %p86 = scmp.eq.s32.totalorder %s24, 0
      %p87 = por %p85, %p86
      %p88 = scmp.ne.s32.totalorder %s76, %s77
      %p89 = scmp.eq.s32.totalorder %s25, 1
      %p90 = por %p88, %p89
      %p92 = scmp.ne.s32.totalorder %s77, %s91
      %p93 = scmp.eq.s32.totalorder %s25, 0
      %p94 = por %p92, %p93
      %s96 = sadd.s32 %s95, 1
      %p99 = scmp.eq.s32.totalorder %s19, 1
      %p100 = scmp.ne.s32.totalorder %s95, %s97
      %p101 = scmp.eq.s32.totalorder %s19, 0
      %p102 = por %p100, %p101
      %p103 = scmp.ne.s32.totalorder %s95, %s97
      %p104 = scmp.eq.s32.totalorder %s24, 1
      %p105 = por %p103, %p104
      %p106 = scmp.ne.s32.totalorder %s97, %s98
      %p107 = scmp.eq.s32.totalorder %s24, 0
      %p108 = por %p106, %p107
      %p109 = scmp.ne.s32.totalorder %s97, %s98
      %p110 = scmp.eq.s32.totalorder %s25, 1
      %p111 = por %p109, %p110
      %p113 = scmp.ne.s32.totalorder %s98, %s112
      %p114 = scmp.eq.s32.totalorder %s25, 0
      %p115 = por %p113, %p114
      %s117 = sadd.s32 %s116, 1
      %p120 = scmp.eq.s32.totalorder %s19, 1
      %p121 = scmp.ne.s32.totalorder %s116, %s118
      %p122 = scmp.eq.s32.totalorder %s19, 0
      %p123 = por %p121, %p122
      %p124 = scmp.ne.s32.totalorder %s116, %s118
      %p125 = scmp.eq.s32.totalorder %s24, 1
      %p126 = por %p124, %p125
      %p127 = scmp.ne.s32.totalorder %s118, %s119
      %p128 = scmp.eq.s32.totalorder %s24, 0
      %p129 = por %p127, %p128
      %p130 = scmp.ne.s32.totalorder %s118, %s119
      %p131 = scmp.eq.s32.totalorder %s25, 1
      %p132 = por %p130, %p131
      %p134 = scmp.ne.s32.totalorder %s119, %s133
      %p135 = scmp.eq.s32.totalorder %s25, 0
      %p136 = por %p134, %p135
      %s138 = sadd.s32 %s137, 1
      %p141 = scmp.eq.s32.totalorder %s19, 1
      %p142 = scmp.ne.s32.totalorder %s137, %s139
      %p143 = scmp.eq.s32.totalorder %s19, 0
      %p144 = por %p142, %p143
      %p145 = scmp.ne.s32.totalorder %s137, %s139
      %p146 = scmp.eq.s32.totalorder %s24, 1
      %p147 = por %p145, %p146
      %p148 = scmp.ne.s32.totalorder %s139, %s140
      %p149 = scmp.eq.s32.totalorder %s24, 0
      %p150 = por %p148, %p149
      %p151 = scmp.ne.s32.totalorder %s139, %s140
      %p152 = scmp.eq.s32.totalorder %s25, 1
      %p153 = por %p151, %p152
      %p155 = scmp.ne.s32.totalorder %s140, %s154
      %p156 = scmp.eq.s32.totalorder %s25, 0
      %p157 = por %p155, %p156
      %s159 = sadd.s32 %s158, 1
      %p162 = scmp.eq.s32.totalorder %s19, 1
      %p163 = scmp.ne.s32.totalorder %s158, %s160
      %p164 = scmp.eq.s32.totalorder %s19, 0
      %p165 = por %p163, %p164
      %p166 = scmp.ne.s32.totalorder %s158, %s160
      %p167 = scmp.eq.s32.totalorder %s24, 1
      %p168 = por %p166, %p167
      %p169 = scmp.ne.s32.totalorder %s160, %s161
      %p170 = scmp.eq.s32.totalorder %s24, 0
      %p171 = por %p169, %p170
      %p172 = scmp.ne.s32.totalorder %s160, %s161
      %p173 = scmp.eq.s32.totalorder %s25, 1
      %p174 = por %p172, %p173
      %p176 = scmp.ne.s32.totalorder %s161, %s175
      %p177 = scmp.eq.s32.totalorder %s25, 0
      %p178 = por %p176, %p177
      %s180 = sadd.s32 %s179, 1
      %p183 = scmp.eq.s32.totalorder %s19, 1
      %p184 = scmp.ne.s32.totalorder %s179, %s181
      %p185 = scmp.eq.s32.totalorder %s19, 0
      %p186 = por %p184, %p185
      %p187 = scmp.ne.s32.totalorder %s179, %s181
      %p188 = scmp.eq.s32.totalorder %s24, 1
      %p189 = por %p187, %p188
      %p190 = scmp.ne.s32.totalorder %s181, %s182
      %p191 = scmp.eq.s32.totalorder %s24, 0
      %p192 = por %p190, %p191
      %p193 = scmp.ne.s32.totalorder %s181, %s182
      %p194 = scmp.eq.s32.totalorder %s25, 1
      %p195 = por %p193, %p194
      %p197 = scmp.ne.s32.totalorder %s182, %s196
      %p198 = scmp.eq.s32.totalorder %s25, 0
      %p199 = por %p197, %p198
      %s201 = sadd.s32 %s200, 1
      %p204 = scmp.eq.s32.totalorder %s19, 1
      %p205 = scmp.ne.s32.totalorder %s200, %s202
      %p206 = scmp.eq.s32.totalorder %s19, 0
      %p207 = por %p205, %p206
      %p208 = scmp.ne.s32.totalorder %s200, %s202
      %p209 = scmp.eq.s32.totalorder %s24, 1
      %p210 = por %p208, %p209
      %p211 = scmp.ne.s32.totalorder %s202, %s203
      %p212 = scmp.eq.s32.totalorder %s24, 0
      %p213 = por %p211, %p212
      %p214 = scmp.ne.s32.totalorder %s202, %s203
      %p215 = scmp.eq.s32.totalorder %s25, 1
      %p216 = por %p214, %p215
      %p218 = scmp.ne.s32.totalorder %s203, %s217
      %p219 = scmp.eq.s32.totalorder %s25, 0
      %p220 = por %p218, %p219
      %s222 = sadd.s32 %s221, 1
      %p225 = scmp.eq.s32.totalorder %s19, 1
      %p226 = scmp.ne.s32.totalorder %s221, %s223
      %p227 = scmp.eq.s32.totalorder %s19, 0
      %p228 = por %p226, %p227
      %p229 = scmp.ne.s32.totalorder %s221, %s223
      %p230 = scmp.eq.s32.totalorder %s24, 1
      %p231 = por %p229, %p230
      %p232 = scmp.ne.s32.totalorder %s223, %s224
      %p233 = scmp.eq.s32.totalorder %s24, 0
      %p234 = por %p232, %p233
      %p235 = scmp.ne.s32.totalorder %s223, %s224
      %p236 = scmp.eq.s32.totalorder %s25, 1
      %p237 = por %p235, %p236
      %p239 = scmp.ne.s32.totalorder %s224, %s238
      %p240 = scmp.eq.s32.totalorder %s25, 0
      %p241 = por %p239, %p240
      %s242 = ssub.s32 %s19, %s26
      %p243 = scmp.eq.s32.totalorder %s242, 0
      %s245 = sadd.s32 %s244, 1
      %s246 = scalar_select %p243, %s244, %s245
      %p249 = pneg %p243
      %p250 = scmp.eq.s32.totalorder %s19, 1
      %p251 = por %p249, %p250
      %p252 = scmp.ne.s32.totalorder %s244, %s247
      %p253 = scmp.eq.s32.totalorder %s19, 0
      %p254 = por %p252, %p253
      %p255 = scmp.ne.s32.totalorder %s244, %s247
      %p256 = scmp.eq.s32.totalorder %s24, 1
      %p257 = por %p255, %p256
      %p258 = scmp.ne.s32.totalorder %s247, %s248
      %p259 = scmp.eq.s32.totalorder %s24, 0
      %p260 = por %p258, %p259
      %p261 = scmp.ne.s32.totalorder %s247, %s248
      %p262 = scmp.eq.s32.totalorder %s25, 1
      %p263 = por %p261, %p262
      %p265 = scmp.ne.s32.totalorder %s248, %s264
      %p266 = scmp.eq.s32.totalorder %s25, 0
      %p267 = por %p265, %p266
      %p268 = scmp.le.s32.totalorder 1, %s19
      %p269 = scmp.lt.s32.totalorder %s19, 3
      %p270 = pnand %p268, %p269
      %p271 = pneg %p270
      // Predicated region
      $region9: #{writer_model_fc.1} parent=5 // pred_check
        _
      $region10: #{writer_model_fc.1} parent=5 // pred_check_branch
        %273 = sbr.rel (%p270) target = $region12
      $region11: #{writer_model_fc.1} parent=5 // pred_region
        %s274 = ssub.s32 %s19, 1
        // Predicated region
        $region13: #{writer_model_fc.1} parent=11 // pred_check
          %p275 = pneg %p66
        $region14: #{writer_model_fc.1} parent=11 // pred_check_branch
          %277 = sbr.rel (%p275) target = $region16
        $region15: #{writer_model_fc.1} parent=11 // pred_region
          _
        $region16: #{writer_model_fc.1} parent=11 // pred_fallthru
          _
        // Predicated region
        $region17: #{writer_model_fc.1} parent=11 // pred_check
          %p278 = pneg %p87
        $region18: #{writer_model_fc.1} parent=11 // pred_check_branch
          %280 = sbr.rel (%p278) target = $region20
        $region19: #{writer_model_fc.1} parent=11 // pred_region
          _
        $region20: #{writer_model_fc.1} parent=11 // pred_fallthru
          _
        // Predicated region
        $region21: #{writer_model_fc.1} parent=11 // pred_check
          %p281 = pneg %p108
        $region22: #{writer_model_fc.1} parent=11 // pred_check_branch
          %283 = sbr.rel (%p281) target = $region24
        $region23: #{writer_model_fc.1} parent=11 // pred_region
          _
        $region24: #{writer_model_fc.1} parent=11 // pred_fallthru
          _
        // Predicated region
        $region25: #{writer_model_fc.1} parent=11 // pred_check
          %p284 = pneg %p129
        $region26: #{writer_model_fc.1} parent=11 // pred_check_branch
          %286 = sbr.rel (%p284) target = $region28
        $region27: #{writer_model_fc.1} parent=11 // pred_region
          _
        $region28: #{writer_model_fc.1} parent=11 // pred_fallthru
          _
        // Predicated region
        $region29: #{writer_model_fc.1} parent=11 // pred_check
          %p287 = pneg %p150
        $region30: #{writer_model_fc.1} parent=11 // pred_check_branch
          %289 = sbr.rel (%p287) target = $region32
        $region31: #{writer_model_fc.1} parent=11 // pred_region
          _
        $region32: #{writer_model_fc.1} parent=11 // pred_fallthru
          _
        // Predicated region
        $region33: #{writer_model_fc.1} parent=11 // pred_check
          %p290 = pneg %p171
        $region34: #{writer_model_fc.1} parent=11 // pred_check_branch
          %292 = sbr.rel (%p290) target = $region36
        $region35: #{writer_model_fc.1} parent=11 // pred_region
          _
        $region36: #{writer_model_fc.1} parent=11 // pred_fallthru
          _
        // Predicated region
        $region37: #{writer_model_fc.1} parent=11 // pred_check
          %p293 = pneg %p192
        $region38: #{writer_model_fc.1} parent=11 // pred_check_branch
          %295 = sbr.rel (%p293) target = $region40
        $region39: #{writer_model_fc.1} parent=11 // pred_region
          _
        $region40: #{writer_model_fc.1} parent=11 // pred_fallthru
          _
        // Predicated region
        $region41: #{writer_model_fc.1} parent=11 // pred_check
          %p296 = pneg %p213
        $region42: #{writer_model_fc.1} parent=11 // pred_check_branch
          %298 = sbr.rel (%p296) target = $region44
        $region43: #{writer_model_fc.1} parent=11 // pred_region
          _
        $region44: #{writer_model_fc.1} parent=11 // pred_fallthru
          _
        // Predicated region
        $region45: #{writer_model_fc.1} parent=11 // pred_check
          %p299 = pneg %p234
        $region46: #{writer_model_fc.1} parent=11 // pred_check_branch
          %301 = sbr.rel (%p299) target = $region48
        $region47: #{writer_model_fc.1} parent=11 // pred_region
          _
        $region48: #{writer_model_fc.1} parent=11 // pred_fallthru
          _
      $region12: #{writer_model_fc.1} parent=5 // pred_fallthru
        _
      %p302 = scmp.lt.s32.totalorder %s19, 2
      // Predicated region
      $region49: #{writer_model_fc.1} parent=5 // pred_check
        %p303 = pneg %p302
      $region50: #{writer_model_fc.1} parent=5 // pred_check_branch
        %305 = sbr.rel (%p303) target = $region52
      $region51: #{writer_model_fc.1} parent=5 // pred_region
        // Predicated region
        $region53: #{writer_model_fc.1} parent=51 // pred_check
          %p306 = pneg %p39
        $region54: #{writer_model_fc.1} parent=51 // pred_check_branch
          %308 = sbr.rel (%p306) target = $region56
        $region55: #{writer_model_fc.1} parent=51 // pred_region
          %p309 = scmp.lt.s32.totalorder %s19, 1
          %s310 = scalar_select %p309, %s19, 1
          %s311 = smul.addr %s310, 8
          %s312 = scalar_lea.vmem %s0, %s311
        $region56: #{writer_model_fc.1} parent=51 // pred_fallthru
          _
      $region52: #{writer_model_fc.1} parent=5 // pred_fallthru
        _
      %p313 = scmp.le.s32.totalorder 1, %s19
      %p314 = scmp.lt.s32.totalorder %s19, 3
      %p315 = pnand %p313, %p314
      %p316 = pneg %p315
      // Predicated region
      $region57: #{writer_model_fc.1} parent=5 // pred_check
        _
      $region58: #{writer_model_fc.1} parent=5 // pred_check_branch
        %318 = sbr.rel (%p315) target = $region60
      $region59: #{writer_model_fc.1} parent=5 // pred_region
        %s319 = ssub.s32 %s19, 1
        %p320 = scmp.lt.s32.totalorder %s24, 1
        %s321 = scalar_select %p320, %s24, 1
        %s322 = smul.addr %s321, 8
        %s323 = scalar_lea.vmem %s0, %s322
        %p324 = pneg %p45
        %p325 = pneg %p42
        %p326 = pneg %p66
        %p327 = pneg %p63
        %p328 = pneg %p87
        %p329 = pneg %p84
        %p330 = pneg %p108
        %p331 = pneg %p105
        %p332 = pneg %p129
        %p333 = pneg %p126
        %p334 = pneg %p150
        %p335 = pneg %p147
        %p336 = pneg %p171
        %p337 = pneg %p168
        %p338 = pneg %p192
        %p339 = pneg %p189
        %p340 = pneg %p213
        %p341 = pneg %p210
        %p342 = pneg %p234
        %p343 = pneg %p231
        %p344 = pneg %p260
        %p345 = pneg %p257
        %s346 = sand.u32 %s247, 1
        %s347 = scalar_lea.sflag [#allocation3], %s346
        %s348 = sand.u32 %s247, 1
        %s349 = smul.addr %s348, 64
        %s350 = scalar_lea.vmem [#allocation2], %s349
        %p351 = scmp.lt.s32.totalorder %s24, 1
        %s352 = scalar_select %p351, %s24, 1
        %s353 = smul.addr %s352, 8
        %s354 = scalar_lea.vmem %s0, %s353
        %v355 = vld [vmem:[%s354] sm:$0xff]
        %v356 = vld [vmem:[%s1] sm:$0xff]
        %v357 = vld [vmem:[%s1 + $0x8] sm:$0xff]
        %v358 = vld [vmem:[%s1 + $0x10] sm:$0xff]
        %v359 = vld [vmem:[%s1 + $0x18] sm:$0xff]
        %v360 = vld [vmem:[%s1 + $0x20] sm:$0xff]
        %v361 = vld [vmem:[%s1 + $0x28] sm:$0xff]
        %v362 = vld [vmem:[%s1 + $0x30] sm:$0xff]
        %v363 = vld [vmem:[%s1 + $0x38] sm:$0xff]
        %v364 = vld [vmem:[%s1 + $0x40] sm:$0xff]
        %v365 = vld [vmem:[%s1 + $0x48] sm:$0xff]
        %v366 = vld [vmem:[%s1 + $0x50] sm:$0xff]
        %v367 = vld [vmem:[%s1 + $0x58] sm:$0xff]
        %v368 = vld [vmem:[%s1 + $0x60] sm:$0xff]
        %v369 = vld [vmem:[%s1 + $0x68] sm:$0xff]
        %v370 = vld [vmem:[%s1 + $0x70] sm:$0xff]
        %v371 = vld [vmem:[%s1 + $0x78] sm:$0xff]
        %v372 = vld [vmem:[%s2] sm:$0x1]
        %v374 = vlaneseq
        %v375 = vshrl.u32 %v374, 7
        %v376 = vsub.s32 0, %v375
        %v377 = vrot.slane %v372, %v376
        %379 = vmatprep.subr.mxu0 0.0
        %v380 = vand.u32 %v356, 4294901760
        %381 = vmatpush1.msra.mxu0 %v380
        %382 = vmatprep.subr.mxu0 0.0
        %v383 = vand.u32 %v357, 4294901760
        %384 = vmatpush1.msra.mxu0 %v383
        %385 = vmatprep.subr.mxu0 0.0
        %v386 = vand.u32 %v358, 4294901760
        %387 = vmatpush1.msra.mxu0 %v386
        %388 = vmatprep.subr.mxu0 0.0
        %v389 = vand.u32 %v359, 4294901760
        %390 = vmatpush1.msra.mxu0 %v389
        %391 = vmatprep.subr.mxu0 0.0
        %v392 = vand.u32 %v360, 4294901760
        %393 = vmatpush1.msra.mxu0 %v392
        %394 = vmatprep.subr.mxu0 0.0
        %v395 = vand.u32 %v361, 4294901760
        %396 = vmatpush1.msra.mxu0 %v395
        %397 = vmatprep.subr.mxu0 0.0
        %v398 = vand.u32 %v362, 4294901760
        %399 = vmatpush1.msra.mxu0 %v398
        %400 = vmatprep.subr.mxu0 0.0
        %v401 = vand.u32 %v363, 4294901760
        %402 = vmatpush1.msra.mxu0 %v401
        %403 = vmatprep.subr.mxu0 0.0
        %v404 = vand.u32 %v364, 4294901760
        %405 = vmatpush1.msra.mxu0 %v404
        %406 = vmatprep.subr.mxu0 0.0
        %v407 = vand.u32 %v365, 4294901760
        %408 = vmatpush1.msra.mxu0 %v407
        %409 = vmatprep.subr.mxu0 0.0
        %v410 = vand.u32 %v366, 4294901760
        %411 = vmatpush1.msra.mxu0 %v410
        %412 = vmatprep.subr.mxu0 0.0
        %v413 = vand.u32 %v367, 4294901760
        %414 = vmatpush1.msra.mxu0 %v413
        %415 = vmatprep.subr.mxu0 0.0
        %v416 = vand.u32 %v368, 4294901760
        %417 = vmatpush1.msra.mxu0 %v416
        %418 = vmatprep.subr.mxu0 0.0
        %v419 = vand.u32 %v369, 4294901760
        %420 = vmatpush1.msra.mxu0 %v419
        %421 = vmatprep.subr.mxu0 0.0
        %v422 = vand.u32 %v370, 4294901760
        %423 = vmatpush1.msra.mxu0 %v422
        %424 = vmatprep.subr.mxu0 0.0
        %v425 = vand.u32 %v371, 4294901760
        %426 = vmatpush1.msra.mxu0 %v425
        %427 = vmatprep.subr.mxu0 0.0
        %428 = vmatpush1.msra.mxu0 0.0
        %429 = vmatprep.subr.mxu0 0.0
        %430 = vmatpush1.msra.mxu0 0.0
        %431 = vmatprep.subr.mxu0 0.0
        %432 = vmatpush1.msra.mxu0 0.0
        %433 = vmatprep.subr.mxu0 0.0
        %434 = vmatpush1.msra.mxu0 0.0
        %435 = vmatprep.subr.mxu0 0.0
        %436 = vmatpush1.msra.mxu0 0.0
        %437 = vmatprep.subr.mxu0 0.0
        %438 = vmatpush1.msra.mxu0 0.0
        %439 = vmatprep.subr.mxu0 0.0
        %440 = vmatpush1.msra.mxu0 0.0
        %441 = vmatprep.subr.mxu0 0.0
        %442 = vmatpush1.msra.mxu0 0.0
        %443 = vmatprep.subr.mxu0 0.0
        %444 = vmatpush1.msra.mxu0 0.0
        %445 = vmatprep.subr.mxu0 0.0
        %446 = vmatpush1.msra.mxu0 0.0
        %447 = vmatprep.subr.mxu0 0.0
        %448 = vmatpush1.msra.mxu0 0.0
        %449 = vmatprep.subr.mxu0 0.0
        %450 = vmatpush1.msra.mxu0 0.0
        %451 = vmatprep.subr.mxu0 0.0
        %452 = vmatpush1.msra.mxu0 0.0
        %453 = vmatprep.subr.mxu0 0.0
        %454 = vmatpush1.msra.mxu0 0.0
        %455 = vmatprep.subr.mxu0 0.0
        %456 = vmatpush1.msra.mxu0 0.0
        %457 = vmatprep.subr.mxu0 0.0
        %458 = vmatpush1.msra.mxu0 0.0
        %459 = vmatprep.mubr.f32.mxu0 0.0
        %v460 = vand.u32 %v355, 4294901760
        %v461 = vsub.f32 %v355, %v460
        %v462 = vand.u32 %v461, 4294901760
        %v463 = vsub.f32 %v461, %v462
        %v464 = vand.u32 %v463, 4294901760
        %465 = vmatmul.mubr.f32.gmra.mrb[0].mxu0 %v464
        %v466 = vpop.f32.mrb[0].mxu0
        %v467 = vadd.f32 %v377, %v466
        %v468 = vpop.f32.mrb[0].mxu0
        %469 = vdwg.mxu0
        %470 = vmatprep.subr.mxu0 0.0
        %v471 = vand.u32 %v356, 4294901760
        %v472 = vsub.f32 %v356, %v471
        %v473 = vand.u32 %v472, 4294901760
        %v474 = vsub.f32 %v472, %v473
        %v475 = vand.u32 %v474, 4294901760
        %476 = vmatpush1.msra.mxu0 %v475
        %477 = vmatprep.subr.mxu0 0.0
        %v478 = vand.u32 %v357, 4294901760
        %v479 = vsub.f32 %v357, %v478
        %v480 = vand.u32 %v479, 4294901760
        %v481 = vsub.f32 %v479, %v480
        %v482 = vand.u32 %v481, 4294901760
        %483 = vmatpush1.msra.mxu0 %v482
        %484 = vmatprep.subr.mxu0 0.0
        %v485 = vand.u32 %v358, 4294901760
        %v486 = vsub.f32 %v358, %v485
        %v487 = vand.u32 %v486, 4294901760
        %v488 = vsub.f32 %v486, %v487
        %v489 = vand.u32 %v488, 4294901760
        %490 = vmatpush1.msra.mxu0 %v489
        %491 = vmatprep.subr.mxu0 0.0
        %v492 = vand.u32 %v359, 4294901760
        %v493 = vsub.f32 %v359, %v492
        %v494 = vand.u32 %v493, 4294901760
        %v495 = vsub.f32 %v493, %v494
        %v496 = vand.u32 %v495, 4294901760
        %497 = vmatpush1.msra.mxu0 %v496
        %498 = vmatprep.subr.mxu0 0.0
        %v499 = vand.u32 %v360, 4294901760
        %v500 = vsub.f32 %v360, %v499
        %v501 = vand.u32 %v500, 4294901760
        %v502 = vsub.f32 %v500, %v501
        %v503 = vand.u32 %v502, 4294901760
        %504 = vmatpush1.msra.mxu0 %v503
        %505 = vmatprep.subr.mxu0 0.0
        %v506 = vand.u32 %v361, 4294901760
        %v507 = vsub.f32 %v361, %v506
        %v508 = vand.u32 %v507, 4294901760
        %v509 = vsub.f32 %v507, %v508
        %v510 = vand.u32 %v509, 4294901760
        %511 = vmatpush1.msra.mxu0 %v510
        %512 = vmatprep.subr.mxu0 0.0
        %v513 = vand.u32 %v362, 4294901760
        %v514 = vsub.f32 %v362, %v513
        %v515 = vand.u32 %v514, 4294901760
        %v516 = vsub.f32 %v514, %v515
        %v517 = vand.u32 %v516, 4294901760
        %518 = vmatpush1.msra.mxu0 %v517
        %519 = vmatprep.subr.mxu0 0.0
        %v520 = vand.u32 %v363, 4294901760
        %v521 = vsub.f32 %v363, %v520
        %v522 = vand.u32 %v521, 4294901760
        %v523 = vsub.f32 %v521, %v522
        %v524 = vand.u32 %v523, 4294901760
        %525 = vmatpush1.msra.mxu0 %v524
        %526 = vmatprep.subr.mxu0 0.0
        %v527 = vand.u32 %v364, 4294901760
        %v528 = vsub.f32 %v364, %v527
        %v529 = vand.u32 %v528, 4294901760
        %v530 = vsub.f32 %v528, %v529
        %v531 = vand.u32 %v530, 4294901760
        %532 = vmatpush1.msra.mxu0 %v531
        %533 = vmatprep.subr.mxu0 0.0
        %v534 = vand.u32 %v365, 4294901760
        %v535 = vsub.f32 %v365, %v534
        %v536 = vand.u32 %v535, 4294901760
        %v537 = vsub.f32 %v535, %v536
        %v538 = vand.u32 %v537, 4294901760
        %539 = vmatpush1.msra.mxu0 %v538
        %540 = vmatprep.subr.mxu0 0.0
        %v541 = vand.u32 %v366, 4294901760
        %v542 = vsub.f32 %v366, %v541
        %v543 = vand.u32 %v542, 4294901760
        %v544 = vsub.f32 %v542, %v543
        %v545 = vand.u32 %v544, 4294901760
        %546 = vmatpush1.msra.mxu0 %v545
        %547 = vmatprep.subr.mxu0 0.0
        %v548 = vand.u32 %v367, 4294901760
        %v549 = vsub.f32 %v367, %v548
        %v550 = vand.u32 %v549, 4294901760
        %v551 = vsub.f32 %v549, %v550
        %v552 = vand.u32 %v551, 4294901760
        %553 = vmatpush1.msra.mxu0 %v552
        %554 = vmatprep.subr.mxu0 0.0
        %v555 = vand.u32 %v368, 4294901760
        %v556 = vsub.f32 %v368, %v555
        %v557 = vand.u32 %v556, 4294901760
        %v558 = vsub.f32 %v556, %v557
        %v559 = vand.u32 %v558, 4294901760
        %560 = vmatpush1.msra.mxu0 %v559
        %561 = vmatprep.subr.mxu0 0.0
        %v562 = vand.u32 %v369, 4294901760
        %v563 = vsub.f32 %v369, %v562
        %v564 = vand.u32 %v563, 4294901760
        %v565 = vsub.f32 %v563, %v564
        %v566 = vand.u32 %v565, 4294901760
        %567 = vmatpush1.msra.mxu0 %v566
        %568 = vmatprep.subr.mxu0 0.0
        %v569 = vand.u32 %v370, 4294901760
        %v570 = vsub.f32 %v370, %v569
        %v571 = vand.u32 %v570, 4294901760
        %v572 = vsub.f32 %v570, %v571
        %v573 = vand.u32 %v572, 4294901760
        %574 = vmatpush1.msra.mxu0 %v573
        %575 = vmatprep.subr.mxu0 0.0
        %v576 = vand.u32 %v371, 4294901760
        %v577 = vsub.f32 %v371, %v576
        %v578 = vand.u32 %v577, 4294901760
        %v579 = vsub.f32 %v577, %v578
        %v580 = vand.u32 %v579, 4294901760
        %581 = vmatpush1.msra.mxu0 %v580
        %582 = vmatprep.subr.mxu0 0.0
        %583 = vmatpush1.msra.mxu0 0.0
        %584 = vmatprep.subr.mxu0 0.0
        %585 = vmatpush1.msra.mxu0 0.0
        %586 = vmatprep.subr.mxu0 0.0
        %587 = vmatpush1.msra.mxu0 0.0
        %588 = vmatprep.subr.mxu0 0.0
        %589 = vmatpush1.msra.mxu0 0.0
        %590 = vmatprep.subr.mxu0 0.0
        %591 = vmatpush1.msra.mxu0 0.0
        %592 = vmatprep.subr.mxu0 0.0
        %593 = vmatpush1.msra.mxu0 0.0
        %594 = vmatprep.subr.mxu0 0.0
        %595 = vmatpush1.msra.mxu0 0.0
        %596 = vmatprep.subr.mxu0 0.0
        %597 = vmatpush1.msra.mxu0 0.0
        %598 = vmatprep.subr.mxu0 0.0
        %599 = vmatpush1.msra.mxu0 0.0
        %600 = vmatprep.subr.mxu0 0.0
        %601 = vmatpush1.msra.mxu0 0.0
        %602 = vmatprep.subr.mxu0 0.0
        %603 = vmatpush1.msra.mxu0 0.0
        %604 = vmatprep.subr.mxu0 0.0
        %605 = vmatpush1.msra.mxu0 0.0
        %606 = vmatprep.subr.mxu0 0.0
        %607 = vmatpush1.msra.mxu0 0.0
        %608 = vmatprep.subr.mxu0 0.0
        %609 = vmatpush1.msra.mxu0 0.0
        %610 = vmatprep.subr.mxu0 0.0
        %611 = vmatpush1.msra.mxu0 0.0
        %612 = vmatprep.subr.mxu0 0.0
        %613 = vmatpush1.msra.mxu0 0.0
        %614 = vmatprep.mubr.f32.mxu0 0.0
        %v615 = vand.u32 %v355, 4294901760
        %616 = vmatmul.mubr.f32.gmra.mrb[0].mxu0 %v615
        %v617 = vpop.f32.mrb[0].mxu0
        %v618 = vadd.f32 %v467, %v617
        %v619 = vpop.f32.mrb[0].mxu0
        %620 = vdwg.mxu0
        %621 = vmatprep.subr.mxu0 0.0
        %v622 = vand.u32 %v356, 4294901760
        %v623 = vsub.f32 %v356, %v622
        %624 = vmatpush1.msra.mxu0 %v623
        %625 = vmatprep.subr.mxu0 0.0
        %v626 = vand.u32 %v357, 4294901760
        %v627 = vsub.f32 %v357, %v626
        %628 = vmatpush1.msra.mxu0 %v627
        %629 = vmatprep.subr.mxu0 0.0
        %v630 = vand.u32 %v358, 4294901760
        %v631 = vsub.f32 %v358, %v630
        %632 = vmatpush1.msra.mxu0 %v631
        %633 = vmatprep.subr.mxu0 0.0
        %v634 = vand.u32 %v359, 4294901760
        %v635 = vsub.f32 %v359, %v634
        %636 = vmatpush1.msra.mxu0 %v635
        %637 = vmatprep.subr.mxu0 0.0
        %v638 = vand.u32 %v360, 4294901760
        %v639 = vsub.f32 %v360, %v638
        %640 = vmatpush1.msra.mxu0 %v639
        %641 = vmatprep.subr.mxu0 0.0
        %v642 = vand.u32 %v361, 4294901760
        %v643 = vsub.f32 %v361, %v642
        %644 = vmatpush1.msra.mxu0 %v643
        %645 = vmatprep.subr.mxu0 0.0
        %v646 = vand.u32 %v362, 4294901760
        %v647 = vsub.f32 %v362, %v646
        %648 = vmatpush1.msra.mxu0 %v647
        %649 = vmatprep.subr.mxu0 0.0
        %v650 = vand.u32 %v363, 4294901760
        %v651 = vsub.f32 %v363, %v650
        %652 = vmatpush1.msra.mxu0 %v651
        %653 = vmatprep.subr.mxu0 0.0
        %v654 = vand.u32 %v364, 4294901760
        %v655 = vsub.f32 %v364, %v654
        %656 = vmatpush1.msra.mxu0 %v655
        %657 = vmatprep.subr.mxu0 0.0
        %v658 = vand.u32 %v365, 4294901760
        %v659 = vsub.f32 %v365, %v658
        %660 = vmatpush1.msra.mxu0 %v659
        %661 = vmatprep.subr.mxu0 0.0
        %v662 = vand.u32 %v366, 4294901760
        %v663 = vsub.f32 %v366, %v662
        %664 = vmatpush1.msra.mxu0 %v663
        %665 = vmatprep.subr.mxu0 0.0
        %v666 = vand.u32 %v367, 4294901760
        %v667 = vsub.f32 %v367, %v666
        %668 = vmatpush1.msra.mxu0 %v667
        %669 = vmatprep.subr.mxu0 0.0
        %v670 = vand.u32 %v368, 4294901760
        %v671 = vsub.f32 %v368, %v670
        %672 = vmatpush1.msra.mxu0 %v671
        %673 = vmatprep.subr.mxu0 0.0
        %v674 = vand.u32 %v369, 4294901760
        %v675 = vsub.f32 %v369, %v674
        %676 = vmatpush1.msra.mxu0 %v675
        %677 = vmatprep.subr.mxu0 0.0
        %v678 = vand.u32 %v370, 4294901760
        %v679 = vsub.f32 %v370, %v678
        %680 = vmatpush1.msra.mxu0 %v679
        %681 = vmatprep.subr.mxu0 0.0
        %v682 = vand.u32 %v371, 4294901760
        %v683 = vsub.f32 %v371, %v682
        %684 = vmatpush1.msra.mxu0 %v683
        %685 = vmatprep.subr.mxu0 0.0
        %686 = vmatpush1.msra.mxu0 0.0
        %687 = vmatprep.subr.mxu0 0.0
        %688 = vmatpush1.msra.mxu0 0.0
        %689 = vmatprep.subr.mxu0 0.0
        %690 = vmatpush1.msra.mxu0 0.0
        %691 = vmatprep.subr.mxu0 0.0
        %692 = vmatpush1.msra.mxu0 0.0
        %693 = vmatprep.subr.mxu0 0.0
        %694 = vmatpush1.msra.mxu0 0.0
        %695 = vmatprep.subr.mxu0 0.0
        %696 = vmatpush1.msra.mxu0 0.0
        %697 = vmatprep.subr.mxu0 0.0
        %698 = vmatpush1.msra.mxu0 0.0
        %699 = vmatprep.subr.mxu0 0.0
        %700 = vmatpush1.msra.mxu0 0.0
        %701 = vmatprep.subr.mxu0 0.0
        %702 = vmatpush1.msra.mxu0 0.0
        %703 = vmatprep.subr.mxu0 0.0
        %704 = vmatpush1.msra.mxu0 0.0
        %705 = vmatprep.subr.mxu0 0.0
        %706 = vmatpush1.msra.mxu0 0.0
        %707 = vmatprep.subr.mxu0 0.0
        %708 = vmatpush1.msra.mxu0 0.0
        %709 = vmatprep.subr.mxu0 0.0
        %710 = vmatpush1.msra.mxu0 0.0
        %711 = vmatprep.subr.mxu0 0.0
        %712 = vmatpush1.msra.mxu0 0.0
        %713 = vmatprep.subr.mxu0 0.0
        %714 = vmatpush1.msra.mxu0 0.0
        %715 = vmatprep.subr.mxu0 0.0
        %716 = vmatpush1.msra.mxu0 0.0
        %717 = vmatprep.mubr.f32.mxu0 0.0
        %v718 = vand.u32 %v355, 4294901760
        %v719 = vsub.f32 %v355, %v718
        %720 = vmatmul.mubr.f32.gmra.mrb[0].mxu0 %v719
        %v721 = vpop.f32.mrb[0].mxu0
        %v722 = vadd.f32 %v618, %v721
        %v723 = vpop.f32.mrb[0].mxu0
        %724 = vdwg.mxu0
        %725 = vmatprep.subr.mxu0 0.0
        %v726 = vand.u32 %v356, 4294901760
        %727 = vmatpush1.msra.mxu0 %v726
        %728 = vmatprep.subr.mxu0 0.0
        %v729 = vand.u32 %v357, 4294901760
        %730 = vmatpush1.msra.mxu0 %v729
        %731 = vmatprep.subr.mxu0 0.0
        %v732 = vand.u32 %v358, 4294901760
        %733 = vmatpush1.msra.mxu0 %v732
        %734 = vmatprep.subr.mxu0 0.0
        %v735 = vand.u32 %v359, 4294901760
        %736 = vmatpush1.msra.mxu0 %v735
        %737 = vmatprep.subr.mxu0 0.0
        %v738 = vand.u32 %v360, 4294901760
        %739 = vmatpush1.msra.mxu0 %v738
        %740 = vmatprep.subr.mxu0 0.0
        %v741 = vand.u32 %v361, 4294901760
        %742 = vmatpush1.msra.mxu0 %v741
        %743 = vmatprep.subr.mxu0 0.0
        %v744 = vand.u32 %v362, 4294901760
        %745 = vmatpush1.msra.mxu0 %v744
        %746 = vmatprep.subr.mxu0 0.0
        %v747 = vand.u32 %v363, 4294901760
        %748 = vmatpush1.msra.mxu0 %v747
        %749 = vmatprep.subr.mxu0 0.0
        %v750 = vand.u32 %v364, 4294901760
        %751 = vmatpush1.msra.mxu0 %v750
        %752 = vmatprep.subr.mxu0 0.0
        %v753 = vand.u32 %v365, 4294901760
        %754 = vmatpush1.msra.mxu0 %v753
        %755 = vmatprep.subr.mxu0 0.0
        %v756 = vand.u32 %v366, 4294901760
        %757 = vmatpush1.msra.mxu0 %v756
        %758 = vmatprep.subr.mxu0 0.0
        %v759 = vand.u32 %v367, 4294901760
        %760 = vmatpush1.msra.mxu0 %v759
        %761 = vmatprep.subr.mxu0 0.0
        %v762 = vand.u32 %v368, 4294901760
        %763 = vmatpush1.msra.mxu0 %v762
        %764 = vmatprep.subr.mxu0 0.0
        %v765 = vand.u32 %v369, 4294901760
        %766 = vmatpush1.msra.mxu0 %v765
        %767 = vmatprep.subr.mxu0 0.0
        %v768 = vand.u32 %v370, 4294901760
        %769 = vmatpush1.msra.mxu0 %v768
        %770 = vmatprep.subr.mxu0 0.0
        %v771 = vand.u32 %v371, 4294901760
        %772 = vmatpush1.msra.mxu0 %v771
        %773 = vmatprep.subr.mxu0 0.0
        %774 = vmatpush1.msra.mxu0 0.0
        %775 = vmatprep.subr.mxu0 0.0
        %776 = vmatpush1.msra.mxu0 0.0
        %777 = vmatprep.subr.mxu0 0.0
        %778 = vmatpush1.msra.mxu0 0.0
        %779 = vmatprep.subr.mxu0 0.0
        %780 = vmatpush1.msra.mxu0 0.0
        %781 = vmatprep.subr.mxu0 0.0
        %782 = vmatpush1.msra.mxu0 0.0
        %783 = vmatprep.subr.mxu0 0.0
        %784 = vmatpush1.msra.mxu0 0.0
        %785 = vmatprep.subr.mxu0 0.0
        %786 = vmatpush1.msra.mxu0 0.0
        %787 = vmatprep.subr.mxu0 0.0
        %788 = vmatpush1.msra.mxu0 0.0
        %789 = vmatprep.subr.mxu0 0.0
        %790 = vmatpush1.msra.mxu0 0.0
        %791 = vmatprep.subr.mxu0 0.0
        %792 = vmatpush1.msra.mxu0 0.0
        %793 = vmatprep.subr.mxu0 0.0
        %794 = vmatpush1.msra.mxu0 0.0
        %795 = vmatprep.subr.mxu0 0.0
        %796 = vmatpush1.msra.mxu0 0.0
        %797 = vmatprep.subr.mxu0 0.0
        %798 = vmatpush1.msra.mxu0 0.0
        %799 = vmatprep.subr.mxu0 0.0
        %800 = vmatpush1.msra.mxu0 0.0
        %801 = vmatprep.subr.mxu0 0.0
        %802 = vmatpush1.msra.mxu0 0.0
        %803 = vmatprep.subr.mxu0 0.0
        %804 = vmatpush1.msra.mxu0 0.0
        %805 = vmatprep.mubr.f32.mxu0 0.0
        %v806 = vand.u32 %v355, 4294901760
        %v807 = vsub.f32 %v355, %v806
        %v808 = vand.u32 %v807, 4294901760
        %809 = vmatmul.mubr.f32.gmra.mrb[0].mxu0 %v808
        %v810 = vpop.f32.mrb[0].mxu0
        %v811 = vadd.f32 %v722, %v810
        %v812 = vpop.f32.mrb[0].mxu0
        %813 = vdwg.mxu0
        %814 = vmatprep.subr.mxu0 0.0
        %v815 = vand.u32 %v356, 4294901760
        %v816 = vsub.f32 %v356, %v815
        %v817 = vand.u32 %v816, 4294901760
        %818 = vmatpush1.msra.mxu0 %v817
        %819 = vmatprep.subr.mxu0 0.0
        %v820 = vand.u32 %v357, 4294901760
        %v821 = vsub.f32 %v357, %v820
        %v822 = vand.u32 %v821, 4294901760
        %823 = vmatpush1.msra.mxu0 %v822
        %824 = vmatprep.subr.mxu0 0.0
        %v825 = vand.u32 %v358, 4294901760
        %v826 = vsub.f32 %v358, %v825
        %v827 = vand.u32 %v826, 4294901760
        %828 = vmatpush1.msra.mxu0 %v827
        %829 = vmatprep.subr.mxu0 0.0
        %v830 = vand.u32 %v359, 4294901760
        %v831 = vsub.f32 %v359, %v830
        %v832 = vand.u32 %v831, 4294901760
        %833 = vmatpush1.msra.mxu0 %v832
        %834 = vmatprep.subr.mxu0 0.0
        %v835 = vand.u32 %v360, 4294901760
        %v836 = vsub.f32 %v360, %v835
        %v837 = vand.u32 %v836, 4294901760
        %838 = vmatpush1.msra.mxu0 %v837
        %839 = vmatprep.subr.mxu0 0.0
        %v840 = vand.u32 %v361, 4294901760
        %v841 = vsub.f32 %v361, %v840
        %v842 = vand.u32 %v841, 4294901760
        %843 = vmatpush1.msra.mxu0 %v842
        %844 = vmatprep.subr.mxu0 0.0
        %v845 = vand.u32 %v362, 4294901760
        %v846 = vsub.f32 %v362, %v845
        %v847 = vand.u32 %v846, 4294901760
        %848 = vmatpush1.msra.mxu0 %v847
        %849 = vmatprep.subr.mxu0 0.0
        %v850 = vand.u32 %v363, 4294901760
        %v851 = vsub.f32 %v363, %v850
        %v852 = vand.u32 %v851, 4294901760
        %853 = vmatpush1.msra.mxu0 %v852
        %854 = vmatprep.subr.mxu0 0.0
        %v855 = vand.u32 %v364, 4294901760
        %v856 = vsub.f32 %v364, %v855
        %v857 = vand.u32 %v856, 4294901760
        %858 = vmatpush1.msra.mxu0 %v857
        %859 = vmatprep.subr.mxu0 0.0
        %v860 = vand.u32 %v365, 4294901760
        %v861 = vsub.f32 %v365, %v860
        %v862 = vand.u32 %v861, 4294901760
        %863 = vmatpush1.msra.mxu0 %v862
        %864 = vmatprep.subr.mxu0 0.0
        %v865 = vand.u32 %v366, 4294901760
        %v866 = vsub.f32 %v366, %v865
        %v867 = vand.u32 %v866, 4294901760
        %868 = vmatpush1.msra.mxu0 %v867
        %869 = vmatprep.subr.mxu0 0.0
        %v870 = vand.u32 %v367, 4294901760
        %v871 = vsub.f32 %v367, %v870
        %v872 = vand.u32 %v871, 4294901760
        %873 = vmatpush1.msra.mxu0 %v872
        %874 = vmatprep.subr.mxu0 0.0
        %v875 = vand.u32 %v368, 4294901760
        %v876 = vsub.f32 %v368, %v875
        %v877 = vand.u32 %v876, 4294901760
        %878 = vmatpush1.msra.mxu0 %v877
        %879 = vmatprep.subr.mxu0 0.0
        %v880 = vand.u32 %v369, 4294901760
        %v881 = vsub.f32 %v369, %v880
        %v882 = vand.u32 %v881, 4294901760
        %883 = vmatpush1.msra.mxu0 %v882
        %884 = vmatprep.subr.mxu0 0.0
        %v885 = vand.u32 %v370, 4294901760
        %v886 = vsub.f32 %v370, %v885
        %v887 = vand.u32 %v886, 4294901760
        %888 = vmatpush1.msra.mxu0 %v887
        %889 = vmatprep.subr.mxu0 0.0
        %v890 = vand.u32 %v371, 4294901760
        %v891 = vsub.f32 %v371, %v890
        %v892 = vand.u32 %v891, 4294901760
        %893 = vmatpush1.msra.mxu0 %v892
        %894 = vmatprep.subr.mxu0 0.0
        %895 = vmatpush1.msra.mxu0 0.0
        %896 = vmatprep.subr.mxu0 0.0
        %897 = vmatpush1.msra.mxu0 0.0
        %898 = vmatprep.subr.mxu0 0.0
        %899 = vmatpush1.msra.mxu0 0.0
        %900 = vmatprep.subr.mxu0 0.0
        %901 = vmatpush1.msra.mxu0 0.0
        %902 = vmatprep.subr.mxu0 0.0
        %903 = vmatpush1.msra.mxu0 0.0
        %904 = vmatprep.subr.mxu0 0.0
        %905 = vmatpush1.msra.mxu0 0.0
        %906 = vmatprep.subr.mxu0 0.0
        %907 = vmatpush1.msra.mxu0 0.0
        %908 = vmatprep.subr.mxu0 0.0
        %909 = vmatpush1.msra.mxu0 0.0
        %910 = vmatprep.subr.mxu0 0.0
        %911 = vmatpush1.msra.mxu0 0.0
        %912 = vmatprep.subr.mxu0 0.0
        %913 = vmatpush1.msra.mxu0 0.0
        %914 = vmatprep.subr.mxu0 0.0
        %915 = vmatpush1.msra.mxu0 0.0
        %916 = vmatprep.subr.mxu0 0.0
        %917 = vmatpush1.msra.mxu0 0.0
        %918 = vmatprep.subr.mxu0 0.0
        %919 = vmatpush1.msra.mxu0 0.0
        %920 = vmatprep.subr.mxu0 0.0
        %921 = vmatpush1.msra.mxu0 0.0
        %922 = vmatprep.subr.mxu0 0.0
        %923 = vmatpush1.msra.mxu0 0.0
        %924 = vmatprep.subr.mxu0 0.0
        %925 = vmatpush1.msra.mxu0 0.0
        %926 = vmatprep.mubr.f32.mxu0 0.0
        %v927 = vand.u32 %v355, 4294901760
        %928 = vmatmul.mubr.f32.gmra.mrb[0].mxu0 %v927
        %v929 = vpop.f32.mrb[0].mxu0
        %v930 = vadd.f32 %v811, %v929
        %v931 = vpop.f32.mrb[0].mxu0
        %932 = vdwg.mxu0
        %933 = vmatprep.subr.mxu0 0.0
        %v934 = vand.u32 %v356, 4294901760
        %935 = vmatpush1.msra.mxu0 %v934
        %936 = vmatprep.subr.mxu0 0.0
        %v937 = vand.u32 %v357, 4294901760
        %938 = vmatpush1.msra.mxu0 %v937
        %939 = vmatprep.subr.mxu0 0.0
        %v940 = vand.u32 %v358, 4294901760
        %941 = vmatpush1.msra.mxu0 %v940
        %942 = vmatprep.subr.mxu0 0.0
        %v943 = vand.u32 %v359, 4294901760
        %944 = vmatpush1.msra.mxu0 %v943
        %945 = vmatprep.subr.mxu0 0.0
        %v946 = vand.u32 %v360, 4294901760
        %947 = vmatpush1.msra.mxu0 %v946
        %948 = vmatprep.subr.mxu0 0.0
        %v949 = vand.u32 %v361, 4294901760
        %950 = vmatpush1.msra.mxu0 %v949
        %951 = vmatprep.subr.mxu0 0.0
        %v952 = vand.u32 %v362, 4294901760
        %953 = vmatpush1.msra.mxu0 %v952
        %954 = vmatprep.subr.mxu0 0.0
        %v955 = vand.u32 %v363, 4294901760
        %956 = vmatpush1.msra.mxu0 %v955
        %957 = vmatprep.subr.mxu0 0.0
        %v958 = vand.u32 %v364, 4294901760
        %959 = vmatpush1.msra.mxu0 %v958
        %960 = vmatprep.subr.mxu0 0.0
        %v961 = vand.u32 %v365, 4294901760
        %962 = vmatpush1.msra.mxu0 %v961
        %963 = vmatprep.subr.mxu0 0.0
        %v964 = vand.u32 %v366, 4294901760
        %965 = vmatpush1.msra.mxu0 %v964
        %966 = vmatprep.subr.mxu0 0.0
        %v967 = vand.u32 %v367, 4294901760
        %968 = vmatpush1.msra.mxu0 %v967
        %969 = vmatprep.subr.mxu0 0.0
        %v970 = vand.u32 %v368, 4294901760
        %971 = vmatpush1.msra.mxu0 %v970
        %972 = vmatprep.subr.mxu0 0.0
        %v973 = vand.u32 %v369, 4294901760
        %974 = vmatpush1.msra.mxu0 %v973
        %975 = vmatprep.subr.mxu0 0.0
        %v976 = vand.u32 %v370, 4294901760
        %977 = vmatpush1.msra.mxu0 %v976
        %978 = vmatprep.subr.mxu0 0.0
        %v979 = vand.u32 %v371, 4294901760
        %980 = vmatpush1.msra.mxu0 %v979
        %981 = vmatprep.subr.mxu0 0.0
        %982 = vmatpush1.msra.mxu0 0.0
        %983 = vmatprep.subr.mxu0 0.0
        %984 = vmatpush1.msra.mxu0 0.0
        %985 = vmatprep.subr.mxu0 0.0
        %986 = vmatpush1.msra.mxu0 0.0
        %987 = vmatprep.subr.mxu0 0.0
        %988 = vmatpush1.msra.mxu0 0.0
        %989 = vmatprep.subr.mxu0 0.0
        %990 = vmatpush1.msra.mxu0 0.0
        %991 = vmatprep.subr.mxu0 0.0
        %992 = vmatpush1.msra.mxu0 0.0
        %993 = vmatprep.subr.mxu0 0.0
        %994 = vmatpush1.msra.mxu0 0.0
        %995 = vmatprep.subr.mxu0 0.0
        %996 = vmatpush1.msra.mxu0 0.0
        %997 = vmatprep.subr.mxu0 0.0
        %998 = vmatpush1.msra.mxu0 0.0
        %999 = vmatprep.subr.mxu0 0.0
        %1000 = vmatpush1.msra.mxu0 0.0
        %1001 = vmatprep.subr.mxu0 0.0
        %1002 = vmatpush1.msra.mxu0 0.0
        %1003 = vmatprep.subr.mxu0 0.0
        %1004 = vmatpush1.msra.mxu0 0.0
        %1005 = vmatprep.subr.mxu0 0.0
        %1006 = vmatpush1.msra.mxu0 0.0
        %1007 = vmatprep.subr.mxu0 0.0
        %1008 = vmatpush1.msra.mxu0 0.0
        %1009 = vmatprep.subr.mxu0 0.0
        %1010 = vmatpush1.msra.mxu0 0.0
        %1011 = vmatprep.subr.mxu0 0.0
        %1012 = vmatpush1.msra.mxu0 0.0
        %1013 = vmatprep.mubr.f32.mxu0 0.0
        %v1014 = vand.u32 %v355, 4294901760
        %1015 = vmatmul.mubr.f32.gmra.mrb[0].mxu0 %v1014
        %v1016 = vpop.f32.mrb[0].mxu0
        %v1017 = vadd.f32 %v930, %v1016
        %v1018 = vpop.f32.mrb[0].mxu0
        %1019 = vdwg.mxu0
        %v1020 = vmul.f32 %v1017, %v1017
        %vm1021 = vcmask 523264
        %v1022 = vsel %vm1021, %v1020, 0.0
        %1023 = vadd.xlane.f32.xlu0 %v1022
        %v1024 = vpop.xlane.xlu0 %1023
        %v1025 = vmax.f32 %v1024, 1e-24
        %v1026 = vrsqrt.pop %v1025
        %v1027 = vmul.f32 %v1017, %v1026
        %v1028 = vmul.f32 %v1027, %v1027
        %v1029 = vsel %vm1021, %v1028, 0.0
        %1030 = vadd.xlane.f32.xlu0 %v1029
        %v1031 = vpop.xlane.xlu0 %1030
        %v1032 = vld [vmem:[%s3] sm:$0xff]
        %v1033 = vld [vmem:[%s3 + $0x8] sm:$0xff]
        %v1034 = vld [vmem:[%s3 + $0x10] sm:$0xff]
        %v1035 = vld [vmem:[%s3 + $0x18] sm:$0xff]
        %v1036 = vld [vmem:[%s3 + $0x20] sm:$0xff]
        %v1037 = vld [vmem:[%s3 + $0x28] sm:$0xff]
        %v1038 = vld [vmem:[%s3 + $0x30] sm:$0xff]
        %v1039 = vld [vmem:[%s3 + $0x38] sm:$0xff]
        %v1040 = vld [vmem:[%s4] sm:$0x1]
        %v1042 = vlaneseq
        %v1043 = vshrl.u32 %v1042, 7
        %v1044 = vsub.s32 0, %v1043
        %v1045 = vrot.slane %v1040, %v1044
        %v1048 = vsel %vm1021, %v1027, 0
        %1050 = vmatprep.subr.mxu0 0.0
        %v1051 = vand.u32 %v1032, 4294901760
        %1052 = vmatpush1.msra.mxu0 %v1051
        %1053 = vmatprep.subr.mxu0 0.0
        %v1054 = vand.u32 %v1033, 4294901760
        %1055 = vmatpush1.msra.mxu0 %v1054
        %1056 = vmatprep.subr.mxu0 0.0
        %v1057 = vand.u32 %v1034, 4294901760
        %1058 = vmatpush1.msra.mxu0 %v1057
        %1059 = vmatprep.subr.mxu0 0.0
        %v1060 = vand.u32 %v1035, 4294901760
        %1061 = vmatpush1.msra.mxu0 %v1060
        %1062 = vmatprep.subr.mxu0 0.0
        %v1063 = vand.u32 %v1036, 4294901760
        %1064 = vmatpush1.msra.mxu0 %v1063
        %1065 = vmatprep.subr.mxu0 0.0
        %v1066 = vand.u32 %v1037, 4294901760
        %1067 = vmatpush1.msra.mxu0 %v1066
        %1068 = vmatprep.subr.mxu0 0.0
        %v1069 = vand.u32 %v1038, 4294901760
        %1070 = vmatpush1.msra.mxu0 %v1069
        %1071 = vmatprep.subr.mxu0 0.0
        %v1072 = vand.u32 %v1039, 4294901760
        %1073 = vmatpush1.msra.mxu0 %v1072
        %1074 = vmatprep.subr.mxu0 0.0
        %1075 = vmatpush1.msra.mxu0 0.0
        %1076 = vmatprep.subr.mxu0 0.0
        %1077 = vmatpush1.msra.mxu0 0.0
        %1078 = vmatprep.subr.mxu0 0.0
        %1079 = vmatpush1.msra.mxu0 0.0
        %1080 = vmatprep.subr.mxu0 0.0
        %1081 = vmatpush1.msra.mxu0 0.0
        %1082 = vmatprep.subr.mxu0 0.0
        %1083 = vmatpush1.msra.mxu0 0.0
        %1084 = vmatprep.subr.mxu0 0.0
        %1085 = vmatpush1.msra.mxu0 0.0
        %1086 = vmatprep.subr.mxu0 0.0
        %1087 = vmatpush1.msra.mxu0 0.0
        %1088 = vmatprep.subr.mxu0 0.0
        %1089 = vmatpush1.msra.mxu0 0.0
        %1090 = vmatprep.subr.mxu0 0.0
        %1091 = vmatpush1.msra.mxu0 0.0
        %1092 = vmatprep.subr.mxu0 0.0
        %1093 = vmatpush1.msra.mxu0 0.0
        %1094 = vmatprep.subr.mxu0 0.0
        %1095 = vmatpush1.msra.mxu0 0.0
        %1096 = vmatprep.subr.mxu0 0.0
        %1097 = vmatpush1.msra.mxu0 0.0
        %1098 = vmatprep.subr.mxu0 0.0
        %1099 = vmatpush1.msra.mxu0 0.0
        %1100 = vmatprep.subr.mxu0 0.0
        %1101 = vmatpush1.msra.mxu0 0.0
        %1102 = vmatprep.subr.mxu0 0.0
        %1103 = vmatpush1.msra.mxu0 0.0
        %1104 = vmatprep.subr.mxu0 0.0
        %1105 = vmatpush1.msra.mxu0 0.0
        %1106 = vmatprep.subr.mxu0 0.0
        %1107 = vmatpush1.msra.mxu0 0.0
        %1108 = vmatprep.subr.mxu0 0.0
        %1109 = vmatpush1.msra.mxu0 0.0
        %1110 = vmatprep.subr.mxu0 0.0
        %1111 = vmatpush1.msra.mxu0 0.0
        %1112 = vmatprep.subr.mxu0 0.0
        %1113 = vmatpush1.msra.mxu0 0.0
        %1114 = vmatprep.subr.mxu0 0.0
        %1115 = vmatpush1.msra.mxu0 0.0
        %1116 = vmatprep.subr.mxu0 0.0
        %1117 = vmatpush1.msra.mxu0 0.0
        %1118 = vmatprep.subr.mxu0 0.0
        %1119 = vmatpush1.msra.mxu0 0.0
        %1120 = vmatprep.subr.mxu0 0.0
        %1121 = vmatpush1.msra.mxu0 0.0
        %1122 = vmatprep.mubr.f32.mxu0 0.0
        %v1123 = vand.u32 %v1048, 4294901760
        %v1124 = vsub.f32 %v1048, %v1123
        %v1125 = vand.u32 %v1124, 4294901760
        %v1126 = vsub.f32 %v1124, %v1125
        %v1127 = vand.u32 %v1126, 4294901760
        %1128 = vmatmul.mubr.f32.gmra.mrb[0].mxu0 %v1127
        %v1129 = vpop.f32.mrb[0].mxu0
        %v1130 = vadd.f32 %v1045, %v1129
        %v1131 = vpop.f32.mrb[0].mxu0
        %1132 = vdwg.mxu0
        %1133 = vmatprep.subr.mxu0 0.0
        %v1134 = vand.u32 %v1032, 4294901760
        %v1135 = vsub.f32 %v1032, %v1134
        %v1136 = vand.u32 %v1135, 4294901760
        %v1137 = vsub.f32 %v1135, %v1136
        %v1138 = vand.u32 %v1137, 4294901760
        %1139 = vmatpush1.msra.mxu0 %v1138
        %1140 = vmatprep.subr.mxu0 0.0
        %v1141 = vand.u32 %v1033, 4294901760
        %v1142 = vsub.f32 %v1033, %v1141
        %v1143 = vand.u32 %v1142, 4294901760
        %v1144 = vsub.f32 %v1142, %v1143
        %v1145 = vand.u32 %v1144, 4294901760
        %1146 = vmatpush1.msra.mxu0 %v1145
        %1147 = vmatprep.subr.mxu0 0.0
        %v1148 = vand.u32 %v1034, 4294901760
        %v1149 = vsub.f32 %v1034, %v1148
        %v1150 = vand.u32 %v1149, 4294901760
        %v1151 = vsub.f32 %v1149, %v1150
        %v1152 = vand.u32 %v1151, 4294901760
        %1153 = vmatpush1.msra.mxu0 %v1152
        %1154 = vmatprep.subr.mxu0 0.0
        %v1155 = vand.u32 %v1035, 4294901760
        %v1156 = vsub.f32 %v1035, %v1155
        %v1157 = vand.u32 %v1156, 4294901760
        %v1158 = vsub.f32 %v1156, %v1157
        %v1159 = vand.u32 %v1158, 4294901760
        %1160 = vmatpush1.msra.mxu0 %v1159
        %1161 = vmatprep.subr.mxu0 0.0
        %v1162 = vand.u32 %v1036, 4294901760
        %v1163 = vsub.f32 %v1036, %v1162
        %v1164 = vand.u32 %v1163, 4294901760
        %v1165 = vsub.f32 %v1163, %v1164
        %v1166 = vand.u32 %v1165, 4294901760
        %1167 = vmatpush1.msra.mxu0 %v1166
        %1168 = vmatprep.subr.mxu0 0.0
        %v1169 = vand.u32 %v1037, 4294901760
        %v1170 = vsub.f32 %v1037, %v1169
        %v1171 = vand.u32 %v1170, 4294901760
        %v1172 = vsub.f32 %v1170, %v1171
        %v1173 = vand.u32 %v1172, 4294901760
        %1174 = vmatpush1.msra.mxu0 %v1173
        %1175 = vmatprep.subr.mxu0 0.0
        %v1176 = vand.u32 %v1038, 4294901760
        %v1177 = vsub.f32 %v1038, %v1176
        %v1178 = vand.u32 %v1177, 4294901760
        %v1179 = vsub.f32 %v1177, %v1178
        %v1180 = vand.u32 %v1179, 4294901760
        %1181 = vmatpush1.msra.mxu0 %v1180
        %1182 = vmatprep.subr.mxu0 0.0
        %v1183 = vand.u32 %v1039, 4294901760
        %v1184 = vsub.f32 %v1039, %v1183
        %v1185 = vand.u32 %v1184, 4294901760
        %v1186 = vsub.f32 %v1184, %v1185
        %v1187 = vand.u32 %v1186, 4294901760
        %1188 = vmatpush1.msra.mxu0 %v1187
        %1189 = vmatprep.subr.mxu0 0.0
        %1190 = vmatpush1.msra.mxu0 0.0
        %1191 = vmatprep.subr.mxu0 0.0
        %1192 = vmatpush1.msra.mxu0 0.0
        %1193 = vmatprep.subr.mxu0 0.0
        %1194 = vmatpush1.msra.mxu0 0.0
        %1195 = vmatprep.subr.mxu0 0.0
        %1196 = vmatpush1.msra.mxu0 0.0
        %1197 = vmatprep.subr.mxu0 0.0
        %1198 = vmatpush1.msra.mxu0 0.0
        %1199 = vmatprep.subr.mxu0 0.0
        %1200 = vmatpush1.msra.mxu0 0.0
        %1201 = vmatprep.subr.mxu0 0.0
        %1202 = vmatpush1.msra.mxu0 0.0
        %1203 = vmatprep.subr.mxu0 0.0
        %1204 = vmatpush1.msra.mxu0 0.0
        %1205 = vmatprep.subr.mxu0 0.0
        %1206 = vmatpush1.msra.mxu0 0.0
        %1207 = vmatprep.subr.mxu0 0.0
        %1208 = vmatpush1.msra.mxu0 0.0
        %1209 = vmatprep.subr.mxu0 0.0
        %1210 = vmatpush1.msra.mxu0 0.0
        %1211 = vmatprep.subr.mxu0 0.0
        %1212 = vmatpush1.msra.mxu0 0.0
        %1213 = vmatprep.subr.mxu0 0.0
        %1214 = vmatpush1.msra.mxu0 0.0
        %1215 = vmatprep.subr.mxu0 0.0
        %1216 = vmatpush1.msra.mxu0 0.0
        %1217 = vmatprep.subr.mxu0 0.0
        %1218 = vmatpush1.msra.mxu0 0.0
        %1219 = vmatprep.subr.mxu0 0.0
        %1220 = vmatpush1.msra.mxu0 0.0
        %1221 = vmatprep.subr.mxu0 0.0
        %1222 = vmatpush1.msra.mxu0 0.0
        %1223 = vmatprep.subr.mxu0 0.0
        %1224 = vmatpush1.msra.mxu0 0.0
        %1225 = vmatprep.subr.mxu0 0.0
        %1226 = vmatpush1.msra.mxu0 0.0
        %1227 = vmatprep.subr.mxu0 0.0
        %1228 = vmatpush1.msra.mxu0 0.0
        %1229 = vmatprep.subr.mxu0 0.0
        %1230 = vmatpush1.msra.mxu0 0.0
        %1231 = vmatprep.subr.mxu0 0.0
        %1232 = vmatpush1.msra.mxu0 0.0
        %1233 = vmatprep.subr.mxu0 0.0
        %1234 = vmatpush1.msra.mxu0 0.0
        %1235 = vmatprep.subr.mxu0 0.0
        %1236 = vmatpush1.msra.mxu0 0.0
        %1237 = vmatprep.mubr.f32.mxu0 0.0
        %v1238 = vand.u32 %v1048, 4294901760
        %1239 = vmatmul.mubr.f32.gmra.mrb[0].mxu0 %v1238
        %v1240 = vpop.f32.mrb[0].mxu0
        %v1241 = vadd.f32 %v1130, %v1240
        %v1242 = vpop.f32.mrb[0].mxu0
        %1243 = vdwg.mxu0
        %1244 = vmatprep.subr.mxu0 0.0
        %v1245 = vand.u32 %v1032, 4294901760
        %v1246 = vsub.f32 %v1032, %v1245
        %1247 = vmatpush1.msra.mxu0 %v1246
        %1248 = vmatprep.subr.mxu0 0.0
        %v1249 = vand.u32 %v1033, 4294901760
        %v1250 = vsub.f32 %v1033, %v1249
        %1251 = vmatpush1.msra.mxu0 %v1250
        %1252 = vmatprep.subr.mxu0 0.0
        %v1253 = vand.u32 %v1034, 4294901760
        %v1254 = vsub.f32 %v1034, %v1253
        %1255 = vmatpush1.msra.mxu0 %v1254
        %1256 = vmatprep.subr.mxu0 0.0
        %v1257 = vand.u32 %v1035, 4294901760
        %v1258 = vsub.f32 %v1035, %v1257
        %1259 = vmatpush1.msra.mxu0 %v1258
        %1260 = vmatprep.subr.mxu0 0.0
        %v1261 = vand.u32 %v1036, 4294901760
        %v1262 = vsub.f32 %v1036, %v1261
        %1263 = vmatpush1.msra.mxu0 %v1262
        %1264 = vmatprep.subr.mxu0 0.0
        %v1265 = vand.u32 %v1037, 4294901760
        %v1266 = vsub.f32 %v1037, %v1265
        %1267 = vmatpush1.msra.mxu0 %v1266
        %1268 = vmatprep.subr.mxu0 0.0
        %v1269 = vand.u32 %v1038, 4294901760
        %v1270 = vsub.f32 %v1038, %v1269
        %1271 = vmatpush1.msra.mxu0 %v1270
        %1272 = vmatprep.subr.mxu0 0.0
        %v1273 = vand.u32 %v1039, 4294901760
        %v1274 = vsub.f32 %v1039, %v1273
        %1275 = vmatpush1.msra.mxu0 %v1274
        %1276 = vmatprep.subr.mxu0 0.0
        %1277 = vmatpush1.msra.mxu0 0.0
        %1278 = vmatprep.subr.mxu0 0.0
        %1279 = vmatpush1.msra.mxu0 0.0
        %1280 = vmatprep.subr.mxu0 0.0
        %1281 = vmatpush1.msra.mxu0 0.0
        %1282 = vmatprep.subr.mxu0 0.0
        %1283 = vmatpush1.msra.mxu0 0.0
        %1284 = vmatprep.subr.mxu0 0.0
        %1285 = vmatpush1.msra.mxu0 0.0
        %1286 = vmatprep.subr.mxu0 0.0
        %1287 = vmatpush1.msra.mxu0 0.0
        %1288 = vmatprep.subr.mxu0 0.0
        %1289 = vmatpush1.msra.mxu0 0.0
        %1290 = vmatprep.subr.mxu0 0.0
        %1291 = vmatpush1.msra.mxu0 0.0
        %1292 = vmatprep.subr.mxu0 0.0
        %1293 = vmatpush1.msra.mxu0 0.0
        %1294 = vmatprep.subr.mxu0 0.0
        %1295 = vmatpush1.msra.mxu0 0.0
        %1296 = vmatprep.subr.mxu0 0.0
        %1297 = vmatpush1.msra.mxu0 0.0
        %1298 = vmatprep.subr.mxu0 0.0
        %1299 = vmatpush1.msra.mxu0 0.0
        %1300 = vmatprep.subr.mxu0 0.0
        %1301 = vmatpush1.msra.mxu0 0.0
        %1302 = vmatprep.subr.mxu0 0.0
        %1303 = vmatpush1.msra.mxu0 0.0
        %1304 = vmatprep.subr.mxu0 0.0
        %1305 = vmatpush1.msra.mxu0 0.0
        %1306 = vmatprep.subr.mxu0 0.0
        %1307 = vmatpush1.msra.mxu0 0.0
        %1308 = vmatprep.subr.mxu0 0.0
        %1309 = vmatpush1.msra.mxu0 0.0
        %1310 = vmatprep.subr.mxu0 0.0
        %1311 = vmatpush1.msra.mxu0 0.0
        %1312 = vmatprep.subr.mxu0 0.0
        %1313 = vmatpush1.msra.mxu0 0.0
        %1314 = vmatprep.subr.mxu0 0.0
        %1315 = vmatpush1.msra.mxu0 0.0
        %1316 = vmatprep.subr.mxu0 0.0
        %1317 = vmatpush1.msra.mxu0 0.0
        %1318 = vmatprep.subr.mxu0 0.0
        %1319 = vmatpush1.msra.mxu0 0.0
        %1320 = vmatprep.subr.mxu0 0.0
        %1321 = vmatpush1.msra.mxu0 0.0
        %1322 = vmatprep.subr.mxu0 0.0
        %1323 = vmatpush1.msra.mxu0 0.0
        %1324 = vmatprep.mubr.f32.mxu0 0.0
        %v1325 = vand.u32 %v1048, 4294901760
        %v1326 = vsub.f32 %v1048, %v1325
        %1327 = vmatmul.mubr.f32.gmra.mrb[0].mxu0 %v1326
        %v1328 = vpop.f32.mrb[0].mxu0
        %v1329 = vadd.f32 %v1241, %v1328
        %v1330 = vpop.f32.mrb[0].mxu0
        %1331 = vdwg.mxu0
        %1332 = vmatprep.subr.mxu0 0.0
        %v1333 = vand.u32 %v1032, 4294901760
        %1334 = vmatpush1.msra.mxu0 %v1333
        %1335 = vmatprep.subr.mxu0 0.0
        %v1336 = vand.u32 %v1033, 4294901760
        %1337 = vmatpush1.msra.mxu0 %v1336
        %1338 = vmatprep.subr.mxu0 0.0
        %v1339 = vand.u32 %v1034, 4294901760
        %1340 = vmatpush1.msra.mxu0 %v1339
        %1341 = vmatprep.subr.mxu0 0.0
        %v1342 = vand.u32 %v1035, 4294901760
        %1343 = vmatpush1.msra.mxu0 %v1342
        %1344 = vmatprep.subr.mxu0 0.0
        %v1345 = vand.u32 %v1036, 4294901760
        %1346 = vmatpush1.msra.mxu0 %v1345
        %1347 = vmatprep.subr.mxu0 0.0
        %v1348 = vand.u32 %v1037, 4294901760
        %1349 = vmatpush1.msra.mxu0 %v1348
        %1350 = vmatprep.subr.mxu0 0.0
        %v1351 = vand.u32 %v1038, 4294901760
        %1352 = vmatpush1.msra.mxu0 %v1351
        %1353 = vmatprep.subr.mxu0 0.0
        %v1354 = vand.u32 %v1039, 4294901760
        %1355 = vmatpush1.msra.mxu0 %v1354
        %1356 = vmatprep.subr.mxu0 0.0
        %1357 = vmatpush1.msra.mxu0 0.0
        %1358 = vmatprep.subr.mxu0 0.0
        %1359 = vmatpush1.msra.mxu0 0.0
        %1360 = vmatprep.subr.mxu0 0.0
        %1361 = vmatpush1.msra.mxu0 0.0
        %1362 = vmatprep.subr.mxu0 0.0
        %1363 = vmatpush1.msra.mxu0 0.0
        %1364 = vmatprep.subr.mxu0 0.0
        %1365 = vmatpush1.msra.mxu0 0.0
        %1366 = vmatprep.subr.mxu0 0.0
        %1367 = vmatpush1.msra.mxu0 0.0
        %1368 = vmatprep.subr.mxu0 0.0
        %1369 = vmatpush1.msra.mxu0 0.0
        %1370 = vmatprep.subr.mxu0 0.0
        %1371 = vmatpush1.msra.mxu0 0.0
        %1372 = vmatprep.subr.mxu0 0.0
        %1373 = vmatpush1.msra.mxu0 0.0
        %1374 = vmatprep.subr.mxu0 0.0
        %1375 = vmatpush1.msra.mxu0 0.0
        %1376 = vmatprep.subr.mxu0 0.0
        %1377 = vmatpush1.msra.mxu0 0.0
        %1378 = vmatprep.subr.mxu0 0.0
        %1379 = vmatpush1.msra.mxu0 0.0
        %1380 = vmatprep.subr.mxu0 0.0
        %1381 = vmatpush1.msra.mxu0 0.0
        %1382 = vmatprep.subr.mxu0 0.0
        %1383 = vmatpush1.msra.mxu0 0.0
        %1384 = vmatprep.subr.mxu0 0.0
        %1385 = vmatpush1.msra.mxu0 0.0
        %1386 = vmatprep.subr.mxu0 0.0
        %1387 = vmatpush1.msra.mxu0 0.0
        %1388 = vmatprep.subr.mxu0 0.0
        %1389 = vmatpush1.msra.mxu0 0.0
        %1390 = vmatprep.subr.mxu0 0.0
        %1391 = vmatpush1.msra.mxu0 0.0
        %1392 = vmatprep.subr.mxu0 0.0
        %1393 = vmatpush1.msra.mxu0 0.0
        %1394 = vmatprep.subr.mxu0 0.0
        %1395 = vmatpush1.msra.mxu0 0.0
        %1396 = vmatprep.subr.mxu0 0.0
        %1397 = vmatpush1.msra.mxu0 0.0
        %1398 = vmatprep.subr.mxu0 0.0
        %1399 = vmatpush1.msra.mxu0 0.0
        %1400 = vmatprep.subr.mxu0 0.0
        %1401 = vmatpush1.msra.mxu0 0.0
        %1402 = vmatprep.subr.mxu0 0.0
        %1403 = vmatpush1.msra.mxu0 0.0
        %1404 = vmatprep.mubr.f32.mxu0 0.0
        %v1405 = vand.u32 %v1048, 4294901760
        %v1406 = vsub.f32 %v1048, %v1405
        %v1407 = vand.u32 %v1406, 4294901760
        %1408 = vmatmul.mubr.f32.gmra.mrb[0].mxu0 %v1407
        %v1409 = vpop.f32.mrb[0].mxu0
        %v1410 = vadd.f32 %v1329, %v1409
        %v1411 = vpop.f32.mrb[0].mxu0
        %1412 = vdwg.mxu0
        %1413 = vmatprep.subr.mxu0 0.0
        %v1414 = vand.u32 %v1032, 4294901760
        %v1415 = vsub.f32 %v1032, %v1414
        %v1416 = vand.u32 %v1415, 4294901760
        %1417 = vmatpush1.msra.mxu0 %v1416
        %1418 = vmatprep.subr.mxu0 0.0
        %v1419 = vand.u32 %v1033, 4294901760
        %v1420 = vsub.f32 %v1033, %v1419
        %v1421 = vand.u32 %v1420, 4294901760
        %1422 = vmatpush1.msra.mxu0 %v1421
        %1423 = vmatprep.subr.mxu0 0.0
        %v1424 = vand.u32 %v1034, 4294901760
        %v1425 = vsub.f32 %v1034, %v1424
        %v1426 = vand.u32 %v1425, 4294901760
        %1427 = vmatpush1.msra.mxu0 %v1426
        %1428 = vmatprep.subr.mxu0 0.0
        %v1429 = vand.u32 %v1035, 4294901760
        %v1430 = vsub.f32 %v1035, %v1429
        %v1431 = vand.u32 %v1430, 4294901760
        %1432 = vmatpush1.msra.mxu0 %v1431
        %1433 = vmatprep.subr.mxu0 0.0
        %v1434 = vand.u32 %v1036, 4294901760
        %v1435 = vsub.f32 %v1036, %v1434
        %v1436 = vand.u32 %v1435, 4294901760
        %1437 = vmatpush1.msra.mxu0 %v1436
        %1438 = vmatprep.subr.mxu0 0.0
        %v1439 = vand.u32 %v1037, 4294901760
        %v1440 = vsub.f32 %v1037, %v1439
        %v1441 = vand.u32 %v1440, 4294901760
        %1442 = vmatpush1.msra.mxu0 %v1441
        %1443 = vmatprep.subr.mxu0 0.0
        %v1444 = vand.u32 %v1038, 4294901760
        %v1445 = vsub.f32 %v1038, %v1444
        %v1446 = vand.u32 %v1445, 4294901760
        %1447 = vmatpush1.msra.mxu0 %v1446
        %1448 = vmatprep.subr.mxu0 0.0
        %v1449 = vand.u32 %v1039, 4294901760
        %v1450 = vsub.f32 %v1039, %v1449
        %v1451 = vand.u32 %v1450, 4294901760
        %1452 = vmatpush1.msra.mxu0 %v1451
        %1453 = vmatprep.subr.mxu0 0.0
        %1454 = vmatpush1.msra.mxu0 0.0
        %1455 = vmatprep.subr.mxu0 0.0
        %1456 = vmatpush1.msra.mxu0 0.0
        %1457 = vmatprep.subr.mxu0 0.0
        %1458 = vmatpush1.msra.mxu0 0.0
        %1459 = vmatprep.subr.mxu0 0.0
        %1460 = vmatpush1.msra.mxu0 0.0
        %1461 = vmatprep.subr.mxu0 0.0
        %1462 = vmatpush1.msra.mxu0 0.0
        %1463 = vmatprep.subr.mxu0 0.0
        %1464 = vmatpush1.msra.mxu0 0.0
        %1465 = vmatprep.subr.mxu0 0.0
        %1466 = vmatpush1.msra.mxu0 0.0
        %1467 = vmatprep.subr.mxu0 0.0
        %1468 = vmatpush1.msra.mxu0 0.0
        %1469 = vmatprep.subr.mxu0 0.0
        %1470 = vmatpush1.msra.mxu0 0.0
        %1471 = vmatprep.subr.mxu0 0.0
        %1472 = vmatpush1.msra.mxu0 0.0
        %1473 = vmatprep.subr.mxu0 0.0
        %1474 = vmatpush1.msra.mxu0 0.0
        %1475 = vmatprep.subr.mxu0 0.0
        %1476 = vmatpush1.msra.mxu0 0.0
        %1477 = vmatprep.subr.mxu0 0.0
        %1478 = vmatpush1.msra.mxu0 0.0
        %1479 = vmatprep.subr.mxu0 0.0
        %1480 = vmatpush1.msra.mxu0 0.0
        %1481 = vmatprep.subr.mxu0 0.0
        %1482 = vmatpush1.msra.mxu0 0.0
        %1483 = vmatprep.subr.mxu0 0.0
        %1484 = vmatpush1.msra.mxu0 0.0
        %1485 = vmatprep.subr.mxu0 0.0
        %1486 = vmatpush1.msra.mxu0 0.0
        %1487 = vmatprep.subr.mxu0 0.0
        %1488 = vmatpush1.msra.mxu0 0.0
        %1489 = vmatprep.subr.mxu0 0.0
        %1490 = vmatpush1.msra.mxu0 0.0
        %1491 = vmatprep.subr.mxu0 0.0
        %1492 = vmatpush1.msra.mxu0 0.0
        %1493 = vmatprep.subr.mxu0 0.0
        %1494 = vmatpush1.msra.mxu0 0.0
        %1495 = vmatprep.subr.mxu0 0.0
        %1496 = vmatpush1.msra.mxu0 0.0
        %1497 = vmatprep.subr.mxu0 0.0
        %1498 = vmatpush1.msra.mxu0 0.0
        %1499 = vmatprep.subr.mxu0 0.0
        %1500 = vmatpush1.msra.mxu0 0.0
        %1501 = vmatprep.mubr.f32.mxu0 0.0
        %v1502 = vand.u32 %v1048, 4294901760
        %1503 = vmatmul.mubr.f32.gmra.mrb[0].mxu0 %v1502
        %v1504 = vpop.f32.mrb[0].mxu0
        %v1505 = vadd.f32 %v1410, %v1504
        %v1506 = vpop.f32.mrb[0].mxu0
        %1507 = vdwg.mxu0
        %1508 = vmatprep.subr.mxu0 0.0
        %v1509 = vand.u32 %v1032, 4294901760
        %1510 = vmatpush1.msra.mxu0 %v1509
        %1511 = vmatprep.subr.mxu0 0.0
        %v1512 = vand.u32 %v1033, 4294901760
        %1513 = vmatpush1.msra.mxu0 %v1512
        %1514 = vmatprep.subr.mxu0 0.0
        %v1515 = vand.u32 %v1034, 4294901760
        %1516 = vmatpush1.msra.mxu0 %v1515
        %1517 = vmatprep.subr.mxu0 0.0
        %v1518 = vand.u32 %v1035, 4294901760
        %1519 = vmatpush1.msra.mxu0 %v1518
        %1520 = vmatprep.subr.mxu0 0.0
        %v1521 = vand.u32 %v1036, 4294901760
        %1522 = vmatpush1.msra.mxu0 %v1521
        %1523 = vmatprep.subr.mxu0 0.0
        %v1524 = vand.u32 %v1037, 4294901760
        %1525 = vmatpush1.msra.mxu0 %v1524
        %1526 = vmatprep.subr.mxu0 0.0
        %v1527 = vand.u32 %v1038, 4294901760
        %1528 = vmatpush1.msra.mxu0 %v1527
        %1529 = vmatprep.subr.mxu0 0.0
        %v1530 = vand.u32 %v1039, 4294901760
        %1531 = vmatpush1.msra.mxu0 %v1530
        %1532 = vmatprep.subr.mxu0 0.0
        %1533 = vmatpush1.msra.mxu0 0.0
        %1534 = vmatprep.subr.mxu0 0.0
        %1535 = vmatpush1.msra.mxu0 0.0
        %1536 = vmatprep.subr.mxu0 0.0
        %1537 = vmatpush1.msra.mxu0 0.0
        %1538 = vmatprep.subr.mxu0 0.0
        %1539 = vmatpush1.msra.mxu0 0.0
        %1540 = vmatprep.subr.mxu0 0.0
        %1541 = vmatpush1.msra.mxu0 0.0
        %1542 = vmatprep.subr.mxu0 0.0
        %1543 = vmatpush1.msra.mxu0 0.0
        %1544 = vmatprep.subr.mxu0 0.0
        %1545 = vmatpush1.msra.mxu0 0.0
        %1546 = vmatprep.subr.mxu0 0.0
        %1547 = vmatpush1.msra.mxu0 0.0
        %1548 = vmatprep.subr.mxu0 0.0
        %1549 = vmatpush1.msra.mxu0 0.0
        %1550 = vmatprep.subr.mxu0 0.0
        %1551 = vmatpush1.msra.mxu0 0.0
        %1552 = vmatprep.subr.mxu0 0.0
        %1553 = vmatpush1.msra.mxu0 0.0
        %1554 = vmatprep.subr.mxu0 0.0
        %1555 = vmatpush1.msra.mxu0 0.0
        %1556 = vmatprep.subr.mxu0 0.0
        %1557 = vmatpush1.msra.mxu0 0.0
        %1558 = vmatprep.subr.mxu0 0.0
        %1559 = vmatpush1.msra.mxu0 0.0
        %1560 = vmatprep.subr.mxu0 0.0
        %1561 = vmatpush1.msra.mxu0 0.0
        %1562 = vmatprep.subr.mxu0 0.0
        %1563 = vmatpush1.msra.mxu0 0.0
        %1564 = vmatprep.subr.mxu0 0.0
        %1565 = vmatpush1.msra.mxu0 0.0
        %1566 = vmatprep.subr.mxu0 0.0
        %1567 = vmatpush1.msra.mxu0 0.0
        %1568 = vmatprep.subr.mxu0 0.0
        %1569 = vmatpush1.msra.mxu0 0.0
        %1570 = vmatprep.subr.mxu0 0.0
        %1571 = vmatpush1.msra.mxu0 0.0
        %1572 = vmatprep.subr.mxu0 0.0
        %1573 = vmatpush1.msra.mxu0 0.0
        %1574 = vmatprep.subr.mxu0 0.0
        %1575 = vmatpush1.msra.mxu0 0.0
        %1576 = vmatprep.subr.mxu0 0.0
        %1577 = vmatpush1.msra.mxu0 0.0
        %1578 = vmatprep.subr.mxu0 0.0
        %1579 = vmatpush1.msra.mxu0 0.0
        %1580 = vmatprep.mubr.f32.mxu0 0.0
        %v1581 = vand.u32 %v1048, 4294901760
        %1582 = vmatmul.mubr.f32.gmra.mrb[0].mxu0 %v1581
        %v1583 = vpop.f32.mrb[0].mxu0
        %v1584 = vadd.f32 %v1505, %v1583
        %v1585 = vpop.f32.mrb[0].mxu0
        %1586 = vdwg.mxu0
        %vm1587 = vcmask 130048
        %v1588 = vsel %vm1587, %v1584, -inf
        %1589 = vmax.xlane.f32.xlu0 %v1588
        %v1590 = vpop.xlane.xlu0 %1589
        %v1591 = vsub.f32 %v1584, %v1590
        %v1592 = vmul.f32 %v1591, 1.442695
        %v1593 = vpow.pop %v1592
        %v1594 = vsel %vm1587, %v1593, 0.0
        %1595 = vadd.xlane.f32.xlu0 %v1594
        %v1596 = vpop.xlane.xlu0 %1595
        %v1597 = vrcp.pop %v1596
        %v1598 = vmul.f32 %v1593, %v1597
        %v1599 = vld [vmem:[%s5] sm:$0xff]
        %v1600 = vld [vmem:[%s5 + $0x8] sm:$0xff]
        %v1601 = vld [vmem:[%s5 + $0x10] sm:$0xff]
        %v1602 = vld [vmem:[%s5 + $0x18] sm:$0xff]
        %v1603 = vld [vmem:[%s5 + $0x20] sm:$0xff]
        %v1604 = vld [vmem:[%s5 + $0x28] sm:$0xff]
        %v1605 = vld [vmem:[%s5 + $0x30] sm:$0xff]
        %v1606 = vld [vmem:[%s5 + $0x38] sm:$0xff]
        %1607 = vmatprep.subr.mxu0 0.0
        %v1608 = vand.u32 %v1599, 4294901760
        %1609 = vmatpush1.msra.mxu0 %v1608
        %1610 = vmatprep.subr.mxu0 0.0
        %v1611 = vand.u32 %v1600, 4294901760
        %1612 = vmatpush1.msra.mxu0 %v1611
        %1613 = vmatprep.subr.mxu0 0.0
        %v1614 = vand.u32 %v1601, 4294901760
        %1615 = vmatpush1.msra.mxu0 %v1614
        %1616 = vmatprep.subr.mxu0 0.0
        %v1617 = vand.u32 %v1602, 4294901760
        %1618 = vmatpush1.msra.mxu0 %v1617
        %1619 = vmatprep.subr.mxu0 0.0
        %v1620 = vand.u32 %v1603, 4294901760
        %1621 = vmatpush1.msra.mxu0 %v1620
        %1622 = vmatprep.subr.mxu0 0.0
        %v1623 = vand.u32 %v1604, 4294901760
        %1624 = vmatpush1.msra.mxu0 %v1623
        %1625 = vmatprep.subr.mxu0 0.0
        %v1626 = vand.u32 %v1605, 4294901760
        %1627 = vmatpush1.msra.mxu0 %v1626
        %1628 = vmatprep.subr.mxu0 0.0
        %v1629 = vand.u32 %v1606, 4294901760
        %1630 = vmatpush1.msra.mxu0 %v1629
        %1631 = vmatprep.subr.mxu0 0.0
        %1632 = vmatpush1.msra.mxu0 0.0
        %1633 = vmatprep.subr.mxu0 0.0
        %1634 = vmatpush1.msra.mxu0 0.0
        %1635 = vmatprep.subr.mxu0 0.0
        %1636 = vmatpush1.msra.mxu0 0.0
        %1637 = vmatprep.subr.mxu0 0.0
        %1638 = vmatpush1.msra.mxu0 0.0
        %1639 = vmatprep.subr.mxu0 0.0
        %1640 = vmatpush1.msra.mxu0 0.0
        %1641 = vmatprep.subr.mxu0 0.0
        %1642 = vmatpush1.msra.mxu0 0.0
        %1643 = vmatprep.subr.mxu0 0.0
        %1644 = vmatpush1.msra.mxu0 0.0
        %1645 = vmatprep.subr.mxu0 0.0
        %1646 = vmatpush1.msra.mxu0 0.0
        %1647 = vmatprep.subr.mxu0 0.0
        %1648 = vmatpush1.msra.mxu0 0.0
        %1649 = vmatprep.subr.mxu0 0.0
        %1650 = vmatpush1.msra.mxu0 0.0
        %1651 = vmatprep.subr.mxu0 0.0
        %1652 = vmatpush1.msra.mxu0 0.0
        %1653 = vmatprep.subr.mxu0 0.0
        %1654 = vmatpush1.msra.mxu0 0.0
        %1655 = vmatprep.subr.mxu0 0.0
        %1656 = vmatpush1.msra.mxu0 0.0
        %1657 = vmatprep.subr.mxu0 0.0
        %1658 = vmatpush1.msra.mxu0 0.0
        %1659 = vmatprep.subr.mxu0 0.0
        %1660 = vmatpush1.msra.mxu0 0.0
        %1661 = vmatprep.subr.mxu0 0.0
        %1662 = vmatpush1.msra.mxu0 0.0
        %1663 = vmatprep.subr.mxu0 0.0
        %1664 = vmatpush1.msra.mxu0 0.0
        %1665 = vmatprep.subr.mxu0 0.0
        %1666 = vmatpush1.msra.mxu0 0.0
        %1667 = vmatprep.subr.mxu0 0.0
        %1668 = vmatpush1.msra.mxu0 0.0
        %1669 = vmatprep.subr.mxu0 0.0
        %1670 = vmatpush1.msra.mxu0 0.0
        %1671 = vmatprep.subr.mxu0 0.0
        %1672 = vmatpush1.msra.mxu0 0.0
        %1673 = vmatprep.subr.mxu0 0.0
        %1674 = vmatpush1.msra.mxu0 0.0
        %1675 = vmatprep.subr.mxu0 0.0
        %1676 = vmatpush1.msra.mxu0 0.0
        %1677 = vmatprep.subr.mxu0 0.0
        %1678 = vmatpush1.msra.mxu0 0.0
        %1679 = vmatprep.mubr.f32.mxu0 0.0
        %v1680 = vand.u32 %v1048, 4294901760
        %v1681 = vsub.f32 %v1048, %v1680
        %v1682 = vand.u32 %v1681, 4294901760
        %v1683 = vsub.f32 %v1681, %v1682
        %v1684 = vand.u32 %v1683, 4294901760
        %1685 = vmatmul.mubr.f32.gmra.mrb[0].mxu0 %v1684
        %v1686 = vpop.f32.mrb[0].mxu0
        %v1687 = vadd.f32 0.0, %v1686
        %v1688 = vpop.f32.mrb[0].mxu0
        %1689 = vdwg.mxu0
        %1690 = vmatprep.subr.mxu0 0.0
        %v1691 = vand.u32 %v1599, 4294901760
        %v1692 = vsub.f32 %v1599, %v1691
        %v1693 = vand.u32 %v1692, 4294901760
        %v1694 = vsub.f32 %v1692, %v1693
        %v1695 = vand.u32 %v1694, 4294901760
        %1696 = vmatpush1.msra.mxu0 %v1695
        %1697 = vmatprep.subr.mxu0 0.0
        %v1698 = vand.u32 %v1600, 4294901760
        %v1699 = vsub.f32 %v1600, %v1698
        %v1700 = vand.u32 %v1699, 4294901760
        %v1701 = vsub.f32 %v1699, %v1700
        %v1702 = vand.u32 %v1701, 4294901760
        %1703 = vmatpush1.msra.mxu0 %v1702
        %1704 = vmatprep.subr.mxu0 0.0
        %v1705 = vand.u32 %v1601, 4294901760
        %v1706 = vsub.f32 %v1601, %v1705
        %v1707 = vand.u32 %v1706, 4294901760
        %v1708 = vsub.f32 %v1706, %v1707
        %v1709 = vand.u32 %v1708, 4294901760
        %1710 = vmatpush1.msra.mxu0 %v1709
        %1711 = vmatprep.subr.mxu0 0.0
        %v1712 = vand.u32 %v1602, 4294901760
        %v1713 = vsub.f32 %v1602, %v1712
        %v1714 = vand.u32 %v1713, 4294901760
        %v1715 = vsub.f32 %v1713, %v1714
        %v1716 = vand.u32 %v1715, 4294901760
        %1717 = vmatpush1.msra.mxu0 %v1716
        %1718 = vmatprep.subr.mxu0 0.0
        %v1719 = vand.u32 %v1603, 4294901760
        %v1720 = vsub.f32 %v1603, %v1719
        %v1721 = vand.u32 %v1720, 4294901760
        %v1722 = vsub.f32 %v1720, %v1721
        %v1723 = vand.u32 %v1722, 4294901760
        %1724 = vmatpush1.msra.mxu0 %v1723
        %1725 = vmatprep.subr.mxu0 0.0
        %v1726 = vand.u32 %v1604, 4294901760
        %v1727 = vsub.f32 %v1604, %v1726
        %v1728 = vand.u32 %v1727, 4294901760
        %v1729 = vsub.f32 %v1727, %v1728
        %v1730 = vand.u32 %v1729, 4294901760
        %1731 = vmatpush1.msra.mxu0 %v1730
        %1732 = vmatprep.subr.mxu0 0.0
        %v1733 = vand.u32 %v1605, 4294901760
        %v1734 = vsub.f32 %v1605, %v1733
        %v1735 = vand.u32 %v1734, 4294901760
        %v1736 = vsub.f32 %v1734, %v1735
        %v1737 = vand.u32 %v1736, 4294901760
        %1738 = vmatpush1.msra.mxu0 %v1737
        %1739 = vmatprep.subr.mxu0 0.0
        %v1740 = vand.u32 %v1606, 4294901760
        %v1741 = vsub.f32 %v1606, %v1740
        %v1742 = vand.u32 %v1741, 4294901760
        %v1743 = vsub.f32 %v1741, %v1742
        %v1744 = vand.u32 %v1743, 4294901760
        %1745 = vmatpush1.msra.mxu0 %v1744
        %1746 = vmatprep.subr.mxu0 0.0
        %1747 = vmatpush1.msra.mxu0 0.0
        %1748 = vmatprep.subr.mxu0 0.0
        %1749 = vmatpush1.msra.mxu0 0.0
        %1750 = vmatprep.subr.mxu0 0.0
        %1751 = vmatpush1.msra.mxu0 0.0
        %1752 = vmatprep.subr.mxu0 0.0
        %1753 = vmatpush1.msra.mxu0 0.0
        %1754 = vmatprep.subr.mxu0 0.0
        %1755 = vmatpush1.msra.mxu0 0.0
        %1756 = vmatprep.subr.mxu0 0.0
        %1757 = vmatpush1.msra.mxu0 0.0
        %1758 = vmatprep.subr.mxu0 0.0
        %1759 = vmatpush1.msra.mxu0 0.0
        %1760 = vmatprep.subr.mxu0 0.0
        %1761 = vmatpush1.msra.mxu0 0.0
        %1762 = vmatprep.subr.mxu0 0.0
        %1763 = vmatpush1.msra.mxu0 0.0
        %1764 = vmatprep.subr.mxu0 0.0
        %1765 = vmatpush1.msra.mxu0 0.0
        %1766 = vmatprep.subr.mxu0 0.0
        %1767 = vmatpush1.msra.mxu0 0.0
        %1768 = vmatprep.subr.mxu0 0.0
        %1769 = vmatpush1.msra.mxu0 0.0
        %1770 = vmatprep.subr.mxu0 0.0
        %1771 = vmatpush1.msra.mxu0 0.0
        %1772 = vmatprep.subr.mxu0 0.0
        %1773 = vmatpush1.msra.mxu0 0.0
        %1774 = vmatprep.subr.mxu0 0.0
        %1775 = vmatpush1.msra.mxu0 0.0
        %1776 = vmatprep.subr.mxu0 0.0
        %1777 = vmatpush1.msra.mxu0 0.0
        %1778 = vmatprep.subr.mxu0 0.0
        %1779 = vmatpush1.msra.mxu0 0.0
        %1780 = vmatprep.subr.mxu0 0.0
        %1781 = vmatpush1.msra.mxu0 0.0
        %1782 = vmatprep.subr.mxu0 0.0
        %1783 = vmatpush1.msra.mxu0 0.0
        %1784 = vmatprep.subr.mxu0 0.0
        %1785 = vmatpush1.msra.mxu0 0.0
        %1786 = vmatprep.subr.mxu0 0.0
        %1787 = vmatpush1.msra.mxu0 0.0
        %1788 = vmatprep.subr.mxu0 0.0
        %1789 = vmatpush1.msra.mxu0 0.0
        %1790 = vmatprep.subr.mxu0 0.0
        %1791 = vmatpush1.msra.mxu0 0.0
        %1792 = vmatprep.subr.mxu0 0.0
        %1793 = vmatpush1.msra.mxu0 0.0
        %1794 = vmatprep.mubr.f32.mxu0 0.0
        %v1795 = vand.u32 %v1048, 4294901760
        %1796 = vmatmul.mubr.f32.gmra.mrb[0].mxu0 %v1795
        %v1797 = vpop.f32.mrb[0].mxu0
        %v1798 = vadd.f32 %v1687, %v1797
        %v1799 = vpop.f32.mrb[0].mxu0
        %1800 = vdwg.mxu0
        %1801 = vmatprep.subr.mxu0 0.0
        %v1802 = vand.u32 %v1599, 4294901760
        %v1803 = vsub.f32 %v1599, %v1802
        %1804 = vmatpush1.msra.mxu0 %v1803
        %1805 = vmatprep.subr.mxu0 0.0
        %v1806 = vand.u32 %v1600, 4294901760
        %v1807 = vsub.f32 %v1600, %v1806
        %1808 = vmatpush1.msra.mxu0 %v1807
        %1809 = vmatprep.subr.mxu0 0.0
        %v1810 = vand.u32 %v1601, 4294901760
        %v1811 = vsub.f32 %v1601, %v1810
        %1812 = vmatpush1.msra.mxu0 %v1811
        %1813 = vmatprep.subr.mxu0 0.0
        %v1814 = vand.u32 %v1602, 4294901760
        %v1815 = vsub.f32 %v1602, %v1814
        %1816 = vmatpush1.msra.mxu0 %v1815
        %1817 = vmatprep.subr.mxu0 0.0
        %v1818 = vand.u32 %v1603, 4294901760
        %v1819 = vsub.f32 %v1603, %v1818
        %1820 = vmatpush1.msra.mxu0 %v1819
        %1821 = vmatprep.subr.mxu0 0.0
        %v1822 = vand.u32 %v1604, 4294901760
        %v1823 = vsub.f32 %v1604, %v1822
        %1824 = vmatpush1.msra.mxu0 %v1823
        %1825 = vmatprep.subr.mxu0 0.0
        %v1826 = vand.u32 %v1605, 4294901760
        %v1827 = vsub.f32 %v1605, %v1826
        %1828 = vmatpush1.msra.mxu0 %v1827
        %1829 = vmatprep.subr.mxu0 0.0
        %v1830 = vand.u32 %v1606, 4294901760
        %v1831 = vsub.f32 %v1606, %v1830
        %1832 = vmatpush1.msra.mxu0 %v1831
        %1833 = vmatprep.subr.mxu0 0.0
        %1834 = vmatpush1.msra.mxu0 0.0
        %1835 = vmatprep.subr.mxu0 0.0
        %1836 = vmatpush1.msra.mxu0 0.0
        %1837 = vmatprep.subr.mxu0 0.0
        %1838 = vmatpush1.msra.mxu0 0.0
        %1839 = vmatprep.subr.mxu0 0.0
        %1840 = vmatpush1.msra.mxu0 0.0
        %1841 = vmatprep.subr.mxu0 0.0
        %1842 = vmatpush1.msra.mxu0 0.0
        %1843 = vmatprep.subr.mxu0 0.0
        %1844 = vmatpush1.msra.mxu0 0.0
        %1845 = vmatprep.subr.mxu0 0.0
        %1846 = vmatpush1.msra.mxu0 0.0
        %1847 = vmatprep.subr.mxu0 0.0
        %1848 = vmatpush1.msra.mxu0 0.0
        %1849 = vmatprep.subr.mxu0 0.0
        %1850 = vmatpush1.msra.mxu0 0.0
        %1851 = vmatprep.subr.mxu0 0.0
        %1852 = vmatpush1.msra.mxu0 0.0
        %1853 = vmatprep.subr.mxu0 0.0
        %1854 = vmatpush1.msra.mxu0 0.0
        %1855 = vmatprep.subr.mxu0 0.0
        %1856 = vmatpush1.msra.mxu0 0.0
        %1857 = vmatprep.subr.mxu0 0.0
        %1858 = vmatpush1.msra.mxu0 0.0
        %1859 = vmatprep.subr.mxu0 0.0
        %1860 = vmatpush1.msra.mxu0 0.0
        %1861 = vmatprep.subr.mxu0 0.0
        %1862 = vmatpush1.msra.mxu0 0.0
        %1863 = vmatprep.subr.mxu0 0.0
        %1864 = vmatpush1.msra.mxu0 0.0
        %1865 = vmatprep.subr.mxu0 0.0
        %1866 = vmatpush1.msra.mxu0 0.0
        %1867 = vmatprep.subr.mxu0 0.0
        %1868 = vmatpush1.msra.mxu0 0.0
        %1869 = vmatprep.subr.mxu0 0.0
        %1870 = vmatpush1.msra.mxu0 0.0
        %1871 = vmatprep.subr.mxu0 0.0
        %1872 = vmatpush1.msra.mxu0 0.0
        %1873 = vmatprep.subr.mxu0 0.0
        %1874 = vmatpush1.msra.mxu0 0.0
        %1875 = vmatprep.subr.mxu0 0.0
        %1876 = vmatpush1.msra.mxu0 0.0
        %1877 = vmatprep.subr.mxu0 0.0
        %1878 = vmatpush1.msra.mxu0 0.0
        %1879 = vmatprep.subr.mxu0 0.0
        %1880 = vmatpush1.msra.mxu0 0.0
        %1881 = vmatprep.mubr.f32.mxu0 0.0
        %v1882 = vand.u32 %v1048, 4294901760
        %v1883 = vsub.f32 %v1048, %v1882
        %1884 = vmatmul.mubr.f32.gmra.mrb[0].mxu0 %v1883
        %v1885 = vpop.f32.mrb[0].mxu0
        %v1886 = vadd.f32 %v1798, %v1885
        %v1887 = vpop.f32.mrb[0].mxu0
        %1888 = vdwg.mxu0
        %1889 = vmatprep.subr.mxu0 0.0
        %v1890 = vand.u32 %v1599, 4294901760
        %1891 = vmatpush1.msra.mxu0 %v1890
        %1892 = vmatprep.subr.mxu0 0.0
        %v1893 = vand.u32 %v1600, 4294901760
        %1894 = vmatpush1.msra.mxu0 %v1893
        %1895 = vmatprep.subr.mxu0 0.0
        %v1896 = vand.u32 %v1601, 4294901760
        %1897 = vmatpush1.msra.mxu0 %v1896
        %1898 = vmatprep.subr.mxu0 0.0
        %v1899 = vand.u32 %v1602, 4294901760
        %1900 = vmatpush1.msra.mxu0 %v1899
        %1901 = vmatprep.subr.mxu0 0.0
        %v1902 = vand.u32 %v1603, 4294901760
        %1903 = vmatpush1.msra.mxu0 %v1902
        %1904 = vmatprep.subr.mxu0 0.0
        %v1905 = vand.u32 %v1604, 4294901760
        %1906 = vmatpush1.msra.mxu0 %v1905
        %1907 = vmatprep.subr.mxu0 0.0
        %v1908 = vand.u32 %v1605, 4294901760
        %1909 = vmatpush1.msra.mxu0 %v1908
        %1910 = vmatprep.subr.mxu0 0.0
        %v1911 = vand.u32 %v1606, 4294901760
        %1912 = vmatpush1.msra.mxu0 %v1911
        %1913 = vmatprep.subr.mxu0 0.0
        %1914 = vmatpush1.msra.mxu0 0.0
        %1915 = vmatprep.subr.mxu0 0.0
        %1916 = vmatpush1.msra.mxu0 0.0
        %1917 = vmatprep.subr.mxu0 0.0
        %1918 = vmatpush1.msra.mxu0 0.0
        %1919 = vmatprep.subr.mxu0 0.0
        %1920 = vmatpush1.msra.mxu0 0.0
        %1921 = vmatprep.subr.mxu0 0.0
        %1922 = vmatpush1.msra.mxu0 0.0
        %1923 = vmatprep.subr.mxu0 0.0
        %1924 = vmatpush1.msra.mxu0 0.0
        %1925 = vmatprep.subr.mxu0 0.0
        %1926 = vmatpush1.msra.mxu0 0.0
        %1927 = vmatprep.subr.mxu0 0.0
        %1928 = vmatpush1.msra.mxu0 0.0
        %1929 = vmatprep.subr.mxu0 0.0
        %1930 = vmatpush1.msra.mxu0 0.0
        %1931 = vmatprep.subr.mxu0 0.0
        %1932 = vmatpush1.msra.mxu0 0.0
        %1933 = vmatprep.subr.mxu0 0.0
        %1934 = vmatpush1.msra.mxu0 0.0
        %1935 = vmatprep.subr.mxu0 0.0
        %1936 = vmatpush1.msra.mxu0 0.0
        %1937 = vmatprep.subr.mxu0 0.0
        %1938 = vmatpush1.msra.mxu0 0.0
        %1939 = vmatprep.subr.mxu0 0.0
        %1940 = vmatpush1.msra.mxu0 0.0
        %1941 = vmatprep.subr.mxu0 0.0
        %1942 = vmatpush1.msra.mxu0 0.0
        %1943 = vmatprep.subr.mxu0 0.0
        %1944 = vmatpush1.msra.mxu0 0.0
        %1945 = vmatprep.subr.mxu0 0.0
        %1946 = vmatpush1.msra.mxu0 0.0
        %1947 = vmatprep.subr.mxu0 0.0
        %1948 = vmatpush1.msra.mxu0 0.0
        %1949 = vmatprep.subr.mxu0 0.0
        %1950 = vmatpush1.msra.mxu0 0.0
        %1951 = vmatprep.subr.mxu0 0.0
        %1952 = vmatpush1.msra.mxu0 0.0
        %1953 = vmatprep.subr.mxu0 0.0
        %1954 = vmatpush1.msra.mxu0 0.0
        %1955 = vmatprep.subr.mxu0 0.0
        %1956 = vmatpush1.msra.mxu0 0.0
        %1957 = vmatprep.subr.mxu0 0.0
        %1958 = vmatpush1.msra.mxu0 0.0
        %1959 = vmatprep.subr.mxu0 0.0
        %1960 = vmatpush1.msra.mxu0 0.0
        %1961 = vmatprep.mubr.f32.mxu0 0.0
        %v1962 = vand.u32 %v1048, 4294901760
        %v1963 = vsub.f32 %v1048, %v1962
        %v1964 = vand.u32 %v1963, 4294901760
        %1965 = vmatmul.mubr.f32.gmra.mrb[0].mxu0 %v1964
        %v1966 = vpop.f32.mrb[0].mxu0
        %v1967 = vadd.f32 %v1886, %v1966
        %v1968 = vpop.f32.mrb[0].mxu0
        %1969 = vdwg.mxu0
        %1970 = vmatprep.subr.mxu0 0.0
        %v1971 = vand.u32 %v1599, 4294901760
        %v1972 = vsub.f32 %v1599, %v1971
        %v1973 = vand.u32 %v1972, 4294901760
        %1974 = vmatpush1.msra.mxu0 %v1973
        %1975 = vmatprep.subr.mxu0 0.0
        %v1976 = vand.u32 %v1600, 4294901760
        %v1977 = vsub.f32 %v1600, %v1976
        %v1978 = vand.u32 %v1977, 4294901760
        %1979 = vmatpush1.msra.mxu0 %v1978
        %1980 = vmatprep.subr.mxu0 0.0
        %v1981 = vand.u32 %v1601, 4294901760
        %v1982 = vsub.f32 %v1601, %v1981
        %v1983 = vand.u32 %v1982, 4294901760
        %1984 = vmatpush1.msra.mxu0 %v1983
        %1985 = vmatprep.subr.mxu0 0.0
        %v1986 = vand.u32 %v1602, 4294901760
        %v1987 = vsub.f32 %v1602, %v1986
        %v1988 = vand.u32 %v1987, 4294901760
        %1989 = vmatpush1.msra.mxu0 %v1988
        %1990 = vmatprep.subr.mxu0 0.0
        %v1991 = vand.u32 %v1603, 4294901760
        %v1992 = vsub.f32 %v1603, %v1991
        %v1993 = vand.u32 %v1992, 4294901760
        %1994 = vmatpush1.msra.mxu0 %v1993
        %1995 = vmatprep.subr.mxu0 0.0
        %v1996 = vand.u32 %v1604, 4294901760
        %v1997 = vsub.f32 %v1604, %v1996
        %v1998 = vand.u32 %v1997, 4294901760
        %1999 = vmatpush1.msra.mxu0 %v1998
        %2000 = vmatprep.subr.mxu0 0.0
        %v2001 = vand.u32 %v1605, 4294901760
        %v2002 = vsub.f32 %v1605, %v2001
        %v2003 = vand.u32 %v2002, 4294901760
        %2004 = vmatpush1.msra.mxu0 %v2003
        %2005 = vmatprep.subr.mxu0 0.0
        %v2006 = vand.u32 %v1606, 4294901760
        %v2007 = vsub.f32 %v1606, %v2006
        %v2008 = vand.u32 %v2007, 4294901760
        %2009 = vmatpush1.msra.mxu0 %v2008
        %2010 = vmatprep.subr.mxu0 0.0
        %2011 = vmatpush1.msra.mxu0 0.0
        %2012 = vmatprep.subr.mxu0 0.0
        %2013 = vmatpush1.msra.mxu0 0.0
        %2014 = vmatprep.subr.mxu0 0.0
        %2015 = vmatpush1.msra.mxu0 0.0
        %2016 = vmatprep.subr.mxu0 0.0
        %2017 = vmatpush1.msra.mxu0 0.0
        %2018 = vmatprep.subr.mxu0 0.0
        %2019 = vmatpush1.msra.mxu0 0.0
        %2020 = vmatprep.subr.mxu0 0.0
        %2021 = vmatpush1.msra.mxu0 0.0
        %2022 = vmatprep.subr.mxu0 0.0
        %2023 = vmatpush1.msra.mxu0 0.0
        %2024 = vmatprep.subr.mxu0 0.0
        %2025 = vmatpush1.msra.mxu0 0.0
        %2026 = vmatprep.subr.mxu0 0.0
        %2027 = vmatpush1.msra.mxu0 0.0
        %2028 = vmatprep.subr.mxu0 0.0
        %2029 = vmatpush1.msra.mxu0 0.0
        %2030 = vmatprep.subr.mxu0 0.0
        %2031 = vmatpush1.msra.mxu0 0.0
        %2032 = vmatprep.subr.mxu0 0.0
        %2033 = vmatpush1.msra.mxu0 0.0
        %2034 = vmatprep.subr.mxu0 0.0
        %2035 = vmatpush1.msra.mxu0 0.0
        %2036 = vmatprep.subr.mxu0 0.0
        %2037 = vmatpush1.msra.mxu0 0.0
        %2038 = vmatprep.subr.mxu0 0.0
        %2039 = vmatpush1.msra.mxu0 0.0
        %2040 = vmatprep.subr.mxu0 0.0
        %2041 = vmatpush1.msra.mxu0 0.0
        %2042 = vmatprep.subr.mxu0 0.0
        %2043 = vmatpush1.msra.mxu0 0.0
        %2044 = vmatprep.subr.mxu0 0.0
        %2045 = vmatpush1.msra.mxu0 0.0
        %2046 = vmatprep.subr.mxu0 0.0
        %2047 = vmatpush1.msra.mxu0 0.0
        %2048 = vmatprep.subr.mxu0 0.0
        %2049 = vmatpush1.msra.mxu0 0.0
        %2050 = vmatprep.subr.mxu0 0.0
        %2051 = vmatpush1.msra.mxu0 0.0
        %2052 = vmatprep.subr.mxu0 0.0
        %2053 = vmatpush1.msra.mxu0 0.0
        %2054 = vmatprep.subr.mxu0 0.0
        %2055 = vmatpush1.msra.mxu0 0.0
        %2056 = vmatprep.subr.mxu0 0.0
        %2057 = vmatpush1.msra.mxu0 0.0
        %2058 = vmatprep.mubr.f32.mxu0 0.0
        %v2059 = vand.u32 %v1048, 4294901760
        %2060 = vmatmul.mubr.f32.gmra.mrb[0].mxu0 %v2059
        %v2061 = vpop.f32.mrb[0].mxu0
        %v2062 = vadd.f32 %v1967, %v2061
        %v2063 = vpop.f32.mrb[0].mxu0
        %2064 = vdwg.mxu0
        %2065 = vmatprep.subr.mxu0 0.0
        %v2066 = vand.u32 %v1599, 4294901760
        %2067 = vmatpush1.msra.mxu0 %v2066
        %2068 = vmatprep.subr.mxu0 0.0
        %v2069 = vand.u32 %v1600, 4294901760
        %2070 = vmatpush1.msra.mxu0 %v2069
        %2071 = vmatprep.subr.mxu0 0.0
        %v2072 = vand.u32 %v1601, 4294901760
        %2073 = vmatpush1.msra.mxu0 %v2072
        %2074 = vmatprep.subr.mxu0 0.0
        %v2075 = vand.u32 %v1602, 4294901760
        %2076 = vmatpush1.msra.mxu0 %v2075
        %2077 = vmatprep.subr.mxu0 0.0
        %v2078 = vand.u32 %v1603, 4294901760
        %2079 = vmatpush1.msra.mxu0 %v2078
        %2080 = vmatprep.subr.mxu0 0.0
        %v2081 = vand.u32 %v1604, 4294901760
        %2082 = vmatpush1.msra.mxu0 %v2081
        %2083 = vmatprep.subr.mxu0 0.0
        %v2084 = vand.u32 %v1605, 4294901760
        %2085 = vmatpush1.msra.mxu0 %v2084
        %2086 = vmatprep.subr.mxu0 0.0
        %v2087 = vand.u32 %v1606, 4294901760
        %2088 = vmatpush1.msra.mxu0 %v2087
        %2089 = vmatprep.subr.mxu0 0.0
        %2090 = vmatpush1.msra.mxu0 0.0
        %2091 = vmatprep.subr.mxu0 0.0
        %2092 = vmatpush1.msra.mxu0 0.0
        %2093 = vmatprep.subr.mxu0 0.0
        %2094 = vmatpush1.msra.mxu0 0.0
        %2095 = vmatprep.subr.mxu0 0.0
        %2096 = vmatpush1.msra.mxu0 0.0
        %2097 = vmatprep.subr.mxu0 0.0
        %2098 = vmatpush1.msra.mxu0 0.0
        %2099 = vmatprep.subr.mxu0 0.0
        %2100 = vmatpush1.msra.mxu0 0.0
        %2101 = vmatprep.subr.mxu0 0.0
        %2102 = vmatpush1.msra.mxu0 0.0
        %2103 = vmatprep.subr.mxu0 0.0
        %2104 = vmatpush1.msra.mxu0 0.0
        %2105 = vmatprep.subr.mxu0 0.0
        %2106 = vmatpush1.msra.mxu0 0.0
        %2107 = vmatprep.subr.mxu0 0.0
        %2108 = vmatpush1.msra.mxu0 0.0
        %2109 = vmatprep.subr.mxu0 0.0
        %2110 = vmatpush1.msra.mxu0 0.0
        %2111 = vmatprep.subr.mxu0 0.0
        %2112 = vmatpush1.msra.mxu0 0.0
        %2113 = vmatprep.subr.mxu0 0.0
        %2114 = vmatpush1.msra.mxu0 0.0
        %2115 = vmatprep.subr.mxu0 0.0
        %2116 = vmatpush1.msra.mxu0 0.0
        %2117 = vmatprep.subr.mxu0 0.0
        %2118 = vmatpush1.msra.mxu0 0.0
        %2119 = vmatprep.subr.mxu0 0.0
        %2120 = vmatpush1.msra.mxu0 0.0
        %2121 = vmatprep.subr.mxu0 0.0
        %2122 = vmatpush1.msra.mxu0 0.0
        %2123 = vmatprep.subr.mxu0 0.0
        %2124 = vmatpush1.msra.mxu0 0.0
        %2125 = vmatprep.subr.mxu0 0.0
        %2126 = vmatpush1.msra.mxu0 0.0
        %2127 = vmatprep.subr.mxu0 0.0
        %2128 = vmatpush1.msra.mxu0 0.0
        %2129 = vmatprep.subr.mxu0 0.0
        %2130 = vmatpush1.msra.mxu0 0.0
        %2131 = vmatprep.subr.mxu0 0.0
        %2132 = vmatpush1.msra.mxu0 0.0
        %2133 = vmatprep.subr.mxu0 0.0
        %2134 = vmatpush1.msra.mxu0 0.0
        %2135 = vmatprep.subr.mxu0 0.0
        %2136 = vmatpush1.msra.mxu0 0.0
        %2137 = vmatprep.mubr.f32.mxu0 0.0
        %v2138 = vand.u32 %v1048, 4294901760
        %2139 = vmatmul.mubr.f32.gmra.mrb[0].mxu0 %v2138
        %v2140 = vpop.f32.mrb[0].mxu0
        %v2141 = vadd.f32 %v2062, %v2140
        %v2142 = vpop.f32.mrb[0].mxu0
        %2143 = vdwg.mxu0
        %v2144 = vmul.f32 %v2141, 2.0
        %v2145 = vsub.f32 %v1031, %v2144
        %v2146 = vld [vmem:[%s6] sm:$0x1]
        %v2148 = vlaneseq
        %v2149 = vshrl.u32 %v2148, 7
        %v2150 = vsub.s32 0, %v2149
        %v2151 = vrot.slane %v2146, %v2150
        %v2153 = vadd.f32 %v2145, %v2151
        %v2154 = vmax.f32 %v2153, 0.0
        %v2155 = vmul.f32 %v1598, %v1598
        %v2156 = vmul.f32 %v2155, %v2154
        %v2157 = vmax.f32 %v2156, 1e-24
        %v2158 = vrsqrt.pop %v2157
        %v2159 = vmul.f32 %v1598, %v2158
        %v2160 = vmul.f32 %v2159, %v2159
        %v2161 = vmul.f32 %v2160, %v2154
        %v2162 = vsel %vm1587, %v2161, 0.0
        %2163 = vadd.xlane.f32.xlu0 %v2162
        %v2164 = vpop.xlane.xlu0 %2163
        %v2165 = vmax.f32 %v2164, 1e-24
        %v2166 = vrsqrt.pop %v2165
        %v2167 = vmul.f32 %v2159, %v2166
        %v2168 = vld [vmem:[%s8] sm:$0xff]
        %v2169 = vld [vmem:[%s8 + $0x8] sm:$0xff]
        %v2170 = vld [vmem:[%s8 + $0x10] sm:$0xff]
        %v2171 = vld [vmem:[%s8 + $0x18] sm:$0xff]
        %v2172 = vld [vmem:[%s8 + $0x20] sm:$0xff]
        %v2173 = vld [vmem:[%s8 + $0x28] sm:$0xff]
        %v2174 = vld [vmem:[%s8 + $0x30] sm:$0xff]
        %v2175 = vld [vmem:[%s8 + $0x38] sm:$0xff]
        %v2176 = vld [vmem:[%s8 + $0x40] sm:$0xff]
        %v2177 = vld [vmem:[%s8 + $0x48] sm:$0xff]
        %v2178 = vld [vmem:[%s8 + $0x50] sm:$0xff]
        %v2179 = vld [vmem:[%s8 + $0x58] sm:$0xff]
        %v2180 = vld [vmem:[%s8 + $0x60] sm:$0xff]
        %v2181 = vld [vmem:[%s8 + $0x68] sm:$0xff]
        %v2182 = vld [vmem:[%s8 + $0x70] sm:$0xff]
        %v2183 = vld [vmem:[%s8 + $0x78] sm:$0xff]
        %v2184 = vld [vmem:[%s8 + $0x80] sm:$0xff]
        %v2185 = vld [vmem:[%s8 + $0x88] sm:$0xff]
        %v2186 = vld [vmem:[%s8 + $0x90] sm:$0xff]
        %v2187 = vld [vmem:[%s8 + $0x98] sm:$0xff]
        %v2188 = vld [vmem:[%s8 + $0xa0] sm:$0xff]
        %v2189 = vld [vmem:[%s8 + $0xa8] sm:$0xff]
        %v2190 = vld [vmem:[%s8 + $0xb0] sm:$0xff]
        %v2191 = vld [vmem:[%s8 + $0xb8] sm:$0xff]
        %v2192 = vld [vmem:[%s8 + $0xc0] sm:$0xff]
        %v2193 = vld [vmem:[%s8 + $0xc8] sm:$0xff]
        %v2194 = vld [vmem:[%s8 + $0xd0] sm:$0xff]
        %v2195 = vld [vmem:[%s8 + $0xd8] sm:$0xff]
        %v2196 = vld [vmem:[%s8 + $0xe0] sm:$0xff]
        %v2197 = vld [vmem:[%s8 + $0xe8] sm:$0xff]
        %v2198 = vld [vmem:[%s8 + $0xf0] sm:$0xff]
        %v2199 = vld [vmem:[%s8 + $0xf8] sm:$0xff]
        %v2200 = vld [vmem:[%s8 + $0x100] sm:$0xff]
        %v2201 = vld [vmem:[%s8 + $0x108] sm:$0xff]
        %v2202 = vld [vmem:[%s8 + $0x110] sm:$0xff]
        %v2203 = vld [vmem:[%s8 + $0x118] sm:$0xff]
        %v2204 = vld [vmem:[%s8 + $0x120] sm:$0xff]
        %v2205 = vld [vmem:[%s8 + $0x128] sm:$0xff]
        %v2206 = vld [vmem:[%s8 + $0x130] sm:$0xff]
        %v2207 = vld [vmem:[%s8 + $0x138] sm:$0xff]
        %v2208 = vld [vmem:[%s8 + $0x140] sm:$0xff]
        %v2209 = vld [vmem:[%s8 + $0x148] sm:$0xff]
        %v2210 = vld [vmem:[%s8 + $0x150] sm:$0xff]
        %v2211 = vld [vmem:[%s8 + $0x158] sm:$0xff]
        %v2212 = vld [vmem:[%s8 + $0x160] sm:$0xff]
        %v2213 = vld [vmem:[%s8 + $0x168] sm:$0xff]
        %v2214 = vld [vmem:[%s8 + $0x170] sm:$0xff]
        %v2215 = vld [vmem:[%s8 + $0x178] sm:$0xff]
        %v2216 = vld [vmem:[%s8 + $0x180] sm:$0xff]
        %v2217 = vld [vmem:[%s8 + $0x188] sm:$0xff]
        %v2218 = vld [vmem:[%s8 + $0x190] sm:$0xff]
        %v2219 = vld [vmem:[%s8 + $0x198] sm:$0xff]
        %v2220 = vld [vmem:[%s8 + $0x1a0] sm:$0xff]
        %v2221 = vld [vmem:[%s8 + $0x1a8] sm:$0xff]
        %v2222 = vld [vmem:[%s8 + $0x1b0] sm:$0xff]
        %v2223 = vld [vmem:[%s8 + $0x1b8] sm:$0xff]
        %v2224 = vld [vmem:[%s8 + $0x1c0] sm:$0xff]
        %v2225 = vld [vmem:[%s8 + $0x1c8] sm:$0xff]
        %v2226 = vld [vmem:[%s8 + $0x1d0] sm:$0xff]
        %v2227 = vld [vmem:[%s8 + $0x1d8] sm:$0xff]
        %v2228 = vld [vmem:[%s8 + $0x1e0] sm:$0xff]
        %v2229 = vld [vmem:[%s8 + $0x1e8] sm:$0xff]
        %v2230 = vld [vmem:[%s8 + $0x1f0] sm:$0xff]
        %v2231 = vld [vmem:[%s8 + $0x1f8] sm:$0xff]
        %v2232 = vand.u32 %v2169, 4294901760
        %2233 = vmatprep.subr.mxu0 %v2232
        %v2234 = vand.u32 %v2168, 4294901760
        %2235 = vmatpush1.msra.mxu0 %v2234
        %v2236 = vand.u32 %v2177, 4294901760
        %2237 = vmatprep.subr.mxu0 %v2236
        %v2238 = vand.u32 %v2176, 4294901760
        %2239 = vmatpush1.msra.mxu0 %v2238
        %v2240 = vand.u32 %v2185, 4294901760
        %2241 = vmatprep.subr.mxu0 %v2240
        %v2242 = vand.u32 %v2184, 4294901760
        %2243 = vmatpush1.msra.mxu0 %v2242
        %v2244 = vand.u32 %v2193, 4294901760
        %2245 = vmatprep.subr.mxu0 %v2244
        %v2246 = vand.u32 %v2192, 4294901760
        %2247 = vmatpush1.msra.mxu0 %v2246
        %v2248 = vand.u32 %v2201, 4294901760
        %2249 = vmatprep.subr.mxu0 %v2248
        %v2250 = vand.u32 %v2200, 4294901760
        %2251 = vmatpush1.msra.mxu0 %v2250
        %v2252 = vand.u32 %v2209, 4294901760
        %2253 = vmatprep.subr.mxu0 %v2252
        %v2254 = vand.u32 %v2208, 4294901760
        %2255 = vmatpush1.msra.mxu0 %v2254
        %v2256 = vand.u32 %v2217, 4294901760
        %2257 = vmatprep.subr.mxu0 %v2256
        %v2258 = vand.u32 %v2216, 4294901760
        %2259 = vmatpush1.msra.mxu0 %v2258
        %v2260 = vand.u32 %v2225, 4294901760
        %2261 = vmatprep.subr.mxu0 %v2260
        %v2262 = vand.u32 %v2224, 4294901760
        %2263 = vmatpush1.msra.mxu0 %v2262
        %2264 = vmatprep.subr.mxu0 0.0
        %2265 = vmatpush1.msra.mxu0 0.0
        %2266 = vmatprep.subr.mxu0 0.0
        %2267 = vmatpush1.msra.mxu0 0.0
        %2268 = vmatprep.subr.mxu0 0.0
        %2269 = vmatpush1.msra.mxu0 0.0
        %2270 = vmatprep.subr.mxu0 0.0
        %2271 = vmatpush1.msra.mxu0 0.0
        %2272 = vmatprep.subr.mxu0 0.0
        %2273 = vmatpush1.msra.mxu0 0.0
        %2274 = vmatprep.subr.mxu0 0.0
        %2275 = vmatpush1.msra.mxu0 0.0
        %2276 = vmatprep.subr.mxu0 0.0
        %2277 = vmatpush1.msra.mxu0 0.0
        %2278 = vmatprep.subr.mxu0 0.0
        %2279 = vmatpush1.msra.mxu0 0.0
        %2280 = vmatprep.subr.mxu0 0.0
        %2281 = vmatpush1.msra.mxu0 0.0
        %2282 = vmatprep.subr.mxu0 0.0
        %2283 = vmatpush1.msra.mxu0 0.0
        %2284 = vmatprep.subr.mxu0 0.0
        %2285 = vmatpush1.msra.mxu0 0.0
        %2286 = vmatprep.subr.mxu0 0.0
        %2287 = vmatpush1.msra.mxu0 0.0
        %2288 = vmatprep.subr.mxu0 0.0
        %2289 = vmatpush1.msra.mxu0 0.0
        %2290 = vmatprep.subr.mxu0 0.0
        %2291 = vmatpush1.msra.mxu0 0.0
        %2292 = vmatprep.subr.mxu0 0.0
        %2293 = vmatpush1.msra.mxu0 0.0
        %2294 = vmatprep.subr.mxu0 0.0
        %2295 = vmatpush1.msra.mxu0 0.0
        %2296 = vmatprep.subr.mxu0 0.0
        %2297 = vmatpush1.msra.mxu0 0.0
        %2298 = vmatprep.subr.mxu0 0.0
        %2299 = vmatpush1.msra.mxu0 0.0
        %2300 = vmatprep.subr.mxu0 0.0
        %2301 = vmatpush1.msra.mxu0 0.0
        %2302 = vmatprep.subr.mxu0 0.0
        %2303 = vmatpush1.msra.mxu0 0.0
        %2304 = vmatprep.subr.mxu0 0.0
        %2305 = vmatpush1.msra.mxu0 0.0
        %2306 = vmatprep.subr.mxu0 0.0
        %2307 = vmatpush1.msra.mxu0 0.0
        %2308 = vmatprep.subr.mxu0 0.0
        %2309 = vmatpush1.msra.mxu0 0.0
        %2310 = vmatprep.subr.mxu0 0.0
        %2311 = vmatpush1.msra.mxu0 0.0
        %2312 = vmatprep.mubr.f32.mxu0 0.0
        %v2313 = vand.u32 %v1048, 4294901760
        %v2314 = vsub.f32 %v1048, %v2313
        %v2315 = vand.u32 %v2314, 4294901760
        %v2316 = vsub.f32 %v2314, %v2315
        %v2317 = vand.u32 %v2316, 4294901760
        %2318 = vmatmul.mubr.f32.gmra.mrb[0].mxu0 %v2317
        %v2319 = vpop.f32.mrb[0].mxu0
        %v2320 = vadd.f32 0.0, %v2319
        %v2321 = vpop.f32.mrb[0].mxu0
        %v2322 = vadd.f32 0.0, %v2321
        %2323 = vdwg.mxu0
        %v2324 = vand.u32 %v2169, 4294901760
        %v2325 = vsub.f32 %v2169, %v2324
        %v2326 = vand.u32 %v2325, 4294901760
        %v2327 = vsub.f32 %v2325, %v2326
        %v2328 = vand.u32 %v2327, 4294901760
        %2329 = vmatprep.subr.mxu0 %v2328
        %v2330 = vand.u32 %v2168, 4294901760
        %v2331 = vsub.f32 %v2168, %v2330
        %v2332 = vand.u32 %v2331, 4294901760
        %v2333 = vsub.f32 %v2331, %v2332
        %v2334 = vand.u32 %v2333, 4294901760
        %2335 = vmatpush1.msra.mxu0 %v2334
        %v2336 = vand.u32 %v2177, 4294901760
        %v2337 = vsub.f32 %v2177, %v2336
        %v2338 = vand.u32 %v2337, 4294901760
        %v2339 = vsub.f32 %v2337, %v2338
        %v2340 = vand.u32 %v2339, 4294901760
        %2341 = vmatprep.subr.mxu0 %v2340
        %v2342 = vand.u32 %v2176, 4294901760
        %v2343 = vsub.f32 %v2176, %v2342
        %v2344 = vand.u32 %v2343, 4294901760
        %v2345 = vsub.f32 %v2343, %v2344
        %v2346 = vand.u32 %v2345, 4294901760
        %2347 = vmatpush1.msra.mxu0 %v2346
        %v2348 = vand.u32 %v2185, 4294901760
        %v2349 = vsub.f32 %v2185, %v2348
        %v2350 = vand.u32 %v2349, 4294901760
        %v2351 = vsub.f32 %v2349, %v2350
        %v2352 = vand.u32 %v2351, 4294901760
        %2353 = vmatprep.subr.mxu0 %v2352
        %v2354 = vand.u32 %v2184, 4294901760
        %v2355 = vsub.f32 %v2184, %v2354
        %v2356 = vand.u32 %v2355, 4294901760
        %v2357 = vsub.f32 %v2355, %v2356
        %v2358 = vand.u32 %v2357, 4294901760
        %2359 = vmatpush1.msra.mxu0 %v2358
        %v2360 = vand.u32 %v2193, 4294901760
        %v2361 = vsub.f32 %v2193, %v2360
        %v2362 = vand.u32 %v2361, 4294901760
        %v2363 = vsub.f32 %v2361, %v2362
        %v2364 = vand.u32 %v2363, 4294901760
        %2365 = vmatprep.subr.mxu0 %v2364
        %v2366 = vand.u32 %v2192, 4294901760
        %v2367 = vsub.f32 %v2192, %v2366
        %v2368 = vand.u32 %v2367, 4294901760
        %v2369 = vsub.f32 %v2367, %v2368
        %v2370 = vand.u32 %v2369, 4294901760
        %2371 = vmatpush1.msra.mxu0 %v2370
        %v2372 = vand.u32 %v2201, 4294901760
        %v2373 = vsub.f32 %v2201, %v2372
        %v2374 = vand.u32 %v2373, 4294901760
        %v2375 = vsub.f32 %v2373, %v2374
        %v2376 = vand.u32 %v2375, 4294901760
        %2377 = vmatprep.subr.mxu0 %v2376
        %v2378 = vand.u32 %v2200, 4294901760
        %v2379 = vsub.f32 %v2200, %v2378
        %v2380 = vand.u32 %v2379, 4294901760
        %v2381 = vsub.f32 %v2379, %v2380
        %v2382 = vand.u32 %v2381, 4294901760
        %2383 = vmatpush1.msra.mxu0 %v2382
        %v2384 = vand.u32 %v2209, 4294901760
        %v2385 = vsub.f32 %v2209, %v2384
        %v2386 = vand.u32 %v2385, 4294901760
        %v2387 = vsub.f32 %v2385, %v2386
        %v2388 = vand.u32 %v2387, 4294901760
        %2389 = vmatprep.subr.mxu0 %v2388
        %v2390 = vand.u32 %v2208, 4294901760
        %v2391 = vsub.f32 %v2208, %v2390
        %v2392 = vand.u32 %v2391, 4294901760
        %v2393 = vsub.f32 %v2391, %v2392
        %v2394 = vand.u32 %v2393, 4294901760
        %2395 = vmatpush1.msra.mxu0 %v2394
        %v2396 = vand.u32 %v2217, 4294901760
        %v2397 = vsub.f32 %v2217, %v2396
        %v2398 = vand.u32 %v2397, 4294901760
        %v2399 = vsub.f32 %v2397, %v2398
        %v2400 = vand.u32 %v2399, 4294901760
        %2401 = vmatprep.subr.mxu0 %v2400
        %v2402 = vand.u32 %v2216, 4294901760
        %v2403 = vsub.f32 %v2216, %v2402
        %v2404 = vand.u32 %v2403, 4294901760
        %v2405 = vsub.f32 %v2403, %v2404
        %v2406 = vand.u32 %v2405, 4294901760
        %2407 = vmatpush1.msra.mxu0 %v2406
        %v2408 = vand.u32 %v2225, 4294901760
        %v2409 = vsub.f32 %v2225, %v2408
        %v2410 = vand.u32 %v2409, 4294901760
        %v2411 = vsub.f32 %v2409, %v2410
        %v2412 = vand.u32 %v2411, 4294901760
        %2413 = vmatprep.subr.mxu0 %v2412
        %v2414 = vand.u32 %v2224, 4294901760
        %v2415 = vsub.f32 %v2224, %v2414
        %v2416 = vand.u32 %v2415, 4294901760
        %v2417 = vsub.f32 %v2415, %v2416
        %v2418 = vand.u32 %v2417, 4294901760
        %2419 = vmatpush1.msra.mxu0 %v2418
        %2420 = vmatprep.subr.mxu0 0.0
        %2421 = vmatpush1.msra.mxu0 0.0
        %2422 = vmatprep.subr.mxu0 0.0
        %2423 = vmatpush1.msra.mxu0 0.0
        %2424 = vmatprep.subr.mxu0 0.0
        %2425 = vmatpush1.msra.mxu0 0.0
        %2426 = vmatprep.subr.mxu0 0.0
        %2427 = vmatpush1.msra.mxu0 0.0
        %2428 = vmatprep.subr.mxu0 0.0
        %2429 = vmatpush1.msra.mxu0 0.0
        %2430 = vmatprep.subr.mxu0 0.0
        %2431 = vmatpush1.msra.mxu0 0.0
        %2432 = vmatprep.subr.mxu0 0.0
        %2433 = vmatpush1.msra.mxu0 0.0
        %2434 = vmatprep.subr.mxu0 0.0
        %2435 = vmatpush1.msra.mxu0 0.0
        %2436 = vmatprep.subr.mxu0 0.0
        %2437 = vmatpush1.msra.mxu0 0.0
        %2438 = vmatprep.subr.mxu0 0.0
        %2439 = vmatpush1.msra.mxu0 0.0
        %2440 = vmatprep.subr.mxu0 0.0
        %2441 = vmatpush1.msra.mxu0 0.0
        %2442 = vmatprep.subr.mxu0 0.0
        %2443 = vmatpush1.msra.mxu0 0.0
        %2444 = vmatprep.subr.mxu0 0.0
        %2445 = vmatpush1.msra.mxu0 0.0
        %2446 = vmatprep.subr.mxu0 0.0
        %2447 = vmatpush1.msra.mxu0 0.0
        %2448 = vmatprep.subr.mxu0 0.0
        %2449 = vmatpush1.msra.mxu0 0.0
        %2450 = vmatprep.subr.mxu0 0.0
        %2451 = vmatpush1.msra.mxu0 0.0
        %2452 = vmatprep.subr.mxu0 0.0
        %2453 = vmatpush1.msra.mxu0 0.0
        %2454 = vmatprep.subr.mxu0 0.0
        %2455 = vmatpush1.msra.mxu0 0.0
        %2456 = vmatprep.subr.mxu0 0.0
        %2457 = vmatpush1.msra.mxu0 0.0
        %2458 = vmatprep.subr.mxu0 0.0
        %2459 = vmatpush1.msra.mxu0 0.0
        %2460 = vmatprep.subr.mxu0 0.0
        %2461 = vmatpush1.msra.mxu0 0.0
        %2462 = vmatprep.subr.mxu0 0.0
        %2463 = vmatpush1.msra.mxu0 0.0
        %2464 = vmatprep.subr.mxu0 0.0
        %2465 = vmatpush1.msra.mxu0 0.0
        %2466 = vmatprep.subr.mxu0 0.0
        %2467 = vmatpush1.msra.mxu0 0.0
        %2468 = vmatprep.mubr.f32.mxu0 0.0
        %v2469 = vand.u32 %v1048, 4294901760
        %2470 = vmatmul.mubr.f32.gmra.mrb[0].mxu0 %v2469
        %v2471 = vpop.f32.mrb[0].mxu0
        %v2472 = vadd.f32 %v2320, %v2471
        %v2473 = vpop.f32.mrb[0].mxu0
        %v2474 = vadd.f32 %v2322, %v2473
        %2475 = vdwg.mxu0
        %v2476 = vand.u32 %v2169, 4294901760
        %v2477 = vsub.f32 %v2169, %v2476
        %2478 = vmatprep.subr.mxu0 %v2477
        %v2479 = vand.u32 %v2168, 4294901760
        %v2480 = vsub.f32 %v2168, %v2479
        %2481 = vmatpush1.msra.mxu0 %v2480
        %v2482 = vand.u32 %v2177, 4294901760
        %v2483 = vsub.f32 %v2177, %v2482
        %2484 = vmatprep.subr.mxu0 %v2483
        %v2485 = vand.u32 %v2176, 4294901760
        %v2486 = vsub.f32 %v2176, %v2485
        %2487 = vmatpush1.msra.mxu0 %v2486
        %v2488 = vand.u32 %v2185, 4294901760
        %v2489 = vsub.f32 %v2185, %v2488
        %2490 = vmatprep.subr.mxu0 %v2489
        %v2491 = vand.u32 %v2184, 4294901760
        %v2492 = vsub.f32 %v2184, %v2491
        %2493 = vmatpush1.msra.mxu0 %v2492
        %v2494 = vand.u32 %v2193, 4294901760
        %v2495 = vsub.f32 %v2193, %v2494
        %2496 = vmatprep.subr.mxu0 %v2495
        %v2497 = vand.u32 %v2192, 4294901760
        %v2498 = vsub.f32 %v2192, %v2497
        %2499 = vmatpush1.msra.mxu0 %v2498
        %v2500 = vand.u32 %v2201, 4294901760
        %v2501 = vsub.f32 %v2201, %v2500
        %2502 = vmatprep.subr.mxu0 %v2501
        %v2503 = vand.u32 %v2200, 4294901760
        %v2504 = vsub.f32 %v2200, %v2503
        %2505 = vmatpush1.msra.mxu0 %v2504
        %v2506 = vand.u32 %v2209, 4294901760
        %v2507 = vsub.f32 %v2209, %v2506
        %2508 = vmatprep.subr.mxu0 %v2507
        %v2509 = vand.u32 %v2208, 4294901760
        %v2510 = vsub.f32 %v2208, %v2509
        %2511 = vmatpush1.msra.mxu0 %v2510
        %v2512 = vand.u32 %v2217, 4294901760
        %v2513 = vsub.f32 %v2217, %v2512
        %2514 = vmatprep.subr.mxu0 %v2513
        %v2515 = vand.u32 %v2216, 4294901760
        %v2516 = vsub.f32 %v2216, %v2515
        %2517 = vmatpush1.msra.mxu0 %v2516
        %v2518 = vand.u32 %v2225, 4294901760
        %v2519 = vsub.f32 %v2225, %v2518
        %2520 = vmatprep.subr.mxu0 %v2519
        %v2521 = vand.u32 %v2224, 4294901760
        %v2522 = vsub.f32 %v2224, %v2521
        %2523 = vmatpush1.msra.mxu0 %v2522
        %2524 = vmatprep.subr.mxu0 0.0
        %2525 = vmatpush1.msra.mxu0 0.0
        %2526 = vmatprep.subr.mxu0 0.0
        %2527 = vmatpush1.msra.mxu0 0.0
        %2528 = vmatprep.subr.mxu0 0.0
        %2529 = vmatpush1.msra.mxu0 0.0
        %2530 = vmatprep.subr.mxu0 0.0
        %2531 = vmatpush1.msra.mxu0 0.0
        %2532 = vmatprep.subr.mxu0 0.0
        %2533 = vmatpush1.msra.mxu0 0.0
        %2534 = vmatprep.subr.mxu0 0.0
        %2535 = vmatpush1.msra.mxu0 0.0
        %2536 = vmatprep.subr.mxu0 0.0
        %2537 = vmatpush1.msra.mxu0 0.0
        %2538 = vmatprep.subr.mxu0 0.0
        %2539 = vmatpush1.msra.mxu0 0.0
        %2540 = vmatprep.subr.mxu0 0.0
        %2541 = vmatpush1.msra.mxu0 0.0
        %2542 = vmatprep.subr.mxu0 0.0
        %2543 = vmatpush1.msra.mxu0 0.0
        %2544 = vmatprep.subr.mxu0 0.0
        %2545 = vmatpush1.msra.mxu0 0.0
        %2546 = vmatprep.subr.mxu0 0.0
        %2547 = vmatpush1.msra.mxu0 0.0
        %2548 = vmatprep.subr.mxu0 0.0
        %2549 = vmatpush1.msra.mxu0 0.0
        %2550 = vmatprep.subr.mxu0 0.0
        %2551 = vmatpush1.msra.mxu0 0.0
        %2552 = vmatprep.subr.mxu0 0.0
        %2553 = vmatpush1.msra.mxu0 0.0
        %2554 = vmatprep.subr.mxu0 0.0
        %2555 = vmatpush1.msra.mxu0 0.0
        %2556 = vmatprep.subr.mxu0 0.0
        %2557 = vmatpush1.msra.mxu0 0.0
        %2558 = vmatprep.subr.mxu0 0.0
        %2559 = vmatpush1.msra.mxu0 0.0
        %2560 = vmatprep.subr.mxu0 0.0
        %2561 = vmatpush1.msra.mxu0 0.0
        %2562 = vmatprep.subr.mxu0 0.0
        %2563 = vmatpush1.msra.mxu0 0.0
        %2564 = vmatprep.subr.mxu0 0.0
        %2565 = vmatpush1.msra.mxu0 0.0
        %2566 = vmatprep.subr.mxu0 0.0
        %2567 = vmatpush1.msra.mxu0 0.0
        %2568 = vmatprep.subr.mxu0 0.0
        %2569 = vmatpush1.msra.mxu0 0.0
        %2570 = vmatprep.subr.mxu0 0.0
        %2571 = vmatpush1.msra.mxu0 0.0
        %2572 = vmatprep.mubr.f32.mxu0 0.0
        %v2573 = vand.u32 %v1048, 4294901760
        %v2574 = vsub.f32 %v1048, %v2573
        %2575 = vmatmul.mubr.f32.gmra.mrb[0].mxu0 %v2574
        %v2576 = vpop.f32.mrb[0].mxu0
        %v2577 = vadd.f32 %v2472, %v2576
        %v2578 = vpop.f32.mrb[0].mxu0
        %v2579 = vadd.f32 %v2474, %v2578
        %2580 = vdwg.mxu0
        %v2581 = vand.u32 %v2169, 4294901760
        %2582 = vmatprep.subr.mxu0 %v2581
        %v2583 = vand.u32 %v2168, 4294901760
        %2584 = vmatpush1.msra.mxu0 %v2583
        %v2585 = vand.u32 %v2177, 4294901760
        %2586 = vmatprep.subr.mxu0 %v2585
        %v2587 = vand.u32 %v2176, 4294901760
        %2588 = vmatpush1.msra.mxu0 %v2587
        %v2589 = vand.u32 %v2185, 4294901760
        %2590 = vmatprep.subr.mxu0 %v2589
        %v2591 = vand.u32 %v2184, 4294901760
        %2592 = vmatpush1.msra.mxu0 %v2591
        %v2593 = vand.u32 %v2193, 4294901760
        %2594 = vmatprep.subr.mxu0 %v2593
        %v2595 = vand.u32 %v2192, 4294901760
        %2596 = vmatpush1.msra.mxu0 %v2595
        %v2597 = vand.u32 %v2201, 4294901760
        %2598 = vmatprep.subr.mxu0 %v2597
        %v2599 = vand.u32 %v2200, 4294901760
        %2600 = vmatpush1.msra.mxu0 %v2599
        %v2601 = vand.u32 %v2209, 4294901760
        %2602 = vmatprep.subr.mxu0 %v2601
        %v2603 = vand.u32 %v2208, 4294901760
        %2604 = vmatpush1.msra.mxu0 %v2603
        %v2605 = vand.u32 %v2217, 4294901760
        %2606 = vmatprep.subr.mxu0 %v2605
        %v2607 = vand.u32 %v2216, 4294901760
        %2608 = vmatpush1.msra.mxu0 %v2607
        %v2609 = vand.u32 %v2225, 4294901760
        %2610 = vmatprep.subr.mxu0 %v2609
        %v2611 = vand.u32 %v2224, 4294901760
        %2612 = vmatpush1.msra.mxu0 %v2611
        %2613 = vmatprep.subr.mxu0 0.0
        %2614 = vmatpush1.msra.mxu0 0.0
        %2615 = vmatprep.subr.mxu0 0.0
        %2616 = vmatpush1.msra.mxu0 0.0
        %2617 = vmatprep.subr.mxu0 0.0
        %2618 = vmatpush1.msra.mxu0 0.0
        %2619 = vmatprep.subr.mxu0 0.0
        %2620 = vmatpush1.msra.mxu0 0.0
        %2621 = vmatprep.subr.mxu0 0.0
        %2622 = vmatpush1.msra.mxu0 0.0
        %2623 = vmatprep.subr.mxu0 0.0
        %2624 = vmatpush1.msra.mxu0 0.0
        %2625 = vmatprep.subr.mxu0 0.0
        %2626 = vmatpush1.msra.mxu0 0.0
        %2627 = vmatprep.subr.mxu0 0.0
        %2628 = vmatpush1.msra.mxu0 0.0
        %2629 = vmatprep.subr.mxu0 0.0
        %2630 = vmatpush1.msra.mxu0 0.0
        %2631 = vmatprep.subr.mxu0 0.0
        %2632 = vmatpush1.msra.mxu0 0.0
        %2633 = vmatprep.subr.mxu0 0.0
        %2634 = vmatpush1.msra.mxu0 0.0
        %2635 = vmatprep.subr.mxu0 0.0
        %2636 = vmatpush1.msra.mxu0 0.0
        %2637 = vmatprep.subr.mxu0 0.0
        %2638 = vmatpush1.msra.mxu0 0.0
        %2639 = vmatprep.subr.mxu0 0.0
        %2640 = vmatpush1.msra.mxu0 0.0
        %2641 = vmatprep.subr.mxu0 0.0
        %2642 = vmatpush1.msra.mxu0 0.0
        %2643 = vmatprep.subr.mxu0 0.0
        %2644 = vmatpush1.msra.mxu0 0.0
        %2645 = vmatprep.subr.mxu0 0.0
        %2646 = vmatpush1.msra.mxu0 0.0
        %2647 = vmatprep.subr.mxu0 0.0
        %2648 = vmatpush1.msra.mxu0 0.0
        %2649 = vmatprep.subr.mxu0 0.0
        %2650 = vmatpush1.msra.mxu0 0.0
        %2651 = vmatprep.subr.mxu0 0.0
        %2652 = vmatpush1.msra.mxu0 0.0
        %2653 = vmatprep.subr.mxu0 0.0
        %2654 = vmatpush1.msra.mxu0 0.0
        %2655 = vmatprep.subr.mxu0 0.0
        %2656 = vmatpush1.msra.mxu0 0.0
        %2657 = vmatprep.subr.mxu0 0.0
        %2658 = vmatpush1.msra.mxu0 0.0
        %2659 = vmatprep.subr.mxu0 0.0
        %2660 = vmatpush1.msra.mxu0 0.0
        %2661 = vmatprep.mubr.f32.mxu0 0.0
        %v2662 = vand.u32 %v1048, 4294901760
        %v2663 = vsub.f32 %v1048, %v2662
        %v2664 = vand.u32 %v2663, 4294901760
        %2665 = vmatmul.mubr.f32.gmra.mrb[0].mxu0 %v2664
        %v2666 = vpop.f32.mrb[0].mxu0
        %v2667 = vadd.f32 %v2577, %v2666
        %v2668 = vpop.f32.mrb[0].mxu0
        %v2669 = vadd.f32 %v2579, %v2668
        %2670 = vdwg.mxu0
        %v2671 = vand.u32 %v2169, 4294901760
        %v2672 = vsub.f32 %v2169, %v2671
        %v2673 = vand.u32 %v2672, 4294901760
        %2674 = vmatprep.subr.mxu0 %v2673
        %v2675 = vand.u32 %v2168, 4294901760
        %v2676 = vsub.f32 %v2168, %v2675
        %v2677 = vand.u32 %v2676, 4294901760
        %2678 = vmatpush1.msra.mxu0 %v2677
        %v2679 = vand.u32 %v2177, 4294901760
        %v2680 = vsub.f32 %v2177, %v2679
        %v2681 = vand.u32 %v2680, 4294901760
        %2682 = vmatprep.subr.mxu0 %v2681
        %v2683 = vand.u32 %v2176, 4294901760
        %v2684 = vsub.f32 %v2176, %v2683
        %v2685 = vand.u32 %v2684, 4294901760
        %2686 = vmatpush1.msra.mxu0 %v2685
        %v2687 = vand.u32 %v2185, 4294901760
        %v2688 = vsub.f32 %v2185, %v2687
        %v2689 = vand.u32 %v2688, 4294901760
        %2690 = vmatprep.subr.mxu0 %v2689
        %v2691 = vand.u32 %v2184, 4294901760
        %v2692 = vsub.f32 %v2184, %v2691
        %v2693 = vand.u32 %v2692, 4294901760
        %2694 = vmatpush1.msra.mxu0 %v2693
        %v2695 = vand.u32 %v2193, 4294901760
        %v2696 = vsub.f32 %v2193, %v2695
        %v2697 = vand.u32 %v2696, 4294901760
        %2698 = vmatprep.subr.mxu0 %v2697
        %v2699 = vand.u32 %v2192, 4294901760
        %v2700 = vsub.f32 %v2192, %v2699
        %v2701 = vand.u32 %v2700, 4294901760
        %2702 = vmatpush1.msra.mxu0 %v2701
        %v2703 = vand.u32 %v2201, 4294901760
        %v2704 = vsub.f32 %v2201, %v2703
        %v2705 = vand.u32 %v2704, 4294901760
        %2706 = vmatprep.subr.mxu0 %v2705
        %v2707 = vand.u32 %v2200, 4294901760
        %v2708 = vsub.f32 %v2200, %v2707
        %v2709 = vand.u32 %v2708, 4294901760
        %2710 = vmatpush1.msra.mxu0 %v2709
        %v2711 = vand.u32 %v2209, 4294901760
        %v2712 = vsub.f32 %v2209, %v2711
        %v2713 = vand.u32 %v2712, 4294901760
        %2714 = vmatprep.subr.mxu0 %v2713
        %v2715 = vand.u32 %v2208, 4294901760
        %v2716 = vsub.f32 %v2208, %v2715
        %v2717 = vand.u32 %v2716, 4294901760
        %2718 = vmatpush1.msra.mxu0 %v2717
        %v2719 = vand.u32 %v2217, 4294901760
        %v2720 = vsub.f32 %v2217, %v2719
        %v2721 = vand.u32 %v2720, 4294901760
        %2722 = vmatprep.subr.mxu0 %v2721
        %v2723 = vand.u32 %v2216, 4294901760
        %v2724 = vsub.f32 %v2216, %v2723
        %v2725 = vand.u32 %v2724, 4294901760
        %2726 = vmatpush1.msra.mxu0 %v2725
        %v2727 = vand.u32 %v2225, 4294901760
        %v2728 = vsub.f32 %v2225, %v2727
        %v2729 = vand.u32 %v2728, 4294901760
        %2730 = vmatprep.subr.mxu0 %v2729
        %v2731 = vand.u32 %v2224, 4294901760
        %v2732 = vsub.f32 %v2224, %v2731
        %v2733 = vand.u32 %v2732, 4294901760
        %2734 = vmatpush1.msra.mxu0 %v2733
        %2735 = vmatprep.subr.mxu0 0.0
        %2736 = vmatpush1.msra.mxu0 0.0
        %2737 = vmatprep.subr.mxu0 0.0
        %2738 = vmatpush1.msra.mxu0 0.0
        %2739 = vmatprep.subr.mxu0 0.0
        %2740 = vmatpush1.msra.mxu0 0.0
        %2741 = vmatprep.subr.mxu0 0.0
        %2742 = vmatpush1.msra.mxu0 0.0
        %2743 = vmatprep.subr.mxu0 0.0
        %2744 = vmatpush1.msra.mxu0 0.0
        %2745 = vmatprep.subr.mxu0 0.0
        %2746 = vmatpush1.msra.mxu0 0.0
        %2747 = vmatprep.subr.mxu0 0.0
        %2748 = vmatpush1.msra.mxu0 0.0
        %2749 = vmatprep.subr.mxu0 0.0
        %2750 = vmatpush1.msra.mxu0 0.0
        %2751 = vmatprep.subr.mxu0 0.0
        %2752 = vmatpush1.msra.mxu0 0.0
        %2753 = vmatprep.subr.mxu0 0.0
        %2754 = vmatpush1.msra.mxu0 0.0
        %2755 = vmatprep.subr.mxu0 0.0
        %2756 = vmatpush1.msra.mxu0 0.0
        %2757 = vmatprep.subr.mxu0 0.0
        %2758 = vmatpush1.msra.mxu0 0.0
        %2759 = vmatprep.subr.mxu0 0.0
        %2760 = vmatpush1.msra.mxu0 0.0
        %2761 = vmatprep.subr.mxu0 0.0
        %2762 = vmatpush1.msra.mxu0 0.0
        %2763 = vmatprep.subr.mxu0 0.0
        %2764 = vmatpush1.msra.mxu0 0.0
        %2765 = vmatprep.subr.mxu0 0.0
        %2766 = vmatpush1.msra.mxu0 0.0
        %2767 = vmatprep.subr.mxu0 0.0
        %2768 = vmatpush1.msra.mxu0 0.0
        %2769 = vmatprep.subr.mxu0 0.0
        %2770 = vmatpush1.msra.mxu0 0.0
        %2771 = vmatprep.subr.mxu0 0.0
        %2772 = vmatpush1.msra.mxu0 0.0
        %2773 = vmatprep.subr.mxu0 0.0
        %2774 = vmatpush1.msra.mxu0 0.0
        %2775 = vmatprep.subr.mxu0 0.0
        %2776 = vmatpush1.msra.mxu0 0.0
        %2777 = vmatprep.subr.mxu0 0.0
        %2778 = vmatpush1.msra.mxu0 0.0
        %2779 = vmatprep.subr.mxu0 0.0
        %2780 = vmatpush1.msra.mxu0 0.0
        %2781 = vmatprep.subr.mxu0 0.0
        %2782 = vmatpush1.msra.mxu0 0.0
        %2783 = vmatprep.mubr.f32.mxu0 0.0
        %v2784 = vand.u32 %v1048, 4294901760
        %2785 = vmatmul.mubr.f32.gmra.mrb[0].mxu0 %v2784
        %v2786 = vpop.f32.mrb[0].mxu0
        %v2787 = vadd.f32 %v2667, %v2786
        %v2788 = vpop.f32.mrb[0].mxu0
        %v2789 = vadd.f32 %v2669, %v2788
        %2790 = vdwg.mxu0
        %v2791 = vand.u32 %v2169, 4294901760
        %2792 = vmatprep.subr.mxu0 %v2791
        %v2793 = vand.u32 %v2168, 4294901760
        %2794 = vmatpush1.msra.mxu0 %v2793
        %v2795 = vand.u32 %v2177, 4294901760
        %2796 = vmatprep.subr.mxu0 %v2795
        %v2797 = vand.u32 %v2176, 4294901760
        %2798 = vmatpush1.msra.mxu0 %v2797
        %v2799 = vand.u32 %v2185, 4294901760
        %2800 = vmatprep.subr.mxu0 %v2799
        %v2801 = vand.u32 %v2184, 4294901760
        %2802 = vmatpush1.msra.mxu0 %v2801
        %v2803 = vand.u32 %v2193, 4294901760
        %2804 = vmatprep.subr.mxu0 %v2803
        %v2805 = vand.u32 %v2192, 4294901760
        %2806 = vmatpush1.msra.mxu0 %v2805
        %v2807 = vand.u32 %v2201, 4294901760
        %2808 = vmatprep.subr.mxu0 %v2807
        %v2809 = vand.u32 %v2200, 4294901760
        %2810 = vmatpush1.msra.mxu0 %v2809
        %v2811 = vand.u32 %v2209, 4294901760
        %2812 = vmatprep.subr.mxu0 %v2811
        %v2813 = vand.u32 %v2208, 4294901760
        %2814 = vmatpush1.msra.mxu0 %v2813
        %v2815 = vand.u32 %v2217, 4294901760
        %2816 = vmatprep.subr.mxu0 %v2815
        %v2817 = vand.u32 %v2216, 4294901760
        %2818 = vmatpush1.msra.mxu0 %v2817
        %v2819 = vand.u32 %v2225, 4294901760
        %2820 = vmatprep.subr.mxu0 %v2819
        %v2821 = vand.u32 %v2224, 4294901760
        %2822 = vmatpush1.msra.mxu0 %v2821
        %2823 = vmatprep.subr.mxu0 0.0
        %2824 = vmatpush1.msra.mxu0 0.0
        %2825 = vmatprep.subr.mxu0 0.0
        %2826 = vmatpush1.msra.mxu0 0.0
        %2827 = vmatprep.subr.mxu0 0.0
        %2828 = vmatpush1.msra.mxu0 0.0
        %2829 = vmatprep.subr.mxu0 0.0
        %2830 = vmatpush1.msra.mxu0 0.0
        %2831 = vmatprep.subr.mxu0 0.0
        %2832 = vmatpush1.msra.mxu0 0.0
        %2833 = vmatprep.subr.mxu0 0.0
        %2834 = vmatpush1.msra.mxu0 0.0
        %2835 = vmatprep.subr.mxu0 0.0
        %2836 = vmatpush1.msra.mxu0 0.0
        %2837 = vmatprep.subr.mxu0 0.0
        %2838 = vmatpush1.msra.mxu0 0.0
        %2839 = vmatprep.subr.mxu0 0.0
        %2840 = vmatpush1.msra.mxu0 0.0
        %2841 = vmatprep.subr.mxu0 0.0
        %2842 = vmatpush1.msra.mxu0 0.0
        %2843 = vmatprep.subr.mxu0 0.0
        %2844 = vmatpush1.msra.mxu0 0.0
        %2845 = vmatprep.subr.mxu0 0.0
        %2846 = vmatpush1.msra.mxu0 0.0
        %2847 = vmatprep.subr.mxu0 0.0
        %2848 = vmatpush1.msra.mxu0 0.0
        %2849 = vmatprep.subr.mxu0 0.0
        %2850 = vmatpush1.msra.mxu0 0.0
        %2851 = vmatprep.subr.mxu0 0.0
        %2852 = vmatpush1.msra.mxu0 0.0
        %2853 = vmatprep.subr.mxu0 0.0
        %2854 = vmatpush1.msra.mxu0 0.0
        %2855 = vmatprep.subr.mxu0 0.0
        %2856 = vmatpush1.msra.mxu0 0.0
        %2857 = vmatprep.subr.mxu0 0.0
        %2858 = vmatpush1.msra.mxu0 0.0
        %2859 = vmatprep.subr.mxu0 0.0
        %2860 = vmatpush1.msra.mxu0 0.0
        %2861 = vmatprep.subr.mxu0 0.0
        %2862 = vmatpush1.msra.mxu0 0.0
        %2863 = vmatprep.subr.mxu0 0.0
        %2864 = vmatpush1.msra.mxu0 0.0
        %2865 = vmatprep.subr.mxu0 0.0
        %2866 = vmatpush1.msra.mxu0 0.0
        %2867 = vmatprep.subr.mxu0 0.0
        %2868 = vmatpush1.msra.mxu0 0.0
        %2869 = vmatprep.subr.mxu0 0.0
        %2870 = vmatpush1.msra.mxu0 0.0
        %2871 = vmatprep.mubr.f32.mxu0 0.0
        %v2872 = vand.u32 %v1048, 4294901760
        %2873 = vmatmul.mubr.f32.gmra.mrb[0].mxu0 %v2872
        %v2874 = vpop.f32.mrb[0].mxu0
        %v2875 = vadd.f32 %v2787, %v2874
        %v2876 = vpop.f32.mrb[0].mxu0
        %v2877 = vadd.f32 %v2789, %v2876
        %2878 = vdwg.mxu0
        %v2879 = vand.u32 %v2171, 4294901760
        %2880 = vmatprep.subr.mxu0 %v2879
        %v2881 = vand.u32 %v2170, 4294901760
        %2882 = vmatpush1.msra.mxu0 %v2881
        %v2883 = vand.u32 %v2179, 4294901760
        %2884 = vmatprep.subr.mxu0 %v2883
        %v2885 = vand.u32 %v2178, 4294901760
        %2886 = vmatpush1.msra.mxu0 %v2885
        %v2887 = vand.u32 %v2187, 4294901760
        %2888 = vmatprep.subr.mxu0 %v2887
        %v2889 = vand.u32 %v2186, 4294901760
        %2890 = vmatpush1.msra.mxu0 %v2889
        %v2891 = vand.u32 %v2195, 4294901760
        %2892 = vmatprep.subr.mxu0 %v2891
        %v2893 = vand.u32 %v2194, 4294901760
        %2894 = vmatpush1.msra.mxu0 %v2893
        %v2895 = vand.u32 %v2203, 4294901760
        %2896 = vmatprep.subr.mxu0 %v2895
        %v2897 = vand.u32 %v2202, 4294901760
        %2898 = vmatpush1.msra.mxu0 %v2897
        %v2899 = vand.u32 %v2211, 4294901760
        %2900 = vmatprep.subr.mxu0 %v2899
        %v2901 = vand.u32 %v2210, 4294901760
        %2902 = vmatpush1.msra.mxu0 %v2901
        %v2903 = vand.u32 %v2219, 4294901760
        %2904 = vmatprep.subr.mxu0 %v2903
        %v2905 = vand.u32 %v2218, 4294901760
        %2906 = vmatpush1.msra.mxu0 %v2905
        %v2907 = vand.u32 %v2227, 4294901760
        %2908 = vmatprep.subr.mxu0 %v2907
        %v2909 = vand.u32 %v2226, 4294901760
        %2910 = vmatpush1.msra.mxu0 %v2909
        %2911 = vmatprep.subr.mxu0 0.0
        %2912 = vmatpush1.msra.mxu0 0.0
        %2913 = vmatprep.subr.mxu0 0.0
        %2914 = vmatpush1.msra.mxu0 0.0
        %2915 = vmatprep.subr.mxu0 0.0
        %2916 = vmatpush1.msra.mxu0 0.0
        %2917 = vmatprep.subr.mxu0 0.0
        %2918 = vmatpush1.msra.mxu0 0.0
        %2919 = vmatprep.subr.mxu0 0.0
        %2920 = vmatpush1.msra.mxu0 0.0
        %2921 = vmatprep.subr.mxu0 0.0
        %2922 = vmatpush1.msra.mxu0 0.0
        %2923 = vmatprep.subr.mxu0 0.0
        %2924 = vmatpush1.msra.mxu0 0.0
        %2925 = vmatprep.subr.mxu0 0.0
        %2926 = vmatpush1.msra.mxu0 0.0
        %2927 = vmatprep.subr.mxu0 0.0
        %2928 = vmatpush1.msra.mxu0 0.0
        %2929 = vmatprep.subr.mxu0 0.0
        %2930 = vmatpush1.msra.mxu0 0.0
        %2931 = vmatprep.subr.mxu0 0.0
        %2932 = vmatpush1.msra.mxu0 0.0
        %2933 = vmatprep.subr.mxu0 0.0
        %2934 = vmatpush1.msra.mxu0 0.0
        %2935 = vmatprep.subr.mxu0 0.0
        %2936 = vmatpush1.msra.mxu0 0.0
        %2937 = vmatprep.subr.mxu0 0.0
        %2938 = vmatpush1.msra.mxu0 0.0
        %2939 = vmatprep.subr.mxu0 0.0
        %2940 = vmatpush1.msra.mxu0 0.0
        %2941 = vmatprep.subr.mxu0 0.0
        %2942 = vmatpush1.msra.mxu0 0.0
        %2943 = vmatprep.subr.mxu0 0.0
        %2944 = vmatpush1.msra.mxu0 0.0
        %2945 = vmatprep.subr.mxu0 0.0
        %2946 = vmatpush1.msra.mxu0 0.0
        %2947 = vmatprep.subr.mxu0 0.0
        %2948 = vmatpush1.msra.mxu0 0.0
        %2949 = vmatprep.subr.mxu0 0.0
        %2950 = vmatpush1.msra.mxu0 0.0
        %2951 = vmatprep.subr.mxu0 0.0
        %2952 = vmatpush1.msra.mxu0 0.0
        %2953 = vmatprep.subr.mxu0 0.0
        %2954 = vmatpush1.msra.mxu0 0.0
        %2955 = vmatprep.subr.mxu0 0.0
        %2956 = vmatpush1.msra.mxu0 0.0
        %2957 = vmatprep.subr.mxu0 0.0
        %2958 = vmatpush1.msra.mxu0 0.0
        %2959 = vmatprep.mubr.f32.mxu0 0.0
        %v2960 = vand.u32 %v1048, 4294901760
        %v2961 = vsub.f32 %v1048, %v2960
        %v2962 = vand.u32 %v2961, 4294901760
        %v2963 = vsub.f32 %v2961, %v2962
        %v2964 = vand.u32 %v2963, 4294901760
        %2965 = vmatmul.mubr.f32.gmra.mrb[0].mxu0 %v2964
        %v2966 = vpop.f32.mrb[0].mxu0
        %v2967 = vadd.f32 0.0, %v2966
        %v2968 = vpop.f32.mrb[0].mxu0
        %v2969 = vadd.f32 0.0, %v2968
        %2970 = vdwg.mxu0
        %v2971 = vand.u32 %v2171, 4294901760
        %v2972 = vsub.f32 %v2171, %v2971
        %v2973 = vand.u32 %v2972, 4294901760
        %v2974 = vsub.f32 %v2972, %v2973
        %v2975 = vand.u32 %v2974, 4294901760
        %2976 = vmatprep.subr.mxu0 %v2975
        %v2977 = vand.u32 %v2170, 4294901760
        %v2978 = vsub.f32 %v2170, %v2977
        %v2979 = vand.u32 %v2978, 4294901760
        %v2980 = vsub.f32 %v2978, %v2979
        %v2981 = vand.u32 %v2980, 4294901760
        %2982 = vmatpush1.msra.mxu0 %v2981
        %v2983 = vand.u32 %v2179, 4294901760
        %v2984 = vsub.f32 %v2179, %v2983
        %v2985 = vand.u32 %v2984, 4294901760
        %v2986 = vsub.f32 %v2984, %v2985
        %v2987 = vand.u32 %v2986, 4294901760
        %2988 = vmatprep.subr.mxu0 %v2987
        %v2989 = vand.u32 %v2178, 4294901760
        %v2990 = vsub.f32 %v2178, %v2989
        %v2991 = vand.u32 %v2990, 4294901760
        %v2992 = vsub.f32 %v2990, %v2991
        %v2993 = vand.u32 %v2992, 4294901760
        %2994 = vmatpush1.msra.mxu0 %v2993
        %v2995 = vand.u32 %v2187, 4294901760
        %v2996 = vsub.f32 %v2187, %v2995
        %v2997 = vand.u32 %v2996, 4294901760
        %v2998 = vsub.f32 %v2996, %v2997
        %v2999 = vand.u32 %v2998, 4294901760
        %3000 = vmatprep.subr.mxu0 %v2999
        %v3001 = vand.u32 %v2186, 4294901760
        %v3002 = vsub.f32 %v2186, %v3001
        %v3003 = vand.u32 %v3002, 4294901760
        %v3004 = vsub.f32 %v3002, %v3003
        %v3005 = vand.u32 %v3004, 4294901760
        %3006 = vmatpush1.msra.mxu0 %v3005
        %v3007 = vand.u32 %v2195, 4294901760
        %v3008 = vsub.f32 %v2195, %v3007
        %v3009 = vand.u32 %v3008, 4294901760
        %v3010 = vsub.f32 %v3008, %v3009
        %v3011 = vand.u32 %v3010, 4294901760
        %3012 = vmatprep.subr.mxu0 %v3011
        %v3013 = vand.u32 %v2194, 4294901760
        %v3014 = vsub.f32 %v2194, %v3013
        %v3015 = vand.u32 %v3014, 4294901760
        %v3016 = vsub.f32 %v3014, %v3015
        %v3017 = vand.u32 %v3016, 4294901760
        %3018 = vmatpush1.msra.mxu0 %v3017
        %v3019 = vand.u32 %v2203, 4294901760
        %v3020 = vsub.f32 %v2203, %v3019
        %v3021 = vand.u32 %v3020, 4294901760
        %v3022 = vsub.f32 %v3020, %v3021
        %v3023 = vand.u32 %v3022, 4294901760
        %3024 = vmatprep.subr.mxu0 %v3023
        %v3025 = vand.u32 %v2202, 4294901760
        %v3026 = vsub.f32 %v2202, %v3025
        %v3027 = vand.u32 %v3026, 4294901760
        %v3028 = vsub.f32 %v3026, %v3027
        %v3029 = vand.u32 %v3028, 4294901760
        %3030 = vmatpush1.msra.mxu0 %v3029
        %v3031 = vand.u32 %v2211, 4294901760
        %v3032 = vsub.f32 %v2211, %v3031
        %v3033 = vand.u32 %v3032, 4294901760
        %v3034 = vsub.f32 %v3032, %v3033
        %v3035 = vand.u32 %v3034, 4294901760
        %3036 = vmatprep.subr.mxu0 %v3035
        %v3037 = vand.u32 %v2210, 4294901760
        %v3038 = vsub.f32 %v2210, %v3037
        %v3039 = vand.u32 %v3038, 4294901760
        %v3040 = vsub.f32 %v3038, %v3039
        %v3041 = vand.u32 %v3040, 4294901760
        %3042 = vmatpush1.msra.mxu0 %v3041
        %v3043 = vand.u32 %v2219, 4294901760
        %v3044 = vsub.f32 %v2219, %v3043
        %v3045 = vand.u32 %v3044, 4294901760
        %v3046 = vsub.f32 %v3044, %v3045
        %v3047 = vand.u32 %v3046, 4294901760
        %3048 = vmatprep.subr.mxu0 %v3047
        %v3049 = vand.u32 %v2218, 4294901760
        %v3050 = vsub.f32 %v2218, %v3049
        %v3051 = vand.u32 %v3050, 4294901760
        %v3052 = vsub.f32 %v3050, %v3051
        %v3053 = vand.u32 %v3052, 4294901760
        %3054 = vmatpush1.msra.mxu0 %v3053
        %v3055 = vand.u32 %v2227, 4294901760
        %v3056 = vsub.f32 %v2227, %v3055
        %v3057 = vand.u32 %v3056, 4294901760
        %v3058 = vsub.f32 %v3056, %v3057
        %v3059 = vand.u32 %v3058, 4294901760
        %3060 = vmatprep.subr.mxu0 %v3059
        %v3061 = vand.u32 %v2226, 4294901760
        %v3062 = vsub.f32 %v2226, %v3061
        %v3063 = vand.u32 %v3062, 4294901760
        %v3064 = vsub.f32 %v3062, %v3063
        %v3065 = vand.u32 %v3064, 4294901760
        %3066 = vmatpush1.msra.mxu0 %v3065
        %3067 = vmatprep.subr.mxu0 0.0
        %3068 = vmatpush1.msra.mxu0 0.0
        %3069 = vmatprep.subr.mxu0 0.0
        %3070 = vmatpush1.msra.mxu0 0.0
        %3071 = vmatprep.subr.mxu0 0.0
        %3072 = vmatpush1.msra.mxu0 0.0
        %3073 = vmatprep.subr.mxu0 0.0
        %3074 = vmatpush1.msra.mxu0 0.0
        %3075 = vmatprep.subr.mxu0 0.0
        %3076 = vmatpush1.msra.mxu0 0.0
        %3077 = vmatprep.subr.mxu0 0.0
        %3078 = vmatpush1.msra.mxu0 0.0
        %3079 = vmatprep.subr.mxu0 0.0
        %3080 = vmatpush1.msra.mxu0 0.0
        %3081 = vmatprep.subr.mxu0 0.0
        %3082 = vmatpush1.msra.mxu0 0.0
        %3083 = vmatprep.subr.mxu0 0.0
        %3084 = vmatpush1.msra.mxu0 0.0
        %3085 = vmatprep.subr.mxu0 0.0
        %3086 = vmatpush1.msra.mxu0 0.0
        %3087 = vmatprep.subr.mxu0 0.0
        %3088 = vmatpush1.msra.mxu0 0.0
        %3089 = vmatprep.subr.mxu0 0.0
        %3090 = vmatpush1.msra.mxu0 0.0
        %3091 = vmatprep.subr.mxu0 0.0
        %3092 = vmatpush1.msra.mxu0 0.0
        %3093 = vmatprep.subr.mxu0 0.0
        %3094 = vmatpush1.msra.mxu0 0.0
        %3095 = vmatprep.subr.mxu0 0.0
        %3096 = vmatpush1.msra.mxu0 0.0
        %3097 = vmatprep.subr.mxu0 0.0
        %3098 = vmatpush1.msra.mxu0 0.0
        %3099 = vmatprep.subr.mxu0 0.0
        %3100 = vmatpush1.msra.mxu0 0.0
        %3101 = vmatprep.subr.mxu0 0.0
        %3102 = vmatpush1.msra.mxu0 0.0
        %3103 = vmatprep.subr.mxu0 0.0
        %3104 = vmatpush1.msra.mxu0 0.0
        %3105 = vmatprep.subr.mxu0 0.0
        %3106 = vmatpush1.msra.mxu0 0.0
        %3107 = vmatprep.subr.mxu0 0.0
        %3108 = vmatpush1.msra.mxu0 0.0
        %3109 = vmatprep.subr.mxu0 0.0
        %3110 = vmatpush1.msra.mxu0 0.0
        %3111 = vmatprep.subr.mxu0 0.0
        %3112 = vmatpush1.msra.mxu0 0.0
        %3113 = vmatprep.subr.mxu0 0.0
        %3114 = vmatpush1.msra.mxu0 0.0
        %3115 = vmatprep.mubr.f32.mxu0 0.0
        %v3116 = vand.u32 %v1048, 4294901760
        %3117 = vmatmul.mubr.f32.gmra.mrb[0].mxu0 %v3116
        %v3118 = vpop.f32.mrb[0].mxu0
        %v3119 = vadd.f32 %v2967, %v3118
        %v3120 = vpop.f32.mrb[0].mxu0
        %v3121 = vadd.f32 %v2969, %v3120
        %3122 = vdwg.mxu0
        %v3123 = vand.u32 %v2171, 4294901760
        %v3124 = vsub.f32 %v2171, %v3123
        %3125 = vmatprep.subr.mxu0 %v3124
        %v3126 = vand.u32 %v2170, 4294901760
        %v3127 = vsub.f32 %v2170, %v3126
        %3128 = vmatpush1.msra.mxu0 %v3127
        %v3129 = vand.u32 %v2179, 4294901760
        %v3130 = vsub.f32 %v2179, %v3129
        %3131 = vmatprep.subr.mxu0 %v3130
        %v3132 = vand.u32 %v2178, 4294901760
        %v3133 = vsub.f32 %v2178, %v3132
        %3134 = vmatpush1.msra.mxu0 %v3133
        %v3135 = vand.u32 %v2187, 4294901760
        %v3136 = vsub.f32 %v2187, %v3135
        %3137 = vmatprep.subr.mxu0 %v3136
        %v3138 = vand.u32 %v2186, 4294901760
        %v3139 = vsub.f32 %v2186, %v3138
        %3140 = vmatpush1.msra.mxu0 %v3139
        %v3141 = vand.u32 %v2195, 4294901760
        %v3142 = vsub.f32 %v2195, %v3141
        %3143 = vmatprep.subr.mxu0 %v3142
        %v3144 = vand.u32 %v2194, 4294901760
        %v3145 = vsub.f32 %v2194, %v3144
        %3146 = vmatpush1.msra.mxu0 %v3145
        %v3147 = vand.u32 %v2203, 4294901760
        %v3148 = vsub.f32 %v2203, %v3147
        %3149 = vmatprep.subr.mxu0 %v3148
        %v3150 = vand.u32 %v2202, 4294901760
        %v3151 = vsub.f32 %v2202, %v3150
        %3152 = vmatpush1.msra.mxu0 %v3151
        %v3153 = vand.u32 %v2211, 4294901760
        %v3154 = vsub.f32 %v2211, %v3153
        %3155 = vmatprep.subr.mxu0 %v3154
        %v3156 = vand.u32 %v2210, 4294901760
        %v3157 = vsub.f32 %v2210, %v3156
        %3158 = vmatpush1.msra.mxu0 %v3157
        %v3159 = vand.u32 %v2219, 4294901760
        %v3160 = vsub.f32 %v2219, %v3159
        %3161 = vmatprep.subr.mxu0 %v3160
        %v3162 = vand.u32 %v2218, 4294901760
        %v3163 = vsub.f32 %v2218, %v3162
        %3164 = vmatpush1.msra.mxu0 %v3163
        %v3165 = vand.u32 %v2227, 4294901760
        %v3166 = vsub.f32 %v2227, %v3165
        %3167 = vmatprep.subr.mxu0 %v3166
        %v3168 = vand.u32 %v2226, 4294901760
        %v3169 = vsub.f32 %v2226, %v3168
        %3170 = vmatpush1.msra.mxu0 %v3169
        %3171 = vmatprep.subr.mxu0 0.0
        %3172 = vmatpush1.msra.mxu0 0.0
        %3173 = vmatprep.subr.mxu0 0.0
        %3174 = vmatpush1.msra.mxu0 0.0
        %3175 = vmatprep.subr.mxu0 0.0
        %3176 = vmatpush1.msra.mxu0 0.0
        %3177 = vmatprep.subr.mxu0 0.0
        %3178 = vmatpush1.msra.mxu0 0.0
        %3179 = vmatprep.subr.mxu0 0.0
        %3180 = vmatpush1.msra.mxu0 0.0
        %3181 = vmatprep.subr.mxu0 0.0
        %3182 = vmatpush1.msra.mxu0 0.0
        %3183 = vmatprep.subr.mxu0 0.0
        %3184 = vmatpush1.msra.mxu0 0.0
        %3185 = vmatprep.subr.mxu0 0.0
        %3186 = vmatpush1.msra.mxu0 0.0
        %3187 = vmatprep.subr.mxu0 0.0
        %3188 = vmatpush1.msra.mxu0 0.0
        %3189 = vmatprep.subr.mxu0 0.0
        %3190 = vmatpush1.msra.mxu0 0.0
        %3191 = vmatprep.subr.mxu0 0.0
        %3192 = vmatpush1.msra.mxu0 0.0
        %3193 = vmatprep.subr.mxu0 0.0
        %3194 = vmatpush1.msra.mxu0 0.0
        %3195 = vmatprep.subr.mxu0 0.0
        %3196 = vmatpush1.msra.mxu0 0.0
        %3197 = vmatprep.subr.mxu0 0.0
        %3198 = vmatpush1.msra.mxu0 0.0
        %3199 = vmatprep.subr.mxu0 0.0
        %3200 = vmatpush1.msra.mxu0 0.0
        %3201 = vmatprep.subr.mxu0 0.0
        %3202 = vmatpush1.msra.mxu0 0.0
        %3203 = vmatprep.subr.mxu0 0.0
        %3204 = vmatpush1.msra.mxu0 0.0
        %3205 = vmatprep.subr.mxu0 0.0
        %3206 = vmatpush1.msra.mxu0 0.0
        %3207 = vmatprep.subr.mxu0 0.0
        %3208 = vmatpush1.msra.mxu0 0.0
        %3209 = vmatprep.subr.mxu0 0.0
        %3210 = vmatpush1.msra.mxu0 0.0
        %3211 = vmatprep.subr.mxu0 0.0
        %3212 = vmatpush1.msra.mxu0 0.0
        %3213 = vmatprep.subr.mxu0 0.0
        %3214 = vmatpush1.msra.mxu0 0.0
        %3215 = vmatprep.subr.mxu0 0.0
        %3216 = vmatpush1.msra.mxu0 0.0
        %3217 = vmatprep.subr.mxu0 0.0
        %3218 = vmatpush1.msra.mxu0 0.0
        %3219 = vmatprep.mubr.f32.mxu0 0.0
        %v3220 = vand.u32 %v1048, 4294901760
        %v3221 = vsub.f32 %v1048, %v3220
        %3222 = vmatmul.mubr.f32.gmra.mrb[0].mxu0 %v3221
        %v3223 = vpop.f32.mrb[0].mxu0
        %v3224 = vadd.f32 %v3119, %v3223
        %v3225 = vpop.f32.mrb[0].mxu0
        %v3226 = vadd.f32 %v3121, %v3225
        %3227 = vdwg.mxu0
        %v3228 = vand.u32 %v2171, 4294901760
        %3229 = vmatprep.subr.mxu0 %v3228
        %v3230 = vand.u32 %v2170, 4294901760
        %3231 = vmatpush1.msra.mxu0 %v3230
        %v3232 = vand.u32 %v2179, 4294901760
        %3233 = vmatprep.subr.mxu0 %v3232
        %v3234 = vand.u32 %v2178, 4294901760
        %3235 = vmatpush1.msra.mxu0 %v3234
        %v3236 = vand.u32 %v2187, 4294901760
        %3237 = vmatprep.subr.mxu0 %v3236
        %v3238 = vand.u32 %v2186, 4294901760
        %3239 = vmatpush1.msra.mxu0 %v3238
        %v3240 = vand.u32 %v2195, 4294901760
        %3241 = vmatprep.subr.mxu0 %v3240
        %v3242 = vand.u32 %v2194, 4294901760
        %3243 = vmatpush1.msra.mxu0 %v3242
        %v3244 = vand.u32 %v2203, 4294901760
        %3245 = vmatprep.subr.mxu0 %v3244
        %v3246 = vand.u32 %v2202, 4294901760
        %3247 = vmatpush1.msra.mxu0 %v3246
        %v3248 = vand.u32 %v2211, 4294901760
        %3249 = vmatprep.subr.mxu0 %v3248
        %v3250 = vand.u32 %v2210, 4294901760
        %3251 = vmatpush1.msra.mxu0 %v3250
        %v3252 = vand.u32 %v2219, 4294901760
        %3253 = vmatprep.subr.mxu0 %v3252
        %v3254 = vand.u32 %v2218, 4294901760
        %3255 = vmatpush1.msra.mxu0 %v3254
        %v3256 = vand.u32 %v2227, 4294901760
        %3257 = vmatprep.subr.mxu0 %v3256
        %v3258 = vand.u32 %v2226, 4294901760
        %3259 = vmatpush1.msra.mxu0 %v3258
        %3260 = vmatprep.subr.mxu0 0.0
        %3261 = vmatpush1.msra.mxu0 0.0
        %3262 = vmatprep.subr.mxu0 0.0
        %3263 = vmatpush1.msra.mxu0 0.0
        %3264 = vmatprep.subr.mxu0 0.0
        %3265 = vmatpush1.msra.mxu0 0.0
        %3266 = vmatprep.subr.mxu0 0.0
        %3267 = vmatpush1.msra.mxu0 0.0
        %3268 = vmatprep.subr.mxu0 0.0
        %3269 = vmatpush1.msra.mxu0 0.0
        %3270 = vmatprep.subr.mxu0 0.0
        %3271 = vmatpush1.msra.mxu0 0.0
        %3272 = vmatprep.subr.mxu0 0.0
        %3273 = vmatpush1.msra.mxu0 0.0
        %3274 = vmatprep.subr.mxu0 0.0
        %3275 = vmatpush1.msra.mxu0 0.0
        %3276 = vmatprep.subr.mxu0 0.0
        %3277 = vmatpush1.msra.mxu0 0.0
        %3278 = vmatprep.subr.mxu0 0.0
        %3279 = vmatpush1.msra.mxu0 0.0
        %3280 = vmatprep.subr.mxu0 0.0
        %3281 = vmatpush1.msra.mxu0 0.0
        %3282 = vmatprep.subr.mxu0 0.0
        %3283 = vmatpush1.msra.mxu0 0.0
        %3284 = vmatprep.subr.mxu0 0.0
        %3285 = vmatpush1.msra.mxu0 0.0
        %3286 = vmatprep.subr.mxu0 0.0
        %3287 = vmatpush1.msra.mxu0 0.0
        %3288 = vmatprep.subr.mxu0 0.0
        %3289 = vmatpush1.msra.mxu0 0.0
        %3290 = vmatprep.subr.mxu0 0.0
        %3291 = vmatpush1.msra.mxu0 0.0
        %3292 = vmatprep.subr.mxu0 0.0
        %3293 = vmatpush1.msra.mxu0 0.0
        %3294 = vmatprep.subr.mxu0 0.0
        %3295 = vmatpush1.msra.mxu0 0.0
        %3296 = vmatprep.subr.mxu0 0.0
        %3297 = vmatpush1.msra.mxu0 0.0
        %3298 = vmatprep.subr.mxu0 0.0
        %3299 = vmatpush1.msra.mxu0 0.0
        %3300 = vmatprep.subr.mxu0 0.0
        %3301 = vmatpush1.msra.mxu0 0.0
        %3302 = vmatprep.subr.mxu0 0.0
        %3303 = vmatpush1.msra.mxu0 0.0
        %3304 = vmatprep.subr.mxu0 0.0
        %3305 = vmatpush1.msra.mxu0 0.0
        %3306 = vmatprep.subr.mxu0 0.0
        %3307 = vmatpush1.msra.mxu0 0.0
        %3308 = vmatprep.mubr.f32.mxu0 0.0
        %v3309 = vand.u32 %v1048, 4294901760
        %v3310 = vsub.f32 %v1048, %v3309
        %v3311 = vand.u32 %v3310, 4294901760
        %3312 = vmatmul.mubr.f32.gmra.mrb[0].mxu0 %v3311
        %v3313 = vpop.f32.mrb[0].mxu0
        %v3314 = vadd.f32 %v3224, %v3313
        %v3315 = vpop.f32.mrb[0].mxu0
        %v3316 = vadd.f32 %v3226, %v3315
        %3317 = vdwg.mxu0
        %v3318 = vand.u32 %v2171, 4294901760
        %v3319 = vsub.f32 %v2171, %v3318
        %v3320 = vand.u32 %v3319, 4294901760
        %3321 = vmatprep.subr.mxu0 %v3320
        %v3322 = vand.u32 %v2170, 4294901760
        %v3323 = vsub.f32 %v2170, %v3322
        %v3324 = vand.u32 %v3323, 4294901760
        %3325 = vmatpush1.msra.mxu0 %v3324
        %v3326 = vand.u32 %v2179, 4294901760
        %v3327 = vsub.f32 %v2179, %v3326
        %v3328 = vand.u32 %v3327, 4294901760
        %3329 = vmatprep.subr.mxu0 %v3328
        %v3330 = vand.u32 %v2178, 4294901760
        %v3331 = vsub.f32 %v2178, %v3330
        %v3332 = vand.u32 %v3331, 4294901760
        %3333 = vmatpush1.msra.mxu0 %v3332
        %v3334 = vand.u32 %v2187, 4294901760
        %v3335 = vsub.f32 %v2187, %v3334
        %v3336 = vand.u32 %v3335, 4294901760
        %3337 = vmatprep.subr.mxu0 %v3336
        %v3338 = vand.u32 %v2186, 4294901760
        %v3339 = vsub.f32 %v2186, %v3338
        %v3340 = vand.u32 %v3339, 4294901760
        %3341 = vmatpush1.msra.mxu0 %v3340
        %v3342 = vand.u32 %v2195, 4294901760
        %v3343 = vsub.f32 %v2195, %v3342
        %v3344 = vand.u32 %v3343, 4294901760
        %3345 = vmatprep.subr.mxu0 %v3344
        %v3346 = vand.u32 %v2194, 4294901760
        %v3347 = vsub.f32 %v2194, %v3346
        %v3348 = vand.u32 %v3347, 4294901760
        %3349 = vmatpush1.msra.mxu0 %v3348
        %v3350 = vand.u32 %v2203, 4294901760
        %v3351 = vsub.f32 %v2203, %v3350
        %v3352 = vand.u32 %v3351, 4294901760
        %3353 = vmatprep.subr.mxu0 %v3352
        %v3354 = vand.u32 %v2202, 4294901760
        %v3355 = vsub.f32 %v2202, %v3354
        %v3356 = vand.u32 %v3355, 4294901760
        %3357 = vmatpush1.msra.mxu0 %v3356
        %v3358 = vand.u32 %v2211, 4294901760
        %v3359 = vsub.f32 %v2211, %v3358
        %v3360 = vand.u32 %v3359, 4294901760
        %3361 = vmatprep.subr.mxu0 %v3360
        %v3362 = vand.u32 %v2210, 4294901760
        %v3363 = vsub.f32 %v2210, %v3362
        %v3364 = vand.u32 %v3363, 4294901760
        %3365 = vmatpush1.msra.mxu0 %v3364
        %v3366 = vand.u32 %v2219, 4294901760
        %v3367 = vsub.f32 %v2219, %v3366
        %v3368 = vand.u32 %v3367, 4294901760
        %3369 = vmatprep.subr.mxu0 %v3368
        %v3370 = vand.u32 %v2218, 4294901760
        %v3371 = vsub.f32 %v2218, %v3370
        %v3372 = vand.u32 %v3371, 4294901760
        %3373 = vmatpush1.msra.mxu0 %v3372
        %v3374 = vand.u32 %v2227, 4294901760
        %v3375 = vsub.f32 %v2227, %v3374
        %v3376 = vand.u32 %v3375, 4294901760
        %3377 = vmatprep.subr.mxu0 %v3376
        %v3378 = vand.u32 %v2226, 4294901760
        %v3379 = vsub.f32 %v2226, %v3378
        %v3380 = vand.u32 %v3379, 4294901760
        %3381 = vmatpush1.msra.mxu0 %v3380
        %3382 = vmatprep.subr.mxu0 0.0
        %3383 = vmatpush1.msra.mxu0 0.0
        %3384 = vmatprep.subr.mxu0 0.0
        %3385 = vmatpush1.msra.mxu0 0.0
        %3386 = vmatprep.subr.mxu0 0.0
        %3387 = vmatpush1.msra.mxu0 0.0
        %3388 = vmatprep.subr.mxu0 0.0
        %3389 = vmatpush1.msra.mxu0 0.0
        %3390 = vmatprep.subr.mxu0 0.0
        %3391 = vmatpush1.msra.mxu0 0.0
        %3392 = vmatprep.subr.mxu0 0.0
        %3393 = vmatpush1.msra.mxu0 0.0
        %3394 = vmatprep.subr.mxu0 0.0
        %3395 = vmatpush1.msra.mxu0 0.0
        %3396 = vmatprep.subr.mxu0 0.0
        %3397 = vmatpush1.msra.mxu0 0.0
        %3398 = vmatprep.subr.mxu0 0.0
        %3399 = vmatpush1.msra.mxu0 0.0
        %3400 = vmatprep.subr.mxu0 0.0
        %3401 = vmatpush1.msra.mxu0 0.0
        %3402 = vmatprep.subr.mxu0 0.0
        %3403 = vmatpush1.msra.mxu0 0.0
        %3404 = vmatprep.subr.mxu0 0.0
        %3405 = vmatpush1.msra.mxu0 0.0
        %3406 = vmatprep.subr.mxu0 0.0
        %3407 = vmatpush1.msra.mxu0 0.0
        %3408 = vmatprep.subr.mxu0 0.0
        %3409 = vmatpush1.msra.mxu0 0.0
        %3410 = vmatprep.subr.mxu0 0.0
        %3411 = vmatpush1.msra.mxu0 0.0
        %3412 = vmatprep.subr.mxu0 0.0
        %3413 = vmatpush1.msra.mxu0 0.0
        %3414 = vmatprep.subr.mxu0 0.0
        %3415 = vmatpush1.msra.mxu0 0.0
        %3416 = vmatprep.subr.mxu0 0.0
        %3417 = vmatpush1.msra.mxu0 0.0
        %3418 = vmatprep.subr.mxu0 0.0
        %3419 = vmatpush1.msra.mxu0 0.0
        %3420 = vmatprep.subr.mxu0 0.0
        %3421 = vmatpush1.msra.mxu0 0.0
        %3422 = vmatprep.subr.mxu0 0.0
        %3423 = vmatpush1.msra.mxu0 0.0
        %3424 = vmatprep.subr.mxu0 0.0
        %3425 = vmatpush1.msra.mxu0 0.0
        %3426 = vmatprep.subr.mxu0 0.0
        %3427 = vmatpush1.msra.mxu0 0.0
        %3428 = vmatprep.subr.mxu0 0.0
        %3429 = vmatpush1.msra.mxu0 0.0
        %3430 = vmatprep.mubr.f32.mxu0 0.0
        %v3431 = vand.u32 %v1048, 4294901760
        %3432 = vmatmul.mubr.f32.gmra.mrb[0].mxu0 %v3431
        %v3433 = vpop.f32.mrb[0].mxu0
        %v3434 = vadd.f32 %v3314, %v3433
        %v3435 = vpop.f32.mrb[0].mxu0
        %v3436 = vadd.f32 %v3316, %v3435
        %3437 = vdwg.mxu0
        %v3438 = vand.u32 %v2171, 4294901760
        %3439 = vmatprep.subr.mxu0 %v3438
        %v3440 = vand.u32 %v2170, 4294901760
        %3441 = vmatpush1.msra.mxu0 %v3440
        %v3442 = vand.u32 %v2179, 4294901760
        %3443 = vmatprep.subr.mxu0 %v3442
        %v3444 = vand.u32 %v2178, 4294901760
        %3445 = vmatpush1.msra.mxu0 %v3444
        %v3446 = vand.u32 %v2187, 4294901760
        %3447 = vmatprep.subr.mxu0 %v3446
        %v3448 = vand.u32 %v2186, 4294901760
        %3449 = vmatpush1.msra.mxu0 %v3448
        %v3450 = vand.u32 %v2195, 4294901760
        %3451 = vmatprep.subr.mxu0 %v3450
        %v3452 = vand.u32 %v2194, 4294901760
        %3453 = vmatpush1.msra.mxu0 %v3452
        %v3454 = vand.u32 %v2203, 4294901760
        %3455 = vmatprep.subr.mxu0 %v3454
        %v3456 = vand.u32 %v2202, 4294901760
        %3457 = vmatpush1.msra.mxu0 %v3456
        %v3458 = vand.u32 %v2211, 4294901760
        %3459 = vmatprep.subr.mxu0 %v3458
        %v3460 = vand.u32 %v2210, 4294901760
        %3461 = vmatpush1.msra.mxu0 %v3460
        %v3462 = vand.u32 %v2219, 4294901760
        %3463 = vmatprep.subr.mxu0 %v3462
        %v3464 = vand.u32 %v2218, 4294901760
        %3465 = vmatpush1.msra.mxu0 %v3464
        %v3466 = vand.u32 %v2227, 4294901760
        %3467 = vmatprep.subr.mxu0 %v3466
        %v3468 = vand.u32 %v2226, 4294901760
        %3469 = vmatpush1.msra.mxu0 %v3468
        %3470 = vmatprep.subr.mxu0 0.0
        %3471 = vmatpush1.msra.mxu0 0.0
        %3472 = vmatprep.subr.mxu0 0.0
        %3473 = vmatpush1.msra.mxu0 0.0
        %3474 = vmatprep.subr.mxu0 0.0
        %3475 = vmatpush1.msra.mxu0 0.0
        %3476 = vmatprep.subr.mxu0 0.0
        %3477 = vmatpush1.msra.mxu0 0.0
        %3478 = vmatprep.subr.mxu0 0.0
        %3479 = vmatpush1.msra.mxu0 0.0
        %3480 = vmatprep.subr.mxu0 0.0
        %3481 = vmatpush1.msra.mxu0 0.0
        %3482 = vmatprep.subr.mxu0 0.0
        %3483 = vmatpush1.msra.mxu0 0.0
        %3484 = vmatprep.subr.mxu0 0.0
        %3485 = vmatpush1.msra.mxu0 0.0
        %3486 = vmatprep.subr.mxu0 0.0
        %3487 = vmatpush1.msra.mxu0 0.0
        %3488 = vmatprep.subr.mxu0 0.0
        %3489 = vmatpush1.msra.mxu0 0.0
        %3490 = vmatprep.subr.mxu0 0.0
        %3491 = vmatpush1.msra.mxu0 0.0
        %3492 = vmatprep.subr.mxu0 0.0
        %3493 = vmatpush1.msra.mxu0 0.0
        %3494 = vmatprep.subr.mxu0 0.0
        %3495 = vmatpush1.msra.mxu0 0.0
        %3496 = vmatprep.subr.mxu0 0.0
        %3497 = vmatpush1.msra.mxu0 0.0
        %3498 = vmatprep.subr.mxu0 0.0
        %3499 = vmatpush1.msra.mxu0 0.0
        %3500 = vmatprep.subr.mxu0 0.0
        %3501 = vmatpush1.msra.mxu0 0.0
        %3502 = vmatprep.subr.mxu0 0.0
        %3503 = vmatpush1.msra.mxu0 0.0
        %3504 = vmatprep.subr.mxu0 0.0
        %3505 = vmatpush1.msra.mxu0 0.0
        %3506 = vmatprep.subr.mxu0 0.0
        %3507 = vmatpush1.msra.mxu0 0.0
        %3508 = vmatprep.subr.mxu0 0.0
        %3509 = vmatpush1.msra.mxu0 0.0
        %3510 = vmatprep.subr.mxu0 0.0
        %3511 = vmatpush1.msra.mxu0 0.0
        %3512 = vmatprep.subr.mxu0 0.0
        %3513 = vmatpush1.msra.mxu0 0.0
        %3514 = vmatprep.subr.mxu0 0.0
        %3515 = vmatpush1.msra.mxu0 0.0
        %3516 = vmatprep.subr.mxu0 0.0
        %3517 = vmatpush1.msra.mxu0 0.0
        %3518 = vmatprep.mubr.f32.mxu0 0.0
        %v3519 = vand.u32 %v1048, 4294901760
        %3520 = vmatmul.mubr.f32.gmra.mrb[0].mxu0 %v3519
        %v3521 = vpop.f32.mrb[0].mxu0
        %v3522 = vadd.f32 %v3434, %v3521
        %v3523 = vpop.f32.mrb[0].mxu0
        %v3524 = vadd.f32 %v3436, %v3523
        %3525 = vdwg.mxu0
        %v3526 = vand.u32 %v2173, 4294901760
        %3527 = vmatprep.subr.mxu0 %v3526
        %v3528 = vand.u32 %v2172, 4294901760
        %3529 = vmatpush1.msra.mxu0 %v3528
        %v3530 = vand.u32 %v2181, 4294901760
        %3531 = vmatprep.subr.mxu0 %v3530
        %v3532 = vand.u32 %v2180, 4294901760
        %3533 = vmatpush1.msra.mxu0 %v3532
        %v3534 = vand.u32 %v2189, 4294901760
        %3535 = vmatprep.subr.mxu0 %v3534
        %v3536 = vand.u32 %v2188, 4294901760
        %3537 = vmatpush1.msra.mxu0 %v3536
        %v3538 = vand.u32 %v2197, 4294901760
        %3539 = vmatprep.subr.mxu0 %v3538
        %v3540 = vand.u32 %v2196, 4294901760
        %3541 = vmatpush1.msra.mxu0 %v3540
        %v3542 = vand.u32 %v2205, 4294901760
        %3543 = vmatprep.subr.mxu0 %v3542
        %v3544 = vand.u32 %v2204, 4294901760
        %3545 = vmatpush1.msra.mxu0 %v3544
        %v3546 = vand.u32 %v2213, 4294901760
        %3547 = vmatprep.subr.mxu0 %v3546
        %v3548 = vand.u32 %v2212, 4294901760
        %3549 = vmatpush1.msra.mxu0 %v3548
        %v3550 = vand.u32 %v2221, 4294901760
        %3551 = vmatprep.subr.mxu0 %v3550
        %v3552 = vand.u32 %v2220, 4294901760
        %3553 = vmatpush1.msra.mxu0 %v3552
        %v3554 = vand.u32 %v2229, 4294901760
        %3555 = vmatprep.subr.mxu0 %v3554
        %v3556 = vand.u32 %v2228, 4294901760
        %3557 = vmatpush1.msra.mxu0 %v3556
        %3558 = vmatprep.subr.mxu0 0.0
        %3559 = vmatpush1.msra.mxu0 0.0
        %3560 = vmatprep.subr.mxu0 0.0
        %3561 = vmatpush1.msra.mxu0 0.0
        %3562 = vmatprep.subr.mxu0 0.0
        %3563 = vmatpush1.msra.mxu0 0.0
        %3564 = vmatprep.subr.mxu0 0.0
        %3565 = vmatpush1.msra.mxu0 0.0
        %3566 = vmatprep.subr.mxu0 0.0
        %3567 = vmatpush1.msra.mxu0 0.0
        %3568 = vmatprep.subr.mxu0 0.0
        %3569 = vmatpush1.msra.mxu0 0.0
        %3570 = vmatprep.subr.mxu0 0.0
        %3571 = vmatpush1.msra.mxu0 0.0
        %3572 = vmatprep.subr.mxu0 0.0
        %3573 = vmatpush1.msra.mxu0 0.0
        %3574 = vmatprep.subr.mxu0 0.0
        %3575 = vmatpush1.msra.mxu0 0.0
        %3576 = vmatprep.subr.mxu0 0.0
        %3577 = vmatpush1.msra.mxu0 0.0
        %3578 = vmatprep.subr.mxu0 0.0
        %3579 = vmatpush1.msra.mxu0 0.0
        %3580 = vmatprep.subr.mxu0 0.0
        %3581 = vmatpush1.msra.mxu0 0.0
        %3582 = vmatprep.subr.mxu0 0.0
        %3583 = vmatpush1.msra.mxu0 0.0
        %3584 = vmatprep.subr.mxu0 0.0
        %3585 = vmatpush1.msra.mxu0 0.0
        %3586 = vmatprep.subr.mxu0 0.0
        %3587 = vmatpush1.msra.mxu0 0.0
        %3588 = vmatprep.subr.mxu0 0.0
        %3589 = vmatpush1.msra.mxu0 0.0
        %3590 = vmatprep.subr.mxu0 0.0
        %3591 = vmatpush1.msra.mxu0 0.0
        %3592 = vmatprep.subr.mxu0 0.0
        %3593 = vmatpush1.msra.mxu0 0.0
        %3594 = vmatprep.subr.mxu0 0.0
        %3595 = vmatpush1.msra.mxu0 0.0
        %3596 = vmatprep.subr.mxu0 0.0
        %3597 = vmatpush1.msra.mxu0 0.0
        %3598 = vmatprep.subr.mxu0 0.0
        %3599 = vmatpush1.msra.mxu0 0.0
        %3600 = vmatprep.subr.mxu0 0.0
        %3601 = vmatpush1.msra.mxu0 0.0
        %3602 = vmatprep.subr.mxu0 0.0
        %3603 = vmatpush1.msra.mxu0 0.0
        %3604 = vmatprep.subr.mxu0 0.0
        %3605 = vmatpush1.msra.mxu0 0.0
        %3606 = vmatprep.mubr.f32.mxu0 0.0
        %v3607 = vand.u32 %v1048, 4294901760
        %v3608 = vsub.f32 %v1048, %v3607
        %v3609 = vand.u32 %v3608, 4294901760
        %v3610 = vsub.f32 %v3608, %v3609
        %v3611 = vand.u32 %v3610, 4294901760
        %3612 = vmatmul.mubr.f32.gmra.mrb[0].mxu0 %v3611
        %v3613 = vpop.f32.mrb[0].mxu0
        %v3614 = vadd.f32 0.0, %v3613
        %v3615 = vpop.f32.mrb[0].mxu0
        %v3616 = vadd.f32 0.0, %v3615
        %3617 = vdwg.mxu0
        %v3618 = vand.u32 %v2173, 4294901760
        %v3619 = vsub.f32 %v2173, %v3618
        %v3620 = vand.u32 %v3619, 4294901760
        %v3621 = vsub.f32 %v3619, %v3620
        %v3622 = vand.u32 %v3621, 4294901760
        %3623 = vmatprep.subr.mxu0 %v3622
        %v3624 = vand.u32 %v2172, 4294901760
        %v3625 = vsub.f32 %v2172, %v3624
        %v3626 = vand.u32 %v3625, 4294901760
        %v3627 = vsub.f32 %v3625, %v3626
        %v3628 = vand.u32 %v3627, 4294901760
        %3629 = vmatpush1.msra.mxu0 %v3628
        %v3630 = vand.u32 %v2181, 4294901760
        %v3631 = vsub.f32 %v2181, %v3630
        %v3632 = vand.u32 %v3631, 4294901760
        %v3633 = vsub.f32 %v3631, %v3632
        %v3634 = vand.u32 %v3633, 4294901760
        %3635 = vmatprep.subr.mxu0 %v3634
        %v3636 = vand.u32 %v2180, 4294901760
        %v3637 = vsub.f32 %v2180, %v3636
        %v3638 = vand.u32 %v3637, 4294901760
        %v3639 = vsub.f32 %v3637, %v3638
        %v3640 = vand.u32 %v3639, 4294901760
        %3641 = vmatpush1.msra.mxu0 %v3640
        %v3642 = vand.u32 %v2189, 4294901760
        %v3643 = vsub.f32 %v2189, %v3642
        %v3644 = vand.u32 %v3643, 4294901760
        %v3645 = vsub.f32 %v3643, %v3644
        %v3646 = vand.u32 %v3645, 4294901760
        %3647 = vmatprep.subr.mxu0 %v3646
        %v3648 = vand.u32 %v2188, 4294901760
        %v3649 = vsub.f32 %v2188, %v3648
        %v3650 = vand.u32 %v3649, 4294901760
        %v3651 = vsub.f32 %v3649, %v3650
        %v3652 = vand.u32 %v3651, 4294901760
        %3653 = vmatpush1.msra.mxu0 %v3652
        %v3654 = vand.u32 %v2197, 4294901760
        %v3655 = vsub.f32 %v2197, %v3654
        %v3656 = vand.u32 %v3655, 4294901760
        %v3657 = vsub.f32 %v3655, %v3656
        %v3658 = vand.u32 %v3657, 4294901760
        %3659 = vmatprep.subr.mxu0 %v3658
        %v3660 = vand.u32 %v2196, 4294901760
        %v3661 = vsub.f32 %v2196, %v3660
        %v3662 = vand.u32 %v3661, 4294901760
        %v3663 = vsub.f32 %v3661, %v3662
        %v3664 = vand.u32 %v3663, 4294901760
        %3665 = vmatpush1.msra.mxu0 %v3664
        %v3666 = vand.u32 %v2205, 4294901760
        %v3667 = vsub.f32 %v2205, %v3666
        %v3668 = vand.u32 %v3667, 4294901760
        %v3669 = vsub.f32 %v3667, %v3668
        %v3670 = vand.u32 %v3669, 4294901760
        %3671 = vmatprep.subr.mxu0 %v3670
        %v3672 = vand.u32 %v2204, 4294901760
        %v3673 = vsub.f32 %v2204, %v3672
        %v3674 = vand.u32 %v3673, 4294901760
        %v3675 = vsub.f32 %v3673, %v3674
        %v3676 = vand.u32 %v3675, 4294901760
        %3677 = vmatpush1.msra.mxu0 %v3676
        %v3678 = vand.u32 %v2213, 4294901760
        %v3679 = vsub.f32 %v2213, %v3678
        %v3680 = vand.u32 %v3679, 4294901760
        %v3681 = vsub.f32 %v3679, %v3680
        %v3682 = vand.u32 %v3681, 4294901760
        %3683 = vmatprep.subr.mxu0 %v3682
        %v3684 = vand.u32 %v2212, 4294901760
        %v3685 = vsub.f32 %v2212, %v3684
        %v3686 = vand.u32 %v3685, 4294901760
        %v3687 = vsub.f32 %v3685, %v3686
        %v3688 = vand.u32 %v3687, 4294901760
        %3689 = vmatpush1.msra.mxu0 %v3688
        %v3690 = vand.u32 %v2221, 4294901760
        %v3691 = vsub.f32 %v2221, %v3690
        %v3692 = vand.u32 %v3691, 4294901760
        %v3693 = vsub.f32 %v3691, %v3692
        %v3694 = vand.u32 %v3693, 4294901760
        %3695 = vmatprep.subr.mxu0 %v3694
        %v3696 = vand.u32 %v2220, 4294901760
        %v3697 = vsub.f32 %v2220, %v3696
        %v3698 = vand.u32 %v3697, 4294901760
        %v3699 = vsub.f32 %v3697, %v3698
        %v3700 = vand.u32 %v3699, 4294901760
        %3701 = vmatpush1.msra.mxu0 %v3700
        %v3702 = vand.u32 %v2229, 4294901760
        %v3703 = vsub.f32 %v2229, %v3702
        %v3704 = vand.u32 %v3703, 4294901760
        %v3705 = vsub.f32 %v3703, %v3704
        %v3706 = vand.u32 %v3705, 4294901760
        %3707 = vmatprep.subr.mxu0 %v3706
        %v3708 = vand.u32 %v2228, 4294901760
        %v3709 = vsub.f32 %v2228, %v3708
        %v3710 = vand.u32 %v3709, 4294901760
        %v3711 = vsub.f32 %v3709, %v3710
        %v3712 = vand.u32 %v3711, 4294901760
        %3713 = vmatpush1.msra.mxu0 %v3712
        %3714 = vmatprep.subr.mxu0 0.0
        %3715 = vmatpush1.msra.mxu0 0.0
        %3716 = vmatprep.subr.mxu0 0.0
        %3717 = vmatpush1.msra.mxu0 0.0
        %3718 = vmatprep.subr.mxu0 0.0
        %3719 = vmatpush1.msra.mxu0 0.0
        %3720 = vmatprep.subr.mxu0 0.0
        %3721 = vmatpush1.msra.mxu0 0.0
        %3722 = vmatprep.subr.mxu0 0.0
        %3723 = vmatpush1.msra.mxu0 0.0
        %3724 = vmatprep.subr.mxu0 0.0
        %3725 = vmatpush1.msra.mxu0 0.0
        %3726 = vmatprep.subr.mxu0 0.0
        %3727 = vmatpush1.msra.mxu0 0.0
        %3728 = vmatprep.subr.mxu0 0.0
        %3729 = vmatpush1.msra.mxu0 0.0
        %3730 = vmatprep.subr.mxu0 0.0
        %3731 = vmatpush1.msra.mxu0 0.0
        %3732 = vmatprep.subr.mxu0 0.0
        %3733 = vmatpush1.msra.mxu0 0.0
        %3734 = vmatprep.subr.mxu0 0.0
        %3735 = vmatpush1.msra.mxu0 0.0
        %3736 = vmatprep.subr.mxu0 0.0
        %3737 = vmatpush1.msra.mxu0 0.0
        %3738 = vmatprep.subr.mxu0 0.0
        %3739 = vmatpush1.msra.mxu0 0.0
        %3740 = vmatprep.subr.mxu0 0.0
        %3741 = vmatpush1.msra.mxu0 0.0
        %3742 = vmatprep.subr.mxu0 0.0
        %3743 = vmatpush1.msra.mxu0 0.0
        %3744 = vmatprep.subr.mxu0 0.0
        %3745 = vmatpush1.msra.mxu0 0.0
        %3746 = vmatprep.subr.mxu0 0.0
        %3747 = vmatpush1.msra.mxu0 0.0
        %3748 = vmatprep.subr.mxu0 0.0
        %3749 = vmatpush1.msra.mxu0 0.0
        %3750 = vmatprep.subr.mxu0 0.0
        %3751 = vmatpush1.msra.mxu0 0.0
        %3752 = vmatprep.subr.mxu0 0.0
        %3753 = vmatpush1.msra.mxu0 0.0
        %3754 = vmatprep.subr.mxu0 0.0
        %3755 = vmatpush1.msra.mxu0 0.0
        %3756 = vmatprep.subr.mxu0 0.0
        %3757 = vmatpush1.msra.mxu0 0.0
        %3758 = vmatprep.subr.mxu0 0.0
        %3759 = vmatpush1.msra.mxu0 0.0
        %3760 = vmatprep.subr.mxu0 0.0
        %3761 = vmatpush1.msra.mxu0 0.0
        %3762 = vmatprep.mubr.f32.mxu0 0.0
        %v3763 = vand.u32 %v1048, 4294901760
        %3764 = vmatmul.mubr.f32.gmra.mrb[0].mxu0 %v3763
        %v3765 = vpop.f32.mrb[0].mxu0
        %v3766 = vadd.f32 %v3614, %v3765
        %v3767 = vpop.f32.mrb[0].mxu0
        %v3768 = vadd.f32 %v3616, %v3767
        %3769 = vdwg.mxu0
        %v3770 = vand.u32 %v2173, 4294901760
        %v3771 = vsub.f32 %v2173, %v3770
        %3772 = vmatprep.subr.mxu0 %v3771
        %v3773 = vand.u32 %v2172, 4294901760
        %v3774 = vsub.f32 %v2172, %v3773
        %3775 = vmatpush1.msra.mxu0 %v3774
        %v3776 = vand.u32 %v2181, 4294901760
        %v3777 = vsub.f32 %v2181, %v3776
        %3778 = vmatprep.subr.mxu0 %v3777
        %v3779 = vand.u32 %v2180, 4294901760
        %v3780 = vsub.f32 %v2180, %v3779
        %3781 = vmatpush1.msra.mxu0 %v3780
        %v3782 = vand.u32 %v2189, 4294901760
        %v3783 = vsub.f32 %v2189, %v3782
        %3784 = vmatprep.subr.mxu0 %v3783
        %v3785 = vand.u32 %v2188, 4294901760
        %v3786 = vsub.f32 %v2188, %v3785
        %3787 = vmatpush1.msra.mxu0 %v3786
        %v3788 = vand.u32 %v2197, 4294901760
        %v3789 = vsub.f32 %v2197, %v3788
        %3790 = vmatprep.subr.mxu0 %v3789
        %v3791 = vand.u32 %v2196, 4294901760
        %v3792 = vsub.f32 %v2196, %v3791
        %3793 = vmatpush1.msra.mxu0 %v3792
        %v3794 = vand.u32 %v2205, 4294901760
        %v3795 = vsub.f32 %v2205, %v3794
        %3796 = vmatprep.subr.mxu0 %v3795
        %v3797 = vand.u32 %v2204, 4294901760
        %v3798 = vsub.f32 %v2204, %v3797
        %3799 = vmatpush1.msra.mxu0 %v3798
        %v3800 = vand.u32 %v2213, 4294901760
        %v3801 = vsub.f32 %v2213, %v3800
        %3802 = vmatprep.subr.mxu0 %v3801
        %v3803 = vand.u32 %v2212, 4294901760
        %v3804 = vsub.f32 %v2212, %v3803
        %3805 = vmatpush1.msra.mxu0 %v3804
        %v3806 = vand.u32 %v2221, 4294901760
        %v3807 = vsub.f32 %v2221, %v3806
        %3808 = vmatprep.subr.mxu0 %v3807
        %v3809 = vand.u32 %v2220, 4294901760
        %v3810 = vsub.f32 %v2220, %v3809
        %3811 = vmatpush1.msra.mxu0 %v3810
        %v3812 = vand.u32 %v2229, 4294901760
        %v3813 = vsub.f32 %v2229, %v3812
        %3814 = vmatprep.subr.mxu0 %v3813
        %v3815 = vand.u32 %v2228, 4294901760
        %v3816 = vsub.f32 %v2228, %v3815
        %3817 = vmatpush1.msra.mxu0 %v3816
        %3818 = vmatprep.subr.mxu0 0.0
        %3819 = vmatpush1.msra.mxu0 0.0
        %3820 = vmatprep.subr.mxu0 0.0
        %3821 = vmatpush1.msra.mxu0 0.0
        %3822 = vmatprep.subr.mxu0 0.0
        %3823 = vmatpush1.msra.mxu0 0.0
        %3824 = vmatprep.subr.mxu0 0.0
        %3825 = vmatpush1.msra.mxu0 0.0
        %3826 = vmatprep.subr.mxu0 0.0
        %3827 = vmatpush1.msra.mxu0 0.0
        %3828 = vmatprep.subr.mxu0 0.0
        %3829 = vmatpush1.msra.mxu0 0.0
        %3830 = vmatprep.subr.mxu0 0.0
        %3831 = vmatpush1.msra.mxu0 0.0
        %3832 = vmatprep.subr.mxu0 0.0
        %3833 = vmatpush1.msra.mxu0 0.0
        %3834 = vmatprep.subr.mxu0 0.0
        %3835 = vmatpush1.msra.mxu0 0.0
        %3836 = vmatprep.subr.mxu0 0.0
        %3837 = vmatpush1.msra.mxu0 0.0
        %3838 = vmatprep.subr.mxu0 0.0
        %3839 = vmatpush1.msra.mxu0 0.0
        %3840 = vmatprep.subr.mxu0 0.0
        %3841 = vmatpush1.msra.mxu0 0.0
        %3842 = vmatprep.subr.mxu0 0.0
        %3843 = vmatpush1.msra.mxu0 0.0
        %3844 = vmatprep.subr.mxu0 0.0
        %3845 = vmatpush1.msra.mxu0 0.0
        %3846 = vmatprep.subr.mxu0 0.0
        %3847 = vmatpush1.msra.mxu0 0.0
        %3848 = vmatprep.subr.mxu0 0.0
        %3849 = vmatpush1.msra.mxu0 0.0
        %3850 = vmatprep.subr.mxu0 0.0
        %3851 = vmatpush1.msra.mxu0 0.0
        %3852 = vmatprep.subr.mxu0 0.0
        %3853 = vmatpush1.msra.mxu0 0.0
        %3854 = vmatprep.subr.mxu0 0.0
        %3855 = vmatpush1.msra.mxu0 0.0
        %3856 = vmatprep.subr.mxu0 0.0
        %3857 = vmatpush1.msra.mxu0 0.0
        %3858 = vmatprep.subr.mxu0 0.0
        %3859 = vmatpush1.msra.mxu0 0.0
        %3860 = vmatprep.subr.mxu0 0.0
        %3861 = vmatpush1.msra.mxu0 0.0
        %3862 = vmatprep.subr.mxu0 0.0
        %3863 = vmatpush1.msra.mxu0 0.0
        %3864 = vmatprep.subr.mxu0 0.0
        %3865 = vmatpush1.msra.mxu0 0.0
        %3866 = vmatprep.mubr.f32.mxu0 0.0
        %v3867 = vand.u32 %v1048, 4294901760
        %v3868 = vsub.f32 %v1048, %v3867
        %3869 = vmatmul.mubr.f32.gmra.mrb[0].mxu0 %v3868
        %v3870 = vpop.f32.mrb[0].mxu0
        %v3871 = vadd.f32 %v3766, %v3870
        %v3872 = vpop.f32.mrb[0].mxu0
        %v3873 = vadd.f32 %v3768, %v3872
        %3874 = vdwg.mxu0
        %v3875 = vand.u32 %v2173, 4294901760
        %3876 = vmatprep.subr.mxu0 %v3875
        %v3877 = vand.u32 %v2172, 4294901760
        %3878 = vmatpush1.msra.mxu0 %v3877
        %v3879 = vand.u32 %v2181, 4294901760
        %3880 = vmatprep.subr.mxu0 %v3879
        %v3881 = vand.u32 %v2180, 4294901760
        %3882 = vmatpush1.msra.mxu0 %v3881
        %v3883 = vand.u32 %v2189, 4294901760
        %3884 = vmatprep.subr.mxu0 %v3883
        %v3885 = vand.u32 %v2188, 4294901760
        %3886 = vmatpush1.msra.mxu0 %v3885
        %v3887 = vand.u32 %v2197, 4294901760
        %3888 = vmatprep.subr.mxu0 %v3887
        %v3889 = vand.u32 %v2196, 4294901760
        %3890 = vmatpush1.msra.mxu0 %v3889
        %v3891 = vand.u32 %v2205, 4294901760
        %3892 = vmatprep.subr.mxu0 %v3891
        %v3893 = vand.u32 %v2204, 4294901760
        %3894 = vmatpush1.msra.mxu0 %v3893
        %v3895 = vand.u32 %v2213, 4294901760
        %3896 = vmatprep.subr.mxu0 %v3895
        %v3897 = vand.u32 %v2212, 4294901760
        %3898 = vmatpush1.msra.mxu0 %v3897
        %v3899 = vand.u32 %v2221, 4294901760
        %3900 = vmatprep.subr.mxu0 %v3899
        %v3901 = vand.u32 %v2220, 4294901760
        %3902 = vmatpush1.msra.mxu0 %v3901
        %v3903 = vand.u32 %v2229, 4294901760
        %3904 = vmatprep.subr.mxu0 %v3903
        %v3905 = vand.u32 %v2228, 4294901760
        %3906 = vmatpush1.msra.mxu0 %v3905
        %3907 = vmatprep.subr.mxu0 0.0
        %3908 = vmatpush1.msra.mxu0 0.0
        %3909 = vmatprep.subr.mxu0 0.0
        %3910 = vmatpush1.msra.mxu0 0.0
        %3911 = vmatprep.subr.mxu0 0.0
        %3912 = vmatpush1.msra.mxu0 0.0
        %3913 = vmatprep.subr.mxu0 0.0
        %3914 = vmatpush1.msra.mxu0 0.0
        %3915 = vmatprep.subr.mxu0 0.0
        %3916 = vmatpush1.msra.mxu0 0.0
        %3917 = vmatprep.subr.mxu0 0.0
        %3918 = vmatpush1.msra.mxu0 0.0
        %3919 = vmatprep.subr.mxu0 0.0
        %3920 = vmatpush1.msra.mxu0 0.0
        %3921 = vmatprep.subr.mxu0 0.0
        %3922 = vmatpush1.msra.mxu0 0.0
        %3923 = vmatprep.subr.mxu0 0.0
        %3924 = vmatpush1.msra.mxu0 0.0
        %3925 = vmatprep.subr.mxu0 0.0
        %3926 = vmatpush1.msra.mxu0 0.0
        %3927 = vmatprep.subr.mxu0 0.0
        %3928 = vmatpush1.msra.mxu0 0.0
        %3929 = vmatprep.subr.mxu0 0.0
        %3930 = vmatpush1.msra.mxu0 0.0
        %3931 = vmatprep.subr.mxu0 0.0
        %3932 = vmatpush1.msra.mxu0 0.0
        %3933 = vmatprep.subr.mxu0 0.0
        %3934 = vmatpush1.msra.mxu0 0.0
        %3935 = vmatprep.subr.mxu0 0.0
        %3936 = vmatpush1.msra.mxu0 0.0
        %3937 = vmatprep.subr.mxu0 0.0
        %3938 = vmatpush1.msra.mxu0 0.0
        %3939 = vmatprep.subr.mxu0 0.0
        %3940 = vmatpush1.msra.mxu0 0.0
        %3941 = vmatprep.subr.mxu0 0.0
        %3942 = vmatpush1.msra.mxu0 0.0
        %3943 = vmatprep.subr.mxu0 0.0
        %3944 = vmatpush1.msra.mxu0 0.0
        %3945 = vmatprep.subr.mxu0 0.0
        %3946 = vmatpush1.msra.mxu0 0.0
        %3947 = vmatprep.subr.mxu0 0.0
        %3948 = vmatpush1.msra.mxu0 0.0
        %3949 = vmatprep.subr.mxu0 0.0
        %3950 = vmatpush1.msra.mxu0 0.0
        %3951 = vmatprep.subr.mxu0 0.0
        %3952 = vmatpush1.msra.mxu0 0.0
        %3953 = vmatprep.subr.mxu0 0.0
        %3954 = vmatpush1.msra.mxu0 0.0
        %3955 = vmatprep.mubr.f32.mxu0 0.0
        %v3956 = vand.u32 %v1048, 4294901760
        %v3957 = vsub.f32 %v1048, %v3956
        %v3958 = vand.u32 %v3957, 4294901760
        %3959 = vmatmul.mubr.f32.gmra.mrb[0].mxu0 %v3958
        %v3960 = vpop.f32.mrb[0].mxu0
        %v3961 = vadd.f32 %v3871, %v3960
        %v3962 = vpop.f32.mrb[0].mxu0
        %v3963 = vadd.f32 %v3873, %v3962
        %3964 = vdwg.mxu0
        %v3965 = vand.u32 %v2173, 4294901760
        %v3966 = vsub.f32 %v2173, %v3965
        %v3967 = vand.u32 %v3966, 4294901760
        %3968 = vmatprep.subr.mxu0 %v3967
        %v3969 = vand.u32 %v2172, 4294901760
        %v3970 = vsub.f32 %v2172, %v3969
        %v3971 = vand.u32 %v3970, 4294901760
        %3972 = vmatpush1.msra.mxu0 %v3971
        %v3973 = vand.u32 %v2181, 4294901760
        %v3974 = vsub.f32 %v2181, %v3973
        %v3975 = vand.u32 %v3974, 4294901760
        %3976 = vmatprep.subr.mxu0 %v3975
        %v3977 = vand.u32 %v2180, 4294901760
        %v3978 = vsub.f32 %v2180, %v3977
        %v3979 = vand.u32 %v3978, 4294901760
        %3980 = vmatpush1.msra.mxu0 %v3979
        %v3981 = vand.u32 %v2189, 4294901760
        %v3982 = vsub.f32 %v2189, %v3981
        %v3983 = vand.u32 %v3982, 4294901760
        %3984 = vmatprep.subr.mxu0 %v3983
        %v3985 = vand.u32 %v2188, 4294901760
        %v3986 = vsub.f32 %v2188, %v3985
        %v3987 = vand.u32 %v3986, 4294901760
        %3988 = vmatpush1.msra.mxu0 %v3987
        %v3989 = vand.u32 %v2197, 4294901760
        %v3990 = vsub.f32 %v2197, %v3989
        %v3991 = vand.u32 %v3990, 4294901760
        %3992 = vmatprep.subr.mxu0 %v3991
        %v3993 = vand.u32 %v2196, 4294901760
        %v3994 = vsub.f32 %v2196, %v3993
        %v3995 = vand.u32 %v3994, 4294901760
        %3996 = vmatpush1.msra.mxu0 %v3995
        %v3997 = vand.u32 %v2205, 4294901760
        %v3998 = vsub.f32 %v2205, %v3997
        %v3999 = vand.u32 %v3998, 4294901760
        %4000 = vmatprep.subr.mxu0 %v3999
        %v4001 = vand.u32 %v2204, 4294901760
        %v4002 = vsub.f32 %v2204, %v4001
        %v4003 = vand.u32 %v4002, 4294901760
        %4004 = vmatpush1.msra.mxu0 %v4003
        %v4005 = vand.u32 %v2213, 4294901760
        %v4006 = vsub.f32 %v2213, %v4005
        %v4007 = vand.u32 %v4006, 4294901760
        %4008 = vmatprep.subr.mxu0 %v4007
        %v4009 = vand.u32 %v2212, 4294901760
        %v4010 = vsub.f32 %v2212, %v4009
        %v4011 = vand.u32 %v4010, 4294901760
        %4012 = vmatpush1.msra.mxu0 %v4011
        %v4013 = vand.u32 %v2221, 4294901760
        %v4014 = vsub.f32 %v2221, %v4013
        %v4015 = vand.u32 %v4014, 4294901760
        %4016 = vmatprep.subr.mxu0 %v4015
        %v4017 = vand.u32 %v2220, 4294901760
        %v4018 = vsub.f32 %v2220, %v4017
        %v4019 = vand.u32 %v4018, 4294901760
        %4020 = vmatpush1.msra.mxu0 %v4019
        %v4021 = vand.u32 %v2229, 4294901760
        %v4022 = vsub.f32 %v2229, %v4021
        %v4023 = vand.u32 %v4022, 4294901760
        %4024 = vmatprep.subr.mxu0 %v4023
        %v4025 = vand.u32 %v2228, 4294901760
        %v4026 = vsub.f32 %v2228, %v4025
        %v4027 = vand.u32 %v4026, 4294901760
        %4028 = vmatpush1.msra.mxu0 %v4027
        %4029 = vmatprep.subr.mxu0 0.0
        %4030 = vmatpush1.msra.mxu0 0.0
        %4031 = vmatprep.subr.mxu0 0.0
        %4032 = vmatpush1.msra.mxu0 0.0
        %4033 = vmatprep.subr.mxu0 0.0
        %4034 = vmatpush1.msra.mxu0 0.0
        %4035 = vmatprep.subr.mxu0 0.0
        %4036 = vmatpush1.msra.mxu0 0.0
        %4037 = vmatprep.subr.mxu0 0.0
        %4038 = vmatpush1.msra.mxu0 0.0
        %4039 = vmatprep.subr.mxu0 0.0
        %4040 = vmatpush1.msra.mxu0 0.0
        %4041 = vmatprep.subr.mxu0 0.0
        %4042 = vmatpush1.msra.mxu0 0.0
        %4043 = vmatprep.subr.mxu0 0.0
        %4044 = vmatpush1.msra.mxu0 0.0
        %4045 = vmatprep.subr.mxu0 0.0
        %4046 = vmatpush1.msra.mxu0 0.0
        %4047 = vmatprep.subr.mxu0 0.0
        %4048 = vmatpush1.msra.mxu0 0.0
        %4049 = vmatprep.subr.mxu0 0.0
        %4050 = vmatpush1.msra.mxu0 0.0
        %4051 = vmatprep.subr.mxu0 0.0
        %4052 = vmatpush1.msra.mxu0 0.0
        %4053 = vmatprep.subr.mxu0 0.0
        %4054 = vmatpush1.msra.mxu0 0.0
        %4055 = vmatprep.subr.mxu0 0.0
        %4056 = vmatpush1.msra.mxu0 0.0
        %4057 = vmatprep.subr.mxu0 0.0
        %4058 = vmatpush1.msra.mxu0 0.0
        %4059 = vmatprep.subr.mxu0 0.0
        %4060 = vmatpush1.msra.mxu0 0.0
        %4061 = vmatprep.subr.mxu0 0.0
        %4062 = vmatpush1.msra.mxu0 0.0
        %4063 = vmatprep.subr.mxu0 0.0
        %4064 = vmatpush1.msra.mxu0 0.0
        %4065 = vmatprep.subr.mxu0 0.0
        %4066 = vmatpush1.msra.mxu0 0.0
        %4067 = vmatprep.subr.mxu0 0.0
        %4068 = vmatpush1.msra.mxu0 0.0
        %4069 = vmatprep.subr.mxu0 0.0
        %4070 = vmatpush1.msra.mxu0 0.0
        %4071 = vmatprep.subr.mxu0 0.0
        %4072 = vmatpush1.msra.mxu0 0.0
        %4073 = vmatprep.subr.mxu0 0.0
        %4074 = vmatpush1.msra.mxu0 0.0
        %4075 = vmatprep.subr.mxu0 0.0
        %4076 = vmatpush1.msra.mxu0 0.0
        %4077 = vmatprep.mubr.f32.mxu0 0.0
        %v4078 = vand.u32 %v1048, 4294901760
        %4079 = vmatmul.mubr.f32.gmra.mrb[0].mxu0 %v4078
        %v4080 = vpop.f32.mrb[0].mxu0
        %v4081 = vadd.f32 %v3961, %v4080
        %v4082 = vpop.f32.mrb[0].mxu0
        %v4083 = vadd.f32 %v3963, %v4082
        %4084 = vdwg.mxu0
        %v4085 = vand.u32 %v2173, 4294901760
        %4086 = vmatprep.subr.mxu0 %v4085
        %v4087 = vand.u32 %v2172, 4294901760
        %4088 = vmatpush1.msra.mxu0 %v4087
        %v4089 = vand.u32 %v2181, 4294901760
        %4090 = vmatprep.subr.mxu0 %v4089
        %v4091 = vand.u32 %v2180, 4294901760
        %4092 = vmatpush1.msra.mxu0 %v4091
        %v4093 = vand.u32 %v2189, 4294901760
        %4094 = vmatprep.subr.mxu0 %v4093
        %v4095 = vand.u32 %v2188, 4294901760
        %4096 = vmatpush1.msra.mxu0 %v4095
        %v4097 = vand.u32 %v2197, 4294901760
        %4098 = vmatprep.subr.mxu0 %v4097
        %v4099 = vand.u32 %v2196, 4294901760
        %4100 = vmatpush1.msra.mxu0 %v4099
        %v4101 = vand.u32 %v2205, 4294901760
        %4102 = vmatprep.subr.mxu0 %v4101
        %v4103 = vand.u32 %v2204, 4294901760
        %4104 = vmatpush1.msra.mxu0 %v4103
        %v4105 = vand.u32 %v2213, 4294901760
        %4106 = vmatprep.subr.mxu0 %v4105
        %v4107 = vand.u32 %v2212, 4294901760
        %4108 = vmatpush1.msra.mxu0 %v4107
        %v4109 = vand.u32 %v2221, 4294901760
        %4110 = vmatprep.subr.mxu0 %v4109
        %v4111 = vand.u32 %v2220, 4294901760
        %4112 = vmatpush1.msra.mxu0 %v4111
        %v4113 = vand.u32 %v2229, 4294901760
        %4114 = vmatprep.subr.mxu0 %v4113
        %v4115 = vand.u32 %v2228, 4294901760
        %4116 = vmatpush1.msra.mxu0 %v4115
        %4117 = vmatprep.subr.mxu0 0.0
        %4118 = vmatpush1.msra.mxu0 0.0
        %4119 = vmatprep.subr.mxu0 0.0
        %4120 = vmatpush1.msra.mxu0 0.0
        %4121 = vmatprep.subr.mxu0 0.0
        %4122 = vmatpush1.msra.mxu0 0.0
        %4123 = vmatprep.subr.mxu0 0.0
        %4124 = vmatpush1.msra.mxu0 0.0
        %4125 = vmatprep.subr.mxu0 0.0
        %4126 = vmatpush1.msra.mxu0 0.0
        %4127 = vmatprep.subr.mxu0 0.0
        %4128 = vmatpush1.msra.mxu0 0.0
        %4129 = vmatprep.subr.mxu0 0.0
        %4130 = vmatpush1.msra.mxu0 0.0
        %4131 = vmatprep.subr.mxu0 0.0
        %4132 = vmatpush1.msra.mxu0 0.0
        %4133 = vmatprep.subr.mxu0 0.0
        %4134 = vmatpush1.msra.mxu0 0.0
        %4135 = vmatprep.subr.mxu0 0.0
        %4136 = vmatpush1.msra.mxu0 0.0
        %4137 = vmatprep.subr.mxu0 0.0
        %4138 = vmatpush1.msra.mxu0 0.0
        %4139 = vmatprep.subr.mxu0 0.0
        %4140 = vmatpush1.msra.mxu0 0.0
        %4141 = vmatprep.subr.mxu0 0.0
        %4142 = vmatpush1.msra.mxu0 0.0
        %4143 = vmatprep.subr.mxu0 0.0
        %4144 = vmatpush1.msra.mxu0 0.0
        %4145 = vmatprep.subr.mxu0 0.0
        %4146 = vmatpush1.msra.mxu0 0.0
        %4147 = vmatprep.subr.mxu0 0.0
        %4148 = vmatpush1.msra.mxu0 0.0
        %4149 = vmatprep.subr.mxu0 0.0
        %4150 = vmatpush1.msra.mxu0 0.0
        %4151 = vmatprep.subr.mxu0 0.0
        %4152 = vmatpush1.msra.mxu0 0.0
        %4153 = vmatprep.subr.mxu0 0.0
        %4154 = vmatpush1.msra.mxu0 0.0
        %4155 = vmatprep.subr.mxu0 0.0
        %4156 = vmatpush1.msra.mxu0 0.0
        %4157 = vmatprep.subr.mxu0 0.0
        %4158 = vmatpush1.msra.mxu0 0.0
        %4159 = vmatprep.subr.mxu0 0.0
        %4160 = vmatpush1.msra.mxu0 0.0
        %4161 = vmatprep.subr.mxu0 0.0
        %4162 = vmatpush1.msra.mxu0 0.0
        %4163 = vmatprep.subr.mxu0 0.0
        %4164 = vmatpush1.msra.mxu0 0.0
        %4165 = vmatprep.mubr.f32.mxu0 0.0
        %v4166 = vand.u32 %v1048, 4294901760
        %4167 = vmatmul.mubr.f32.gmra.mrb[0].mxu0 %v4166
        %v4168 = vpop.f32.mrb[0].mxu0
        %v4169 = vadd.f32 %v4081, %v4168
        %v4170 = vpop.f32.mrb[0].mxu0
        %v4171 = vadd.f32 %v4083, %v4170
        %4172 = vdwg.mxu0
        %v4173 = vand.u32 %v2175, 4294901760
        %4174 = vmatprep.subr.mxu0 %v4173
        %v4175 = vand.u32 %v2174, 4294901760
        %4176 = vmatpush1.msra.mxu0 %v4175
        %v4177 = vand.u32 %v2183, 4294901760
        %4178 = vmatprep.subr.mxu0 %v4177
        %v4179 = vand.u32 %v2182, 4294901760
        %4180 = vmatpush1.msra.mxu0 %v4179
        %v4181 = vand.u32 %v2191, 4294901760
        %4182 = vmatprep.subr.mxu0 %v4181
        %v4183 = vand.u32 %v2190, 4294901760
        %4184 = vmatpush1.msra.mxu0 %v4183
        %v4185 = vand.u32 %v2199, 4294901760
        %4186 = vmatprep.subr.mxu0 %v4185
        %v4187 = vand.u32 %v2198, 4294901760
        %4188 = vmatpush1.msra.mxu0 %v4187
        %v4189 = vand.u32 %v2207, 4294901760
        %4190 = vmatprep.subr.mxu0 %v4189
        %v4191 = vand.u32 %v2206, 4294901760
        %4192 = vmatpush1.msra.mxu0 %v4191
        %v4193 = vand.u32 %v2215, 4294901760
        %4194 = vmatprep.subr.mxu0 %v4193
        %v4195 = vand.u32 %v2214, 4294901760
        %4196 = vmatpush1.msra.mxu0 %v4195
        %v4197 = vand.u32 %v2223, 4294901760
        %4198 = vmatprep.subr.mxu0 %v4197
        %v4199 = vand.u32 %v2222, 4294901760
        %4200 = vmatpush1.msra.mxu0 %v4199
        %v4201 = vand.u32 %v2231, 4294901760
        %4202 = vmatprep.subr.mxu0 %v4201
        %v4203 = vand.u32 %v2230, 4294901760
        %4204 = vmatpush1.msra.mxu0 %v4203
        %4205 = vmatprep.subr.mxu0 0.0
        %4206 = vmatpush1.msra.mxu0 0.0
        %4207 = vmatprep.subr.mxu0 0.0
        %4208 = vmatpush1.msra.mxu0 0.0
        %4209 = vmatprep.subr.mxu0 0.0
        %4210 = vmatpush1.msra.mxu0 0.0
        %4211 = vmatprep.subr.mxu0 0.0
        %4212 = vmatpush1.msra.mxu0 0.0
        %4213 = vmatprep.subr.mxu0 0.0
        %4214 = vmatpush1.msra.mxu0 0.0
        %4215 = vmatprep.subr.mxu0 0.0
        %4216 = vmatpush1.msra.mxu0 0.0
        %4217 = vmatprep.subr.mxu0 0.0
        %4218 = vmatpush1.msra.mxu0 0.0
        %4219 = vmatprep.subr.mxu0 0.0
        %4220 = vmatpush1.msra.mxu0 0.0
        %4221 = vmatprep.subr.mxu0 0.0
        %4222 = vmatpush1.msra.mxu0 0.0
        %4223 = vmatprep.subr.mxu0 0.0
        %4224 = vmatpush1.msra.mxu0 0.0
        %4225 = vmatprep.subr.mxu0 0.0
        %4226 = vmatpush1.msra.mxu0 0.0
        %4227 = vmatprep.subr.mxu0 0.0
        %4228 = vmatpush1.msra.mxu0 0.0
        %4229 = vmatprep.subr.mxu0 0.0
        %4230 = vmatpush1.msra.mxu0 0.0
        %4231 = vmatprep.subr.mxu0 0.0
        %4232 = vmatpush1.msra.mxu0 0.0
        %4233 = vmatprep.subr.mxu0 0.0
        %4234 = vmatpush1.msra.mxu0 0.0
        %4235 = vmatprep.subr.mxu0 0.0
        %4236 = vmatpush1.msra.mxu0 0.0
        %4237 = vmatprep.subr.mxu0 0.0
        %4238 = vmatpush1.msra.mxu0 0.0
        %4239 = vmatprep.subr.mxu0 0.0
        %4240 = vmatpush1.msra.mxu0 0.0
        %4241 = vmatprep.subr.mxu0 0.0
        %4242 = vmatpush1.msra.mxu0 0.0
        %4243 = vmatprep.subr.mxu0 0.0
        %4244 = vmatpush1.msra.mxu0 0.0
        %4245 = vmatprep.subr.mxu0 0.0
        %4246 = vmatpush1.msra.mxu0 0.0
        %4247 = vmatprep.subr.mxu0 0.0
        %4248 = vmatpush1.msra.mxu0 0.0
        %4249 = vmatprep.subr.mxu0 0.0
        %4250 = vmatpush1.msra.mxu0 0.0
        %4251 = vmatprep.subr.mxu0 0.0
        %4252 = vmatpush1.msra.mxu0 0.0
        %4253 = vmatprep.mubr.f32.mxu0 0.0
        %v4254 = vand.u32 %v1048, 4294901760
        %v4255 = vsub.f32 %v1048, %v4254
        %v4256 = vand.u32 %v4255, 4294901760
        %v4257 = vsub.f32 %v4255, %v4256
        %v4258 = vand.u32 %v4257, 4294901760
        %4259 = vmatmul.mubr.f32.gmra.mrb[0].mxu0 %v4258
        %v4260 = vpop.f32.mrb[0].mxu0
        %v4261 = vadd.f32 0.0, %v4260
        %v4262 = vpop.f32.mrb[0].mxu0
        %v4263 = vadd.f32 0.0, %v4262
        %4264 = vdwg.mxu0
        %v4265 = vand.u32 %v2175, 4294901760
        %v4266 = vsub.f32 %v2175, %v4265
        %v4267 = vand.u32 %v4266, 4294901760
        %v4268 = vsub.f32 %v4266, %v4267
        %v4269 = vand.u32 %v4268, 4294901760
        %4270 = vmatprep.subr.mxu0 %v4269
        %v4271 = vand.u32 %v2174, 4294901760
        %v4272 = vsub.f32 %v2174, %v4271
        %v4273 = vand.u32 %v4272, 4294901760
        %v4274 = vsub.f32 %v4272, %v4273
        %v4275 = vand.u32 %v4274, 4294901760
        %4276 = vmatpush1.msra.mxu0 %v4275
        %v4277 = vand.u32 %v2183, 4294901760
        %v4278 = vsub.f32 %v2183, %v4277
        %v4279 = vand.u32 %v4278, 4294901760
        %v4280 = vsub.f32 %v4278, %v4279
        %v4281 = vand.u32 %v4280, 4294901760
        %4282 = vmatprep.subr.mxu0 %v4281
        %v4283 = vand.u32 %v2182, 4294901760
        %v4284 = vsub.f32 %v2182, %v4283
        %v4285 = vand.u32 %v4284, 4294901760
        %v4286 = vsub.f32 %v4284, %v4285
        %v4287 = vand.u32 %v4286, 4294901760
        %4288 = vmatpush1.msra.mxu0 %v4287
        %v4289 = vand.u32 %v2191, 4294901760
        %v4290 = vsub.f32 %v2191, %v4289
        %v4291 = vand.u32 %v4290, 4294901760
        %v4292 = vsub.f32 %v4290, %v4291
        %v4293 = vand.u32 %v4292, 4294901760
        %4294 = vmatprep.subr.mxu0 %v4293
        %v4295 = vand.u32 %v2190, 4294901760
        %v4296 = vsub.f32 %v2190, %v4295
        %v4297 = vand.u32 %v4296, 4294901760
        %v4298 = vsub.f32 %v4296, %v4297
        %v4299 = vand.u32 %v4298, 4294901760
        %4300 = vmatpush1.msra.mxu0 %v4299
        %v4301 = vand.u32 %v2199, 4294901760
        %v4302 = vsub.f32 %v2199, %v4301
        %v4303 = vand.u32 %v4302, 4294901760
        %v4304 = vsub.f32 %v4302, %v4303
        %v4305 = vand.u32 %v4304, 4294901760
        %4306 = vmatprep.subr.mxu0 %v4305
        %v4307 = vand.u32 %v2198, 4294901760
        %v4308 = vsub.f32 %v2198, %v4307
        %v4309 = vand.u32 %v4308, 4294901760
        %v4310 = vsub.f32 %v4308, %v4309
        %v4311 = vand.u32 %v4310, 4294901760
        %4312 = vmatpush1.msra.mxu0 %v4311
        %v4313 = vand.u32 %v2207, 4294901760
        %v4314 = vsub.f32 %v2207, %v4313
        %v4315 = vand.u32 %v4314, 4294901760
        %v4316 = vsub.f32 %v4314, %v4315
        %v4317 = vand.u32 %v4316, 4294901760
        %4318 = vmatprep.subr.mxu0 %v4317
        %v4319 = vand.u32 %v2206, 4294901760
        %v4320 = vsub.f32 %v2206, %v4319
        %v4321 = vand.u32 %v4320, 4294901760
        %v4322 = vsub.f32 %v4320, %v4321
        %v4323 = vand.u32 %v4322, 4294901760
        %4324 = vmatpush1.msra.mxu0 %v4323
        %v4325 = vand.u32 %v2215, 4294901760
        %v4326 = vsub.f32 %v2215, %v4325
        %v4327 = vand.u32 %v4326, 4294901760
        %v4328 = vsub.f32 %v4326, %v4327
        %v4329 = vand.u32 %v4328, 4294901760
        %4330 = vmatprep.subr.mxu0 %v4329
        %v4331 = vand.u32 %v2214, 4294901760
        %v4332 = vsub.f32 %v2214, %v4331
        %v4333 = vand.u32 %v4332, 4294901760
        %v4334 = vsub.f32 %v4332, %v4333
        %v4335 = vand.u32 %v4334, 4294901760
        %4336 = vmatpush1.msra.mxu0 %v4335
        %v4337 = vand.u32 %v2223, 4294901760
        %v4338 = vsub.f32 %v2223, %v4337
        %v4339 = vand.u32 %v4338, 4294901760
        %v4340 = vsub.f32 %v4338, %v4339
        %v4341 = vand.u32 %v4340, 4294901760
        %4342 = vmatprep.subr.mxu0 %v4341
        %v4343 = vand.u32 %v2222, 4294901760
        %v4344 = vsub.f32 %v2222, %v4343
        %v4345 = vand.u32 %v4344, 4294901760
        %v4346 = vsub.f32 %v4344, %v4345
        %v4347 = vand.u32 %v4346, 4294901760
        %4348 = vmatpush1.msra.mxu0 %v4347
        %v4349 = vand.u32 %v2231, 4294901760
        %v4350 = vsub.f32 %v2231, %v4349
        %v4351 = vand.u32 %v4350, 4294901760
        %v4352 = vsub.f32 %v4350, %v4351
        %v4353 = vand.u32 %v4352, 4294901760
        %4354 = vmatprep.subr.mxu0 %v4353
        %v4355 = vand.u32 %v2230, 4294901760
        %v4356 = vsub.f32 %v2230, %v4355
        %v4357 = vand.u32 %v4356, 4294901760
        %v4358 = vsub.f32 %v4356, %v4357
        %v4359 = vand.u32 %v4358, 4294901760
        %4360 = vmatpush1.msra.mxu0 %v4359
        %4361 = vmatprep.subr.mxu0 0.0
        %4362 = vmatpush1.msra.mxu0 0.0
        %4363 = vmatprep.subr.mxu0 0.0
        %4364 = vmatpush1.msra.mxu0 0.0
        %4365 = vmatprep.subr.mxu0 0.0
        %4366 = vmatpush1.msra.mxu0 0.0
        %4367 = vmatprep.subr.mxu0 0.0
        %4368 = vmatpush1.msra.mxu0 0.0
        %4369 = vmatprep.subr.mxu0 0.0
        %4370 = vmatpush1.msra.mxu0 0.0
        %4371 = vmatprep.subr.mxu0 0.0
        %4372 = vmatpush1.msra.mxu0 0.0
        %4373 = vmatprep.subr.mxu0 0.0
        %4374 = vmatpush1.msra.mxu0 0.0
        %4375 = vmatprep.subr.mxu0 0.0
        %4376 = vmatpush1.msra.mxu0 0.0
        %4377 = vmatprep.subr.mxu0 0.0
        %4378 = vmatpush1.msra.mxu0 0.0
        %4379 = vmatprep.subr.mxu0 0.0
        %4380 = vmatpush1.msra.mxu0 0.0
        %4381 = vmatprep.subr.mxu0 0.0
        %4382 = vmatpush1.msra.mxu0 0.0
        %4383 = vmatprep.subr.mxu0 0.0
        %4384 = vmatpush1.msra.mxu0 0.0
        %4385 = vmatprep.subr.mxu0 0.0
        %4386 = vmatpush1.msra.mxu0 0.0
        %4387 = vmatprep.subr.mxu0 0.0
        %4388 = vmatpush1.msra.mxu0 0.0
        %4389 = vmatprep.subr.mxu0 0.0
        %4390 = vmatpush1.msra.mxu0 0.0
        %4391 = vmatprep.subr.mxu0 0.0
        %4392 = vmatpush1.msra.mxu0 0.0
        %4393 = vmatprep.subr.mxu0 0.0
        %4394 = vmatpush1.msra.mxu0 0.0
        %4395 = vmatprep.subr.mxu0 0.0
        %4396 = vmatpush1.msra.mxu0 0.0
        %4397 = vmatprep.subr.mxu0 0.0
        %4398 = vmatpush1.msra.mxu0 0.0
        %4399 = vmatprep.subr.mxu0 0.0
        %4400 = vmatpush1.msra.mxu0 0.0
        %4401 = vmatprep.subr.mxu0 0.0
        %4402 = vmatpush1.msra.mxu0 0.0
        %4403 = vmatprep.subr.mxu0 0.0
        %4404 = vmatpush1.msra.mxu0 0.0
        %4405 = vmatprep.subr.mxu0 0.0
        %4406 = vmatpush1.msra.mxu0 0.0
        %4407 = vmatprep.subr.mxu0 0.0
        %4408 = vmatpush1.msra.mxu0 0.0
        %4409 = vmatprep.mubr.f32.mxu0 0.0
        %v4410 = vand.u32 %v1048, 4294901760
        %4411 = vmatmul.mubr.f32.gmra.mrb[0].mxu0 %v4410
        %v4412 = vpop.f32.mrb[0].mxu0
        %v4413 = vadd.f32 %v4261, %v4412
        %v4414 = vpop.f32.mrb[0].mxu0
        %v4415 = vadd.f32 %v4263, %v4414
        %4416 = vdwg.mxu0
        %v4417 = vand.u32 %v2175, 4294901760
        %v4418 = vsub.f32 %v2175, %v4417
        %4419 = vmatprep.subr.mxu0 %v4418
        %v4420 = vand.u32 %v2174, 4294901760
        %v4421 = vsub.f32 %v2174, %v4420
        %4422 = vmatpush1.msra.mxu0 %v4421
        %v4423 = vand.u32 %v2183, 4294901760
        %v4424 = vsub.f32 %v2183, %v4423
        %4425 = vmatprep.subr.mxu0 %v4424
        %v4426 = vand.u32 %v2182, 4294901760
        %v4427 = vsub.f32 %v2182, %v4426
        %4428 = vmatpush1.msra.mxu0 %v4427
        %v4429 = vand.u32 %v2191, 4294901760
        %v4430 = vsub.f32 %v2191, %v4429
        %4431 = vmatprep.subr.mxu0 %v4430
        %v4432 = vand.u32 %v2190, 4294901760
        %v4433 = vsub.f32 %v2190, %v4432
        %4434 = vmatpush1.msra.mxu0 %v4433
        %v4435 = vand.u32 %v2199, 4294901760
        %v4436 = vsub.f32 %v2199, %v4435
        %4437 = vmatprep.subr.mxu0 %v4436
        %v4438 = vand.u32 %v2198, 4294901760
        %v4439 = vsub.f32 %v2198, %v4438
        %4440 = vmatpush1.msra.mxu0 %v4439
        %v4441 = vand.u32 %v2207, 4294901760
        %v4442 = vsub.f32 %v2207, %v4441
        %4443 = vmatprep.subr.mxu0 %v4442
        %v4444 = vand.u32 %v2206, 4294901760
        %v4445 = vsub.f32 %v2206, %v4444
        %4446 = vmatpush1.msra.mxu0 %v4445
        %v4447 = vand.u32 %v2215, 4294901760
        %v4448 = vsub.f32 %v2215, %v4447
        %4449 = vmatprep.subr.mxu0 %v4448
        %v4450 = vand.u32 %v2214, 4294901760
        %v4451 = vsub.f32 %v2214, %v4450
        %4452 = vmatpush1.msra.mxu0 %v4451
        %v4453 = vand.u32 %v2223, 4294901760
        %v4454 = vsub.f32 %v2223, %v4453
        %4455 = vmatprep.subr.mxu0 %v4454
        %v4456 = vand.u32 %v2222, 4294901760
        %v4457 = vsub.f32 %v2222, %v4456
        %4458 = vmatpush1.msra.mxu0 %v4457
        %v4459 = vand.u32 %v2231, 4294901760
        %v4460 = vsub.f32 %v2231, %v4459
        %4461 = vmatprep.subr.mxu0 %v4460
        %v4462 = vand.u32 %v2230, 4294901760
        %v4463 = vsub.f32 %v2230, %v4462
        %4464 = vmatpush1.msra.mxu0 %v4463
        %4465 = vmatprep.subr.mxu0 0.0
        %4466 = vmatpush1.msra.mxu0 0.0
        %4467 = vmatprep.subr.mxu0 0.0
        %4468 = vmatpush1.msra.mxu0 0.0
        %4469 = vmatprep.subr.mxu0 0.0
        %4470 = vmatpush1.msra.mxu0 0.0
        %4471 = vmatprep.subr.mxu0 0.0
        %4472 = vmatpush1.msra.mxu0 0.0
        %4473 = vmatprep.subr.mxu0 0.0
        %4474 = vmatpush1.msra.mxu0 0.0
        %4475 = vmatprep.subr.mxu0 0.0
        %4476 = vmatpush1.msra.mxu0 0.0
        %4477 = vmatprep.subr.mxu0 0.0
        %4478 = vmatpush1.msra.mxu0 0.0
        %4479 = vmatprep.subr.mxu0 0.0
        %4480 = vmatpush1.msra.mxu0 0.0
        %4481 = vmatprep.subr.mxu0 0.0
        %4482 = vmatpush1.msra.mxu0 0.0
        %4483 = vmatprep.subr.mxu0 0.0
        %4484 = vmatpush1.msra.mxu0 0.0
        %4485 = vmatprep.subr.mxu0 0.0
        %4486 = vmatpush1.msra.mxu0 0.0
        %4487 = vmatprep.subr.mxu0 0.0
        %4488 = vmatpush1.msra.mxu0 0.0
        %4489 = vmatprep.subr.mxu0 0.0
        %4490 = vmatpush1.msra.mxu0 0.0
        %4491 = vmatprep.subr.mxu0 0.0
        %4492 = vmatpush1.msra.mxu0 0.0
        %4493 = vmatprep.subr.mxu0 0.0
        %4494 = vmatpush1.msra.mxu0 0.0
        %4495 = vmatprep.subr.mxu0 0.0
        %4496 = vmatpush1.msra.mxu0 0.0
        %4497 = vmatprep.subr.mxu0 0.0
        %4498 = vmatpush1.msra.mxu0 0.0
        %4499 = vmatprep.subr.mxu0 0.0
        %4500 = vmatpush1.msra.mxu0 0.0
        %4501 = vmatprep.subr.mxu0 0.0
        %4502 = vmatpush1.msra.mxu0 0.0
        %4503 = vmatprep.subr.mxu0 0.0
        %4504 = vmatpush1.msra.mxu0 0.0
        %4505 = vmatprep.subr.mxu0 0.0
        %4506 = vmatpush1.msra.mxu0 0.0
        %4507 = vmatprep.subr.mxu0 0.0
        %4508 = vmatpush1.msra.mxu0 0.0
        %4509 = vmatprep.subr.mxu0 0.0
        %4510 = vmatpush1.msra.mxu0 0.0
        %4511 = vmatprep.subr.mxu0 0.0
        %4512 = vmatpush1.msra.mxu0 0.0
        %4513 = vmatprep.mubr.f32.mxu0 0.0
        %v4514 = vand.u32 %v1048, 4294901760
        %v4515 = vsub.f32 %v1048, %v4514
        %4516 = vmatmul.mubr.f32.gmra.mrb[0].mxu0 %v4515
        %v4517 = vpop.f32.mrb[0].mxu0
        %v4518 = vadd.f32 %v4413, %v4517
        %v4519 = vpop.f32.mrb[0].mxu0
        %v4520 = vadd.f32 %v4415, %v4519
        %4521 = vdwg.mxu0
        %v4522 = vand.u32 %v2175, 4294901760
        %4523 = vmatprep.subr.mxu0 %v4522
        %v4524 = vand.u32 %v2174, 4294901760
        %4525 = vmatpush1.msra.mxu0 %v4524
        %v4526 = vand.u32 %v2183, 4294901760
        %4527 = vmatprep.subr.mxu0 %v4526
        %v4528 = vand.u32 %v2182, 4294901760
        %4529 = vmatpush1.msra.mxu0 %v4528
        %v4530 = vand.u32 %v2191, 4294901760
        %4531 = vmatprep.subr.mxu0 %v4530
        %v4532 = vand.u32 %v2190, 4294901760
        %4533 = vmatpush1.msra.mxu0 %v4532
        %v4534 = vand.u32 %v2199, 4294901760
        %4535 = vmatprep.subr.mxu0 %v4534
        %v4536 = vand.u32 %v2198, 4294901760
        %4537 = vmatpush1.msra.mxu0 %v4536
        %v4538 = vand.u32 %v2207, 4294901760
        %4539 = vmatprep.subr.mxu0 %v4538
        %v4540 = vand.u32 %v2206, 4294901760
        %4541 = vmatpush1.msra.mxu0 %v4540
        %v4542 = vand.u32 %v2215, 4294901760
        %4543 = vmatprep.subr.mxu0 %v4542
        %v4544 = vand.u32 %v2214, 4294901760
        %4545 = vmatpush1.msra.mxu0 %v4544
        %v4546 = vand.u32 %v2223, 4294901760
        %4547 = vmatprep.subr.mxu0 %v4546
        %v4548 = vand.u32 %v2222, 4294901760
        %4549 = vmatpush1.msra.mxu0 %v4548
        %v4550 = vand.u32 %v2231, 4294901760
        %4551 = vmatprep.subr.mxu0 %v4550
        %v4552 = vand.u32 %v2230, 4294901760
        %4553 = vmatpush1.msra.mxu0 %v4552
        %4554 = vmatprep.subr.mxu0 0.0
        %4555 = vmatpush1.msra.mxu0 0.0
        %4556 = vmatprep.subr.mxu0 0.0
        %4557 = vmatpush1.msra.mxu0 0.0
        %4558 = vmatprep.subr.mxu0 0.0
        %4559 = vmatpush1.msra.mxu0 0.0
        %4560 = vmatprep.subr.mxu0 0.0
        %4561 = vmatpush1.msra.mxu0 0.0
        %4562 = vmatprep.subr.mxu0 0.0
        %4563 = vmatpush1.msra.mxu0 0.0
        %4564 = vmatprep.subr.mxu0 0.0
        %4565 = vmatpush1.msra.mxu0 0.0
        %4566 = vmatprep.subr.mxu0 0.0
        %4567 = vmatpush1.msra.mxu0 0.0
        %4568 = vmatprep.subr.mxu0 0.0
        %4569 = vmatpush1.msra.mxu0 0.0
        %4570 = vmatprep.subr.mxu0 0.0
        %4571 = vmatpush1.msra.mxu0 0.0
        %4572 = vmatprep.subr.mxu0 0.0
        %4573 = vmatpush1.msra.mxu0 0.0
        %4574 = vmatprep.subr.mxu0 0.0
        %4575 = vmatpush1.msra.mxu0 0.0
        %4576 = vmatprep.subr.mxu0 0.0
        %4577 = vmatpush1.msra.mxu0 0.0
        %4578 = vmatprep.subr.mxu0 0.0
        %4579 = vmatpush1.msra.mxu0 0.0
        %4580 = vmatprep.subr.mxu0 0.0
        %4581 = vmatpush1.msra.mxu0 0.0
        %4582 = vmatprep.subr.mxu0 0.0
        %4583 = vmatpush1.msra.mxu0 0.0
        %4584 = vmatprep.subr.mxu0 0.0
        %4585 = vmatpush1.msra.mxu0 0.0
        %4586 = vmatprep.subr.mxu0 0.0
        %4587 = vmatpush1.msra.mxu0 0.0
        %4588 = vmatprep.subr.mxu0 0.0
        %4589 = vmatpush1.msra.mxu0 0.0
        %4590 = vmatprep.subr.mxu0 0.0
        %4591 = vmatpush1.msra.mxu0 0.0
        %4592 = vmatprep.subr.mxu0 0.0
        %4593 = vmatpush1.msra.mxu0 0.0
        %4594 = vmatprep.subr.mxu0 0.0
        %4595 = vmatpush1.msra.mxu0 0.0
        %4596 = vmatprep.subr.mxu0 0.0
        %4597 = vmatpush1.msra.mxu0 0.0
        %4598 = vmatprep.subr.mxu0 0.0
        %4599 = vmatpush1.msra.mxu0 0.0
        %4600 = vmatprep.subr.mxu0 0.0
        %4601 = vmatpush1.msra.mxu0 0.0
        %4602 = vmatprep.mubr.f32.mxu0 0.0
        %v4603 = vand.u32 %v1048, 4294901760
        %v4604 = vsub.f32 %v1048, %v4603
        %v4605 = vand.u32 %v4604, 4294901760
        %4606 = vmatmul.mubr.f32.gmra.mrb[0].mxu0 %v4605
        %v4607 = vpop.f32.mrb[0].mxu0
        %v4608 = vadd.f32 %v4518, %v4607
        %v4609 = vpop.f32.mrb[0].mxu0
        %v4610 = vadd.f32 %v4520, %v4609
        %4611 = vdwg.mxu0
        %v4612 = vand.u32 %v2175, 4294901760
        %v4613 = vsub.f32 %v2175, %v4612
        %v4614 = vand.u32 %v4613, 4294901760
        %4615 = vmatprep.subr.mxu0 %v4614
        %v4616 = vand.u32 %v2174, 4294901760
        %v4617 = vsub.f32 %v2174, %v4616
        %v4618 = vand.u32 %v4617, 4294901760
        %4619 = vmatpush1.msra.mxu0 %v4618
        %v4620 = vand.u32 %v2183, 4294901760
        %v4621 = vsub.f32 %v2183, %v4620
        %v4622 = vand.u32 %v4621, 4294901760
        %4623 = vmatprep.subr.mxu0 %v4622
        %v4624 = vand.u32 %v2182, 4294901760
        %v4625 = vsub.f32 %v2182, %v4624
        %v4626 = vand.u32 %v4625, 4294901760
        %4627 = vmatpush1.msra.mxu0 %v4626
        %v4628 = vand.u32 %v2191, 4294901760
        %v4629 = vsub.f32 %v2191, %v4628
        %v4630 = vand.u32 %v4629, 4294901760
        %4631 = vmatprep.subr.mxu0 %v4630
        %v4632 = vand.u32 %v2190, 4294901760
        %v4633 = vsub.f32 %v2190, %v4632
        %v4634 = vand.u32 %v4633, 4294901760
        %4635 = vmatpush1.msra.mxu0 %v4634
        %v4636 = vand.u32 %v2199, 4294901760
        %v4637 = vsub.f32 %v2199, %v4636
        %v4638 = vand.u32 %v4637, 4294901760
        %4639 = vmatprep.subr.mxu0 %v4638
        %v4640 = vand.u32 %v2198, 4294901760
        %v4641 = vsub.f32 %v2198, %v4640
        %v4642 = vand.u32 %v4641, 4294901760
        %4643 = vmatpush1.msra.mxu0 %v4642
        %v4644 = vand.u32 %v2207, 4294901760
        %v4645 = vsub.f32 %v2207, %v4644
        %v4646 = vand.u32 %v4645, 4294901760
        %4647 = vmatprep.subr.mxu0 %v4646
        %v4648 = vand.u32 %v2206, 4294901760
        %v4649 = vsub.f32 %v2206, %v4648
        %v4650 = vand.u32 %v4649, 4294901760
        %4651 = vmatpush1.msra.mxu0 %v4650
        %v4652 = vand.u32 %v2215, 4294901760
        %v4653 = vsub.f32 %v2215, %v4652
        %v4654 = vand.u32 %v4653, 4294901760
        %4655 = vmatprep.subr.mxu0 %v4654
        %v4656 = vand.u32 %v2214, 4294901760
        %v4657 = vsub.f32 %v2214, %v4656
        %v4658 = vand.u32 %v4657, 4294901760
        %4659 = vmatpush1.msra.mxu0 %v4658
        %v4660 = vand.u32 %v2223, 4294901760
        %v4661 = vsub.f32 %v2223, %v4660
        %v4662 = vand.u32 %v4661, 4294901760
        %4663 = vmatprep.subr.mxu0 %v4662
        %v4664 = vand.u32 %v2222, 4294901760
        %v4665 = vsub.f32 %v2222, %v4664
        %v4666 = vand.u32 %v4665, 4294901760
        %4667 = vmatpush1.msra.mxu0 %v4666
        %v4668 = vand.u32 %v2231, 4294901760
        %v4669 = vsub.f32 %v2231, %v4668
        %v4670 = vand.u32 %v4669, 4294901760
        %4671 = vmatprep.subr.mxu0 %v4670
        %v4672 = vand.u32 %v2230, 4294901760
        %v4673 = vsub.f32 %v2230, %v4672
        %v4674 = vand.u32 %v4673, 4294901760
        %4675 = vmatpush1.msra.mxu0 %v4674
        %4676 = vmatprep.subr.mxu0 0.0
        %4677 = vmatpush1.msra.mxu0 0.0
        %4678 = vmatprep.subr.mxu0 0.0
        %4679 = vmatpush1.msra.mxu0 0.0
        %4680 = vmatprep.subr.mxu0 0.0
        %4681 = vmatpush1.msra.mxu0 0.0
        %4682 = vmatprep.subr.mxu0 0.0
        %4683 = vmatpush1.msra.mxu0 0.0
        %4684 = vmatprep.subr.mxu0 0.0
        %4685 = vmatpush1.msra.mxu0 0.0
        %4686 = vmatprep.subr.mxu0 0.0
        %4687 = vmatpush1.msra.mxu0 0.0
        %4688 = vmatprep.subr.mxu0 0.0
        %4689 = vmatpush1.msra.mxu0 0.0
        %4690 = vmatprep.subr.mxu0 0.0
        %4691 = vmatpush1.msra.mxu0 0.0
        %4692 = vmatprep.subr.mxu0 0.0
        %4693 = vmatpush1.msra.mxu0 0.0
        %4694 = vmatprep.subr.mxu0 0.0
        %4695 = vmatpush1.msra.mxu0 0.0
        %4696 = vmatprep.subr.mxu0 0.0
        %4697 = vmatpush1.msra.mxu0 0.0
        %4698 = vmatprep.subr.mxu0 0.0
        %4699 = vmatpush1.msra.mxu0 0.0
        %4700 = vmatprep.subr.mxu0 0.0
        %4701 = vmatpush1.msra.mxu0 0.0
        %4702 = vmatprep.subr.mxu0 0.0
        %4703 = vmatpush1.msra.mxu0 0.0
        %4704 = vmatprep.subr.mxu0 0.0
        %4705 = vmatpush1.msra.mxu0 0.0
        %4706 = vmatprep.subr.mxu0 0.0
        %4707 = vmatpush1.msra.mxu0 0.0
        %4708 = vmatprep.subr.mxu0 0.0
        %4709 = vmatpush1.msra.mxu0 0.0
        %4710 = vmatprep.subr.mxu0 0.0
        %4711 = vmatpush1.msra.mxu0 0.0
        %4712 = vmatprep.subr.mxu0 0.0
        %4713 = vmatpush1.msra.mxu0 0.0
        %4714 = vmatprep.subr.mxu0 0.0
        %4715 = vmatpush1.msra.mxu0 0.0
        %4716 = vmatprep.subr.mxu0 0.0
        %4717 = vmatpush1.msra.mxu0 0.0
        %4718 = vmatprep.subr.mxu0 0.0
        %4719 = vmatpush1.msra.mxu0 0.0
        %4720 = vmatprep.subr.mxu0 0.0
        %4721 = vmatpush1.msra.mxu0 0.0
        %4722 = vmatprep.subr.mxu0 0.0
        %4723 = vmatpush1.msra.mxu0 0.0
        %4724 = vmatprep.mubr.f32.mxu0 0.0
        %v4725 = vand.u32 %v1048, 4294901760
        %4726 = vmatmul.mubr.f32.gmra.mrb[0].mxu0 %v4725
        %v4727 = vpop.f32.mrb[0].mxu0
        %v4728 = vadd.f32 %v4608, %v4727
        %v4729 = vpop.f32.mrb[0].mxu0
        %v4730 = vadd.f32 %v4610, %v4729
        %4731 = vdwg.mxu0
        %v4732 = vand.u32 %v2175, 4294901760
        %4733 = vmatprep.subr.mxu0 %v4732
        %v4734 = vand.u32 %v2174, 4294901760
        %4735 = vmatpush1.msra.mxu0 %v4734
        %v4736 = vand.u32 %v2183, 4294901760
        %4737 = vmatprep.subr.mxu0 %v4736
        %v4738 = vand.u32 %v2182, 4294901760
        %4739 = vmatpush1.msra.mxu0 %v4738
        %v4740 = vand.u32 %v2191, 4294901760
        %4741 = vmatprep.subr.mxu0 %v4740
        %v4742 = vand.u32 %v2190, 4294901760
        %4743 = vmatpush1.msra.mxu0 %v4742
        %v4744 = vand.u32 %v2199, 4294901760
        %4745 = vmatprep.subr.mxu0 %v4744
        %v4746 = vand.u32 %v2198, 4294901760
        %4747 = vmatpush1.msra.mxu0 %v4746
        %v4748 = vand.u32 %v2207, 4294901760
        %4749 = vmatprep.subr.mxu0 %v4748
        %v4750 = vand.u32 %v2206, 4294901760
        %4751 = vmatpush1.msra.mxu0 %v4750
        %v4752 = vand.u32 %v2215, 4294901760
        %4753 = vmatprep.subr.mxu0 %v4752
        %v4754 = vand.u32 %v2214, 4294901760
        %4755 = vmatpush1.msra.mxu0 %v4754
        %v4756 = vand.u32 %v2223, 4294901760
        %4757 = vmatprep.subr.mxu0 %v4756
        %v4758 = vand.u32 %v2222, 4294901760
        %4759 = vmatpush1.msra.mxu0 %v4758
        %v4760 = vand.u32 %v2231, 4294901760
        %4761 = vmatprep.subr.mxu0 %v4760
        %v4762 = vand.u32 %v2230, 4294901760
        %4763 = vmatpush1.msra.mxu0 %v4762
        %4764 = vmatprep.subr.mxu0 0.0
        %4765 = vmatpush1.msra.mxu0 0.0
        %4766 = vmatprep.subr.mxu0 0.0
        %4767 = vmatpush1.msra.mxu0 0.0
        %4768 = vmatprep.subr.mxu0 0.0
        %4769 = vmatpush1.msra.mxu0 0.0
        %4770 = vmatprep.subr.mxu0 0.0
        %4771 = vmatpush1.msra.mxu0 0.0
        %4772 = vmatprep.subr.mxu0 0.0
        %4773 = vmatpush1.msra.mxu0 0.0
        %4774 = vmatprep.subr.mxu0 0.0
        %4775 = vmatpush1.msra.mxu0 0.0
        %4776 = vmatprep.subr.mxu0 0.0
        %4777 = vmatpush1.msra.mxu0 0.0
        %4778 = vmatprep.subr.mxu0 0.0
        %4779 = vmatpush1.msra.mxu0 0.0
        %4780 = vmatprep.subr.mxu0 0.0
        %4781 = vmatpush1.msra.mxu0 0.0
        %4782 = vmatprep.subr.mxu0 0.0
        %4783 = vmatpush1.msra.mxu0 0.0
        %4784 = vmatprep.subr.mxu0 0.0
        %4785 = vmatpush1.msra.mxu0 0.0
        %4786 = vmatprep.subr.mxu0 0.0
        %4787 = vmatpush1.msra.mxu0 0.0
        %4788 = vmatprep.subr.mxu0 0.0
        %4789 = vmatpush1.msra.mxu0 0.0
        %4790 = vmatprep.subr.mxu0 0.0
        %4791 = vmatpush1.msra.mxu0 0.0
        %4792 = vmatprep.subr.mxu0 0.0
        %4793 = vmatpush1.msra.mxu0 0.0
        %4794 = vmatprep.subr.mxu0 0.0
        %4795 = vmatpush1.msra.mxu0 0.0
        %4796 = vmatprep.subr.mxu0 0.0
        %4797 = vmatpush1.msra.mxu0 0.0
        %4798 = vmatprep.subr.mxu0 0.0
        %4799 = vmatpush1.msra.mxu0 0.0
        %4800 = vmatprep.subr.mxu0 0.0
        %4801 = vmatpush1.msra.mxu0 0.0
        %4802 = vmatprep.subr.mxu0 0.0
        %4803 = vmatpush1.msra.mxu0 0.0
        %4804 = vmatprep.subr.mxu0 0.0
        %4805 = vmatpush1.msra.mxu0 0.0
        %4806 = vmatprep.subr.mxu0 0.0
        %4807 = vmatpush1.msra.mxu0 0.0
        %4808 = vmatprep.subr.mxu0 0.0
        %4809 = vmatpush1.msra.mxu0 0.0
        %4810 = vmatprep.subr.mxu0 0.0
        %4811 = vmatpush1.msra.mxu0 0.0
        %4812 = vmatprep.mubr.f32.mxu0 0.0
        %v4813 = vand.u32 %v1048, 4294901760
        %4814 = vmatmul.mubr.f32.gmra.mrb[0].mxu0 %v4813
        %v4815 = vpop.f32.mrb[0].mxu0
        %v4816 = vadd.f32 %v4728, %v4815
        %v4817 = vpop.f32.mrb[0].mxu0
        %v4818 = vadd.f32 %v4730, %v4817
        %4819 = vdwg.mxu0
        %v4820 = vld [vmem:[%s9] sm:$0xff]
        %v4821 = vld [vmem:[%s9 + $0x8] sm:$0xff]
        %v4822 = vld [vmem:[%s9 + $0x10] sm:$0xff]
        %v4823 = vld [vmem:[%s9 + $0x18] sm:$0xff]
        %v4824 = vld [vmem:[%s9 + $0x20] sm:$0xff]
        %v4825 = vld [vmem:[%s9 + $0x28] sm:$0xff]
        %v4826 = vld [vmem:[%s9 + $0x30] sm:$0xff]
        %v4827 = vld [vmem:[%s9 + $0x38] sm:$0xff]
        %v4828 = vld [vmem:[%s9 + $0x40] sm:$0xff]
        %v4829 = vld [vmem:[%s9 + $0x48] sm:$0xff]
        %v4830 = vld [vmem:[%s9 + $0x50] sm:$0xff]
        %v4831 = vld [vmem:[%s9 + $0x58] sm:$0xff]
        %v4832 = vld [vmem:[%s9 + $0x60] sm:$0xff]
        %v4833 = vld [vmem:[%s9 + $0x68] sm:$0xff]
        %v4834 = vld [vmem:[%s9 + $0x70] sm:$0xff]
        %v4835 = vld [vmem:[%s9 + $0x78] sm:$0xff]
        %v4837 = vsel %vm1587, %v2167, 0
        %v4839 = vand.u32 %v4821, 4294901760
        %4840 = vmatprep.subr.mxu0 %v4839
        %v4841 = vand.u32 %v4820, 4294901760
        %4842 = vmatpush1.msra.mxu0 %v4841
        %v4843 = vand.u32 %v4829, 4294901760
        %4844 = vmatprep.subr.mxu0 %v4843
        %v4845 = vand.u32 %v4828, 4294901760
        %4846 = vmatpush1.msra.mxu0 %v4845
        %4847 = vmatprep.subr.mxu0 0.0
        %4848 = vmatpush1.msra.mxu0 0.0
        %4849 = vmatprep.subr.mxu0 0.0
        %4850 = vmatpush1.msra.mxu0 0.0
        %4851 = vmatprep.subr.mxu0 0.0
        %4852 = vmatpush1.msra.mxu0 0.0
        %4853 = vmatprep.subr.mxu0 0.0
        %4854 = vmatpush1.msra.mxu0 0.0
        %4855 = vmatprep.subr.mxu0 0.0
        %4856 = vmatpush1.msra.mxu0 0.0
        %4857 = vmatprep.subr.mxu0 0.0
        %4858 = vmatpush1.msra.mxu0 0.0
        %4859 = vmatprep.subr.mxu0 0.0
        %4860 = vmatpush1.msra.mxu0 0.0
        %4861 = vmatprep.subr.mxu0 0.0
        %4862 = vmatpush1.msra.mxu0 0.0
        %4863 = vmatprep.subr.mxu0 0.0
        %4864 = vmatpush1.msra.mxu0 0.0
        %4865 = vmatprep.subr.mxu0 0.0
        %4866 = vmatpush1.msra.mxu0 0.0
        %4867 = vmatprep.subr.mxu0 0.0
        %4868 = vmatpush1.msra.mxu0 0.0
        %4869 = vmatprep.subr.mxu0 0.0
        %4870 = vmatpush1.msra.mxu0 0.0
        %4871 = vmatprep.subr.mxu0 0.0
        %4872 = vmatpush1.msra.mxu0 0.0
        %4873 = vmatprep.subr.mxu0 0.0
        %4874 = vmatpush1.msra.mxu0 0.0
        %4875 = vmatprep.subr.mxu0 0.0
        %4876 = vmatpush1.msra.mxu0 0.0
        %4877 = vmatprep.subr.mxu0 0.0
        %4878 = vmatpush1.msra.mxu0 0.0
        %4879 = vmatprep.subr.mxu0 0.0
        %4880 = vmatpush1.msra.mxu0 0.0
        %4881 = vmatprep.subr.mxu0 0.0
        %4882 = vmatpush1.msra.mxu0 0.0
        %4883 = vmatprep.subr.mxu0 0.0
        %4884 = vmatpush1.msra.mxu0 0.0
        %4885 = vmatprep.subr.mxu0 0.0
        %4886 = vmatpush1.msra.mxu0 0.0
        %4887 = vmatprep.subr.mxu0 0.0
        %4888 = vmatpush1.msra.mxu0 0.0
        %4889 = vmatprep.subr.mxu0 0.0
        %4890 = vmatpush1.msra.mxu0 0.0
        %4891 = vmatprep.subr.mxu0 0.0
        %4892 = vmatpush1.msra.mxu0 0.0
        %4893 = vmatprep.subr.mxu0 0.0
        %4894 = vmatpush1.msra.mxu0 0.0
        %4895 = vmatprep.subr.mxu0 0.0
        %4896 = vmatpush1.msra.mxu0 0.0
        %4897 = vmatprep.subr.mxu0 0.0
        %4898 = vmatpush1.msra.mxu0 0.0
        %4899 = vmatprep.subr.mxu0 0.0
        %4900 = vmatpush1.msra.mxu0 0.0
        %4901 = vmatprep.subr.mxu0 0.0
        %4902 = vmatpush1.msra.mxu0 0.0
        %4903 = vmatprep.subr.mxu0 0.0
        %4904 = vmatpush1.msra.mxu0 0.0
        %4905 = vmatprep.subr.mxu0 0.0
        %4906 = vmatpush1.msra.mxu0 0.0
        %4907 = vmatprep.mubr.f32.mxu0 0.0
        %v4908 = vand.u32 %v4837, 4294901760
        %v4909 = vsub.f32 %v4837, %v4908
        %v4910 = vand.u32 %v4909, 4294901760
        %v4911 = vsub.f32 %v4909, %v4910
        %v4912 = vand.u32 %v4911, 4294901760
        %4913 = vmatmul.mubr.f32.gmra.mrb[0].mxu0 %v4912
        %v4914 = vpop.f32.mrb[0].mxu0
        %v4915 = vadd.f32 0.0, %v4914
        %v4916 = vpop.f32.mrb[0].mxu0
        %v4917 = vadd.f32 0.0, %v4916
        %4918 = vdwg.mxu0
        %v4919 = vand.u32 %v4821, 4294901760
        %v4920 = vsub.f32 %v4821, %v4919
        %v4921 = vand.u32 %v4920, 4294901760
        %v4922 = vsub.f32 %v4920, %v4921
        %v4923 = vand.u32 %v4922, 4294901760
        %4924 = vmatprep.subr.mxu0 %v4923
        %v4925 = vand.u32 %v4820, 4294901760
        %v4926 = vsub.f32 %v4820, %v4925
        %v4927 = vand.u32 %v4926, 4294901760
        %v4928 = vsub.f32 %v4926, %v4927
        %v4929 = vand.u32 %v4928, 4294901760
        %4930 = vmatpush1.msra.mxu0 %v4929
        %v4931 = vand.u32 %v4829, 4294901760
        %v4932 = vsub.f32 %v4829, %v4931
        %v4933 = vand.u32 %v4932, 4294901760
        %v4934 = vsub.f32 %v4932, %v4933
        %v4935 = vand.u32 %v4934, 4294901760
        %4936 = vmatprep.subr.mxu0 %v4935
        %v4937 = vand.u32 %v4828, 4294901760
        %v4938 = vsub.f32 %v4828, %v4937
        %v4939 = vand.u32 %v4938, 4294901760
        %v4940 = vsub.f32 %v4938, %v4939
        %v4941 = vand.u32 %v4940, 4294901760
        %4942 = vmatpush1.msra.mxu0 %v4941
        %4943 = vmatprep.subr.mxu0 0.0
        %4944 = vmatpush1.msra.mxu0 0.0
        %4945 = vmatprep.subr.mxu0 0.0
        %4946 = vmatpush1.msra.mxu0 0.0
        %4947 = vmatprep.subr.mxu0 0.0
        %4948 = vmatpush1.msra.mxu0 0.0
        %4949 = vmatprep.subr.mxu0 0.0
        %4950 = vmatpush1.msra.mxu0 0.0
        %4951 = vmatprep.subr.mxu0 0.0
        %4952 = vmatpush1.msra.mxu0 0.0
        %4953 = vmatprep.subr.mxu0 0.0
        %4954 = vmatpush1.msra.mxu0 0.0
        %4955 = vmatprep.subr.mxu0 0.0
        %4956 = vmatpush1.msra.mxu0 0.0
        %4957 = vmatprep.subr.mxu0 0.0
        %4958 = vmatpush1.msra.mxu0 0.0
        %4959 = vmatprep.subr.mxu0 0.0
        %4960 = vmatpush1.msra.mxu0 0.0
        %4961 = vmatprep.subr.mxu0 0.0
        %4962 = vmatpush1.msra.mxu0 0.0
        %4963 = vmatprep.subr.mxu0 0.0
        %4964 = vmatpush1.msra.mxu0 0.0
        %4965 = vmatprep.subr.mxu0 0.0
        %4966 = vmatpush1.msra.mxu0 0.0
        %4967 = vmatprep.subr.mxu0 0.0
        %4968 = vmatpush1.msra.mxu0 0.0
        %4969 = vmatprep.subr.mxu0 0.0
        %4970 = vmatpush1.msra.mxu0 0.0
        %4971 = vmatprep.subr.mxu0 0.0
        %4972 = vmatpush1.msra.mxu0 0.0
        %4973 = vmatprep.subr.mxu0 0.0
        %4974 = vmatpush1.msra.mxu0 0.0
        %4975 = vmatprep.subr.mxu0 0.0
        %4976 = vmatpush1.msra.mxu0 0.0
        %4977 = vmatprep.subr.mxu0 0.0
        %4978 = vmatpush1.msra.mxu0 0.0
        %4979 = vmatprep.subr.mxu0 0.0
        %4980 = vmatpush1.msra.mxu0 0.0
        %4981 = vmatprep.subr.mxu0 0.0
        %4982 = vmatpush1.msra.mxu0 0.0
        %4983 = vmatprep.subr.mxu0 0.0
        %4984 = vmatpush1.msra.mxu0 0.0
        %4985 = vmatprep.subr.mxu0 0.0
        %4986 = vmatpush1.msra.mxu0 0.0
        %4987 = vmatprep.subr.mxu0 0.0
        %4988 = vmatpush1.msra.mxu0 0.0
        %4989 = vmatprep.subr.mxu0 0.0
        %4990 = vmatpush1.msra.mxu0 0.0
        %4991 = vmatprep.subr.mxu0 0.0
        %4992 = vmatpush1.msra.mxu0 0.0
        %4993 = vmatprep.subr.mxu0 0.0
        %4994 = vmatpush1.msra.mxu0 0.0
        %4995 = vmatprep.subr.mxu0 0.0
        %4996 = vmatpush1.msra.mxu0 0.0
        %4997 = vmatprep.subr.mxu0 0.0
        %4998 = vmatpush1.msra.mxu0 0.0
        %4999 = vmatprep.subr.mxu0 0.0
        %5000 = vmatpush1.msra.mxu0 0.0
        %5001 = vmatprep.subr.mxu0 0.0
        %5002 = vmatpush1.msra.mxu0 0.0
        %5003 = vmatprep.mubr.f32.mxu0 0.0
        %v5004 = vand.u32 %v4837, 4294901760
        %5005 = vmatmul.mubr.f32.gmra.mrb[0].mxu0 %v5004
        %v5006 = vpop.f32.mrb[0].mxu0
        %v5007 = vadd.f32 %v4915, %v5006
        %v5008 = vpop.f32.mrb[0].mxu0
        %v5009 = vadd.f32 %v4917, %v5008
        %5010 = vdwg.mxu0
        %v5011 = vand.u32 %v4821, 4294901760
        %v5012 = vsub.f32 %v4821, %v5011
        %5013 = vmatprep.subr.mxu0 %v5012
        %v5014 = vand.u32 %v4820, 4294901760
        %v5015 = vsub.f32 %v4820, %v5014
        %5016 = vmatpush1.msra.mxu0 %v5015
        %v5017 = vand.u32 %v4829, 4294901760
        %v5018 = vsub.f32 %v4829, %v5017
        %5019 = vmatprep.subr.mxu0 %v5018
        %v5020 = vand.u32 %v4828, 4294901760
        %v5021 = vsub.f32 %v4828, %v5020
        %5022 = vmatpush1.msra.mxu0 %v5021
        %5023 = vmatprep.subr.mxu0 0.0
        %5024 = vmatpush1.msra.mxu0 0.0
        %5025 = vmatprep.subr.mxu0 0.0
        %5026 = vmatpush1.msra.mxu0 0.0
        %5027 = vmatprep.subr.mxu0 0.0
        %5028 = vmatpush1.msra.mxu0 0.0
        %5029 = vmatprep.subr.mxu0 0.0
        %5030 = vmatpush1.msra.mxu0 0.0
        %5031 = vmatprep.subr.mxu0 0.0
        %5032 = vmatpush1.msra.mxu0 0.0
        %5033 = vmatprep.subr.mxu0 0.0
        %5034 = vmatpush1.msra.mxu0 0.0
        %5035 = vmatprep.subr.mxu0 0.0
        %5036 = vmatpush1.msra.mxu0 0.0
        %5037 = vmatprep.subr.mxu0 0.0
        %5038 = vmatpush1.msra.mxu0 0.0
        %5039 = vmatprep.subr.mxu0 0.0
        %5040 = vmatpush1.msra.mxu0 0.0
        %5041 = vmatprep.subr.mxu0 0.0
        %5042 = vmatpush1.msra.mxu0 0.0
        %5043 = vmatprep.subr.mxu0 0.0
        %5044 = vmatpush1.msra.mxu0 0.0
        %5045 = vmatprep.subr.mxu0 0.0
        %5046 = vmatpush1.msra.mxu0 0.0
        %5047 = vmatprep.subr.mxu0 0.0
        %5048 = vmatpush1.msra.mxu0 0.0
        %5049 = vmatprep.subr.mxu0 0.0
        %5050 = vmatpush1.msra.mxu0 0.0
        %5051 = vmatprep.subr.mxu0 0.0
        %5052 = vmatpush1.msra.mxu0 0.0
        %5053 = vmatprep.subr.mxu0 0.0
        %5054 = vmatpush1.msra.mxu0 0.0
        %5055 = vmatprep.subr.mxu0 0.0
        %5056 = vmatpush1.msra.mxu0 0.0
        %5057 = vmatprep.subr.mxu0 0.0
        %5058 = vmatpush1.msra.mxu0 0.0
        %5059 = vmatprep.subr.mxu0 0.0
        %5060 = vmatpush1.msra.mxu0 0.0
        %5061 = vmatprep.subr.mxu0 0.0
        %5062 = vmatpush1.msra.mxu0 0.0
        %5063 = vmatprep.subr.mxu0 0.0
        %5064 = vmatpush1.msra.mxu0 0.0
        %5065 = vmatprep.subr.mxu0 0.0
        %5066 = vmatpush1.msra.mxu0 0.0
        %5067 = vmatprep.subr.mxu0 0.0
        %5068 = vmatpush1.msra.mxu0 0.0
        %5069 = vmatprep.subr.mxu0 0.0
        %5070 = vmatpush1.msra.mxu0 0.0
        %5071 = vmatprep.subr.mxu0 0.0
        %5072 = vmatpush1.msra.mxu0 0.0
        %5073 = vmatprep.subr.mxu0 0.0
        %5074 = vmatpush1.msra.mxu0 0.0
        %5075 = vmatprep.subr.mxu0 0.0
        %5076 = vmatpush1.msra.mxu0 0.0
        %5077 = vmatprep.subr.mxu0 0.0
        %5078 = vmatpush1.msra.mxu0 0.0
        %5079 = vmatprep.subr.mxu0 0.0
        %5080 = vmatpush1.msra.mxu0 0.0
        %5081 = vmatprep.subr.mxu0 0.0
        %5082 = vmatpush1.msra.mxu0 0.0
        %5083 = vmatprep.mubr.f32.mxu0 0.0
        %v5084 = vand.u32 %v4837, 4294901760
        %v5085 = vsub.f32 %v4837, %v5084
        %5086 = vmatmul.mubr.f32.gmra.mrb[0].mxu0 %v5085
        %v5087 = vpop.f32.mrb[0].mxu0
        %v5088 = vadd.f32 %v5007, %v5087
        %v5089 = vpop.f32.mrb[0].mxu0
        %v5090 = vadd.f32 %v5009, %v5089
        %5091 = vdwg.mxu0
        %v5092 = vand.u32 %v4821, 4294901760
        %5093 = vmatprep.subr.mxu0 %v5092
        %v5094 = vand.u32 %v4820, 4294901760
        %5095 = vmatpush1.msra.mxu0 %v5094
        %v5096 = vand.u32 %v4829, 4294901760
        %5097 = vmatprep.subr.mxu0 %v5096
        %v5098 = vand.u32 %v4828, 4294901760
        %5099 = vmatpush1.msra.mxu0 %v5098
        %5100 = vmatprep.subr.mxu0 0.0
        %5101 = vmatpush1.msra.mxu0 0.0
        %5102 = vmatprep.subr.mxu0 0.0
        %5103 = vmatpush1.msra.mxu0 0.0
        %5104 = vmatprep.subr.mxu0 0.0
        %5105 = vmatpush1.msra.mxu0 0.0
        %5106 = vmatprep.subr.mxu0 0.0
        %5107 = vmatpush1.msra.mxu0 0.0
        %5108 = vmatprep.subr.mxu0 0.0
        %5109 = vmatpush1.msra.mxu0 0.0
        %5110 = vmatprep.subr.mxu0 0.0
        %5111 = vmatpush1.msra.mxu0 0.0
        %5112 = vmatprep.subr.mxu0 0.0
        %5113 = vmatpush1.msra.mxu0 0.0
        %5114 = vmatprep.subr.mxu0 0.0
        %5115 = vmatpush1.msra.mxu0 0.0
        %5116 = vmatprep.subr.mxu0 0.0
        %5117 = vmatpush1.msra.mxu0 0.0
        %5118 = vmatprep.subr.mxu0 0.0
        %5119 = vmatpush1.msra.mxu0 0.0
        %5120 = vmatprep.subr.mxu0 0.0
        %5121 = vmatpush1.msra.mxu0 0.0
        %5122 = vmatprep.subr.mxu0 0.0
        %5123 = vmatpush1.msra.mxu0 0.0
        %5124 = vmatprep.subr.mxu0 0.0
        %5125 = vmatpush1.msra.mxu0 0.0
        %5126 = vmatprep.subr.mxu0 0.0
        %5127 = vmatpush1.msra.mxu0 0.0
        %5128 = vmatprep.subr.mxu0 0.0
        %5129 = vmatpush1.msra.mxu0 0.0
        %5130 = vmatprep.subr.mxu0 0.0
        %5131 = vmatpush1.msra.mxu0 0.0
        %5132 = vmatprep.subr.mxu0 0.0
        %5133 = vmatpush1.msra.mxu0 0.0
        %5134 = vmatprep.subr.mxu0 0.0
        %5135 = vmatpush1.msra.mxu0 0.0
        %5136 = vmatprep.subr.mxu0 0.0
        %5137 = vmatpush1.msra.mxu0 0.0
        %5138 = vmatprep.subr.mxu0 0.0
        %5139 = vmatpush1.msra.mxu0 0.0
        %5140 = vmatprep.subr.mxu0 0.0
        %5141 = vmatpush1.msra.mxu0 0.0
        %5142 = vmatprep.subr.mxu0 0.0
        %5143 = vmatpush1.msra.mxu0 0.0
        %5144 = vmatprep.subr.mxu0 0.0
        %5145 = vmatpush1.msra.mxu0 0.0
        %5146 = vmatprep.subr.mxu0 0.0
        %5147 = vmatpush1.msra.mxu0 0.0
        %5148 = vmatprep.subr.mxu0 0.0
        %5149 = vmatpush1.msra.mxu0 0.0
        %5150 = vmatprep.subr.mxu0 0.0
        %5151 = vmatpush1.msra.mxu0 0.0
        %5152 = vmatprep.subr.mxu0 0.0
        %5153 = vmatpush1.msra.mxu0 0.0
        %5154 = vmatprep.subr.mxu0 0.0
        %5155 = vmatpush1.msra.mxu0 0.0
        %5156 = vmatprep.subr.mxu0 0.0
        %5157 = vmatpush1.msra.mxu0 0.0
        %5158 = vmatprep.subr.mxu0 0.0
        %5159 = vmatpush1.msra.mxu0 0.0
        %5160 = vmatprep.mubr.f32.mxu0 0.0
        %v5161 = vand.u32 %v4837, 4294901760
        %v5162 = vsub.f32 %v4837, %v5161
        %v5163 = vand.u32 %v5162, 4294901760
        %5164 = vmatmul.mubr.f32.gmra.mrb[0].mxu0 %v5163
        %v5165 = vpop.f32.mrb[0].mxu0
        %v5166 = vadd.f32 %v5088, %v5165
        %v5167 = vpop.f32.mrb[0].mxu0
        %v5168 = vadd.f32 %v5090, %v5167
        %5169 = vdwg.mxu0
        %v5170 = vand.u32 %v4821, 4294901760
        %v5171 = vsub.f32 %v4821, %v5170
        %v5172 = vand.u32 %v5171, 4294901760
        %5173 = vmatprep.subr.mxu0 %v5172
        %v5174 = vand.u32 %v4820, 4294901760
        %v5175 = vsub.f32 %v4820, %v5174
        %v5176 = vand.u32 %v5175, 4294901760
        %5177 = vmatpush1.msra.mxu0 %v5176
        %v5178 = vand.u32 %v4829, 4294901760
        %v5179 = vsub.f32 %v4829, %v5178
        %v5180 = vand.u32 %v5179, 4294901760
        %5181 = vmatprep.subr.mxu0 %v5180
        %v5182 = vand.u32 %v4828, 4294901760
        %v5183 = vsub.f32 %v4828, %v5182
        %v5184 = vand.u32 %v5183, 4294901760
        %5185 = vmatpush1.msra.mxu0 %v5184
        %5186 = vmatprep.subr.mxu0 0.0
        %5187 = vmatpush1.msra.mxu0 0.0
        %5188 = vmatprep.subr.mxu0 0.0
        %5189 = vmatpush1.msra.mxu0 0.0
        %5190 = vmatprep.subr.mxu0 0.0
        %5191 = vmatpush1.msra.mxu0 0.0
        %5192 = vmatprep.subr.mxu0 0.0
        %5193 = vmatpush1.msra.mxu0 0.0
        %5194 = vmatprep.subr.mxu0 0.0
        %5195 = vmatpush1.msra.mxu0 0.0
        %5196 = vmatprep.subr.mxu0 0.0
        %5197 = vmatpush1.msra.mxu0 0.0
        %5198 = vmatprep.subr.mxu0 0.0
        %5199 = vmatpush1.msra.mxu0 0.0
        %5200 = vmatprep.subr.mxu0 0.0
        %5201 = vmatpush1.msra.mxu0 0.0
        %5202 = vmatprep.subr.mxu0 0.0
        %5203 = vmatpush1.msra.mxu0 0.0
        %5204 = vmatprep.subr.mxu0 0.0
        %5205 = vmatpush1.msra.mxu0 0.0
        %5206 = vmatprep.subr.mxu0 0.0
        %5207 = vmatpush1.msra.mxu0 0.0
        %5208 = vmatprep.subr.mxu0 0.0
        %5209 = vmatpush1.msra.mxu0 0.0
        %5210 = vmatprep.subr.mxu0 0.0
        %5211 = vmatpush1.msra.mxu0 0.0
        %5212 = vmatprep.subr.mxu0 0.0
        %5213 = vmatpush1.msra.mxu0 0.0
        %5214 = vmatprep.subr.mxu0 0.0
        %5215 = vmatpush1.msra.mxu0 0.0
        %5216 = vmatprep.subr.mxu0 0.0
        %5217 = vmatpush1.msra.mxu0 0.0
        %5218 = vmatprep.subr.mxu0 0.0
        %5219 = vmatpush1.msra.mxu0 0.0
        %5220 = vmatprep.subr.mxu0 0.0
        %5221 = vmatpush1.msra.mxu0 0.0
        %5222 = vmatprep.subr.mxu0 0.0
        %5223 = vmatpush1.msra.mxu0 0.0
        %5224 = vmatprep.subr.mxu0 0.0
        %5225 = vmatpush1.msra.mxu0 0.0
        %5226 = vmatprep.subr.mxu0 0.0
        %5227 = vmatpush1.msra.mxu0 0.0
        %5228 = vmatprep.subr.mxu0 0.0
        %5229 = vmatpush1.msra.mxu0 0.0
        %5230 = vmatprep.subr.mxu0 0.0
        %5231 = vmatpush1.msra.mxu0 0.0
        %5232 = vmatprep.subr.mxu0 0.0
        %5233 = vmatpush1.msra.mxu0 0.0
        %5234 = vmatprep.subr.mxu0 0.0
        %5235 = vmatpush1.msra.mxu0 0.0
        %5236 = vmatprep.subr.mxu0 0.0
        %5237 = vmatpush1.msra.mxu0 0.0
        %5238 = vmatprep.subr.mxu0 0.0
        %5239 = vmatpush1.msra.mxu0 0.0
        %5240 = vmatprep.subr.mxu0 0.0
        %5241 = vmatpush1.msra.mxu0 0.0
        %5242 = vmatprep.subr.mxu0 0.0
        %5243 = vmatpush1.msra.mxu0 0.0
        %5244 = vmatprep.subr.mxu0 0.0
        %5245 = vmatpush1.msra.mxu0 0.0
        %5246 = vmatprep.mubr.f32.mxu0 0.0
        %v5247 = vand.u32 %v4837, 4294901760
        %5248 = vmatmul.mubr.f32.gmra.mrb[0].mxu0 %v5247
        %v5249 = vpop.f32.mrb[0].mxu0
        %v5250 = vadd.f32 %v5166, %v5249
        %v5251 = vpop.f32.mrb[0].mxu0
        %v5252 = vadd.f32 %v5168, %v5251
        %5253 = vdwg.mxu0
        %v5254 = vand.u32 %v4821, 4294901760
        %5255 = vmatprep.subr.mxu0 %v5254
        %v5256 = vand.u32 %v4820, 4294901760
        %5257 = vmatpush1.msra.mxu0 %v5256
        %v5258 = vand.u32 %v4829, 4294901760
        %5259 = vmatprep.subr.mxu0 %v5258
        %v5260 = vand.u32 %v4828, 4294901760
        %5261 = vmatpush1.msra.mxu0 %v5260
        %5262 = vmatprep.subr.mxu0 0.0
        %5263 = vmatpush1.msra.mxu0 0.0
        %5264 = vmatprep.subr.mxu0 0.0
        %5265 = vmatpush1.msra.mxu0 0.0
        %5266 = vmatprep.subr.mxu0 0.0
        %5267 = vmatpush1.msra.mxu0 0.0
        %5268 = vmatprep.subr.mxu0 0.0
        %5269 = vmatpush1.msra.mxu0 0.0
        %5270 = vmatprep.subr.mxu0 0.0
        %5271 = vmatpush1.msra.mxu0 0.0
        %5272 = vmatprep.subr.mxu0 0.0
        %5273 = vmatpush1.msra.mxu0 0.0
        %5274 = vmatprep.subr.mxu0 0.0
        %5275 = vmatpush1.msra.mxu0 0.0
        %5276 = vmatprep.subr.mxu0 0.0
        %5277 = vmatpush1.msra.mxu0 0.0
        %5278 = vmatprep.subr.mxu0 0.0
        %5279 = vmatpush1.msra.mxu0 0.0
        %5280 = vmatprep.subr.mxu0 0.0
        %5281 = vmatpush1.msra.mxu0 0.0
        %5282 = vmatprep.subr.mxu0 0.0
        %5283 = vmatpush1.msra.mxu0 0.0
        %5284 = vmatprep.subr.mxu0 0.0
        %5285 = vmatpush1.msra.mxu0 0.0
        %5286 = vmatprep.subr.mxu0 0.0
        %5287 = vmatpush1.msra.mxu0 0.0
        %5288 = vmatprep.subr.mxu0 0.0
        %5289 = vmatpush1.msra.mxu0 0.0
        %5290 = vmatprep.subr.mxu0 0.0
        %5291 = vmatpush1.msra.mxu0 0.0
        %5292 = vmatprep.subr.mxu0 0.0
        %5293 = vmatpush1.msra.mxu0 0.0
        %5294 = vmatprep.subr.mxu0 0.0
        %5295 = vmatpush1.msra.mxu0 0.0
        %5296 = vmatprep.subr.mxu0 0.0
        %5297 = vmatpush1.msra.mxu0 0.0
        %5298 = vmatprep.subr.mxu0 0.0
        %5299 = vmatpush1.msra.mxu0 0.0
        %5300 = vmatprep.subr.mxu0 0.0
        %5301 = vmatpush1.msra.mxu0 0.0
        %5302 = vmatprep.subr.mxu0 0.0
        %5303 = vmatpush1.msra.mxu0 0.0
        %5304 = vmatprep.subr.mxu0 0.0
        %5305 = vmatpush1.msra.mxu0 0.0
        %5306 = vmatprep.subr.mxu0 0.0
        %5307 = vmatpush1.msra.mxu0 0.0
        %5308 = vmatprep.subr.mxu0 0.0
        %5309 = vmatpush1.msra.mxu0 0.0
        %5310 = vmatprep.subr.mxu0 0.0
        %5311 = vmatpush1.msra.mxu0 0.0
        %5312 = vmatprep.subr.mxu0 0.0
        %5313 = vmatpush1.msra.mxu0 0.0
        %5314 = vmatprep.subr.mxu0 0.0
        %5315 = vmatpush1.msra.mxu0 0.0
        %5316 = vmatprep.subr.mxu0 0.0
        %5317 = vmatpush1.msra.mxu0 0.0
        %5318 = vmatprep.subr.mxu0 0.0
        %5319 = vmatpush1.msra.mxu0 0.0
        %5320 = vmatprep.subr.mxu0 0.0
        %5321 = vmatpush1.msra.mxu0 0.0
        %5322 = vmatprep.mubr.f32.mxu0 0.0
        %v5323 = vand.u32 %v4837, 4294901760
        %5324 = vmatmul.mubr.f32.gmra.mrb[0].mxu0 %v5323
        %v5325 = vpop.f32.mrb[0].mxu0
        %v5326 = vadd.f32 %v5250, %v5325
        %v5327 = vpop.f32.mrb[0].mxu0
        %v5328 = vadd.f32 %v5252, %v5327
        %5329 = vdwg.mxu0
        %v5330 = vand.u32 %v4823, 4294901760
        %5331 = vmatprep.subr.mxu0 %v5330
        %v5332 = vand.u32 %v4822, 4294901760
        %5333 = vmatpush1.msra.mxu0 %v5332
        %v5334 = vand.u32 %v4831, 4294901760
        %5335 = vmatprep.subr.mxu0 %v5334
        %v5336 = vand.u32 %v4830, 4294901760
        %5337 = vmatpush1.msra.mxu0 %v5336
        %5338 = vmatprep.subr.mxu0 0.0
        %5339 = vmatpush1.msra.mxu0 0.0
        %5340 = vmatprep.subr.mxu0 0.0
        %5341 = vmatpush1.msra.mxu0 0.0
        %5342 = vmatprep.subr.mxu0 0.0
        %5343 = vmatpush1.msra.mxu0 0.0
        %5344 = vmatprep.subr.mxu0 0.0
        %5345 = vmatpush1.msra.mxu0 0.0
        %5346 = vmatprep.subr.mxu0 0.0
        %5347 = vmatpush1.msra.mxu0 0.0
        %5348 = vmatprep.subr.mxu0 0.0
        %5349 = vmatpush1.msra.mxu0 0.0
        %5350 = vmatprep.subr.mxu0 0.0
        %5351 = vmatpush1.msra.mxu0 0.0
        %5352 = vmatprep.subr.mxu0 0.0
        %5353 = vmatpush1.msra.mxu0 0.0
        %5354 = vmatprep.subr.mxu0 0.0
        %5355 = vmatpush1.msra.mxu0 0.0
        %5356 = vmatprep.subr.mxu0 0.0
        %5357 = vmatpush1.msra.mxu0 0.0
        %5358 = vmatprep.subr.mxu0 0.0
        %5359 = vmatpush1.msra.mxu0 0.0
        %5360 = vmatprep.subr.mxu0 0.0
        %5361 = vmatpush1.msra.mxu0 0.0
        %5362 = vmatprep.subr.mxu0 0.0
        %5363 = vmatpush1.msra.mxu0 0.0
        %5364 = vmatprep.subr.mxu0 0.0
        %5365 = vmatpush1.msra.mxu0 0.0
        %5366 = vmatprep.subr.mxu0 0.0
        %5367 = vmatpush1.msra.mxu0 0.0
        %5368 = vmatprep.subr.mxu0 0.0
        %5369 = vmatpush1.msra.mxu0 0.0
        %5370 = vmatprep.subr.mxu0 0.0
        %5371 = vmatpush1.msra.mxu0 0.0
        %5372 = vmatprep.subr.mxu0 0.0
        %5373 = vmatpush1.msra.mxu0 0.0
        %5374 = vmatprep.subr.mxu0 0.0
        %5375 = vmatpush1.msra.mxu0 0.0
        %5376 = vmatprep.subr.mxu0 0.0
        %5377 = vmatpush1.msra.mxu0 0.0
        %5378 = vmatprep.subr.mxu0 0.0
        %5379 = vmatpush1.msra.mxu0 0.0
        %5380 = vmatprep.subr.mxu0 0.0
        %5381 = vmatpush1.msra.mxu0 0.0
        %5382 = vmatprep.subr.mxu0 0.0
        %5383 = vmatpush1.msra.mxu0 0.0
        %5384 = vmatprep.subr.mxu0 0.0
        %5385 = vmatpush1.msra.mxu0 0.0
        %5386 = vmatprep.subr.mxu0 0.0
        %5387 = vmatpush1.msra.mxu0 0.0
        %5388 = vmatprep.subr.mxu0 0.0
        %5389 = vmatpush1.msra.mxu0 0.0
        %5390 = vmatprep.subr.mxu0 0.0
        %5391 = vmatpush1.msra.mxu0 0.0
        %5392 = vmatprep.subr.mxu0 0.0
        %5393 = vmatpush1.msra.mxu0 0.0
        %5394 = vmatprep.subr.mxu0 0.0
        %5395 = vmatpush1.msra.mxu0 0.0
        %5396 = vmatprep.subr.mxu0 0.0
        %5397 = vmatpush1.msra.mxu0 0.0
        %5398 = vmatprep.mubr.f32.mxu0 0.0
        %v5399 = vand.u32 %v4837, 4294901760
        %v5400 = vsub.f32 %v4837, %v5399
        %v5401 = vand.u32 %v5400, 4294901760
        %v5402 = vsub.f32 %v5400, %v5401
        %v5403 = vand.u32 %v5402, 4294901760
        %5404 = vmatmul.mubr.f32.gmra.mrb[0].mxu0 %v5403
        %v5405 = vpop.f32.mrb[0].mxu0
        %v5406 = vadd.f32 0.0, %v5405
        %v5407 = vpop.f32.mrb[0].mxu0
        %v5408 = vadd.f32 0.0, %v5407
        %5409 = vdwg.mxu0
        %v5410 = vand.u32 %v4823, 4294901760
        %v5411 = vsub.f32 %v4823, %v5410
        %v5412 = vand.u32 %v5411, 4294901760
        %v5413 = vsub.f32 %v5411, %v5412
        %v5414 = vand.u32 %v5413, 4294901760
        %5415 = vmatprep.subr.mxu0 %v5414
        %v5416 = vand.u32 %v4822, 4294901760
        %v5417 = vsub.f32 %v4822, %v5416
        %v5418 = vand.u32 %v5417, 4294901760
        %v5419 = vsub.f32 %v5417, %v5418
        %v5420 = vand.u32 %v5419, 4294901760
        %5421 = vmatpush1.msra.mxu0 %v5420
        %v5422 = vand.u32 %v4831, 4294901760
        %v5423 = vsub.f32 %v4831, %v5422
        %v5424 = vand.u32 %v5423, 4294901760
        %v5425 = vsub.f32 %v5423, %v5424
        %v5426 = vand.u32 %v5425, 4294901760
        %5427 = vmatprep.subr.mxu0 %v5426
        %v5428 = vand.u32 %v4830, 4294901760
        %v5429 = vsub.f32 %v4830, %v5428
        %v5430 = vand.u32 %v5429, 4294901760
        %v5431 = vsub.f32 %v5429, %v5430
        %v5432 = vand.u32 %v5431, 4294901760
        %5433 = vmatpush1.msra.mxu0 %v5432
        %5434 = vmatprep.subr.mxu0 0.0
        %5435 = vmatpush1.msra.mxu0 0.0
        %5436 = vmatprep.subr.mxu0 0.0
        %5437 = vmatpush1.msra.mxu0 0.0
        %5438 = vmatprep.subr.mxu0 0.0
        %5439 = vmatpush1.msra.mxu0 0.0
        %5440 = vmatprep.subr.mxu0 0.0
        %5441 = vmatpush1.msra.mxu0 0.0
        %5442 = vmatprep.subr.mxu0 0.0
        %5443 = vmatpush1.msra.mxu0 0.0
        %5444 = vmatprep.subr.mxu0 0.0
        %5445 = vmatpush1.msra.mxu0 0.0
        %5446 = vmatprep.subr.mxu0 0.0
        %5447 = vmatpush1.msra.mxu0 0.0
        %5448 = vmatprep.subr.mxu0 0.0
        %5449 = vmatpush1.msra.mxu0 0.0
        %5450 = vmatprep.subr.mxu0 0.0
        %5451 = vmatpush1.msra.mxu0 0.0
        %5452 = vmatprep.subr.mxu0 0.0
        %5453 = vmatpush1.msra.mxu0 0.0
        %5454 = vmatprep.subr.mxu0 0.0
        %5455 = vmatpush1.msra.mxu0 0.0
        %5456 = vmatprep.subr.mxu0 0.0
        %5457 = vmatpush1.msra.mxu0 0.0
        %5458 = vmatprep.subr.mxu0 0.0
        %5459 = vmatpush1.msra.mxu0 0.0
        %5460 = vmatprep.subr.mxu0 0.0
        %5461 = vmatpush1.msra.mxu0 0.0
        %5462 = vmatprep.subr.mxu0 0.0
        %5463 = vmatpush1.msra.mxu0 0.0
        %5464 = vmatprep.subr.mxu0 0.0
        %5465 = vmatpush1.msra.mxu0 0.0
        %5466 = vmatprep.subr.mxu0 0.0
        %5467 = vmatpush1.msra.mxu0 0.0
        %5468 = vmatprep.subr.mxu0 0.0
        %5469 = vmatpush1.msra.mxu0 0.0
        %5470 = vmatprep.subr.mxu0 0.0
        %5471 = vmatpush1.msra.mxu0 0.0
        %5472 = vmatprep.subr.mxu0 0.0
        %5473 = vmatpush1.msra.mxu0 0.0
        %5474 = vmatprep.subr.mxu0 0.0
        %5475 = vmatpush1.msra.mxu0 0.0
        %5476 = vmatprep.subr.mxu0 0.0
        %5477 = vmatpush1.msra.mxu0 0.0
        %5478 = vmatprep.subr.mxu0 0.0
        %5479 = vmatpush1.msra.mxu0 0.0
        %5480 = vmatprep.subr.mxu0 0.0
        %5481 = vmatpush1.msra.mxu0 0.0
        %5482 = vmatprep.subr.mxu0 0.0
        %5483 = vmatpush1.msra.mxu0 0.0
        %5484 = vmatprep.subr.mxu0 0.0
        %5485 = vmatpush1.msra.mxu0 0.0
        %5486 = vmatprep.subr.mxu0 0.0
        %5487 = vmatpush1.msra.mxu0 0.0
        %5488 = vmatprep.subr.mxu0 0.0
        %5489 = vmatpush1.msra.mxu0 0.0
        %5490 = vmatprep.subr.mxu0 0.0
        %5491 = vmatpush1.msra.mxu0 0.0
        %5492 = vmatprep.subr.mxu0 0.0
        %5493 = vmatpush1.msra.mxu0 0.0
        %5494 = vmatprep.mubr.f32.mxu0 0.0
        %v5495 = vand.u32 %v4837, 4294901760
        %5496 = vmatmul.mubr.f32.gmra.mrb[0].mxu0 %v5495
        %v5497 = vpop.f32.mrb[0].mxu0
        %v5498 = vadd.f32 %v5406, %v5497
        %v5499 = vpop.f32.mrb[0].mxu0
        %v5500 = vadd.f32 %v5408, %v5499
        %5501 = vdwg.mxu0
        %v5502 = vand.u32 %v4823, 4294901760
        %v5503 = vsub.f32 %v4823, %v5502
        %5504 = vmatprep.subr.mxu0 %v5503
        %v5505 = vand.u32 %v4822, 4294901760
        %v5506 = vsub.f32 %v4822, %v5505
        %5507 = vmatpush1.msra.mxu0 %v5506
        %v5508 = vand.u32 %v4831, 4294901760
        %v5509 = vsub.f32 %v4831, %v5508
        %5510 = vmatprep.subr.mxu0 %v5509
        %v5511 = vand.u32 %v4830, 4294901760
        %v5512 = vsub.f32 %v4830, %v5511
        %5513 = vmatpush1.msra.mxu0 %v5512
        %5514 = vmatprep.subr.mxu0 0.0
        %5515 = vmatpush1.msra.mxu0 0.0
        %5516 = vmatprep.subr.mxu0 0.0
        %5517 = vmatpush1.msra.mxu0 0.0
        %5518 = vmatprep.subr.mxu0 0.0
        %5519 = vmatpush1.msra.mxu0 0.0
        %5520 = vmatprep.subr.mxu0 0.0
        %5521 = vmatpush1.msra.mxu0 0.0
        %5522 = vmatprep.subr.mxu0 0.0
        %5523 = vmatpush1.msra.mxu0 0.0
        %5524 = vmatprep.subr.mxu0 0.0
        %5525 = vmatpush1.msra.mxu0 0.0
        %5526 = vmatprep.subr.mxu0 0.0
        %5527 = vmatpush1.msra.mxu0 0.0
        %5528 = vmatprep.subr.mxu0 0.0
        %5529 = vmatpush1.msra.mxu0 0.0
        %5530 = vmatprep.subr.mxu0 0.0
        %5531 = vmatpush1.msra.mxu0 0.0
        %5532 = vmatprep.subr.mxu0 0.0
        %5533 = vmatpush1.msra.mxu0 0.0
        %5534 = vmatprep.subr.mxu0 0.0
        %5535 = vmatpush1.msra.mxu0 0.0
        %5536 = vmatprep.subr.mxu0 0.0
        %5537 = vmatpush1.msra.mxu0 0.0
        %5538 = vmatprep.subr.mxu0 0.0
        %5539 = vmatpush1.msra.mxu0 0.0
        %5540 = vmatprep.subr.mxu0 0.0
        %5541 = vmatpush1.msra.mxu0 0.0
        %5542 = vmatprep.subr.mxu0 0.0
        %5543 = vmatpush1.msra.mxu0 0.0
        %5544 = vmatprep.subr.mxu0 0.0
        %5545 = vmatpush1.msra.mxu0 0.0
        %5546 = vmatprep.subr.mxu0 0.0
        %5547 = vmatpush1.msra.mxu0 0.0
        %5548 = vmatprep.subr.mxu0 0.0
        %5549 = vmatpush1.msra.mxu0 0.0
        %5550 = vmatprep.subr.mxu0 0.0
        %5551 = vmatpush1.msra.mxu0 0.0
        %5552 = vmatprep.subr.mxu0 0.0
        %5553 = vmatpush1.msra.mxu0 0.0
        %5554 = vmatprep.subr.mxu0 0.0
        %5555 = vmatpush1.msra.mxu0 0.0
        %5556 = vmatprep.subr.mxu0 0.0
        %5557 = vmatpush1.msra.mxu0 0.0
        %5558 = vmatprep.subr.mxu0 0.0
        %5559 = vmatpush1.msra.mxu0 0.0
        %5560 = vmatprep.subr.mxu0 0.0
        %5561 = vmatpush1.msra.mxu0 0.0
        %5562 = vmatprep.subr.mxu0 0.0
        %5563 = vmatpush1.msra.mxu0 0.0
        %5564 = vmatprep.subr.mxu0 0.0
        %5565 = vmatpush1.msra.mxu0 0.0
        %5566 = vmatprep.subr.mxu0 0.0
        %5567 = vmatpush1.msra.mxu0 0.0
        %5568 = vmatprep.subr.mxu0 0.0
        %5569 = vmatpush1.msra.mxu0 0.0
        %5570 = vmatprep.subr.mxu0 0.0
        %5571 = vmatpush1.msra.mxu0 0.0
        %5572 = vmatprep.subr.mxu0 0.0
        %5573 = vmatpush1.msra.mxu0 0.0
        %5574 = vmatprep.mubr.f32.mxu0 0.0
        %v5575 = vand.u32 %v4837, 4294901760
        %v5576 = vsub.f32 %v4837, %v5575
        %5577 = vmatmul.mubr.f32.gmra.mrb[0].mxu0 %v5576
        %v5578 = vpop.f32.mrb[0].mxu0
        %v5579 = vadd.f32 %v5498, %v5578
        %v5580 = vpop.f32.mrb[0].mxu0
        %v5581 = vadd.f32 %v5500, %v5580
        %5582 = vdwg.mxu0
        %v5583 = vand.u32 %v4823, 4294901760
        %5584 = vmatprep.subr.mxu0 %v5583
        %v5585 = vand.u32 %v4822, 4294901760
        %5586 = vmatpush1.msra.mxu0 %v5585
        %v5587 = vand.u32 %v4831, 4294901760
        %5588 = vmatprep.subr.mxu0 %v5587
        %v5589 = vand.u32 %v4830, 4294901760
        %5590 = vmatpush1.msra.mxu0 %v5589
        %5591 = vmatprep.subr.mxu0 0.0
        %5592 = vmatpush1.msra.mxu0 0.0
        %5593 = vmatprep.subr.mxu0 0.0
        %5594 = vmatpush1.msra.mxu0 0.0
        %5595 = vmatprep.subr.mxu0 0.0
        %5596 = vmatpush1.msra.mxu0 0.0
        %5597 = vmatprep.subr.mxu0 0.0
        %5598 = vmatpush1.msra.mxu0 0.0
        %5599 = vmatprep.subr.mxu0 0.0
        %5600 = vmatpush1.msra.mxu0 0.0
        %5601 = vmatprep.subr.mxu0 0.0
        %5602 = vmatpush1.msra.mxu0 0.0
        %5603 = vmatprep.subr.mxu0 0.0
        %5604 = vmatpush1.msra.mxu0 0.0
        %5605 = vmatprep.subr.mxu0 0.0
        %5606 = vmatpush1.msra.mxu0 0.0
        %5607 = vmatprep.subr.mxu0 0.0
        %5608 = vmatpush1.msra.mxu0 0.0
        %5609 = vmatprep.subr.mxu0 0.0
        %5610 = vmatpush1.msra.mxu0 0.0
        %5611 = vmatprep.subr.mxu0 0.0
        %5612 = vmatpush1.msra.mxu0 0.0
        %5613 = vmatprep.subr.mxu0 0.0
        %5614 = vmatpush1.msra.mxu0 0.0
        %5615 = vmatprep.subr.mxu0 0.0
        %5616 = vmatpush1.msra.mxu0 0.0
        %5617 = vmatprep.subr.mxu0 0.0
        %5618 = vmatpush1.msra.mxu0 0.0
        %5619 = vmatprep.subr.mxu0 0.0
        %5620 = vmatpush1.msra.mxu0 0.0
        %5621 = vmatprep.subr.mxu0 0.0
        %5622 = vmatpush1.msra.mxu0 0.0
        %5623 = vmatprep.subr.mxu0 0.0
        %5624 = vmatpush1.msra.mxu0 0.0
        %5625 = vmatprep.subr.mxu0 0.0
        %5626 = vmatpush1.msra.mxu0 0.0
        %5627 = vmatprep.subr.mxu0 0.0
        %5628 = vmatpush1.msra.mxu0 0.0
        %5629 = vmatprep.subr.mxu0 0.0
        %5630 = vmatpush1.msra.mxu0 0.0
        %5631 = vmatprep.subr.mxu0 0.0
        %5632 = vmatpush1.msra.mxu0 0.0
        %5633 = vmatprep.subr.mxu0 0.0
        %5634 = vmatpush1.msra.mxu0 0.0
        %5635 = vmatprep.subr.mxu0 0.0
        %5636 = vmatpush1.msra.mxu0 0.0
        %5637 = vmatprep.subr.mxu0 0.0
        %5638 = vmatpush1.msra.mxu0 0.0
        %5639 = vmatprep.subr.mxu0 0.0
        %5640 = vmatpush1.msra.mxu0 0.0
        %5641 = vmatprep.subr.mxu0 0.0
        %5642 = vmatpush1.msra.mxu0 0.0
        %5643 = vmatprep.subr.mxu0 0.0
        %5644 = vmatpush1.msra.mxu0 0.0
        %5645 = vmatprep.subr.mxu0 0.0
        %5646 = vmatpush1.msra.mxu0 0.0
        %5647 = vmatprep.subr.mxu0 0.0
        %5648 = vmatpush1.msra.mxu0 0.0
        %5649 = vmatprep.subr.mxu0 0.0
        %5650 = vmatpush1.msra.mxu0 0.0
        %5651 = vmatprep.mubr.f32.mxu0 0.0
        %v5652 = vand.u32 %v4837, 4294901760
        %v5653 = vsub.f32 %v4837, %v5652
        %v5654 = vand.u32 %v5653, 4294901760
        %5655 = vmatmul.mubr.f32.gmra.mrb[0].mxu0 %v5654
        %v5656 = vpop.f32.mrb[0].mxu0
        %v5657 = vadd.f32 %v5579, %v5656
        %v5658 = vpop.f32.mrb[0].mxu0
        %v5659 = vadd.f32 %v5581, %v5658
        %5660 = vdwg.mxu0
        %v5661 = vand.u32 %v4823, 4294901760
        %v5662 = vsub.f32 %v4823, %v5661
        %v5663 = vand.u32 %v5662, 4294901760
        %5664 = vmatprep.subr.mxu0 %v5663
        %v5665 = vand.u32 %v4822, 4294901760
        %v5666 = vsub.f32 %v4822, %v5665
        %v5667 = vand.u32 %v5666, 4294901760
        %5668 = vmatpush1.msra.mxu0 %v5667
        %v5669 = vand.u32 %v4831, 4294901760
        %v5670 = vsub.f32 %v4831, %v5669
        %v5671 = vand.u32 %v5670, 4294901760
        %5672 = vmatprep.subr.mxu0 %v5671
        %v5673 = vand.u32 %v4830, 4294901760
        %v5674 = vsub.f32 %v4830, %v5673
        %v5675 = vand.u32 %v5674, 4294901760
        %5676 = vmatpush1.msra.mxu0 %v5675
        %5677 = vmatprep.subr.mxu0 0.0
        %5678 = vmatpush1.msra.mxu0 0.0
        %5679 = vmatprep.subr.mxu0 0.0
        %5680 = vmatpush1.msra.mxu0 0.0
        %5681 = vmatprep.subr.mxu0 0.0
        %5682 = vmatpush1.msra.mxu0 0.0
        %5683 = vmatprep.subr.mxu0 0.0
        %5684 = vmatpush1.msra.mxu0 0.0
        %5685 = vmatprep.subr.mxu0 0.0
        %5686 = vmatpush1.msra.mxu0 0.0
        %5687 = vmatprep.subr.mxu0 0.0
        %5688 = vmatpush1.msra.mxu0 0.0
        %5689 = vmatprep.subr.mxu0 0.0
        %5690 = vmatpush1.msra.mxu0 0.0
        %5691 = vmatprep.subr.mxu0 0.0
        %5692 = vmatpush1.msra.mxu0 0.0
        %5693 = vmatprep.subr.mxu0 0.0
        %5694 = vmatpush1.msra.mxu0 0.0
        %5695 = vmatprep.subr.mxu0 0.0
        %5696 = vmatpush1.msra.mxu0 0.0
        %5697 = vmatprep.subr.mxu0 0.0
        %5698 = vmatpush1.msra.mxu0 0.0
        %5699 = vmatprep.subr.mxu0 0.0
        %5700 = vmatpush1.msra.mxu0 0.0
        %5701 = vmatprep.subr.mxu0 0.0
        %5702 = vmatpush1.msra.mxu0 0.0
        %5703 = vmatprep.subr.mxu0 0.0
        %5704 = vmatpush1.msra.mxu0 0.0
        %5705 = vmatprep.subr.mxu0 0.0
        %5706 = vmatpush1.msra.mxu0 0.0
        %5707 = vmatprep.subr.mxu0 0.0
        %5708 = vmatpush1.msra.mxu0 0.0
        %5709 = vmatprep.subr.mxu0 0.0
        %5710 = vmatpush1.msra.mxu0 0.0
        %5711 = vmatprep.subr.mxu0 0.0
        %5712 = vmatpush1.msra.mxu0 0.0
        %5713 = vmatprep.subr.mxu0 0.0
        %5714 = vmatpush1.msra.mxu0 0.0
        %5715 = vmatprep.subr.mxu0 0.0
        %5716 = vmatpush1.msra.mxu0 0.0
        %5717 = vmatprep.subr.mxu0 0.0
        %5718 = vmatpush1.msra.mxu0 0.0
        %5719 = vmatprep.subr.mxu0 0.0
        %5720 = vmatpush1.msra.mxu0 0.0
        %5721 = vmatprep.subr.mxu0 0.0
        %5722 = vmatpush1.msra.mxu0 0.0
        %5723 = vmatprep.subr.mxu0 0.0
        %5724 = vmatpush1.msra.mxu0 0.0
        %5725 = vmatprep.subr.mxu0 0.0
        %5726 = vmatpush1.msra.mxu0 0.0
        %5727 = vmatprep.subr.mxu0 0.0
        %5728 = vmatpush1.msra.mxu0 0.0
        %5729 = vmatprep.subr.mxu0 0.0
        %5730 = vmatpush1.msra.mxu0 0.0
        %5731 = vmatprep.subr.mxu0 0.0
        %5732 = vmatpush1.msra.mxu0 0.0
        %5733 = vmatprep.subr.mxu0 0.0
        %5734 = vmatpush1.msra.mxu0 0.0
        %5735 = vmatprep.subr.mxu0 0.0
        %5736 = vmatpush1.msra.mxu0 0.0
        %5737 = vmatprep.mubr.f32.mxu0 0.0
        %v5738 = vand.u32 %v4837, 4294901760
        %5739 = vmatmul.mubr.f32.gmra.mrb[0].mxu0 %v5738
        %v5740 = vpop.f32.mrb[0].mxu0
        %v5741 = vadd.f32 %v5657, %v5740
        %v5742 = vpop.f32.mrb[0].mxu0
        %v5743 = vadd.f32 %v5659, %v5742
        %5744 = vdwg.mxu0
        %v5745 = vand.u32 %v4823, 4294901760
        %5746 = vmatprep.subr.mxu0 %v5745
        %v5747 = vand.u32 %v4822, 4294901760
        %5748 = vmatpush1.msra.mxu0 %v5747
        %v5749 = vand.u32 %v4831, 4294901760
        %5750 = vmatprep.subr.mxu0 %v5749
        %v5751 = vand.u32 %v4830, 4294901760
        %5752 = vmatpush1.msra.mxu0 %v5751
        %5753 = vmatprep.subr.mxu0 0.0
        %5754 = vmatpush1.msra.mxu0 0.0
        %5755 = vmatprep.subr.mxu0 0.0
        %5756 = vmatpush1.msra.mxu0 0.0
        %5757 = vmatprep.subr.mxu0 0.0
        %5758 = vmatpush1.msra.mxu0 0.0
        %5759 = vmatprep.subr.mxu0 0.0
        %5760 = vmatpush1.msra.mxu0 0.0
        %5761 = vmatprep.subr.mxu0 0.0
        %5762 = vmatpush1.msra.mxu0 0.0
        %5763 = vmatprep.subr.mxu0 0.0
        %5764 = vmatpush1.msra.mxu0 0.0
        %5765 = vmatprep.subr.mxu0 0.0
        %5766 = vmatpush1.msra.mxu0 0.0
        %5767 = vmatprep.subr.mxu0 0.0
        %5768 = vmatpush1.msra.mxu0 0.0
        %5769 = vmatprep.subr.mxu0 0.0
        %5770 = vmatpush1.msra.mxu0 0.0
        %5771 = vmatprep.subr.mxu0 0.0
        %5772 = vmatpush1.msra.mxu0 0.0
        %5773 = vmatprep.subr.mxu0 0.0
        %5774 = vmatpush1.msra.mxu0 0.0
        %5775 = vmatprep.subr.mxu0 0.0
        %5776 = vmatpush1.msra.mxu0 0.0
        %5777 = vmatprep.subr.mxu0 0.0
        %5778 = vmatpush1.msra.mxu0 0.0
        %5779 = vmatprep.subr.mxu0 0.0
        %5780 = vmatpush1.msra.mxu0 0.0
        %5781 = vmatprep.subr.mxu0 0.0
        %5782 = vmatpush1.msra.mxu0 0.0
        %5783 = vmatprep.subr.mxu0 0.0
        %5784 = vmatpush1.msra.mxu0 0.0
        %5785 = vmatprep.subr.mxu0 0.0
        %5786 = vmatpush1.msra.mxu0 0.0
        %5787 = vmatprep.subr.mxu0 0.0
        %5788 = vmatpush1.msra.mxu0 0.0
        %5789 = vmatprep.subr.mxu0 0.0
        %5790 = vmatpush1.msra.mxu0 0.0
        %5791 = vmatprep.subr.mxu0 0.0
        %5792 = vmatpush1.msra.mxu0 0.0
        %5793 = vmatprep.subr.mxu0 0.0
        %5794 = vmatpush1.msra.mxu0 0.0
        %5795 = vmatprep.subr.mxu0 0.0
        %5796 = vmatpush1.msra.mxu0 0.0
        %5797 = vmatprep.subr.mxu0 0.0
        %5798 = vmatpush1.msra.mxu0 0.0
        %5799 = vmatprep.subr.mxu0 0.0
        %5800 = vmatpush1.msra.mxu0 0.0
        %5801 = vmatprep.subr.mxu0 0.0
        %5802 = vmatpush1.msra.mxu0 0.0
        %5803 = vmatprep.subr.mxu0 0.0
        %5804 = vmatpush1.msra.mxu0 0.0
        %5805 = vmatprep.subr.mxu0 0.0
        %5806 = vmatpush1.msra.mxu0 0.0
        %5807 = vmatprep.subr.mxu0 0.0
        %5808 = vmatpush1.msra.mxu0 0.0
        %5809 = vmatprep.subr.mxu0 0.0
        %5810 = vmatpush1.msra.mxu0 0.0
        %5811 = vmatprep.subr.mxu0 0.0
        %5812 = vmatpush1.msra.mxu0 0.0
        %5813 = vmatprep.mubr.f32.mxu0 0.0
        %v5814 = vand.u32 %v4837, 4294901760
        %5815 = vmatmul.mubr.f32.gmra.mrb[0].mxu0 %v5814
        %v5816 = vpop.f32.mrb[0].mxu0
        %v5817 = vadd.f32 %v5741, %v5816
        %v5818 = vpop.f32.mrb[0].mxu0
        %v5819 = vadd.f32 %v5743, %v5818
        %5820 = vdwg.mxu0
        %v5821 = vand.u32 %v4825, 4294901760
        %5822 = vmatprep.subr.mxu0 %v5821
        %v5823 = vand.u32 %v4824, 4294901760
        %5824 = vmatpush1.msra.mxu0 %v5823
        %v5825 = vand.u32 %v4833, 4294901760
        %5826 = vmatprep.subr.mxu0 %v5825
        %v5827 = vand.u32 %v4832, 4294901760
        %5828 = vmatpush1.msra.mxu0 %v5827
        %5829 = vmatprep.subr.mxu0 0.0
        %5830 = vmatpush1.msra.mxu0 0.0
        %5831 = vmatprep.subr.mxu0 0.0
        %5832 = vmatpush1.msra.mxu0 0.0
        %5833 = vmatprep.subr.mxu0 0.0
        %5834 = vmatpush1.msra.mxu0 0.0
        %5835 = vmatprep.subr.mxu0 0.0
        %5836 = vmatpush1.msra.mxu0 0.0
        %5837 = vmatprep.subr.mxu0 0.0
        %5838 = vmatpush1.msra.mxu0 0.0
        %5839 = vmatprep.subr.mxu0 0.0
        %5840 = vmatpush1.msra.mxu0 0.0
        %5841 = vmatprep.subr.mxu0 0.0
        %5842 = vmatpush1.msra.mxu0 0.0
        %5843 = vmatprep.subr.mxu0 0.0
        %5844 = vmatpush1.msra.mxu0 0.0
        %5845 = vmatprep.subr.mxu0 0.0
        %5846 = vmatpush1.msra.mxu0 0.0
        %5847 = vmatprep.subr.mxu0 0.0
        %5848 = vmatpush1.msra.mxu0 0.0
        %5849 = vmatprep.subr.mxu0 0.0
        %5850 = vmatpush1.msra.mxu0 0.0
        %5851 = vmatprep.subr.mxu0 0.0
        %5852 = vmatpush1.msra.mxu0 0.0
        %5853 = vmatprep.subr.mxu0 0.0
        %5854 = vmatpush1.msra.mxu0 0.0
        %5855 = vmatprep.subr.mxu0 0.0
        %5856 = vmatpush1.msra.mxu0 0.0
        %5857 = vmatprep.subr.mxu0 0.0
        %5858 = vmatpush1.msra.mxu0 0.0
        %5859 = vmatprep.subr.mxu0 0.0
        %5860 = vmatpush1.msra.mxu0 0.0
        %5861 = vmatprep.subr.mxu0 0.0
        %5862 = vmatpush1.msra.mxu0 0.0
        %5863 = vmatprep.subr.mxu0 0.0
        %5864 = vmatpush1.msra.mxu0 0.0
        %5865 = vmatprep.subr.mxu0 0.0
        %5866 = vmatpush1.msra.mxu0 0.0
        %5867 = vmatprep.subr.mxu0 0.0
        %5868 = vmatpush1.msra.mxu0 0.0
        %5869 = vmatprep.subr.mxu0 0.0
        %5870 = vmatpush1.msra.mxu0 0.0
        %5871 = vmatprep.subr.mxu0 0.0
        %5872 = vmatpush1.msra.mxu0 0.0
        %5873 = vmatprep.subr.mxu0 0.0
        %5874 = vmatpush1.msra.mxu0 0.0
        %5875 = vmatprep.subr.mxu0 0.0
        %5876 = vmatpush1.msra.mxu0 0.0
        %5877 = vmatprep.subr.mxu0 0.0
        %5878 = vmatpush1.msra.mxu0 0.0
        %5879 = vmatprep.subr.mxu0 0.0
        %5880 = vmatpush1.msra.mxu0 0.0
        %5881 = vmatprep.subr.mxu0 0.0
        %5882 = vmatpush1.msra.mxu0 0.0
        %5883 = vmatprep.subr.mxu0 0.0
        %5884 = vmatpush1.msra.mxu0 0.0
        %5885 = vmatprep.subr.mxu0 0.0
        %5886 = vmatpush1.msra.mxu0 0.0
        %5887 = vmatprep.subr.mxu0 0.0
        %5888 = vmatpush1.msra.mxu0 0.0
        %5889 = vmatprep.mubr.f32.mxu0 0.0
        %v5890 = vand.u32 %v4837, 4294901760
        %v5891 = vsub.f32 %v4837, %v5890
        %v5892 = vand.u32 %v5891, 4294901760
        %v5893 = vsub.f32 %v5891, %v5892
        %v5894 = vand.u32 %v5893, 4294901760
        %5895 = vmatmul.mubr.f32.gmra.mrb[0].mxu0 %v5894
        %v5896 = vpop.f32.mrb[0].mxu0
        %v5897 = vadd.f32 0.0, %v5896
        %v5898 = vpop.f32.mrb[0].mxu0
        %v5899 = vadd.f32 0.0, %v5898
        %5900 = vdwg.mxu0
        %v5901 = vand.u32 %v4825, 4294901760
        %v5902 = vsub.f32 %v4825, %v5901
        %v5903 = vand.u32 %v5902, 4294901760
        %v5904 = vsub.f32 %v5902, %v5903
        %v5905 = vand.u32 %v5904, 4294901760
        %5906 = vmatprep.subr.mxu0 %v5905
        %v5907 = vand.u32 %v4824, 4294901760
        %v5908 = vsub.f32 %v4824, %v5907
        %v5909 = vand.u32 %v5908, 4294901760
        %v5910 = vsub.f32 %v5908, %v5909
        %v5911 = vand.u32 %v5910, 4294901760
        %5912 = vmatpush1.msra.mxu0 %v5911
        %v5913 = vand.u32 %v4833, 4294901760
        %v5914 = vsub.f32 %v4833, %v5913
        %v5915 = vand.u32 %v5914, 4294901760
        %v5916 = vsub.f32 %v5914, %v5915
        %v5917 = vand.u32 %v5916, 4294901760
        %5918 = vmatprep.subr.mxu0 %v5917
        %v5919 = vand.u32 %v4832, 4294901760
        %v5920 = vsub.f32 %v4832, %v5919
        %v5921 = vand.u32 %v5920, 4294901760
        %v5922 = vsub.f32 %v5920, %v5921
        %v5923 = vand.u32 %v5922, 4294901760
        %5924 = vmatpush1.msra.mxu0 %v5923
        %5925 = vmatprep.subr.mxu0 0.0
        %5926 = vmatpush1.msra.mxu0 0.0
        %5927 = vmatprep.subr.mxu0 0.0
        %5928 = vmatpush1.msra.mxu0 0.0
        %5929 = vmatprep.subr.mxu0 0.0
        %5930 = vmatpush1.msra.mxu0 0.0
        %5931 = vmatprep.subr.mxu0 0.0
        %5932 = vmatpush1.msra.mxu0 0.0
        %5933 = vmatprep.subr.mxu0 0.0
        %5934 = vmatpush1.msra.mxu0 0.0
        %5935 = vmatprep.subr.mxu0 0.0
        %5936 = vmatpush1.msra.mxu0 0.0
        %5937 = vmatprep.subr.mxu0 0.0
        %5938 = vmatpush1.msra.mxu0 0.0
        %5939 = vmatprep.subr.mxu0 0.0
        %5940 = vmatpush1.msra.mxu0 0.0
        %5941 = vmatprep.subr.mxu0 0.0
        %5942 = vmatpush1.msra.mxu0 0.0
        %5943 = vmatprep.subr.mxu0 0.0
        %5944 = vmatpush1.msra.mxu0 0.0
        %5945 = vmatprep.subr.mxu0 0.0
        %5946 = vmatpush1.msra.mxu0 0.0
        %5947 = vmatprep.subr.mxu0 0.0
        %5948 = vmatpush1.msra.mxu0 0.0
        %5949 = vmatprep.subr.mxu0 0.0
        %5950 = vmatpush1.msra.mxu0 0.0
        %5951 = vmatprep.subr.mxu0 0.0
        %5952 = vmatpush1.msra.mxu0 0.0
        %5953 = vmatprep.subr.mxu0 0.0
        %5954 = vmatpush1.msra.mxu0 0.0
        %5955 = vmatprep.subr.mxu0 0.0
        %5956 = vmatpush1.msra.mxu0 0.0
        %5957 = vmatprep.subr.mxu0 0.0
        %5958 = vmatpush1.msra.mxu0 0.0
        %5959 = vmatprep.subr.mxu0 0.0
        %5960 = vmatpush1.msra.mxu0 0.0
        %5961 = vmatprep.subr.mxu0 0.0
        %5962 = vmatpush1.msra.mxu0 0.0
        %5963 = vmatprep.subr.mxu0 0.0
        %5964 = vmatpush1.msra.mxu0 0.0
        %5965 = vmatprep.subr.mxu0 0.0
        %5966 = vmatpush1.msra.mxu0 0.0
        %5967 = vmatprep.subr.mxu0 0.0
        %5968 = vmatpush1.msra.mxu0 0.0
        %5969 = vmatprep.subr.mxu0 0.0
        %5970 = vmatpush1.msra.mxu0 0.0
        %5971 = vmatprep.subr.mxu0 0.0
        %5972 = vmatpush1.msra.mxu0 0.0
        %5973 = vmatprep.subr.mxu0 0.0
        %5974 = vmatpush1.msra.mxu0 0.0
        %5975 = vmatprep.subr.mxu0 0.0
        %5976 = vmatpush1.msra.mxu0 0.0
        %5977 = vmatprep.subr.mxu0 0.0
        %5978 = vmatpush1.msra.mxu0 0.0
        %5979 = vmatprep.subr.mxu0 0.0
        %5980 = vmatpush1.msra.mxu0 0.0
        %5981 = vmatprep.subr.mxu0 0.0
        %5982 = vmatpush1.msra.mxu0 0.0
        %5983 = vmatprep.subr.mxu0 0.0
        %5984 = vmatpush1.msra.mxu0 0.0
        %5985 = vmatprep.mubr.f32.mxu0 0.0
        %v5986 = vand.u32 %v4837, 4294901760
        %5987 = vmatmul.mubr.f32.gmra.mrb[0].mxu0 %v5986
        %v5988 = vpop.f32.mrb[0].mxu0
        %v5989 = vadd.f32 %v5897, %v5988
        %v5990 = vpop.f32.mrb[0].mxu0
        %v5991 = vadd.f32 %v5899, %v5990
        %5992 = vdwg.mxu0
        %v5993 = vand.u32 %v4825, 4294901760
        %v5994 = vsub.f32 %v4825, %v5993
        %5995 = vmatprep.subr.mxu0 %v5994
        %v5996 = vand.u32 %v4824, 4294901760
        %v5997 = vsub.f32 %v4824, %v5996
        %5998 = vmatpush1.msra.mxu0 %v5997
        %v5999 = vand.u32 %v4833, 4294901760
        %v6000 = vsub.f32 %v4833, %v5999
        %6001 = vmatprep.subr.mxu0 %v6000
        %v6002 = vand.u32 %v4832, 4294901760
        %v6003 = vsub.f32 %v4832, %v6002
        %6004 = vmatpush1.msra.mxu0 %v6003
        %6005 = vmatprep.subr.mxu0 0.0
        %6006 = vmatpush1.msra.mxu0 0.0
        %6007 = vmatprep.subr.mxu0 0.0
        %6008 = vmatpush1.msra.mxu0 0.0
        %6009 = vmatprep.subr.mxu0 0.0
        %6010 = vmatpush1.msra.mxu0 0.0
        %6011 = vmatprep.subr.mxu0 0.0
        %6012 = vmatpush1.msra.mxu0 0.0
        %6013 = vmatprep.subr.mxu0 0.0
        %6014 = vmatpush1.msra.mxu0 0.0
        %6015 = vmatprep.subr.mxu0 0.0
        %6016 = vmatpush1.msra.mxu0 0.0
        %6017 = vmatprep.subr.mxu0 0.0
        %6018 = vmatpush1.msra.mxu0 0.0
        %6019 = vmatprep.subr.mxu0 0.0
        %6020 = vmatpush1.msra.mxu0 0.0
        %6021 = vmatprep.subr.mxu0 0.0
        %6022 = vmatpush1.msra.mxu0 0.0
        %6023 = vmatprep.subr.mxu0 0.0
        %6024 = vmatpush1.msra.mxu0 0.0
        %6025 = vmatprep.subr.mxu0 0.0
        %6026 = vmatpush1.msra.mxu0 0.0
        %6027 = vmatprep.subr.mxu0 0.0
        %6028 = vmatpush1.msra.mxu0 0.0
        %6029 = vmatprep.subr.mxu0 0.0
        %6030 = vmatpush1.msra.mxu0 0.0
        %6031 = vmatprep.subr.mxu0 0.0
        %6032 = vmatpush1.msra.mxu0 0.0
        %6033 = vmatprep.subr.mxu0 0.0
        %6034 = vmatpush1.msra.mxu0 0.0
        %6035 = vmatprep.subr.mxu0 0.0
        %6036 = vmatpush1.msra.mxu0 0.0
        %6037 = vmatprep.subr.mxu0 0.0
        %6038 = vmatpush1.msra.mxu0 0.0
        %6039 = vmatprep.subr.mxu0 0.0
        %6040 = vmatpush1.msra.mxu0 0.0
        %6041 = vmatprep.subr.mxu0 0.0
        %6042 = vmatpush1.msra.mxu0 0.0
        %6043 = vmatprep.subr.mxu0 0.0
        %6044 = vmatpush1.msra.mxu0 0.0
        %6045 = vmatprep.subr.mxu0 0.0
        %6046 = vmatpush1.msra.mxu0 0.0
        %6047 = vmatprep.subr.mxu0 0.0
        %6048 = vmatpush1.msra.mxu0 0.0
        %6049 = vmatprep.subr.mxu0 0.0
        %6050 = vmatpush1.msra.mxu0 0.0
        %6051 = vmatprep.subr.mxu0 0.0
        %6052 = vmatpush1.msra.mxu0 0.0
        %6053 = vmatprep.subr.mxu0 0.0
        %6054 = vmatpush1.msra.mxu0 0.0
        %6055 = vmatprep.subr.mxu0 0.0
        %6056 = vmatpush1.msra.mxu0 0.0
        %6057 = vmatprep.subr.mxu0 0.0
        %6058 = vmatpush1.msra.mxu0 0.0
        %6059 = vmatprep.subr.mxu0 0.0
        %6060 = vmatpush1.msra.mxu0 0.0
        %6061 = vmatprep.subr.mxu0 0.0
        %6062 = vmatpush1.msra.mxu0 0.0
        %6063 = vmatprep.subr.mxu0 0.0
        %6064 = vmatpush1.msra.mxu0 0.0
        %6065 = vmatprep.mubr.f32.mxu0 0.0
        %v6066 = vand.u32 %v4837, 4294901760
        %v6067 = vsub.f32 %v4837, %v6066
        %6068 = vmatmul.mubr.f32.gmra.mrb[0].mxu0 %v6067
        %v6069 = vpop.f32.mrb[0].mxu0
        %v6070 = vadd.f32 %v5989, %v6069
        %v6071 = vpop.f32.mrb[0].mxu0
        %v6072 = vadd.f32 %v5991, %v6071
        %6073 = vdwg.mxu0
        %v6074 = vand.u32 %v4825, 4294901760
        %6075 = vmatprep.subr.mxu0 %v6074
        %v6076 = vand.u32 %v4824, 4294901760
        %6077 = vmatpush1.msra.mxu0 %v6076
        %v6078 = vand.u32 %v4833, 4294901760
        %6079 = vmatprep.subr.mxu0 %v6078
        %v6080 = vand.u32 %v4832, 4294901760
        %6081 = vmatpush1.msra.mxu0 %v6080
        %6082 = vmatprep.subr.mxu0 0.0
        %6083 = vmatpush1.msra.mxu0 0.0
        %6084 = vmatprep.subr.mxu0 0.0
        %6085 = vmatpush1.msra.mxu0 0.0
        %6086 = vmatprep.subr.mxu0 0.0
        %6087 = vmatpush1.msra.mxu0 0.0
        %6088 = vmatprep.subr.mxu0 0.0
        %6089 = vmatpush1.msra.mxu0 0.0
        %6090 = vmatprep.subr.mxu0 0.0
        %6091 = vmatpush1.msra.mxu0 0.0
        %6092 = vmatprep.subr.mxu0 0.0
        %6093 = vmatpush1.msra.mxu0 0.0
        %6094 = vmatprep.subr.mxu0 0.0
        %6095 = vmatpush1.msra.mxu0 0.0
        %6096 = vmatprep.subr.mxu0 0.0
        %6097 = vmatpush1.msra.mxu0 0.0
        %6098 = vmatprep.subr.mxu0 0.0
        %6099 = vmatpush1.msra.mxu0 0.0
        %6100 = vmatprep.subr.mxu0 0.0
        %6101 = vmatpush1.msra.mxu0 0.0
        %6102 = vmatprep.subr.mxu0 0.0
        %6103 = vmatpush1.msra.mxu0 0.0
        %6104 = vmatprep.subr.mxu0 0.0
        %6105 = vmatpush1.msra.mxu0 0.0
        %6106 = vmatprep.subr.mxu0 0.0
        %6107 = vmatpush1.msra.mxu0 0.0
        %6108 = vmatprep.subr.mxu0 0.0
        %6109 = vmatpush1.msra.mxu0 0.0
        %6110 = vmatprep.subr.mxu0 0.0
        %6111 = vmatpush1.msra.mxu0 0.0
        %6112 = vmatprep.subr.mxu0 0.0
        %6113 = vmatpush1.msra.mxu0 0.0
        %6114 = vmatprep.subr.mxu0 0.0
        %6115 = vmatpush1.msra.mxu0 0.0
        %6116 = vmatprep.subr.mxu0 0.0
        %6117 = vmatpush1.msra.mxu0 0.0
        %6118 = vmatprep.subr.mxu0 0.0
        %6119 = vmatpush1.msra.mxu0 0.0
        %6120 = vmatprep.subr.mxu0 0.0
        %6121 = vmatpush1.msra.mxu0 0.0
        %6122 = vmatprep.subr.mxu0 0.0
        %6123 = vmatpush1.msra.mxu0 0.0
        %6124 = vmatprep.subr.mxu0 0.0
        %6125 = vmatpush1.msra.mxu0 0.0
        %6126 = vmatprep.subr.mxu0 0.0
        %6127 = vmatpush1.msra.mxu0 0.0
        %6128 = vmatprep.subr.mxu0 0.0
        %6129 = vmatpush1.msra.mxu0 0.0
        %6130 = vmatprep.subr.mxu0 0.0
        %6131 = vmatpush1.msra.mxu0 0.0
        %6132 = vmatprep.subr.mxu0 0.0
        %6133 = vmatpush1.msra.mxu0 0.0
        %6134 = vmatprep.subr.mxu0 0.0
        %6135 = vmatpush1.msra.mxu0 0.0
        %6136 = vmatprep.subr.mxu0 0.0
        %6137 = vmatpush1.msra.mxu0 0.0
        %6138 = vmatprep.subr.mxu0 0.0
        %6139 = vmatpush1.msra.mxu0 0.0
        %6140 = vmatprep.subr.mxu0 0.0
        %6141 = vmatpush1.msra.mxu0 0.0
        %6142 = vmatprep.mubr.f32.mxu0 0.0
        %v6143 = vand.u32 %v4837, 4294901760
        %v6144 = vsub.f32 %v4837, %v6143
        %v6145 = vand.u32 %v6144, 4294901760
        %6146 = vmatmul.mubr.f32.gmra.mrb[0].mxu0 %v6145
        %v6147 = vpop.f32.mrb[0].mxu0
        %v6148 = vadd.f32 %v6070, %v6147
        %v6149 = vpop.f32.mrb[0].mxu0
        %v6150 = vadd.f32 %v6072, %v6149
        %6151 = vdwg.mxu0
        %v6152 = vand.u32 %v4825, 4294901760
        %v6153 = vsub.f32 %v4825, %v6152
        %v6154 = vand.u32 %v6153, 4294901760
        %6155 = vmatprep.subr.mxu0 %v6154
        %v6156 = vand.u32 %v4824, 4294901760
        %v6157 = vsub.f32 %v4824, %v6156
        %v6158 = vand.u32 %v6157, 4294901760
        %6159 = vmatpush1.msra.mxu0 %v6158
        %v6160 = vand.u32 %v4833, 4294901760
        %v6161 = vsub.f32 %v4833, %v6160
        %v6162 = vand.u32 %v6161, 4294901760
        %6163 = vmatprep.subr.mxu0 %v6162
        %v6164 = vand.u32 %v4832, 4294901760
        %v6165 = vsub.f32 %v4832, %v6164
        %v6166 = vand.u32 %v6165, 4294901760
        %6167 = vmatpush1.msra.mxu0 %v6166
        %6168 = vmatprep.subr.mxu0 0.0
        %6169 = vmatpush1.msra.mxu0 0.0
        %6170 = vmatprep.subr.mxu0 0.0
        %6171 = vmatpush1.msra.mxu0 0.0
        %6172 = vmatprep.subr.mxu0 0.0
        %6173 = vmatpush1.msra.mxu0 0.0
        %6174 = vmatprep.subr.mxu0 0.0
        %6175 = vmatpush1.msra.mxu0 0.0
        %6176 = vmatprep.subr.mxu0 0.0
        %6177 = vmatpush1.msra.mxu0 0.0
        %6178 = vmatprep.subr.mxu0 0.0
        %6179 = vmatpush1.msra.mxu0 0.0
        %6180 = vmatprep.subr.mxu0 0.0
        %6181 = vmatpush1.msra.mxu0 0.0
        %6182 = vmatprep.subr.mxu0 0.0
        %6183 = vmatpush1.msra.mxu0 0.0
        %6184 = vmatprep.subr.mxu0 0.0
        %6185 = vmatpush1.msra.mxu0 0.0
        %6186 = vmatprep.subr.mxu0 0.0
        %6187 = vmatpush1.msra.mxu0 0.0
        %6188 = vmatprep.subr.mxu0 0.0
        %6189 = vmatpush1.msra.mxu0 0.0
        %6190 = vmatprep.subr.mxu0 0.0
        %6191 = vmatpush1.msra.mxu0 0.0
        %6192 = vmatprep.subr.mxu0 0.0
        %6193 = vmatpush1.msra.mxu0 0.0
        %6194 = vmatprep.subr.mxu0 0.0
        %6195 = vmatpush1.msra.mxu0 0.0
        %6196 = vmatprep.subr.mxu0 0.0
        %6197 = vmatpush1.msra.mxu0 0.0
        %6198 = vmatprep.subr.mxu0 0.0
        %6199 = vmatpush1.msra.mxu0 0.0
        %6200 = vmatprep.subr.mxu0 0.0
        %6201 = vmatpush1.msra.mxu0 0.0
        %6202 = vmatprep.subr.mxu0 0.0
        %6203 = vmatpush1.msra.mxu0 0.0
        %6204 = vmatprep.subr.mxu0 0.0
        %6205 = vmatpush1.msra.mxu0 0.0
        %6206 = vmatprep.subr.mxu0 0.0
        %6207 = vmatpush1.msra.mxu0 0.0
        %6208 = vmatprep.subr.mxu0 0.0
        %6209 = vmatpush1.msra.mxu0 0.0
        %6210 = vmatprep.subr.mxu0 0.0
        %6211 = vmatpush1.msra.mxu0 0.0
        %6212 = vmatprep.subr.mxu0 0.0
        %6213 = vmatpush1.msra.mxu0 0.0
        %6214 = vmatprep.subr.mxu0 0.0
        %6215 = vmatpush1.msra.mxu0 0.0
        %6216 = vmatprep.subr.mxu0 0.0
        %6217 = vmatpush1.msra.mxu0 0.0
        %6218 = vmatprep.subr.mxu0 0.0
        %6219 = vmatpush1.msra.mxu0 0.0
        %6220 = vmatprep.subr.mxu0 0.0
        %6221 = vmatpush1.msra.mxu0 0.0
        %6222 = vmatprep.subr.mxu0 0.0
        %6223 = vmatpush1.msra.mxu0 0.0
        %6224 = vmatprep.subr.mxu0 0.0
        %6225 = vmatpush1.msra.mxu0 0.0
        %6226 = vmatprep.subr.mxu0 0.0
        %6227 = vmatpush1.msra.mxu0 0.0
        %6228 = vmatprep.mubr.f32.mxu0 0.0
        %v6229 = vand.u32 %v4837, 4294901760
        %6230 = vmatmul.mubr.f32.gmra.mrb[0].mxu0 %v6229
        %v6231 = vpop.f32.mrb[0].mxu0
        %v6232 = vadd.f32 %v6148, %v6231
        %v6233 = vpop.f32.mrb[0].mxu0
        %v6234 = vadd.f32 %v6150, %v6233
        %6235 = vdwg.mxu0
        %v6236 = vand.u32 %v4825, 4294901760
        %6237 = vmatprep.subr.mxu0 %v6236
        %v6238 = vand.u32 %v4824, 4294901760
        %6239 = vmatpush1.msra.mxu0 %v6238
        %v6240 = vand.u32 %v4833, 4294901760
        %6241 = vmatprep.subr.mxu0 %v6240
        %v6242 = vand.u32 %v4832, 4294901760
        %6243 = vmatpush1.msra.mxu0 %v6242
        %6244 = vmatprep.subr.mxu0 0.0
        %6245 = vmatpush1.msra.mxu0 0.0
        %6246 = vmatprep.subr.mxu0 0.0
        %6247 = vmatpush1.msra.mxu0 0.0
        %6248 = vmatprep.subr.mxu0 0.0
        %6249 = vmatpush1.msra.mxu0 0.0
        %6250 = vmatprep.subr.mxu0 0.0
        %6251 = vmatpush1.msra.mxu0 0.0
        %6252 = vmatprep.subr.mxu0 0.0
        %6253 = vmatpush1.msra.mxu0 0.0
        %6254 = vmatprep.subr.mxu0 0.0
        %6255 = vmatpush1.msra.mxu0 0.0
        %6256 = vmatprep.subr.mxu0 0.0
        %6257 = vmatpush1.msra.mxu0 0.0
        %6258 = vmatprep.subr.mxu0 0.0
        %6259 = vmatpush1.msra.mxu0 0.0
        %6260 = vmatprep.subr.mxu0 0.0
        %6261 = vmatpush1.msra.mxu0 0.0
        %6262 = vmatprep.subr.mxu0 0.0
        %6263 = vmatpush1.msra.mxu0 0.0
        %6264 = vmatprep.subr.mxu0 0.0
        %6265 = vmatpush1.msra.mxu0 0.0
        %6266 = vmatprep.subr.mxu0 0.0
        %6267 = vmatpush1.msra.mxu0 0.0
        %6268 = vmatprep.subr.mxu0 0.0
        %6269 = vmatpush1.msra.mxu0 0.0
        %6270 = vmatprep.subr.mxu0 0.0
        %6271 = vmatpush1.msra.mxu0 0.0
        %6272 = vmatprep.subr.mxu0 0.0
        %6273 = vmatpush1.msra.mxu0 0.0
        %6274 = vmatprep.subr.mxu0 0.0
        %6275 = vmatpush1.msra.mxu0 0.0
        %6276 = vmatprep.subr.mxu0 0.0
        %6277 = vmatpush1.msra.mxu0 0.0
        %6278 = vmatprep.subr.mxu0 0.0
        %6279 = vmatpush1.msra.mxu0 0.0
        %6280 = vmatprep.subr.mxu0 0.0
        %6281 = vmatpush1.msra.mxu0 0.0
        %6282 = vmatprep.subr.mxu0 0.0
        %6283 = vmatpush1.msra.mxu0 0.0
        %6284 = vmatprep.subr.mxu0 0.0
        %6285 = vmatpush1.msra.mxu0 0.0
        %6286 = vmatprep.subr.mxu0 0.0
        %6287 = vmatpush1.msra.mxu0 0.0
        %6288 = vmatprep.subr.mxu0 0.0
        %6289 = vmatpush1.msra.mxu0 0.0
        %6290 = vmatprep.subr.mxu0 0.0
        %6291 = vmatpush1.msra.mxu0 0.0
        %6292 = vmatprep.subr.mxu0 0.0
        %6293 = vmatpush1.msra.mxu0 0.0
        %6294 = vmatprep.subr.mxu0 0.0
        %6295 = vmatpush1.msra.mxu0 0.0
        %6296 = vmatprep.subr.mxu0 0.0
        %6297 = vmatpush1.msra.mxu0 0.0
        %6298 = vmatprep.subr.mxu0 0.0
        %6299 = vmatpush1.msra.mxu0 0.0
        %6300 = vmatprep.subr.mxu0 0.0
        %6301 = vmatpush1.msra.mxu0 0.0
        %6302 = vmatprep.subr.mxu0 0.0
        %6303 = vmatpush1.msra.mxu0 0.0
        %6304 = vmatprep.mubr.f32.mxu0 0.0
        %v6305 = vand.u32 %v4837, 4294901760
        %6306 = vmatmul.mubr.f32.gmra.mrb[0].mxu0 %v6305
        %v6307 = vpop.f32.mrb[0].mxu0
        %v6308 = vadd.f32 %v6232, %v6307
        %v6309 = vpop.f32.mrb[0].mxu0
        %v6310 = vadd.f32 %v6234, %v6309
        %6311 = vdwg.mxu0
        %v6312 = vand.u32 %v4827, 4294901760
        %6313 = vmatprep.subr.mxu0 %v6312
        %v6314 = vand.u32 %v4826, 4294901760
        %6315 = vmatpush1.msra.mxu0 %v6314
        %v6316 = vand.u32 %v4835, 4294901760
        %6317 = vmatprep.subr.mxu0 %v6316
        %v6318 = vand.u32 %v4834, 4294901760
        %6319 = vmatpush1.msra.mxu0 %v6318
        %6320 = vmatprep.subr.mxu0 0.0
        %6321 = vmatpush1.msra.mxu0 0.0
        %6322 = vmatprep.subr.mxu0 0.0
        %6323 = vmatpush1.msra.mxu0 0.0
        %6324 = vmatprep.subr.mxu0 0.0
        %6325 = vmatpush1.msra.mxu0 0.0
        %6326 = vmatprep.subr.mxu0 0.0
        %6327 = vmatpush1.msra.mxu0 0.0
        %6328 = vmatprep.subr.mxu0 0.0
        %6329 = vmatpush1.msra.mxu0 0.0
        %6330 = vmatprep.subr.mxu0 0.0
        %6331 = vmatpush1.msra.mxu0 0.0
        %6332 = vmatprep.subr.mxu0 0.0
        %6333 = vmatpush1.msra.mxu0 0.0
        %6334 = vmatprep.subr.mxu0 0.0
        %6335 = vmatpush1.msra.mxu0 0.0
        %6336 = vmatprep.subr.mxu0 0.0
        %6337 = vmatpush1.msra.mxu0 0.0
        %6338 = vmatprep.subr.mxu0 0.0
        %6339 = vmatpush1.msra.mxu0 0.0
        %6340 = vmatprep.subr.mxu0 0.0
        %6341 = vmatpush1.msra.mxu0 0.0
        %6342 = vmatprep.subr.mxu0 0.0
        %6343 = vmatpush1.msra.mxu0 0.0
        %6344 = vmatprep.subr.mxu0 0.0
        %6345 = vmatpush1.msra.mxu0 0.0
        %6346 = vmatprep.subr.mxu0 0.0
        %6347 = vmatpush1.msra.mxu0 0.0
        %6348 = vmatprep.subr.mxu0 0.0
        %6349 = vmatpush1.msra.mxu0 0.0
        %6350 = vmatprep.subr.mxu0 0.0
        %6351 = vmatpush1.msra.mxu0 0.0
        %6352 = vmatprep.subr.mxu0 0.0
        %6353 = vmatpush1.msra.mxu0 0.0
        %6354 = vmatprep.subr.mxu0 0.0
        %6355 = vmatpush1.msra.mxu0 0.0
        %6356 = vmatprep.subr.mxu0 0.0
        %6357 = vmatpush1.msra.mxu0 0.0
        %6358 = vmatprep.subr.mxu0 0.0
        %6359 = vmatpush1.msra.mxu0 0.0
        %6360 = vmatprep.subr.mxu0 0.0
        %6361 = vmatpush1.msra.mxu0 0.0
        %6362 = vmatprep.subr.mxu0 0.0
        %6363 = vmatpush1.msra.mxu0 0.0
        %6364 = vmatprep.subr.mxu0 0.0
        %6365 = vmatpush1.msra.mxu0 0.0
        %6366 = vmatprep.subr.mxu0 0.0
        %6367 = vmatpush1.msra.mxu0 0.0
        %6368 = vmatprep.subr.mxu0 0.0
        %6369 = vmatpush1.msra.mxu0 0.0
        %6370 = vmatprep.subr.mxu0 0.0
        %6371 = vmatpush1.msra.mxu0 0.0
        %6372 = vmatprep.subr.mxu0 0.0
        %6373 = vmatpush1.msra.mxu0 0.0
        %6374 = vmatprep.subr.mxu0 0.0
        %6375 = vmatpush1.msra.mxu0 0.0
        %6376 = vmatprep.subr.mxu0 0.0
        %6377 = vmatpush1.msra.mxu0 0.0
        %6378 = vmatprep.subr.mxu0 0.0
        %6379 = vmatpush1.msra.mxu0 0.0
        %6380 = vmatprep.mubr.f32.mxu0 0.0
        %v6381 = vand.u32 %v4837, 4294901760
        %v6382 = vsub.f32 %v4837, %v6381
        %v6383 = vand.u32 %v6382, 4294901760
        %v6384 = vsub.f32 %v6382, %v6383
        %v6385 = vand.u32 %v6384, 4294901760
        %6386 = vmatmul.mubr.f32.gmra.mrb[0].mxu0 %v6385
        %v6387 = vpop.f32.mrb[0].mxu0
        %v6388 = vadd.f32 0.0, %v6387
        %v6389 = vpop.f32.mrb[0].mxu0
        %v6390 = vadd.f32 0.0, %v6389
        %6391 = vdwg.mxu0
        %v6392 = vand.u32 %v4827, 4294901760
        %v6393 = vsub.f32 %v4827, %v6392
        %v6394 = vand.u32 %v6393, 4294901760
        %v6395 = vsub.f32 %v6393, %v6394
        %v6396 = vand.u32 %v6395, 4294901760
        %6397 = vmatprep.subr.mxu0 %v6396
        %v6398 = vand.u32 %v4826, 4294901760
        %v6399 = vsub.f32 %v4826, %v6398
        %v6400 = vand.u32 %v6399, 4294901760
        %v6401 = vsub.f32 %v6399, %v6400
        %v6402 = vand.u32 %v6401, 4294901760
        %6403 = vmatpush1.msra.mxu0 %v6402
        %v6404 = vand.u32 %v4835, 4294901760
        %v6405 = vsub.f32 %v4835, %v6404
        %v6406 = vand.u32 %v6405, 4294901760
        %v6407 = vsub.f32 %v6405, %v6406
        %v6408 = vand.u32 %v6407, 4294901760
        %6409 = vmatprep.subr.mxu0 %v6408
        %v6410 = vand.u32 %v4834, 4294901760
        %v6411 = vsub.f32 %v4834, %v6410
        %v6412 = vand.u32 %v6411, 4294901760
        %v6413 = vsub.f32 %v6411, %v6412
        %v6414 = vand.u32 %v6413, 4294901760
        %6415 = vmatpush1.msra.mxu0 %v6414
        %6416 = vmatprep.subr.mxu0 0.0
        %6417 = vmatpush1.msra.mxu0 0.0
        %6418 = vmatprep.subr.mxu0 0.0
        %6419 = vmatpush1.msra.mxu0 0.0
        %6420 = vmatprep.subr.mxu0 0.0
        %6421 = vmatpush1.msra.mxu0 0.0
        %6422 = vmatprep.subr.mxu0 0.0
        %6423 = vmatpush1.msra.mxu0 0.0
        %6424 = vmatprep.subr.mxu0 0.0
        %6425 = vmatpush1.msra.mxu0 0.0
        %6426 = vmatprep.subr.mxu0 0.0
        %6427 = vmatpush1.msra.mxu0 0.0
        %6428 = vmatprep.subr.mxu0 0.0
        %6429 = vmatpush1.msra.mxu0 0.0
        %6430 = vmatprep.subr.mxu0 0.0
        %6431 = vmatpush1.msra.mxu0 0.0
        %6432 = vmatprep.subr.mxu0 0.0
        %6433 = vmatpush1.msra.mxu0 0.0
        %6434 = vmatprep.subr.mxu0 0.0
        %6435 = vmatpush1.msra.mxu0 0.0
        %6436 = vmatprep.subr.mxu0 0.0
        %6437 = vmatpush1.msra.mxu0 0.0
        %6438 = vmatprep.subr.mxu0 0.0
        %6439 = vmatpush1.msra.mxu0 0.0
        %6440 = vmatprep.subr.mxu0 0.0
        %6441 = vmatpush1.msra.mxu0 0.0
        %6442 = vmatprep.subr.mxu0 0.0
        %6443 = vmatpush1.msra.mxu0 0.0
        %6444 = vmatprep.subr.mxu0 0.0
        %6445 = vmatpush1.msra.mxu0 0.0
        %6446 = vmatprep.subr.mxu0 0.0
        %6447 = vmatpush1.msra.mxu0 0.0
        %6448 = vmatprep.subr.mxu0 0.0
        %6449 = vmatpush1.msra.mxu0 0.0
        %6450 = vmatprep.subr.mxu0 0.0
        %6451 = vmatpush1.msra.mxu0 0.0
        %6452 = vmatprep.subr.mxu0 0.0
        %6453 = vmatpush1.msra.mxu0 0.0
        %6454 = vmatprep.subr.mxu0 0.0
        %6455 = vmatpush1.msra.mxu0 0.0
        %6456 = vmatprep.subr.mxu0 0.0
        %6457 = vmatpush1.msra.mxu0 0.0
        %6458 = vmatprep.subr.mxu0 0.0
        %6459 = vmatpush1.msra.mxu0 0.0
        %6460 = vmatprep.subr.mxu0 0.0
        %6461 = vmatpush1.msra.mxu0 0.0
        %6462 = vmatprep.subr.mxu0 0.0
        %6463 = vmatpush1.msra.mxu0 0.0
        %6464 = vmatprep.subr.mxu0 0.0
        %6465 = vmatpush1.msra.mxu0 0.0
        %6466 = vmatprep.subr.mxu0 0.0
        %6467 = vmatpush1.msra.mxu0 0.0
        %6468 = vmatprep.subr.mxu0 0.0
        %6469 = vmatpush1.msra.mxu0 0.0
        %6470 = vmatprep.subr.mxu0 0.0
        %6471 = vmatpush1.msra.mxu0 0.0
        %6472 = vmatprep.subr.mxu0 0.0
        %6473 = vmatpush1.msra.mxu0 0.0
        %6474 = vmatprep.subr.mxu0 0.0
        %6475 = vmatpush1.msra.mxu0 0.0
        %6476 = vmatprep.mubr.f32.mxu0 0.0
        %v6477 = vand.u32 %v4837, 4294901760
        %6478 = vmatmul.mubr.f32.gmra.mrb[0].mxu0 %v6477
        %v6479 = vpop.f32.mrb[0].mxu0
        %v6480 = vadd.f32 %v6388, %v6479
        %v6481 = vpop.f32.mrb[0].mxu0
        %v6482 = vadd.f32 %v6390, %v6481
        %6483 = vdwg.mxu0
        %v6484 = vand.u32 %v4827, 4294901760
        %v6485 = vsub.f32 %v4827, %v6484
        %6486 = vmatprep.subr.mxu0 %v6485
        %v6487 = vand.u32 %v4826, 4294901760
        %v6488 = vsub.f32 %v4826, %v6487
        %6489 = vmatpush1.msra.mxu0 %v6488
        %v6490 = vand.u32 %v4835, 4294901760
        %v6491 = vsub.f32 %v4835, %v6490
        %6492 = vmatprep.subr.mxu0 %v6491
        %v6493 = vand.u32 %v4834, 4294901760
        %v6494 = vsub.f32 %v4834, %v6493
        %6495 = vmatpush1.msra.mxu0 %v6494
        %6496 = vmatprep.subr.mxu0 0.0
        %6497 = vmatpush1.msra.mxu0 0.0
        %6498 = vmatprep.subr.mxu0 0.0
        %6499 = vmatpush1.msra.mxu0 0.0
        %6500 = vmatprep.subr.mxu0 0.0
        %6501 = vmatpush1.msra.mxu0 0.0
        %6502 = vmatprep.subr.mxu0 0.0
        %6503 = vmatpush1.msra.mxu0 0.0
        %6504 = vmatprep.subr.mxu0 0.0
        %6505 = vmatpush1.msra.mxu0 0.0
        %6506 = vmatprep.subr.mxu0 0.0
        %6507 = vmatpush1.msra.mxu0 0.0
        %6508 = vmatprep.subr.mxu0 0.0
        %6509 = vmatpush1.msra.mxu0 0.0
        %6510 = vmatprep.subr.mxu0 0.0
        %6511 = vmatpush1.msra.mxu0 0.0
        %6512 = vmatprep.subr.mxu0 0.0
        %6513 = vmatpush1.msra.mxu0 0.0
        %6514 = vmatprep.subr.mxu0 0.0
        %6515 = vmatpush1.msra.mxu0 0.0
        %6516 = vmatprep.subr.mxu0 0.0
        %6517 = vmatpush1.msra.mxu0 0.0
        %6518 = vmatprep.subr.mxu0 0.0
        %6519 = vmatpush1.msra.mxu0 0.0
        %6520 = vmatprep.subr.mxu0 0.0
        %6521 = vmatpush1.msra.mxu0 0.0
        %6522 = vmatprep.subr.mxu0 0.0
        %6523 = vmatpush1.msra.mxu0 0.0
        %6524 = vmatprep.subr.mxu0 0.0
        %6525 = vmatpush1.msra.mxu0 0.0
        %6526 = vmatprep.subr.mxu0 0.0
        %6527 = vmatpush1.msra.mxu0 0.0
        %6528 = vmatprep.subr.mxu0 0.0
        %6529 = vmatpush1.msra.mxu0 0.0
        %6530 = vmatprep.subr.mxu0 0.0
        %6531 = vmatpush1.msra.mxu0 0.0
        %6532 = vmatprep.subr.mxu0 0.0
        %6533 = vmatpush1.msra.mxu0 0.0
        %6534 = vmatprep.subr.mxu0 0.0
        %6535 = vmatpush1.msra.mxu0 0.0
        %6536 = vmatprep.subr.mxu0 0.0
        %6537 = vmatpush1.msra.mxu0 0.0
        %6538 = vmatprep.subr.mxu0 0.0
        %6539 = vmatpush1.msra.mxu0 0.0
        %6540 = vmatprep.subr.mxu0 0.0
        %6541 = vmatpush1.msra.mxu0 0.0
        %6542 = vmatprep.subr.mxu0 0.0
        %6543 = vmatpush1.msra.mxu0 0.0
        %6544 = vmatprep.subr.mxu0 0.0
        %6545 = vmatpush1.msra.mxu0 0.0
        %6546 = vmatprep.subr.mxu0 0.0
        %6547 = vmatpush1.msra.mxu0 0.0
        %6548 = vmatprep.subr.mxu0 0.0
        %6549 = vmatpush1.msra.mxu0 0.0
        %6550 = vmatprep.subr.mxu0 0.0
        %6551 = vmatpush1.msra.mxu0 0.0
        %6552 = vmatprep.subr.mxu0 0.0
        %6553 = vmatpush1.msra.mxu0 0.0
        %6554 = vmatprep.subr.mxu0 0.0
        %6555 = vmatpush1.msra.mxu0 0.0
        %6556 = vmatprep.mubr.f32.mxu0 0.0
        %v6557 = vand.u32 %v4837, 4294901760
        %v6558 = vsub.f32 %v4837, %v6557
        %6559 = vmatmul.mubr.f32.gmra.mrb[0].mxu0 %v6558
        %v6560 = vpop.f32.mrb[0].mxu0
        %v6561 = vadd.f32 %v6480, %v6560
        %v6562 = vpop.f32.mrb[0].mxu0
        %v6563 = vadd.f32 %v6482, %v6562
        %6564 = vdwg.mxu0
        %v6565 = vand.u32 %v4827, 4294901760
        %6566 = vmatprep.subr.mxu0 %v6565
        %v6567 = vand.u32 %v4826, 4294901760
        %6568 = vmatpush1.msra.mxu0 %v6567
        %v6569 = vand.u32 %v4835, 4294901760
        %6570 = vmatprep.subr.mxu0 %v6569
        %v6571 = vand.u32 %v4834, 4294901760
        %6572 = vmatpush1.msra.mxu0 %v6571
        %6573 = vmatprep.subr.mxu0 0.0
        %6574 = vmatpush1.msra.mxu0 0.0
        %6575 = vmatprep.subr.mxu0 0.0
        %6576 = vmatpush1.msra.mxu0 0.0
        %6577 = vmatprep.subr.mxu0 0.0
        %6578 = vmatpush1.msra.mxu0 0.0
        %6579 = vmatprep.subr.mxu0 0.0
        %6580 = vmatpush1.msra.mxu0 0.0
        %6581 = vmatprep.subr.mxu0 0.0
        %6582 = vmatpush1.msra.mxu0 0.0
        %6583 = vmatprep.subr.mxu0 0.0
        %6584 = vmatpush1.msra.mxu0 0.0
        %6585 = vmatprep.subr.mxu0 0.0
        %6586 = vmatpush1.msra.mxu0 0.0
        %6587 = vmatprep.subr.mxu0 0.0
        %6588 = vmatpush1.msra.mxu0 0.0
        %6589 = vmatprep.subr.mxu0 0.0
        %6590 = vmatpush1.msra.mxu0 0.0
        %6591 = vmatprep.subr.mxu0 0.0
        %6592 = vmatpush1.msra.mxu0 0.0
        %6593 = vmatprep.subr.mxu0 0.0
        %6594 = vmatpush1.msra.mxu0 0.0
        %6595 = vmatprep.subr.mxu0 0.0
        %6596 = vmatpush1.msra.mxu0 0.0
        %6597 = vmatprep.subr.mxu0 0.0
        %6598 = vmatpush1.msra.mxu0 0.0
        %6599 = vmatprep.subr.mxu0 0.0
        %6600 = vmatpush1.msra.mxu0 0.0
        %6601 = vmatprep.subr.mxu0 0.0
        %6602 = vmatpush1.msra.mxu0 0.0
        %6603 = vmatprep.subr.mxu0 0.0
        %6604 = vmatpush1.msra.mxu0 0.0
        %6605 = vmatprep.subr.mxu0 0.0
        %6606 = vmatpush1.msra.mxu0 0.0
        %6607 = vmatprep.subr.mxu0 0.0
        %6608 = vmatpush1.msra.mxu0 0.0
        %6609 = vmatprep.subr.mxu0 0.0
        %6610 = vmatpush1.msra.mxu0 0.0
        %6611 = vmatprep.subr.mxu0 0.0
        %6612 = vmatpush1.msra.mxu0 0.0
        %6613 = vmatprep.subr.mxu0 0.0
        %6614 = vmatpush1.msra.mxu0 0.0
        %6615 = vmatprep.subr.mxu0 0.0
        %6616 = vmatpush1.msra.mxu0 0.0
        %6617 = vmatprep.subr.mxu0 0.0
        %6618 = vmatpush1.msra.mxu0 0.0
        %6619 = vmatprep.subr.mxu0 0.0
        %6620 = vmatpush1.msra.mxu0 0.0
        %6621 = vmatprep.subr.mxu0 0.0
        %6622 = vmatpush1.msra.mxu0 0.0
        %6623 = vmatprep.subr.mxu0 0.0
        %6624 = vmatpush1.msra.mxu0 0.0
        %6625 = vmatprep.subr.mxu0 0.0
        %6626 = vmatpush1.msra.mxu0 0.0
        %6627 = vmatprep.subr.mxu0 0.0
        %6628 = vmatpush1.msra.mxu0 0.0
        %6629 = vmatprep.subr.mxu0 0.0
        %6630 = vmatpush1.msra.mxu0 0.0
        %6631 = vmatprep.subr.mxu0 0.0
        %6632 = vmatpush1.msra.mxu0 0.0
        %6633 = vmatprep.mubr.f32.mxu0 0.0
        %v6634 = vand.u32 %v4837, 4294901760
        %v6635 = vsub.f32 %v4837, %v6634
        %v6636 = vand.u32 %v6635, 4294901760
        %6637 = vmatmul.mubr.f32.gmra.mrb[0].mxu0 %v6636
        %v6638 = vpop.f32.mrb[0].mxu0
        %v6639 = vadd.f32 %v6561, %v6638
        %v6640 = vpop.f32.mrb[0].mxu0
        %v6641 = vadd.f32 %v6563, %v6640
        %6642 = vdwg.mxu0
        %v6643 = vand.u32 %v4827, 4294901760
        %v6644 = vsub.f32 %v4827, %v6643
        %v6645 = vand.u32 %v6644, 4294901760
        %6646 = vmatprep.subr.mxu0 %v6645
        %v6647 = vand.u32 %v4826, 4294901760
        %v6648 = vsub.f32 %v4826, %v6647
        %v6649 = vand.u32 %v6648, 4294901760
        %6650 = vmatpush1.msra.mxu0 %v6649
        %v6651 = vand.u32 %v4835, 4294901760
        %v6652 = vsub.f32 %v4835, %v6651
        %v6653 = vand.u32 %v6652, 4294901760
        %6654 = vmatprep.subr.mxu0 %v6653
        %v6655 = vand.u32 %v4834, 4294901760
        %v6656 = vsub.f32 %v4834, %v6655
        %v6657 = vand.u32 %v6656, 4294901760
        %6658 = vmatpush1.msra.mxu0 %v6657
        %6659 = vmatprep.subr.mxu0 0.0
        %6660 = vmatpush1.msra.mxu0 0.0
        %6661 = vmatprep.subr.mxu0 0.0
        %6662 = vmatpush1.msra.mxu0 0.0
        %6663 = vmatprep.subr.mxu0 0.0
        %6664 = vmatpush1.msra.mxu0 0.0
        %6665 = vmatprep.subr.mxu0 0.0
        %6666 = vmatpush1.msra.mxu0 0.0
        %6667 = vmatprep.subr.mxu0 0.0
        %6668 = vmatpush1.msra.mxu0 0.0
        %6669 = vmatprep.subr.mxu0 0.0
        %6670 = vmatpush1.msra.mxu0 0.0
        %6671 = vmatprep.subr.mxu0 0.0
        %6672 = vmatpush1.msra.mxu0 0.0
        %6673 = vmatprep.subr.mxu0 0.0
        %6674 = vmatpush1.msra.mxu0 0.0
        %6675 = vmatprep.subr.mxu0 0.0
        %6676 = vmatpush1.msra.mxu0 0.0
        %6677 = vmatprep.subr.mxu0 0.0
        %6678 = vmatpush1.msra.mxu0 0.0
        %6679 = vmatprep.subr.mxu0 0.0
        %6680 = vmatpush1.msra.mxu0 0.0
        %6681 = vmatprep.subr.mxu0 0.0
        %6682 = vmatpush1.msra.mxu0 0.0
        %6683 = vmatprep.subr.mxu0 0.0
        %6684 = vmatpush1.msra.mxu0 0.0
        %6685 = vmatprep.subr.mxu0 0.0
        %6686 = vmatpush1.msra.mxu0 0.0
        %6687 = vmatprep.subr.mxu0 0.0
        %6688 = vmatpush1.msra.mxu0 0.0
        %6689 = vmatprep.subr.mxu0 0.0
        %6690 = vmatpush1.msra.mxu0 0.0
        %6691 = vmatprep.subr.mxu0 0.0
        %6692 = vmatpush1.msra.mxu0 0.0
        %6693 = vmatprep.subr.mxu0 0.0
        %6694 = vmatpush1.msra.mxu0 0.0
        %6695 = vmatprep.subr.mxu0 0.0
        %6696 = vmatpush1.msra.mxu0 0.0
        %6697 = vmatprep.subr.mxu0 0.0
        %6698 = vmatpush1.msra.mxu0 0.0
        %6699 = vmatprep.subr.mxu0 0.0
        %6700 = vmatpush1.msra.mxu0 0.0
        %6701 = vmatprep.subr.mxu0 0.0
        %6702 = vmatpush1.msra.mxu0 0.0
        %6703 = vmatprep.subr.mxu0 0.0
        %6704 = vmatpush1.msra.mxu0 0.0
        %6705 = vmatprep.subr.mxu0 0.0
        %6706 = vmatpush1.msra.mxu0 0.0
        %6707 = vmatprep.subr.mxu0 0.0
        %6708 = vmatpush1.msra.mxu0 0.0
        %6709 = vmatprep.subr.mxu0 0.0
        %6710 = vmatpush1.msra.mxu0 0.0
        %6711 = vmatprep.subr.mxu0 0.0
        %6712 = vmatpush1.msra.mxu0 0.0
        %6713 = vmatprep.subr.mxu0 0.0
        %6714 = vmatpush1.msra.mxu0 0.0
        %6715 = vmatprep.subr.mxu0 0.0
        %6716 = vmatpush1.msra.mxu0 0.0
        %6717 = vmatprep.subr.mxu0 0.0
        %6718 = vmatpush1.msra.mxu0 0.0
        %6719 = vmatprep.mubr.f32.mxu0 0.0
        %v6720 = vand.u32 %v4837, 4294901760
        %6721 = vmatmul.mubr.f32.gmra.mrb[0].mxu0 %v6720
        %v6722 = vpop.f32.mrb[0].mxu0
        %v6723 = vadd.f32 %v6639, %v6722
        %v6724 = vpop.f32.mrb[0].mxu0
        %v6725 = vadd.f32 %v6641, %v6724
        %6726 = vdwg.mxu0
        %v6727 = vand.u32 %v4827, 4294901760
        %6728 = vmatprep.subr.mxu0 %v6727
        %v6729 = vand.u32 %v4826, 4294901760
        %6730 = vmatpush1.msra.mxu0 %v6729
        %v6731 = vand.u32 %v4835, 4294901760
        %6732 = vmatprep.subr.mxu0 %v6731
        %v6733 = vand.u32 %v4834, 4294901760
        %6734 = vmatpush1.msra.mxu0 %v6733
        %6735 = vmatprep.subr.mxu0 0.0
        %6736 = vmatpush1.msra.mxu0 0.0
        %6737 = vmatprep.subr.mxu0 0.0
        %6738 = vmatpush1.msra.mxu0 0.0
        %6739 = vmatprep.subr.mxu0 0.0
        %6740 = vmatpush1.msra.mxu0 0.0
        %6741 = vmatprep.subr.mxu0 0.0
        %6742 = vmatpush1.msra.mxu0 0.0
        %6743 = vmatprep.subr.mxu0 0.0
        %6744 = vmatpush1.msra.mxu0 0.0
        %6745 = vmatprep.subr.mxu0 0.0
        %6746 = vmatpush1.msra.mxu0 0.0
        %6747 = vmatprep.subr.mxu0 0.0
        %6748 = vmatpush1.msra.mxu0 0.0
        %6749 = vmatprep.subr.mxu0 0.0
        %6750 = vmatpush1.msra.mxu0 0.0
        %6751 = vmatprep.subr.mxu0 0.0
        %6752 = vmatpush1.msra.mxu0 0.0
        %6753 = vmatprep.subr.mxu0 0.0
        %6754 = vmatpush1.msra.mxu0 0.0
        %6755 = vmatprep.subr.mxu0 0.0
        %6756 = vmatpush1.msra.mxu0 0.0
        %6757 = vmatprep.subr.mxu0 0.0
        %6758 = vmatpush1.msra.mxu0 0.0
        %6759 = vmatprep.subr.mxu0 0.0
        %6760 = vmatpush1.msra.mxu0 0.0
        %6761 = vmatprep.subr.mxu0 0.0
        %6762 = vmatpush1.msra.mxu0 0.0
        %6763 = vmatprep.subr.mxu0 0.0
        %6764 = vmatpush1.msra.mxu0 0.0
        %6765 = vmatprep.subr.mxu0 0.0
        %6766 = vmatpush1.msra.mxu0 0.0
        %6767 = vmatprep.subr.mxu0 0.0
        %6768 = vmatpush1.msra.mxu0 0.0
        %6769 = vmatprep.subr.mxu0 0.0
        %6770 = vmatpush1.msra.mxu0 0.0
        %6771 = vmatprep.subr.mxu0 0.0
        %6772 = vmatpush1.msra.mxu0 0.0
        %6773 = vmatprep.subr.mxu0 0.0
        %6774 = vmatpush1.msra.mxu0 0.0
        %6775 = vmatprep.subr.mxu0 0.0
        %6776 = vmatpush1.msra.mxu0 0.0
        %6777 = vmatprep.subr.mxu0 0.0
        %6778 = vmatpush1.msra.mxu0 0.0
        %6779 = vmatprep.subr.mxu0 0.0
        %6780 = vmatpush1.msra.mxu0 0.0
        %6781 = vmatprep.subr.mxu0 0.0
        %6782 = vmatpush1.msra.mxu0 0.0
        %6783 = vmatprep.subr.mxu0 0.0
        %6784 = vmatpush1.msra.mxu0 0.0
        %6785 = vmatprep.subr.mxu0 0.0
        %6786 = vmatpush1.msra.mxu0 0.0
        %6787 = vmatprep.subr.mxu0 0.0
        %6788 = vmatpush1.msra.mxu0 0.0
        %6789 = vmatprep.subr.mxu0 0.0
        %6790 = vmatpush1.msra.mxu0 0.0
        %6791 = vmatprep.subr.mxu0 0.0
        %6792 = vmatpush1.msra.mxu0 0.0
        %6793 = vmatprep.subr.mxu0 0.0
        %6794 = vmatpush1.msra.mxu0 0.0
        %6795 = vmatprep.mubr.f32.mxu0 0.0
        %v6796 = vand.u32 %v4837, 4294901760
        %6797 = vmatmul.mubr.f32.gmra.mrb[0].mxu0 %v6796
        %v6798 = vpop.f32.mrb[0].mxu0
        %v6799 = vadd.f32 %v6723, %v6798
        %v6800 = vpop.f32.mrb[0].mxu0
        %v6801 = vadd.f32 %v6725, %v6800
        %6802 = vdwg.mxu0
        %v6803 = vld [vmem:[%s7] sm:$0xff]
        %v6805 = vlaneseq
        %v6806 = vshrl.u32 %v6805, 7
        %v6807 = vsub.s32 0, %v6806
        %v6808 = vrot.slane %v6803, %v6807
        %v6809 = vlaneseq
        %v6810 = vshrl.u32 %v6809, 7
        %v6811 = vsub.s32 1, %v6810
        %v6812 = vrot.slane %v6803, %v6811
        %v6813 = vlaneseq
        %v6814 = vshrl.u32 %v6813, 7
        %v6815 = vsub.s32 2, %v6814
        %v6816 = vrot.slane %v6803, %v6815
        %v6817 = vlaneseq
        %v6818 = vshrl.u32 %v6817, 7
        %v6819 = vsub.s32 3, %v6818
        %v6820 = vrot.slane %v6803, %v6819
        %v6821 = vlaneseq
        %v6822 = vshrl.u32 %v6821, 7
        %v6823 = vsub.s32 4, %v6822
        %v6824 = vrot.slane %v6803, %v6823
        %v6825 = vlaneseq
        %v6826 = vshrl.u32 %v6825, 7
        %v6827 = vsub.s32 5, %v6826
        %v6828 = vrot.slane %v6803, %v6827
        %v6829 = vlaneseq
        %v6830 = vshrl.u32 %v6829, 7
        %v6831 = vsub.s32 6, %v6830
        %v6832 = vrot.slane %v6803, %v6831
        %v6833 = vlaneseq
        %v6834 = vshrl.u32 %v6833, 7
        %v6835 = vsub.s32 7, %v6834
        %v6836 = vrot.slane %v6803, %v6835
        %v6845 = vsub.f32 %v2875, %v6808
        %v6846 = vsub.f32 %v2877, %v6812
        %v6847 = vsub.f32 %v3522, %v6816
        %v6848 = vsub.f32 %v3524, %v6820
        %v6849 = vsub.f32 %v4169, %v6824
        %v6850 = vsub.f32 %v4171, %v6828
        %v6851 = vsub.f32 %v4816, %v6832
        %v6852 = vsub.f32 %v4818, %v6836
        %v6853 = vmul.f32 %v5326, %v6845
        %v6854 = vmul.f32 %v5328, %v6846
        %v6855 = vmul.f32 %v5817, %v6847
        %v6856 = vmul.f32 %v5819, %v6848
        %v6857 = vmul.f32 %v6308, %v6849
        %v6858 = vmul.f32 %v6310, %v6850
        %v6859 = vmul.f32 %v6799, %v6851
        %v6860 = vmul.f32 %v6801, %v6852
        %6861 = vst [vmem:[%s350] sm:$0xff] %v6853
        %6862 = vst [vmem:[%s350 + $0x8] sm:$0xff] %v6854
        %6863 = vst [vmem:[%s350 + $0x10] sm:$0xff] %v6855
        %6864 = vst [vmem:[%s350 + $0x18] sm:$0xff] %v6856
        %6865 = vst [vmem:[%s350 + $0x20] sm:$0xff] %v6857
        %6866 = vst [vmem:[%s350 + $0x28] sm:$0xff] %v6858
        %6867 = vst [vmem:[%s350 + $0x30] sm:$0xff] %v6859
        %6868 = vst [vmem:[%s350 + $0x38] sm:$0xff] %v6860
        %s6869 = sand.u32 %s247, 1
        %s6870 = scalar_lea.sflag [#allocation3], %s6869
        %s6871 = sand.u32 %s247, 1
        %s6872 = smul.addr %s6871, 64
        %s6873 = scalar_lea.vmem [#allocation2], %s6872
        // Predicated region
        $region61: #{writer_model_fc.1} parent=59 // pred_check
          %p6874 = pneg %p257
        $region62: #{writer_model_fc.1} parent=59 // pred_check_branch
          %6876 = sbr.rel (%p6874) target = $region64
        $region63: #{writer_model_fc.1} parent=59 // pred_region
          %s6878 = ssub.s32 1024, 1024
          %6879 = vsyncadd %s6870, %s6878
          %s6880 = smul.addr %s24, 8
          %s6881 = smul.addr %s6880, 128
          %s6882 = scalar_lea.hbm %s10, %s6881
          %s6884 = sshll.u32 %s6873, 4
          %s6885 = int_to_ptr.vmem [resolvable:$true] %s6884
          %6887 = dma.vmem_to_hbm [thread:$0]  %s6885, 1024, %s6882, %s6870
        $region64: #{writer_model_fc.1} parent=59 // pred_fallthru
          _
      $region60: #{writer_model_fc.1} parent=5 // pred_fallthru
        _
      %p6888 = scmp.le.s32.totalorder 2, %s19
      // Predicated region
      $region65: #{writer_model_fc.1} parent=5 // pred_check
        %p6889 = pneg %p6888
      $region66: #{writer_model_fc.1} parent=5 // pred_check_branch
        %6891 = sbr.rel (%p6889) target = $region68
      $region67: #{writer_model_fc.1} parent=5 // pred_region
        %s6892 = ssub.s32 %s19, 2
        // Predicated region
        $region69: #{writer_model_fc.1} parent=67 // pred_check
          %p6893 = pneg %p263
        $region70: #{writer_model_fc.1} parent=67 // pred_check_branch
          %6895 = sbr.rel (%p6893) target = $region72
        $region71: #{writer_model_fc.1} parent=67 // pred_region
          %s6896 = sand.u32 %s248, 1
          %s6897 = scalar_lea.sflag [#allocation3], %s6896
          %s6898 = sand.u32 %s248, 1
          %s6899 = smul.addr %s6898, 64
          %s6900 = scalar_lea.vmem [#allocation2], %s6899
          %6901 = dma.done %s6897, 1024
        $region72: #{writer_model_fc.1} parent=67 // pred_fallthru
          _
      $region68: #{writer_model_fc.1} parent=5 // pred_fallthru
        _
    $region6: #{writer_model_fc.1} parent=1 // loop_footer
      %s23 = sadd.s32 1, %s19
    $region7: #{writer_model_fc.1} parent=1 // loop_footer_branch
      %18 = sbr.rel target = $region3
    $region8: #{writer_model_fc.1} parent=1 // loop_exit
      _
    %6902 = vsyncpa [#allocation3], 1
    %s6903 = scalar_lea.sflag [#allocation3], 1
    %6904 = vsyncpa %s6903, 1

</llo_original>
